<compile_context>
chip_gen: v7x
topology: tpu7x:2x2x1
jax: 0.10.0
libtpu: 0.0.40
codegen_flags: <defaults>
</compile_context>

<pallas_src>
import functools

import numpy as np
import jax
import jax.numpy as jnp
from jax.experimental import pallas as pl
from jax.experimental.pallas import tpu as pltpu

# ----------------------------- small config ---------------------------------
N_RES_BLOCKS = 2            # n_ResidualBlock (module default 8; kept small)
N_LEVELS = 2                # n_levels        (module default 4; kept small)
INPUT_CH = 1
Z_DIM = 32                  # z_dim           (module default 128; kept small)
USE_SKIPS = True
MAX_FILTERS = 2 ** (N_LEVELS + 3)

BATCH = 2
H = W = 16

BN_EPS = 1e-5
LEAK = 0.2
MXU_DTYPE = jnp.bfloat16    # MXU input dtype (accumulation stays f32)
LANE = 128


def _round_up(x, m):
    return (x + m - 1) // m * m


def _flat_width(h, w):
    """Per-image padded-flat width (Hp*Wp), rounded up to a lane multiple."""
    return _round_up((h + 2) * (w + 2), LANE)


# --------------------------- in-kernel building blocks -----------------------
def _leaky(y):
    return jnp.maximum(y, LEAK * y)


def _shifted(x, off):
    """y[:, m] = x[:, m + off] with wrap-around.

    Wrapped columns only land on masked border / tail-padding columns because
    |off| <= Wp + 1 and the per-image layout has >= Wp + 1 masked columns at
    both ends, so they never contaminate an interior output column.
    """
    if off == 0:
        return x
    return jnp.concatenate([x[:, off:], x[:, :off]], axis=1)


def _conv3x3(a, w, shift, mask, wp, act=True, apply_mask=True):
    """3x3 stride-1 pad-1 conv on a padded-flat (C, M) f32 activation.

    a     : (Cin, M) f32, zeros outside the interior pixels.
    w     : (Cout, 9*Cin) bf16, BN scale folded in, column order (dy, dx, ci).
    shift : (Cout, 1) f32 folded BN shift (conv bias folded in).
    mask  : (1, M) f32, 1 at interior pixels.
    """
    ab = a.astype(MXU_DTYPE)                                    # one cast per conv
    taps = [_shifted(ab, dy * wp + dx) for dy in (-1, 0, 1) for dx in (-1, 0, 1)]
    patch = jnp.concatenate(taps, axis=0)                       # (9*Cin, M) bf16
    y = jnp.dot(w, patch, preferred_element_type=jnp.float32) + shift
    if act:
        y = _leaky(y)
    if apply_mask:
        y = y * mask
    return y


def _strided_conv(a, gather, m_out, w, shift, mask_out):
    """kernel==stride conv fused with re-embedding into the target flat layout.

    a      : (Cin, M_in)  f32 trunk activation (zeros outside interior).
    gather : (M_in, taps*M_out) bf16 0/1 column-gather matrix (compile-time).
    w      : (Cout, taps*Cin) bf16 (BN scale folded), shift: (Cout, 1) f32.
    """
    taps = gather.shape[1] // m_out
    cols = jnp.dot(a.astype(MXU_DTYPE), gather,
                   preferred_element_type=jnp.float32)          # (Cin, taps*M_out)
    k = jnp.concatenate(
        [cols[:, t * m_out:(t + 1) * m_out] for t in range(taps)], axis=0
    ).astype(MXU_DTYPE)                                         # (taps*Cin, M_out)
    y = jnp.dot(w, k, preferred_element_type=jnp.float32) + shift
    return _leaky(y) * mask_out


# --------------------------------- the fused kernel --------------------------
def _encoder_kernel(n_levels, n_res, use_skips, wps, mis, *refs):
    """Whole ResNetEncoder forward for one image (grid program = one image).

    Ref order (matches the wrapper):
      x, mask[0..L], g_down[0..L-1], (g_skip[0..L-1] if skips),
      w_in, s_in,
      per level l: w_res_l, s_res_l, w_down_l, s_down_l, (w_skip_l, s_skip_l),
      w_out, s_out, out
    """
    refs = list(refs)
    out_ref = refs.pop()
    it = iter(refs)

    x_ref = next(it)
    masks = [next(it)[...] for _ in range(n_levels + 1)]
    g_down = [next(it)[...] for _ in range(n_levels)]
    g_skip = [next(it)[...] for _ in range(n_levels)] if use_skips else []
    w_in, s_in = next(it)[...], next(it)[...]

    # input conv (Cin = INPUT_CH) -> level-0 trunk
    a = _conv3x3(x_ref[...], w_in, s_in, masks[0], wps[0])

    skip_sum = None
    for lvl in range(n_levels):
        w_res, s_res = next(it)[...], next(it)[...]
        for r in range(n_res):
            mid = _conv3x3(a, w_res[2 * r], s_res[2 * r], masks[lvl], wps[lvl])
            a = a + _conv3x3(mid, w_res[2 * r + 1], s_res[2 * r + 1],
                             masks[lvl], wps[lvl])
        w_d, s_d = next(it)[...], next(it)[...]
        if use_skips:
            w_sk, s_sk = next(it)[...], next(it)[...]
            sk = _strided_conv(a, g_skip[lvl], mis[n_levels], w_sk, s_sk,
                               masks[n_levels])
            skip_sum = sk if skip_sum is None else skip_sum + sk
        a = _strided_conv(a, g_down[lvl], mis[lvl + 1], w_d, s_d, masks[lvl + 1])

    if skip_sum is not None:
        a = a + skip_sum

    w_out, s_out = next(it)[...], next(it)[...]
    # output conv: no BN / no activation; border garbage is cropped host-side.
    y = _conv3x3(a, w_out, s_out, masks[n_levels], wps[n_levels],
                 act=False, apply_mask=False)
    out_ref[...] = y.astype(out_ref.dtype)


# ------------------------- host-side compile-time constants ------------------
def _mask_np(h, w):
    hp, wp = h + 2, w + 2
    m = np.zeros((1, _flat_width(h, w)), np.float32)
    for hh in range(1, hp - 1):
        m[0, hh * wp + 1:hh * wp + 1 + w] = 1.0
    return m


def _gather_np(h_in, w_in, s, h_out, w_out):
    """0/1 matrix (M_in, s*s*M_out): column block t=(dy*s+dx) gathers input
    pixel (ho*s+dy, wo*s+dx) into the interior output column of (ho, wo)."""
    wp_in, wp_out = w_in + 2, w_out + 2
    m_in, m_out = _flat_width(h_in, w_in), _flat_width(h_out, w_out)
    g = np.zeros((m_in, s * s * m_out), np.float32)
    for dy in range(s):
        for dx in range(s):
            t = dy * s + dx
            for ho in range(h_out):
                for wo in range(w_out):
                    src = (ho * s + dy + 1) * wp_in + (wo * s + dx + 1)
                    dst = (ho + 1) * wp_out + (wo + 1)
                    g[src, t * m_out + dst] = 1.0
    return g


# ------------------------- host-side layout / param prep ---------------------
def _prep_conv(p):
    """(Cout, kh*kw*Cin) bf16 weight with BN scale folded (in f32, one cast),
    plus folded shift (conv bias folded into BN shift)."""
    w, b, scale, shift = p["w"], p["b"], p["scale"], p["shift"]
    cout, cin, kh, kw = w.shape
    wmat = jnp.transpose(w, (0, 2, 3, 1)).reshape(cout, kh * kw * cin)
    wmat = wmat * scale[:, None]
    t = (b * scale + shift).reshape(cout, 1).astype(jnp.float32)
    return wmat.astype(MXU_DTYPE), t


def _prep_res_level(blocks):
    """Stack all residual-block conv weights/shifts of one level."""
    ws, ts = [], []
    for blk1, blk2 in blocks:
        for p in (blk1, blk2):
            wm, t = _prep_conv(p)
            ws.append(wm)
            ts.append(t)
    return jnp.stack(ws), jnp.stack(ts)


def _to_padflat(x, mi):
    """(N, C, H, W) -> (C, N*mi) padded-flat per-image blocks (zero borders)."""
    n, c, h, w = x.shape
    hp, wp = h + 2, w + 2
    xp = jnp.pad(x, ((0, 0), (0, 0), (1, 1), (1, 1)))
    xf = jnp.transpose(xp, (1, 0, 2, 3)).reshape(c, n, hp * wp)
    xf = jnp.pad(xf, ((0, 0), (0, 0), (0, mi - hp * wp)))
    return xf.reshape(c, n * mi)


def _from_padflat(y, n, h, w, mi):
    """(C, N*mi) padded-flat -> (N, C, H, W), cropping borders / tail padding."""
    c = y.shape[0]
    hp, wp = h + 2, w + 2
    y = y.reshape(c, n, mi)[:, :, :hp * wp].reshape(c, n, hp, wp)
    y = y[:, :, 1:1 + h, 1:1 + w]
    return jnp.transpose(y, (1, 0, 2, 3))


# ------------------------------ Pallas forward --------------------------------
def encoder_forward_pallas(x_nchw, params):
    n, _, h0, w0 = x_nchw.shape
    h_lv = [h0 // 2 ** l for l in range(N_LEVELS + 1)]
    w_lv = [w0 // 2 ** l for l in range(N_LEVELS + 1)]
    wps = tuple(w + 2 for w in w_lv)
    mis = tuple(_flat_width(h_lv[l], w_lv[l]) for l in range(N_LEVELS + 1))

    inputs, in_specs = [], []

    def add_const(arr):
        """Operand shared by all grid programs (weights / masks / gathers)."""
        inputs.append(arr)
        nd = arr.ndim
        in_specs.append(pl.BlockSpec(tuple(arr.shape),
                                     lambda b, _nd=nd: (0,) * _nd))

    # --- per-image input activation ---
    x_flat = _to_padflat(x_nchw, mis[0])                       # (Cin, n*mis[0]) f32
    inputs.append(x_flat)
    in_specs.append(pl.BlockSpec((INPUT_CH, mis[0]), lambda b: (0, b)))

    # --- compile-time constants (numpy -> baked into the executable) ---
    for l in range(N_LEVELS + 1):
        add_const(jnp.asarray(_mask_np(h_lv[l], w_lv[l])))
    for l in range(N_LEVELS):
        add_const(jnp.asarray(
            _gather_np(h_lv[l], w_lv[l], 2, h_lv[l + 1], w_lv[l + 1]),
            dtype=MXU_DTYPE))
    if USE_SKIPS:
        for l in range(N_LEVELS):
            ks = 2 ** (N_LEVELS - l)
            add_const(jnp.asarray(
                _gather_np(h_lv[l], w_lv[l], ks, h_lv[-1], w_lv[-1]),
                dtype=MXU_DTYPE))

    # --- weights (BN folded; res-block weights stacked per level) ---
    w_in, s_in = _prep_conv(params["input_conv"])
    add_const(w_in)
    add_const(s_in)
    for l in range(N_LEVELS):
        w_r, s_r = _prep_res_level(params["res"][l])
        add_const(w_r)
        add_const(s_r)
        w_d, s_d = _prep_conv(params["down"][l])
        add_const(w_d)
        add_const(s_d)
        if USE_SKIPS:
            w_s, s_s = _prep_conv(params["skip"][l])
            add_const(w_s)
            add_const(s_s)
    w_o, s_o = _prep_conv(params["out"])
    add_const(w_o)
    add_const(s_o)

    kernel = functools.partial(_encoder_kernel, N_LEVELS, N_RES_BLOCKS,
                               USE_SKIPS, wps, mis)
    # TODO(synk): for the module defaults (n_levels=4, n_res=8, larger H*W) add
    # an M-tiled grid and re-check VMEM headroom against v7x's 64 MiB.
    y = pl.pallas_call(
        kernel,
        grid=(n,),
        in_specs=in_specs,
        out_specs=pl.BlockSpec((Z_DIM, mis[-1]), lambda b: (0, b)),
        out_shape=jax.ShapeDtypeStruct((Z_DIM, n * mis[-1]), jnp.float32),
        compiler_params=pltpu.CompilerParams(
            dimension_semantics=("parallel",),
            vmem_limit_bytes=32 * 1024 * 1024),
    )(*inputs)
    return _from_padflat(y, n, h_lv[-1], w_lv[-1], mis[-1])


# --------------------------- pure-JAX reference ------------------------------
def conv_ref(x, p, stride, pad, act=True, residual=None):
    w_hwio = jnp.transpose(p["w"], (2, 3, 1, 0))
    y = jax.lax.conv_general_dilated(
        x, w_hwio, (stride, stride), [(pad, pad), (pad, pad)],
        dimension_numbers=("NHWC", "HWIO", "NHWC"))
    y = y + p["b"]
    y = y * p["scale"] + p["shift"]
    if act:
        y = jnp.where(y > 0, y, LEAK * y)
    if residual is not None:
        y = y + residual
    return y


def encoder_forward_ref(x_nchw, params):
    x = jnp.transpose(x_nchw, (0, 2, 3, 1))            # NCHW -> NHWC
    x = conv_ref(x, params["input_conv"], 1, 1, act=True)
    skips = []
    for i in range(N_LEVELS):
        for blk1, blk2 in params["res"][i]:
            h = conv_ref(x, blk1, 1, 1, act=True)
            x = conv_ref(h, blk2, 1, 1, act=True, residual=x)
        if USE_SKIPS:
            ks = 2 ** (N_LEVELS - i)
            skips.append(conv_ref(x, params["skip"][i], ks, 0, act=True))
        x = conv_ref(x, params["down"][i], 2, 0, act=True)
    if USE_SKIPS:
        for s in skips:
            x = x + s
    x = conv_ref(x, params["out"], 1, 1, act=False)     # output_conv: no BN/act
    return jnp.transpose(x, (0, 3, 1, 2))               # NHWC -> NCHW


# --------------------------- deterministic params -----------------------------
def make_conv_params(key, cin, cout, k, with_bn=True):
    k0, k1, k2, k3, k4, k5 = jax.random.split(key, 6)
    fan_in = cin * k * k
    w = jax.random.normal(k0, (cout, cin, k, k), jnp.float32) / jnp.sqrt(fan_in)
    b = 0.1 * jax.random.normal(k1, (cout,), jnp.float32)
    if with_bn:
        gamma = jax.random.uniform(k2, (cout,), jnp.float32, 0.5, 1.5)
        beta = 0.1 * jax.random.normal(k3, (cout,), jnp.float32)
        rmean = 0.1 * jax.random.normal(k4, (cout,), jnp.float32)
        rvar = jax.random.uniform(k5, (cout,), jnp.float32, 0.5, 1.5)
        scale = gamma / jnp.sqrt(rvar + BN_EPS)
        shift = beta - rmean * scale
    else:
        scale = jnp.ones((cout,), jnp.float32)
        shift = jnp.zeros((cout,), jnp.float32)
    return {"w": w, "b": b, "scale": scale, "shift": shift}


def build_params(key):
    keys = iter(jax.random.split(key, 256))
    params = {
        "input_conv": make_conv_params(next(keys), INPUT_CH, 8, 3, True),
        "res": [], "down": [], "skip": [],
    }
    for i in range(N_LEVELS):
        nf1, nf2 = 2 ** (i + 3), 2 ** (i + 4)
        ks = 2 ** (N_LEVELS - i)
        blocks = []
        for _ in range(N_RES_BLOCKS):
            blocks.append((make_conv_params(next(keys), nf1, nf1, 3, True),
                           make_conv_params(next(keys), nf1, nf1, 3, True)))
        params["res"].append(blocks)
        params["down"].append(make_conv_params(next(keys), nf1, nf2, 2, True))
        if USE_SKIPS:
            params["skip"].append(
                make_conv_params(next(keys), nf1, MAX_FILTERS, ks, True))
    params["out"] = make_conv_params(next(keys), MAX_FILTERS, Z_DIM, 3, False)
    return params


# ----------------------------------- main -------------------------------------
if __name__ == "__main__":
    x = jax.random.normal(jax.random.PRNGKey(0), (BATCH, INPUT_CH, H, W),
                          jnp.float32)
    params = build_params(jax.random.PRNGKey(42))

    fwd = jax.jit(lambda xx: encoder_forward_pallas(xx, params))
    out = jax.block_until_ready(fwd(x))

    expected_shape = (BATCH, Z_DIM, H // 2 ** N_LEVELS, W // 2 ** N_LEVELS)
    assert out.shape == expected_shape, (out.shape, expected_shape)

    ref_fn = jax.jit(lambda xx: encoder_forward_ref(xx, params))
    ref = jax.block_until_ready(ref_fn(x))
    err = float(jnp.max(jnp.abs(out - ref)))
    scale = float(jnp.max(jnp.abs(ref))) + 1e-6
    assert err <= 0.05 * scale + 1e-3, f"mismatch: max abs err {err}, scale {scale}"

    print("KERNEL_OK")
</pallas_src>

<mosaic_0001>
module attributes {stable_mosaic.version = 11 : i64} {
  func.func @_encoder_kernel(%arg0: i32, %arg1: memref<1x384xf32, #tpu.memory_space<vmem>>, %arg2: memref<1x384xf32, #tpu.memory_space<vmem>>, %arg3: memref<1x128xf32, #tpu.memory_space<vmem>>, %arg4: memref<1x128xf32, #tpu.memory_space<vmem>>, %arg5: memref<384x512xbf16, #tpu.memory_space<vmem>>, %arg6: memref<128x512xbf16, #tpu.memory_space<vmem>>, %arg7: memref<384x2048xbf16, #tpu.memory_space<vmem>>, %arg8: memref<128x512xbf16, #tpu.memory_space<vmem>>, %arg9: memref<8x9xbf16, #tpu.memory_space<vmem>>, %arg10: memref<8x1xf32, #tpu.memory_space<vmem>>, %arg11: memref<4x8x72xbf16, #tpu.memory_space<vmem>>, %arg12: memref<4x8x1xf32, #tpu.memory_space<vmem>>, %arg13: memref<16x32xbf16, #tpu.memory_space<vmem>>, %arg14: memref<16x1xf32, #tpu.memory_space<vmem>>, %arg15: memref<32x128xbf16, #tpu.memory_space<vmem>>, %arg16: memref<32x1xf32, #tpu.memory_space<vmem>>, %arg17: memref<4x16x144xbf16, #tpu.memory_space<vmem>>, %arg18: memref<4x16x1xf32, #tpu.memory_space<vmem>>, %arg19: memref<32x64xbf16, #tpu.memory_space<vmem>>, %arg20: memref<32x1xf32, #tpu.memory_space<vmem>>, %arg21: memref<32x64xbf16, #tpu.memory_space<vmem>>, %arg22: memref<32x1xf32, #tpu.memory_space<vmem>>, %arg23: memref<32x288xbf16, #tpu.memory_space<vmem>>, %arg24: memref<32x1xf32, #tpu.memory_space<vmem>>, %arg25: memref<32x128xf32, #tpu.memory_space<vmem>>) attributes {dimension_semantics = [#tpu.dimension_semantics<parallel>], iteration_bounds = array<i64: 2>, scalar_prefetch = 0 : i64, scratch_operands = 0 : i64, tpu.core_type = #tpu.core_type<tc>, window_params = [{transform_indices = @transform_0, window_bounds = array<i64: 1, 384>}, {pipeline_mode = #tpu.pipeline_mode<synchronous>, transform_indices = @transform_1, window_bounds = array<i64: 1, 384>}, {pipeline_mode = #tpu.pipeline_mode<synchronous>, transform_indices = @transform_2, window_bounds = array<i64: 1, 128>}, {pipeline_mode = #tpu.pipeline_mode<synchronous>, transform_indices = @transform_3, window_bounds = array<i64: 1, 128>}, {pipeline_mode = #tpu.pipeline_mode<synchronous>, transform_indices = @transform_4, window_bounds = array<i64: 384, 512>}, {pipeline_mode = #tpu.pipeline_mode<synchronous>, transform_indices = @transform_5, window_bounds = array<i64: 128, 512>}, {pipeline_mode = #tpu.pipeline_mode<synchronous>, transform_indices = @transform_6, window_bounds = array<i64: 384, 2048>}, {pipeline_mode = #tpu.pipeline_mode<synchronous>, transform_indices = @transform_7, window_bounds = array<i64: 128, 512>}, {pipeline_mode = #tpu.pipeline_mode<synchronous>, transform_indices = @transform_8, window_bounds = array<i64: 8, 9>}, {pipeline_mode = #tpu.pipeline_mode<synchronous>, transform_indices = @transform_9, window_bounds = array<i64: 8, 1>}, {pipeline_mode = #tpu.pipeline_mode<synchronous>, transform_indices = @transform_10, window_bounds = array<i64: 4, 8, 72>}, {pipeline_mode = #tpu.pipeline_mode<synchronous>, transform_indices = @transform_11, window_bounds = array<i64: 4, 8, 1>}, {pipeline_mode = #tpu.pipeline_mode<synchronous>, transform_indices = @transform_12, window_bounds = array<i64: 16, 32>}, {pipeline_mode = #tpu.pipeline_mode<synchronous>, transform_indices = @transform_13, window_bounds = array<i64: 16, 1>}, {pipeline_mode = #tpu.pipeline_mode<synchronous>, transform_indices = @transform_14, window_bounds = array<i64: 32, 128>}, {pipeline_mode = #tpu.pipeline_mode<synchronous>, transform_indices = @transform_15, window_bounds = array<i64: 32, 1>}, {pipeline_mode = #tpu.pipeline_mode<synchronous>, transform_indices = @transform_16, window_bounds = array<i64: 4, 16, 144>}, {pipeline_mode = #tpu.pipeline_mode<synchronous>, transform_indices = @transform_17, window_bounds = array<i64: 4, 16, 1>}, {pipeline_mode = #tpu.pipeline_mode<synchronous>, transform_indices = @transform_18, window_bounds = array<i64: 32, 64>}, {pipeline_mode = #tpu.pipeline_mode<synchronous>, transform_indices = @transform_19, window_bounds = array<i64: 32, 1>}, {pipeline_mode = #tpu.pipeline_mode<synchronous>, transform_indices = @transform_20, window_bounds = array<i64: 32, 64>}, {pipeline_mode = #tpu.pipeline_mode<synchronous>, transform_indices = @transform_21, window_bounds = array<i64: 32, 1>}, {pipeline_mode = #tpu.pipeline_mode<synchronous>, transform_indices = @transform_22, window_bounds = array<i64: 32, 288>}, {pipeline_mode = #tpu.pipeline_mode<synchronous>, transform_indices = @transform_23, window_bounds = array<i64: 32, 1>}, {transform_indices = @transform_24, window_bounds = array<i64: 32, 128>}]} {
    %c0 = arith.constant 0 : index
    %c0_0 = arith.constant 0 : index
    %0 = vector.load %arg2[%c0, %c0_0] : memref<1x384xf32, #tpu.memory_space<vmem>>, vector<1x384xf32>
    %c0_1 = arith.constant 0 : index
    %c0_2 = arith.constant 0 : index
    %1 = vector.load %arg3[%c0_1, %c0_2] : memref<1x128xf32, #tpu.memory_space<vmem>>, vector<1x128xf32>
    %c0_3 = arith.constant 0 : index
    %c0_4 = arith.constant 0 : index
    %2 = vector.load %arg4[%c0_3, %c0_4] : memref<1x128xf32, #tpu.memory_space<vmem>>, vector<1x128xf32>
    %c0_5 = arith.constant 0 : index
    %c0_6 = arith.constant 0 : index
    %3 = vector.load %arg5[%c0_5, %c0_6] : memref<384x512xbf16, #tpu.memory_space<vmem>>, vector<384x512xbf16>
    %c0_7 = arith.constant 0 : index
    %c0_8 = arith.constant 0 : index
    %4 = vector.load %arg6[%c0_7, %c0_8] : memref<128x512xbf16, #tpu.memory_space<vmem>>, vector<128x512xbf16>
    %c0_9 = arith.constant 0 : index
    %c0_10 = arith.constant 0 : index
    %5 = vector.load %arg7[%c0_9, %c0_10] : memref<384x2048xbf16, #tpu.memory_space<vmem>>, vector<384x2048xbf16>
    %c0_11 = arith.constant 0 : index
    %c0_12 = arith.constant 0 : index
    %6 = vector.load %arg8[%c0_11, %c0_12] : memref<128x512xbf16, #tpu.memory_space<vmem>>, vector<128x512xbf16>
    %c0_13 = arith.constant 0 : index
    %c0_14 = arith.constant 0 : index
    %7 = vector.load %arg9[%c0_13, %c0_14] : memref<8x9xbf16, #tpu.memory_space<vmem>>, vector<8x9xbf16>
    %c0_15 = arith.constant 0 : index
    %c0_16 = arith.constant 0 : index
    %8 = vector.load %arg10[%c0_15, %c0_16] : memref<8x1xf32, #tpu.memory_space<vmem>>, vector<8x1xf32>
    %c0_17 = arith.constant 0 : index
    %c0_18 = arith.constant 0 : index
    %9 = vector.load %arg1[%c0_17, %c0_18] : memref<1x384xf32, #tpu.memory_space<vmem>>, vector<1x384xf32>
    %10 = arith.truncf %9 : vector<1x384xf32> to vector<1x384xbf16>
    %11 = vector.extract_strided_slice %10 {offsets = [0, 365], sizes = [1, 19], strides = [1, 1]} : vector<1x384xbf16> to vector<1x19xbf16>
    %12 = vector.extract_strided_slice %10 {offsets = [0, 0], sizes = [1, 365], strides = [1, 1]} : vector<1x384xbf16> to vector<1x365xbf16>
    %13 = tpu.concatenate %11, %12 in 1 : vector<1x19xbf16>, vector<1x365xbf16> -> vector<1x384xbf16>
    %14 = vector.extract_strided_slice %10 {offsets = [0, 366], sizes = [1, 18], strides = [1, 1]} : vector<1x384xbf16> to vector<1x18xbf16>
    %15 = vector.extract_strided_slice %10 {offsets = [0, 0], sizes = [1, 366], strides = [1, 1]} : vector<1x384xbf16> to vector<1x366xbf16>
    %16 = tpu.concatenate %14, %15 in 1 : vector<1x18xbf16>, vector<1x366xbf16> -> vector<1x384xbf16>
    %17 = vector.extract_strided_slice %10 {offsets = [0, 367], sizes = [1, 17], strides = [1, 1]} : vector<1x384xbf16> to vector<1x17xbf16>
    %18 = vector.extract_strided_slice %10 {offsets = [0, 0], sizes = [1, 367], strides = [1, 1]} : vector<1x384xbf16> to vector<1x367xbf16>
    %19 = tpu.concatenate %17, %18 in 1 : vector<1x17xbf16>, vector<1x367xbf16> -> vector<1x384xbf16>
    %20 = vector.extract_strided_slice %10 {offsets = [0, 383], sizes = [1, 1], strides = [1, 1]} : vector<1x384xbf16> to vector<1x1xbf16>
    %21 = vector.extract_strided_slice %10 {offsets = [0, 0], sizes = [1, 383], strides = [1, 1]} : vector<1x384xbf16> to vector<1x383xbf16>
    %22 = tpu.concatenate %20, %21 in 1 : vector<1x1xbf16>, vector<1x383xbf16> -> vector<1x384xbf16>
    %23 = vector.extract_strided_slice %10 {offsets = [0, 1], sizes = [1, 383], strides = [1, 1]} : vector<1x384xbf16> to vector<1x383xbf16>
    %24 = vector.extract_strided_slice %10 {offsets = [0, 0], sizes = [1, 1], strides = [1, 1]} : vector<1x384xbf16> to vector<1x1xbf16>
    %25 = tpu.concatenate %23, %24 in 1 : vector<1x383xbf16>, vector<1x1xbf16> -> vector<1x384xbf16>
    %26 = vector.extract_strided_slice %10 {offsets = [0, 17], sizes = [1, 367], strides = [1, 1]} : vector<1x384xbf16> to vector<1x367xbf16>
    %27 = vector.extract_strided_slice %10 {offsets = [0, 0], sizes = [1, 17], strides = [1, 1]} : vector<1x384xbf16> to vector<1x17xbf16>
    %28 = tpu.concatenate %26, %27 in 1 : vector<1x367xbf16>, vector<1x17xbf16> -> vector<1x384xbf16>
    %29 = vector.extract_strided_slice %10 {offsets = [0, 18], sizes = [1, 366], strides = [1, 1]} : vector<1x384xbf16> to vector<1x366xbf16>
    %30 = vector.extract_strided_slice %10 {offsets = [0, 0], sizes = [1, 18], strides = [1, 1]} : vector<1x384xbf16> to vector<1x18xbf16>
    %31 = tpu.concatenate %29, %30 in 1 : vector<1x366xbf16>, vector<1x18xbf16> -> vector<1x384xbf16>
    %32 = vector.extract_strided_slice %10 {offsets = [0, 19], sizes = [1, 365], strides = [1, 1]} : vector<1x384xbf16> to vector<1x365xbf16>
    %33 = vector.extract_strided_slice %10 {offsets = [0, 0], sizes = [1, 19], strides = [1, 1]} : vector<1x384xbf16> to vector<1x19xbf16>
    %34 = tpu.concatenate %32, %33 in 1 : vector<1x365xbf16>, vector<1x19xbf16> -> vector<1x384xbf16>
    %35 = tpu.concatenate %13, %16, %19, %22, %10, %25, %28, %31, %34 in 0 : vector<1x384xbf16>, vector<1x384xbf16>, vector<1x384xbf16>, vector<1x384xbf16>, vector<1x384xbf16>, vector<1x384xbf16>, vector<1x384xbf16>, vector<1x384xbf16>, vector<1x384xbf16> -> vector<9x384xbf16>
    %cst = arith.constant dense<0.000000e+00> : vector<8x384xf32>
    %36 = tpu.matmul %7, %35, %cst {dimension_numbers = #tpu.dot_dimension_numbers<[1], [0], [0], [1], [0, 0, 1, 1], [], []>} : vector<8x9xbf16>, vector<9x384xbf16>, vector<8x384xf32> -> vector<8x384xf32>
    %37 = vector.broadcast %8 : vector<8x1xf32> to vector<8x384xf32>
    %38 = arith.addf %36, %37 : vector<8x384xf32>
    %cst_19 = arith.constant 2.000000e-01 : f32
    %39 = vector.broadcast %cst_19 : f32 to vector<8x384xf32>
    %40 = arith.mulf %39, %38 : vector<8x384xf32>
    %41 = arith.maximumf %38, %40 : vector<8x384xf32>
    %42 = vector.broadcast %0 : vector<1x384xf32> to vector<8x384xf32>
    %43 = arith.mulf %41, %42 : vector<8x384xf32>
    %c0_20 = arith.constant 0 : index
    %c0_21 = arith.constant 0 : index
    %c0_22 = arith.constant 0 : index
    %44 = vector.load %arg11[%c0_20, %c0_21, %c0_22] : memref<4x8x72xbf16, #tpu.memory_space<vmem>>, vector<4x8x72xbf16>
    %c0_23 = arith.constant 0 : index
    %c0_24 = arith.constant 0 : index
    %c0_25 = arith.constant 0 : index
    %45 = vector.load %arg12[%c0_23, %c0_24, %c0_25] : memref<4x8x1xf32, #tpu.memory_space<vmem>>, vector<4x8x1xf32>
    %46 = vector.extract_strided_slice %44 {offsets = [0, 0, 0], sizes = [1, 8, 72], strides = [1, 1, 1]} : vector<4x8x72xbf16> to vector<1x8x72xbf16>
    %47 = vector.shape_cast %46 : vector<1x8x72xbf16> to vector<8x72xbf16>
    %48 = vector.extract_strided_slice %45 {offsets = [0, 0, 0], sizes = [1, 8, 1], strides = [1, 1, 1]} : vector<4x8x1xf32> to vector<1x8x1xf32>
    %49 = vector.shape_cast %48 : vector<1x8x1xf32> to vector<8x1xf32>
    %50 = arith.truncf %43 : vector<8x384xf32> to vector<8x384xbf16>
    %51 = vector.extract_strided_slice %50 {offsets = [0, 365], sizes = [8, 19], strides = [1, 1]} : vector<8x384xbf16> to vector<8x19xbf16>
    %52 = vector.extract_strided_slice %50 {offsets = [0, 0], sizes = [8, 365], strides = [1, 1]} : vector<8x384xbf16> to vector<8x365xbf16>
    %53 = tpu.concatenate %51, %52 in 1 : vector<8x19xbf16>, vector<8x365xbf16> -> vector<8x384xbf16>
    %54 = vector.extract_strided_slice %50 {offsets = [0, 366], sizes = [8, 18], strides = [1, 1]} : vector<8x384xbf16> to vector<8x18xbf16>
    %55 = vector.extract_strided_slice %50 {offsets = [0, 0], sizes = [8, 366], strides = [1, 1]} : vector<8x384xbf16> to vector<8x366xbf16>
    %56 = tpu.concatenate %54, %55 in 1 : vector<8x18xbf16>, vector<8x366xbf16> -> vector<8x384xbf16>
    %57 = vector.extract_strided_slice %50 {offsets = [0, 367], sizes = [8, 17], strides = [1, 1]} : vector<8x384xbf16> to vector<8x17xbf16>
    %58 = vector.extract_strided_slice %50 {offsets = [0, 0], sizes = [8, 367], strides = [1, 1]} : vector<8x384xbf16> to vector<8x367xbf16>
    %59 = tpu.concatenate %57, %58 in 1 : vector<8x17xbf16>, vector<8x367xbf16> -> vector<8x384xbf16>
    %60 = vector.extract_strided_slice %50 {offsets = [0, 383], sizes = [8, 1], strides = [1, 1]} : vector<8x384xbf16> to vector<8x1xbf16>
    %61 = vector.extract_strided_slice %50 {offsets = [0, 0], sizes = [8, 383], strides = [1, 1]} : vector<8x384xbf16> to vector<8x383xbf16>
    %62 = tpu.concatenate %60, %61 in 1 : vector<8x1xbf16>, vector<8x383xbf16> -> vector<8x384xbf16>
    %63 = vector.extract_strided_slice %50 {offsets = [0, 1], sizes = [8, 383], strides = [1, 1]} : vector<8x384xbf16> to vector<8x383xbf16>
    %64 = vector.extract_strided_slice %50 {offsets = [0, 0], sizes = [8, 1], strides = [1, 1]} : vector<8x384xbf16> to vector<8x1xbf16>
    %65 = tpu.concatenate %63, %64 in 1 : vector<8x383xbf16>, vector<8x1xbf16> -> vector<8x384xbf16>
    %66 = vector.extract_strided_slice %50 {offsets = [0, 17], sizes = [8, 367], strides = [1, 1]} : vector<8x384xbf16> to vector<8x367xbf16>
    %67 = vector.extract_strided_slice %50 {offsets = [0, 0], sizes = [8, 17], strides = [1, 1]} : vector<8x384xbf16> to vector<8x17xbf16>
    %68 = tpu.concatenate %66, %67 in 1 : vector<8x367xbf16>, vector<8x17xbf16> -> vector<8x384xbf16>
    %69 = vector.extract_strided_slice %50 {offsets = [0, 18], sizes = [8, 366], strides = [1, 1]} : vector<8x384xbf16> to vector<8x366xbf16>
    %70 = vector.extract_strided_slice %50 {offsets = [0, 0], sizes = [8, 18], strides = [1, 1]} : vector<8x384xbf16> to vector<8x18xbf16>
    %71 = tpu.concatenate %69, %70 in 1 : vector<8x366xbf16>, vector<8x18xbf16> -> vector<8x384xbf16>
    %72 = vector.extract_strided_slice %50 {offsets = [0, 19], sizes = [8, 365], strides = [1, 1]} : vector<8x384xbf16> to vector<8x365xbf16>
    %73 = vector.extract_strided_slice %50 {offsets = [0, 0], sizes = [8, 19], strides = [1, 1]} : vector<8x384xbf16> to vector<8x19xbf16>
    %74 = tpu.concatenate %72, %73 in 1 : vector<8x365xbf16>, vector<8x19xbf16> -> vector<8x384xbf16>
    %75 = tpu.concatenate %53, %56, %59, %62, %50, %65, %68, %71, %74 in 0 : vector<8x384xbf16>, vector<8x384xbf16>, vector<8x384xbf16>, vector<8x384xbf16>, vector<8x384xbf16>, vector<8x384xbf16>, vector<8x384xbf16>, vector<8x384xbf16>, vector<8x384xbf16> -> vector<72x384xbf16>
    %cst_26 = arith.constant dense<0.000000e+00> : vector<8x384xf32>
    %76 = tpu.matmul %47, %75, %cst_26 {dimension_numbers = #tpu.dot_dimension_numbers<[1], [0], [0], [1], [0, 0, 1, 1], [], []>} : vector<8x72xbf16>, vector<72x384xbf16>, vector<8x384xf32> -> vector<8x384xf32>
    %77 = vector.broadcast %49 : vector<8x1xf32> to vector<8x384xf32>
    %78 = arith.addf %76, %77 : vector<8x384xf32>
    %cst_27 = arith.constant 2.000000e-01 : f32
    %79 = vector.broadcast %cst_27 : f32 to vector<8x384xf32>
    %80 = arith.mulf %79, %78 : vector<8x384xf32>
    %81 = arith.maximumf %78, %80 : vector<8x384xf32>
    %82 = vector.broadcast %0 : vector<1x384xf32> to vector<8x384xf32>
    %83 = arith.mulf %81, %82 : vector<8x384xf32>
    %84 = vector.extract_strided_slice %44 {offsets = [1, 0, 0], sizes = [1, 8, 72], strides = [1, 1, 1]} : vector<4x8x72xbf16> to vector<1x8x72xbf16>
    %85 = vector.shape_cast %84 : vector<1x8x72xbf16> to vector<8x72xbf16>
    %86 = vector.extract_strided_slice %45 {offsets = [1, 0, 0], sizes = [1, 8, 1], strides = [1, 1, 1]} : vector<4x8x1xf32> to vector<1x8x1xf32>
    %87 = vector.shape_cast %86 : vector<1x8x1xf32> to vector<8x1xf32>
    %88 = arith.truncf %83 : vector<8x384xf32> to vector<8x384xbf16>
    %89 = vector.extract_strided_slice %88 {offsets = [0, 365], sizes = [8, 19], strides = [1, 1]} : vector<8x384xbf16> to vector<8x19xbf16>
    %90 = vector.extract_strided_slice %88 {offsets = [0, 0], sizes = [8, 365], strides = [1, 1]} : vector<8x384xbf16> to vector<8x365xbf16>
    %91 = tpu.concatenate %89, %90 in 1 : vector<8x19xbf16>, vector<8x365xbf16> -> vector<8x384xbf16>
    %92 = vector.extract_strided_slice %88 {offsets = [0, 366], sizes = [8, 18], strides = [1, 1]} : vector<8x384xbf16> to vector<8x18xbf16>
    %93 = vector.extract_strided_slice %88 {offsets = [0, 0], sizes = [8, 366], strides = [1, 1]} : vector<8x384xbf16> to vector<8x366xbf16>
    %94 = tpu.concatenate %92, %93 in 1 : vector<8x18xbf16>, vector<8x366xbf16> -> vector<8x384xbf16>
    %95 = vector.extract_strided_slice %88 {offsets = [0, 367], sizes = [8, 17], strides = [1, 1]} : vector<8x384xbf16> to vector<8x17xbf16>
    %96 = vector.extract_strided_slice %88 {offsets = [0, 0], sizes = [8, 367], strides = [1, 1]} : vector<8x384xbf16> to vector<8x367xbf16>
    %97 = tpu.concatenate %95, %96 in 1 : vector<8x17xbf16>, vector<8x367xbf16> -> vector<8x384xbf16>
    %98 = vector.extract_strided_slice %88 {offsets = [0, 383], sizes = [8, 1], strides = [1, 1]} : vector<8x384xbf16> to vector<8x1xbf16>
    %99 = vector.extract_strided_slice %88 {offsets = [0, 0], sizes = [8, 383], strides = [1, 1]} : vector<8x384xbf16> to vector<8x383xbf16>
    %100 = tpu.concatenate %98, %99 in 1 : vector<8x1xbf16>, vector<8x383xbf16> -> vector<8x384xbf16>
    %101 = vector.extract_strided_slice %88 {offsets = [0, 1], sizes = [8, 383], strides = [1, 1]} : vector<8x384xbf16> to vector<8x383xbf16>
    %102 = vector.extract_strided_slice %88 {offsets = [0, 0], sizes = [8, 1], strides = [1, 1]} : vector<8x384xbf16> to vector<8x1xbf16>
    %103 = tpu.concatenate %101, %102 in 1 : vector<8x383xbf16>, vector<8x1xbf16> -> vector<8x384xbf16>
    %104 = vector.extract_strided_slice %88 {offsets = [0, 17], sizes = [8, 367], strides = [1, 1]} : vector<8x384xbf16> to vector<8x367xbf16>
    %105 = vector.extract_strided_slice %88 {offsets = [0, 0], sizes = [8, 17], strides = [1, 1]} : vector<8x384xbf16> to vector<8x17xbf16>
    %106 = tpu.concatenate %104, %105 in 1 : vector<8x367xbf16>, vector<8x17xbf16> -> vector<8x384xbf16>
    %107 = vector.extract_strided_slice %88 {offsets = [0, 18], sizes = [8, 366], strides = [1, 1]} : vector<8x384xbf16> to vector<8x366xbf16>
    %108 = vector.extract_strided_slice %88 {offsets = [0, 0], sizes = [8, 18], strides = [1, 1]} : vector<8x384xbf16> to vector<8x18xbf16>
    %109 = tpu.concatenate %107, %108 in 1 : vector<8x366xbf16>, vector<8x18xbf16> -> vector<8x384xbf16>
    %110 = vector.extract_strided_slice %88 {offsets = [0, 19], sizes = [8, 365], strides = [1, 1]} : vector<8x384xbf16> to vector<8x365xbf16>
    %111 = vector.extract_strided_slice %88 {offsets = [0, 0], sizes = [8, 19], strides = [1, 1]} : vector<8x384xbf16> to vector<8x19xbf16>
    %112 = tpu.concatenate %110, %111 in 1 : vector<8x365xbf16>, vector<8x19xbf16> -> vector<8x384xbf16>
    %113 = tpu.concatenate %91, %94, %97, %100, %88, %103, %106, %109, %112 in 0 : vector<8x384xbf16>, vector<8x384xbf16>, vector<8x384xbf16>, vector<8x384xbf16>, vector<8x384xbf16>, vector<8x384xbf16>, vector<8x384xbf16>, vector<8x384xbf16>, vector<8x384xbf16> -> vector<72x384xbf16>
    %cst_28 = arith.constant dense<0.000000e+00> : vector<8x384xf32>
    %114 = tpu.matmul %85, %113, %cst_28 {dimension_numbers = #tpu.dot_dimension_numbers<[1], [0], [0], [1], [0, 0, 1, 1], [], []>} : vector<8x72xbf16>, vector<72x384xbf16>, vector<8x384xf32> -> vector<8x384xf32>
    %115 = vector.broadcast %87 : vector<8x1xf32> to vector<8x384xf32>
    %116 = arith.addf %114, %115 : vector<8x384xf32>
    %cst_29 = arith.constant 2.000000e-01 : f32
    %117 = vector.broadcast %cst_29 : f32 to vector<8x384xf32>
    %118 = arith.mulf %117, %116 : vector<8x384xf32>
    %119 = arith.maximumf %116, %118 : vector<8x384xf32>
    %120 = vector.broadcast %0 : vector<1x384xf32> to vector<8x384xf32>
    %121 = arith.mulf %119, %120 : vector<8x384xf32>
    %122 = arith.addf %43, %121 : vector<8x384xf32>
    %123 = vector.extract_strided_slice %44 {offsets = [2, 0, 0], sizes = [1, 8, 72], strides = [1, 1, 1]} : vector<4x8x72xbf16> to vector<1x8x72xbf16>
    %124 = vector.shape_cast %123 : vector<1x8x72xbf16> to vector<8x72xbf16>
    %125 = vector.extract_strided_slice %45 {offsets = [2, 0, 0], sizes = [1, 8, 1], strides = [1, 1, 1]} : vector<4x8x1xf32> to vector<1x8x1xf32>
    %126 = vector.shape_cast %125 : vector<1x8x1xf32> to vector<8x1xf32>
    %127 = arith.truncf %122 : vector<8x384xf32> to vector<8x384xbf16>
    %128 = vector.extract_strided_slice %127 {offsets = [0, 365], sizes = [8, 19], strides = [1, 1]} : vector<8x384xbf16> to vector<8x19xbf16>
    %129 = vector.extract_strided_slice %127 {offsets = [0, 0], sizes = [8, 365], strides = [1, 1]} : vector<8x384xbf16> to vector<8x365xbf16>
    %130 = tpu.concatenate %128, %129 in 1 : vector<8x19xbf16>, vector<8x365xbf16> -> vector<8x384xbf16>
    %131 = vector.extract_strided_slice %127 {offsets = [0, 366], sizes = [8, 18], strides = [1, 1]} : vector<8x384xbf16> to vector<8x18xbf16>
    %132 = vector.extract_strided_slice %127 {offsets = [0, 0], sizes = [8, 366], strides = [1, 1]} : vector<8x384xbf16> to vector<8x366xbf16>
    %133 = tpu.concatenate %131, %132 in 1 : vector<8x18xbf16>, vector<8x366xbf16> -> vector<8x384xbf16>
    %134 = vector.extract_strided_slice %127 {offsets = [0, 367], sizes = [8, 17], strides = [1, 1]} : vector<8x384xbf16> to vector<8x17xbf16>
    %135 = vector.extract_strided_slice %127 {offsets = [0, 0], sizes = [8, 367], strides = [1, 1]} : vector<8x384xbf16> to vector<8x367xbf16>
    %136 = tpu.concatenate %134, %135 in 1 : vector<8x17xbf16>, vector<8x367xbf16> -> vector<8x384xbf16>
    %137 = vector.extract_strided_slice %127 {offsets = [0, 383], sizes = [8, 1], strides = [1, 1]} : vector<8x384xbf16> to vector<8x1xbf16>
    %138 = vector.extract_strided_slice %127 {offsets = [0, 0], sizes = [8, 383], strides = [1, 1]} : vector<8x384xbf16> to vector<8x383xbf16>
    %139 = tpu.concatenate %137, %138 in 1 : vector<8x1xbf16>, vector<8x383xbf16> -> vector<8x384xbf16>
    %140 = vector.extract_strided_slice %127 {offsets = [0, 1], sizes = [8, 383], strides = [1, 1]} : vector<8x384xbf16> to vector<8x383xbf16>
    %141 = vector.extract_strided_slice %127 {offsets = [0, 0], sizes = [8, 1], strides = [1, 1]} : vector<8x384xbf16> to vector<8x1xbf16>
    %142 = tpu.concatenate %140, %141 in 1 : vector<8x383xbf16>, vector<8x1xbf16> -> vector<8x384xbf16>
    %143 = vector.extract_strided_slice %127 {offsets = [0, 17], sizes = [8, 367], strides = [1, 1]} : vector<8x384xbf16> to vector<8x367xbf16>
    %144 = vector.extract_strided_slice %127 {offsets = [0, 0], sizes = [8, 17], strides = [1, 1]} : vector<8x384xbf16> to vector<8x17xbf16>
    %145 = tpu.concatenate %143, %144 in 1 : vector<8x367xbf16>, vector<8x17xbf16> -> vector<8x384xbf16>
    %146 = vector.extract_strided_slice %127 {offsets = [0, 18], sizes = [8, 366], strides = [1, 1]} : vector<8x384xbf16> to vector<8x366xbf16>
    %147 = vector.extract_strided_slice %127 {offsets = [0, 0], sizes = [8, 18], strides = [1, 1]} : vector<8x384xbf16> to vector<8x18xbf16>
    %148 = tpu.concatenate %146, %147 in 1 : vector<8x366xbf16>, vector<8x18xbf16> -> vector<8x384xbf16>
    %149 = vector.extract_strided_slice %127 {offsets = [0, 19], sizes = [8, 365], strides = [1, 1]} : vector<8x384xbf16> to vector<8x365xbf16>
    %150 = vector.extract_strided_slice %127 {offsets = [0, 0], sizes = [8, 19], strides = [1, 1]} : vector<8x384xbf16> to vector<8x19xbf16>
    %151 = tpu.concatenate %149, %150 in 1 : vector<8x365xbf16>, vector<8x19xbf16> -> vector<8x384xbf16>
    %152 = tpu.concatenate %130, %133, %136, %139, %127, %142, %145, %148, %151 in 0 : vector<8x384xbf16>, vector<8x384xbf16>, vector<8x384xbf16>, vector<8x384xbf16>, vector<8x384xbf16>, vector<8x384xbf16>, vector<8x384xbf16>, vector<8x384xbf16>, vector<8x384xbf16> -> vector<72x384xbf16>
    %cst_30 = arith.constant dense<0.000000e+00> : vector<8x384xf32>
    %153 = tpu.matmul %124, %152, %cst_30 {dimension_numbers = #tpu.dot_dimension_numbers<[1], [0], [0], [1], [0, 0, 1, 1], [], []>} : vector<8x72xbf16>, vector<72x384xbf16>, vector<8x384xf32> -> vector<8x384xf32>
    %154 = vector.broadcast %126 : vector<8x1xf32> to vector<8x384xf32>
    %155 = arith.addf %153, %154 : vector<8x384xf32>
    %cst_31 = arith.constant 2.000000e-01 : f32
    %156 = vector.broadcast %cst_31 : f32 to vector<8x384xf32>
    %157 = arith.mulf %156, %155 : vector<8x384xf32>
    %158 = arith.maximumf %155, %157 : vector<8x384xf32>
    %159 = vector.broadcast %0 : vector<1x384xf32> to vector<8x384xf32>
    %160 = arith.mulf %158, %159 : vector<8x384xf32>
    %161 = vector.extract_strided_slice %44 {offsets = [3, 0, 0], sizes = [1, 8, 72], strides = [1, 1, 1]} : vector<4x8x72xbf16> to vector<1x8x72xbf16>
    %162 = vector.shape_cast %161 : vector<1x8x72xbf16> to vector<8x72xbf16>
    %163 = vector.extract_strided_slice %45 {offsets = [3, 0, 0], sizes = [1, 8, 1], strides = [1, 1, 1]} : vector<4x8x1xf32> to vector<1x8x1xf32>
    %164 = vector.shape_cast %163 : vector<1x8x1xf32> to vector<8x1xf32>
    %165 = arith.truncf %160 : vector<8x384xf32> to vector<8x384xbf16>
    %166 = vector.extract_strided_slice %165 {offsets = [0, 365], sizes = [8, 19], strides = [1, 1]} : vector<8x384xbf16> to vector<8x19xbf16>
    %167 = vector.extract_strided_slice %165 {offsets = [0, 0], sizes = [8, 365], strides = [1, 1]} : vector<8x384xbf16> to vector<8x365xbf16>
    %168 = tpu.concatenate %166, %167 in 1 : vector<8x19xbf16>, vector<8x365xbf16> -> vector<8x384xbf16>
    %169 = vector.extract_strided_slice %165 {offsets = [0, 366], sizes = [8, 18], strides = [1, 1]} : vector<8x384xbf16> to vector<8x18xbf16>
    %170 = vector.extract_strided_slice %165 {offsets = [0, 0], sizes = [8, 366], strides = [1, 1]} : vector<8x384xbf16> to vector<8x366xbf16>
    %171 = tpu.concatenate %169, %170 in 1 : vector<8x18xbf16>, vector<8x366xbf16> -> vector<8x384xbf16>
    %172 = vector.extract_strided_slice %165 {offsets = [0, 367], sizes = [8, 17], strides = [1, 1]} : vector<8x384xbf16> to vector<8x17xbf16>
    %173 = vector.extract_strided_slice %165 {offsets = [0, 0], sizes = [8, 367], strides = [1, 1]} : vector<8x384xbf16> to vector<8x367xbf16>
    %174 = tpu.concatenate %172, %173 in 1 : vector<8x17xbf16>, vector<8x367xbf16> -> vector<8x384xbf16>
    %175 = vector.extract_strided_slice %165 {offsets = [0, 383], sizes = [8, 1], strides = [1, 1]} : vector<8x384xbf16> to vector<8x1xbf16>
    %176 = vector.extract_strided_slice %165 {offsets = [0, 0], sizes = [8, 383], strides = [1, 1]} : vector<8x384xbf16> to vector<8x383xbf16>
    %177 = tpu.concatenate %175, %176 in 1 : vector<8x1xbf16>, vector<8x383xbf16> -> vector<8x384xbf16>
    %178 = vector.extract_strided_slice %165 {offsets = [0, 1], sizes = [8, 383], strides = [1, 1]} : vector<8x384xbf16> to vector<8x383xbf16>
    %179 = vector.extract_strided_slice %165 {offsets = [0, 0], sizes = [8, 1], strides = [1, 1]} : vector<8x384xbf16> to vector<8x1xbf16>
    %180 = tpu.concatenate %178, %179 in 1 : vector<8x383xbf16>, vector<8x1xbf16> -> vector<8x384xbf16>
    %181 = vector.extract_strided_slice %165 {offsets = [0, 17], sizes = [8, 367], strides = [1, 1]} : vector<8x384xbf16> to vector<8x367xbf16>
    %182 = vector.extract_strided_slice %165 {offsets = [0, 0], sizes = [8, 17], strides = [1, 1]} : vector<8x384xbf16> to vector<8x17xbf16>
    %183 = tpu.concatenate %181, %182 in 1 : vector<8x367xbf16>, vector<8x17xbf16> -> vector<8x384xbf16>
    %184 = vector.extract_strided_slice %165 {offsets = [0, 18], sizes = [8, 366], strides = [1, 1]} : vector<8x384xbf16> to vector<8x366xbf16>
    %185 = vector.extract_strided_slice %165 {offsets = [0, 0], sizes = [8, 18], strides = [1, 1]} : vector<8x384xbf16> to vector<8x18xbf16>
    %186 = tpu.concatenate %184, %185 in 1 : vector<8x366xbf16>, vector<8x18xbf16> -> vector<8x384xbf16>
    %187 = vector.extract_strided_slice %165 {offsets = [0, 19], sizes = [8, 365], strides = [1, 1]} : vector<8x384xbf16> to vector<8x365xbf16>
    %188 = vector.extract_strided_slice %165 {offsets = [0, 0], sizes = [8, 19], strides = [1, 1]} : vector<8x384xbf16> to vector<8x19xbf16>
    %189 = tpu.concatenate %187, %188 in 1 : vector<8x365xbf16>, vector<8x19xbf16> -> vector<8x384xbf16>
    %190 = tpu.concatenate %168, %171, %174, %177, %165, %180, %183, %186, %189 in 0 : vector<8x384xbf16>, vector<8x384xbf16>, vector<8x384xbf16>, vector<8x384xbf16>, vector<8x384xbf16>, vector<8x384xbf16>, vector<8x384xbf16>, vector<8x384xbf16>, vector<8x384xbf16> -> vector<72x384xbf16>
    %cst_32 = arith.constant dense<0.000000e+00> : vector<8x384xf32>
    %191 = tpu.matmul %162, %190, %cst_32 {dimension_numbers = #tpu.dot_dimension_numbers<[1], [0], [0], [1], [0, 0, 1, 1], [], []>} : vector<8x72xbf16>, vector<72x384xbf16>, vector<8x384xf32> -> vector<8x384xf32>
    %192 = vector.broadcast %164 : vector<8x1xf32> to vector<8x384xf32>
    %193 = arith.addf %191, %192 : vector<8x384xf32>
    %cst_33 = arith.constant 2.000000e-01 : f32
    %194 = vector.broadcast %cst_33 : f32 to vector<8x384xf32>
    %195 = arith.mulf %194, %193 : vector<8x384xf32>
    %196 = arith.maximumf %193, %195 : vector<8x384xf32>
    %197 = vector.broadcast %0 : vector<1x384xf32> to vector<8x384xf32>
    %198 = arith.mulf %196, %197 : vector<8x384xf32>
    %199 = arith.addf %122, %198 : vector<8x384xf32>
    %c0_34 = arith.constant 0 : index
    %c0_35 = arith.constant 0 : index
    %200 = vector.load %arg13[%c0_34, %c0_35] : memref<16x32xbf16, #tpu.memory_space<vmem>>, vector<16x32xbf16>
    %c0_36 = arith.constant 0 : index
    %c0_37 = arith.constant 0 : index
    %201 = vector.load %arg14[%c0_36, %c0_37] : memref<16x1xf32, #tpu.memory_space<vmem>>, vector<16x1xf32>
    %c0_38 = arith.constant 0 : index
    %c0_39 = arith.constant 0 : index
    %202 = vector.load %arg15[%c0_38, %c0_39] : memref<32x128xbf16, #tpu.memory_space<vmem>>, vector<32x128xbf16>
    %c0_40 = arith.constant 0 : index
    %c0_41 = arith.constant 0 : index
    %203 = vector.load %arg16[%c0_40, %c0_41] : memref<32x1xf32, #tpu.memory_space<vmem>>, vector<32x1xf32>
    %204 = arith.truncf %199 : vector<8x384xf32> to vector<8x384xbf16>
    %cst_42 = arith.constant dense<0.000000e+00> : vector<8x2048xf32>
    %205 = tpu.matmul %204, %5, %cst_42 {dimension_numbers = #tpu.dot_dimension_numbers<[1], [0], [0], [1], [0, 0, 1, 1], [], []>} : vector<8x384xbf16>, vector<384x2048xbf16>, vector<8x2048xf32> -> vector<8x2048xf32>
    %206 = vector.extract_strided_slice %205 {offsets = [0, 0], sizes = [8, 128], strides = [1, 1]} : vector<8x2048xf32> to vector<8x128xf32>
    %207 = vector.extract_strided_slice %205 {offsets = [0, 128], sizes = [8, 128], strides = [1, 1]} : vector<8x2048xf32> to vector<8x128xf32>
    %208 = vector.extract_strided_slice %205 {offsets = [0, 256], sizes = [8, 128], strides = [1, 1]} : vector<8x2048xf32> to vector<8x128xf32>
    %209 = vector.extract_strided_slice %205 {offsets = [0, 384], sizes = [8, 128], strides = [1, 1]} : vector<8x2048xf32> to vector<8x128xf32>
    %210 = vector.extract_strided_slice %205 {offsets = [0, 512], sizes = [8, 128], strides = [1, 1]} : vector<8x2048xf32> to vector<8x128xf32>
    %211 = vector.extract_strided_slice %205 {offsets = [0, 640], sizes = [8, 128], strides = [1, 1]} : vector<8x2048xf32> to vector<8x128xf32>
    %212 = vector.extract_strided_slice %205 {offsets = [0, 768], sizes = [8, 128], strides = [1, 1]} : vector<8x2048xf32> to vector<8x128xf32>
    %213 = vector.extract_strided_slice %205 {offsets = [0, 896], sizes = [8, 128], strides = [1, 1]} : vector<8x2048xf32> to vector<8x128xf32>
    %214 = vector.extract_strided_slice %205 {offsets = [0, 1024], sizes = [8, 128], strides = [1, 1]} : vector<8x2048xf32> to vector<8x128xf32>
    %215 = vector.extract_strided_slice %205 {offsets = [0, 1152], sizes = [8, 128], strides = [1, 1]} : vector<8x2048xf32> to vector<8x128xf32>
    %216 = vector.extract_strided_slice %205 {offsets = [0, 1280], sizes = [8, 128], strides = [1, 1]} : vector<8x2048xf32> to vector<8x128xf32>
    %217 = vector.extract_strided_slice %205 {offsets = [0, 1408], sizes = [8, 128], strides = [1, 1]} : vector<8x2048xf32> to vector<8x128xf32>
    %218 = vector.extract_strided_slice %205 {offsets = [0, 1536], sizes = [8, 128], strides = [1, 1]} : vector<8x2048xf32> to vector<8x128xf32>
    %219 = vector.extract_strided_slice %205 {offsets = [0, 1664], sizes = [8, 128], strides = [1, 1]} : vector<8x2048xf32> to vector<8x128xf32>
    %220 = vector.extract_strided_slice %205 {offsets = [0, 1792], sizes = [8, 128], strides = [1, 1]} : vector<8x2048xf32> to vector<8x128xf32>
    %221 = vector.extract_strided_slice %205 {offsets = [0, 1920], sizes = [8, 128], strides = [1, 1]} : vector<8x2048xf32> to vector<8x128xf32>
    %222 = tpu.concatenate %206, %207, %208, %209, %210, %211, %212, %213, %214, %215, %216, %217, %218, %219, %220, %221 in 0 : vector<8x128xf32>, vector<8x128xf32>, vector<8x128xf32>, vector<8x128xf32>, vector<8x128xf32>, vector<8x128xf32>, vector<8x128xf32>, vector<8x128xf32>, vector<8x128xf32>, vector<8x128xf32>, vector<8x128xf32>, vector<8x128xf32>, vector<8x128xf32>, vector<8x128xf32>, vector<8x128xf32>, vector<8x128xf32> -> vector<128x128xf32>
    %223 = arith.truncf %222 : vector<128x128xf32> to vector<128x128xbf16>
    %cst_43 = arith.constant dense<0.000000e+00> : vector<32x128xf32>
    %224 = tpu.matmul %202, %223, %cst_43 {dimension_numbers = #tpu.dot_dimension_numbers<[1], [0], [0], [1], [0, 0, 1, 1], [], []>} : vector<32x128xbf16>, vector<128x128xbf16>, vector<32x128xf32> -> vector<32x128xf32>
    %225 = vector.broadcast %203 : vector<32x1xf32> to vector<32x128xf32>
    %226 = arith.addf %224, %225 : vector<32x128xf32>
    %cst_44 = arith.constant 2.000000e-01 : f32
    %227 = vector.broadcast %cst_44 : f32 to vector<32x128xf32>
    %228 = arith.mulf %227, %226 : vector<32x128xf32>
    %229 = arith.maximumf %226, %228 : vector<32x128xf32>
    %230 = vector.broadcast %2 : vector<1x128xf32> to vector<32x128xf32>
    %231 = arith.mulf %229, %230 : vector<32x128xf32>
    %232 = arith.truncf %199 : vector<8x384xf32> to vector<8x384xbf16>
    %cst_45 = arith.constant dense<0.000000e+00> : vector<8x512xf32>
    %233 = tpu.matmul %232, %3, %cst_45 {dimension_numbers = #tpu.dot_dimension_numbers<[1], [0], [0], [1], [0, 0, 1, 1], [], []>} : vector<8x384xbf16>, vector<384x512xbf16>, vector<8x512xf32> -> vector<8x512xf32>
    %234 = vector.extract_strided_slice %233 {offsets = [0, 0], sizes = [8, 128], strides = [1, 1]} : vector<8x512xf32> to vector<8x128xf32>
    %235 = vector.extract_strided_slice %233 {offsets = [0, 128], sizes = [8, 128], strides = [1, 1]} : vector<8x512xf32> to vector<8x128xf32>
    %236 = vector.extract_strided_slice %233 {offsets = [0, 256], sizes = [8, 128], strides = [1, 1]} : vector<8x512xf32> to vector<8x128xf32>
    %237 = vector.extract_strided_slice %233 {offsets = [0, 384], sizes = [8, 128], strides = [1, 1]} : vector<8x512xf32> to vector<8x128xf32>
    %238 = tpu.concatenate %234, %235, %236, %237 in 0 : vector<8x128xf32>, vector<8x128xf32>, vector<8x128xf32>, vector<8x128xf32> -> vector<32x128xf32>
    %239 = arith.truncf %238 : vector<32x128xf32> to vector<32x128xbf16>
    %cst_46 = arith.constant dense<0.000000e+00> : vector<16x128xf32>
    %240 = tpu.matmul %200, %239, %cst_46 {dimension_numbers = #tpu.dot_dimension_numbers<[1], [0], [0], [1], [0, 0, 1, 1], [], []>} : vector<16x32xbf16>, vector<32x128xbf16>, vector<16x128xf32> -> vector<16x128xf32>
    %241 = vector.broadcast %201 : vector<16x1xf32> to vector<16x128xf32>
    %242 = arith.addf %240, %241 : vector<16x128xf32>
    %cst_47 = arith.constant 2.000000e-01 : f32
    %243 = vector.broadcast %cst_47 : f32 to vector<16x128xf32>
    %244 = arith.mulf %243, %242 : vector<16x128xf32>
    %245 = arith.maximumf %242, %244 : vector<16x128xf32>
    %246 = vector.broadcast %1 : vector<1x128xf32> to vector<16x128xf32>
    %247 = arith.mulf %245, %246 : vector<16x128xf32>
    %c0_48 = arith.constant 0 : index
    %c0_49 = arith.constant 0 : index
    %c0_50 = arith.constant 0 : index
    %248 = vector.load %arg17[%c0_48, %c0_49, %c0_50] : memref<4x16x144xbf16, #tpu.memory_space<vmem>>, vector<4x16x144xbf16>
    %c0_51 = arith.constant 0 : index
    %c0_52 = arith.constant 0 : index
    %c0_53 = arith.constant 0 : index
    %249 = vector.load %arg18[%c0_51, %c0_52, %c0_53] : memref<4x16x1xf32, #tpu.memory_space<vmem>>, vector<4x16x1xf32>
    %250 = vector.extract_strided_slice %248 {offsets = [0, 0, 0], sizes = [1, 16, 144], strides = [1, 1, 1]} : vector<4x16x144xbf16> to vector<1x16x144xbf16>
    %251 = vector.shape_cast %250 : vector<1x16x144xbf16> to vector<16x144xbf16>
    %252 = vector.extract_strided_slice %249 {offsets = [0, 0, 0], sizes = [1, 16, 1], strides = [1, 1, 1]} : vector<4x16x1xf32> to vector<1x16x1xf32>
    %253 = vector.shape_cast %252 : vector<1x16x1xf32> to vector<16x1xf32>
    %254 = arith.truncf %247 : vector<16x128xf32> to vector<16x128xbf16>
    %255 = vector.extract_strided_slice %254 {offsets = [0, 117], sizes = [16, 11], strides = [1, 1]} : vector<16x128xbf16> to vector<16x11xbf16>
    %256 = vector.extract_strided_slice %254 {offsets = [0, 0], sizes = [16, 117], strides = [1, 1]} : vector<16x128xbf16> to vector<16x117xbf16>
    %257 = tpu.concatenate %255, %256 in 1 : vector<16x11xbf16>, vector<16x117xbf16> -> vector<16x128xbf16>
    %258 = vector.extract_strided_slice %254 {offsets = [0, 118], sizes = [16, 10], strides = [1, 1]} : vector<16x128xbf16> to vector<16x10xbf16>
    %259 = vector.extract_strided_slice %254 {offsets = [0, 0], sizes = [16, 118], strides = [1, 1]} : vector<16x128xbf16> to vector<16x118xbf16>
    %260 = tpu.concatenate %258, %259 in 1 : vector<16x10xbf16>, vector<16x118xbf16> -> vector<16x128xbf16>
    %261 = vector.extract_strided_slice %254 {offsets = [0, 119], sizes = [16, 9], strides = [1, 1]} : vector<16x128xbf16> to vector<16x9xbf16>
    %262 = vector.extract_strided_slice %254 {offsets = [0, 0], sizes = [16, 119], strides = [1, 1]} : vector<16x128xbf16> to vector<16x119xbf16>
    %263 = tpu.concatenate %261, %262 in 1 : vector<16x9xbf16>, vector<16x119xbf16> -> vector<16x128xbf16>
    %264 = vector.extract_strided_slice %254 {offsets = [0, 127], sizes = [16, 1], strides = [1, 1]} : vector<16x128xbf16> to vector<16x1xbf16>
    %265 = vector.extract_strided_slice %254 {offsets = [0, 0], sizes = [16, 127], strides = [1, 1]} : vector<16x128xbf16> to vector<16x127xbf16>
    %266 = tpu.concatenate %264, %265 in 1 : vector<16x1xbf16>, vector<16x127xbf16> -> vector<16x128xbf16>
    %267 = vector.extract_strided_slice %254 {offsets = [0, 1], sizes = [16, 127], strides = [1, 1]} : vector<16x128xbf16> to vector<16x127xbf16>
    %268 = vector.extract_strided_slice %254 {offsets = [0, 0], sizes = [16, 1], strides = [1, 1]} : vector<16x128xbf16> to vector<16x1xbf16>
    %269 = tpu.concatenate %267, %268 in 1 : vector<16x127xbf16>, vector<16x1xbf16> -> vector<16x128xbf16>
    %270 = vector.extract_strided_slice %254 {offsets = [0, 9], sizes = [16, 119], strides = [1, 1]} : vector<16x128xbf16> to vector<16x119xbf16>
    %271 = vector.extract_strided_slice %254 {offsets = [0, 0], sizes = [16, 9], strides = [1, 1]} : vector<16x128xbf16> to vector<16x9xbf16>
    %272 = tpu.concatenate %270, %271 in 1 : vector<16x119xbf16>, vector<16x9xbf16> -> vector<16x128xbf16>
    %273 = vector.extract_strided_slice %254 {offsets = [0, 10], sizes = [16, 118], strides = [1, 1]} : vector<16x128xbf16> to vector<16x118xbf16>
    %274 = vector.extract_strided_slice %254 {offsets = [0, 0], sizes = [16, 10], strides = [1, 1]} : vector<16x128xbf16> to vector<16x10xbf16>
    %275 = tpu.concatenate %273, %274 in 1 : vector<16x118xbf16>, vector<16x10xbf16> -> vector<16x128xbf16>
    %276 = vector.extract_strided_slice %254 {offsets = [0, 11], sizes = [16, 117], strides = [1, 1]} : vector<16x128xbf16> to vector<16x117xbf16>
    %277 = vector.extract_strided_slice %254 {offsets = [0, 0], sizes = [16, 11], strides = [1, 1]} : vector<16x128xbf16> to vector<16x11xbf16>
    %278 = tpu.concatenate %276, %277 in 1 : vector<16x117xbf16>, vector<16x11xbf16> -> vector<16x128xbf16>
    %279 = tpu.concatenate %257, %260, %263, %266, %254, %269, %272, %275, %278 in 0 : vector<16x128xbf16>, vector<16x128xbf16>, vector<16x128xbf16>, vector<16x128xbf16>, vector<16x128xbf16>, vector<16x128xbf16>, vector<16x128xbf16>, vector<16x128xbf16>, vector<16x128xbf16> -> vector<144x128xbf16>
    %cst_54 = arith.constant dense<0.000000e+00> : vector<16x128xf32>
    %280 = tpu.matmul %251, %279, %cst_54 {dimension_numbers = #tpu.dot_dimension_numbers<[1], [0], [0], [1], [0, 0, 1, 1], [], []>} : vector<16x144xbf16>, vector<144x128xbf16>, vector<16x128xf32> -> vector<16x128xf32>
    %281 = vector.broadcast %253 : vector<16x1xf32> to vector<16x128xf32>
    %282 = arith.addf %280, %281 : vector<16x128xf32>
    %cst_55 = arith.constant 2.000000e-01 : f32
    %283 = vector.broadcast %cst_55 : f32 to vector<16x128xf32>
    %284 = arith.mulf %283, %282 : vector<16x128xf32>
    %285 = arith.maximumf %282, %284 : vector<16x128xf32>
    %286 = vector.broadcast %1 : vector<1x128xf32> to vector<16x128xf32>
    %287 = arith.mulf %285, %286 : vector<16x128xf32>
    %288 = vector.extract_strided_slice %248 {offsets = [1, 0, 0], sizes = [1, 16, 144], strides = [1, 1, 1]} : vector<4x16x144xbf16> to vector<1x16x144xbf16>
    %289 = vector.shape_cast %288 : vector<1x16x144xbf16> to vector<16x144xbf16>
    %290 = vector.extract_strided_slice %249 {offsets = [1, 0, 0], sizes = [1, 16, 1], strides = [1, 1, 1]} : vector<4x16x1xf32> to vector<1x16x1xf32>
    %291 = vector.shape_cast %290 : vector<1x16x1xf32> to vector<16x1xf32>
    %292 = arith.truncf %287 : vector<16x128xf32> to vector<16x128xbf16>
    %293 = vector.extract_strided_slice %292 {offsets = [0, 117], sizes = [16, 11], strides = [1, 1]} : vector<16x128xbf16> to vector<16x11xbf16>
    %294 = vector.extract_strided_slice %292 {offsets = [0, 0], sizes = [16, 117], strides = [1, 1]} : vector<16x128xbf16> to vector<16x117xbf16>
    %295 = tpu.concatenate %293, %294 in 1 : vector<16x11xbf16>, vector<16x117xbf16> -> vector<16x128xbf16>
    %296 = vector.extract_strided_slice %292 {offsets = [0, 118], sizes = [16, 10], strides = [1, 1]} : vector<16x128xbf16> to vector<16x10xbf16>
    %297 = vector.extract_strided_slice %292 {offsets = [0, 0], sizes = [16, 118], strides = [1, 1]} : vector<16x128xbf16> to vector<16x118xbf16>
    %298 = tpu.concatenate %296, %297 in 1 : vector<16x10xbf16>, vector<16x118xbf16> -> vector<16x128xbf16>
    %299 = vector.extract_strided_slice %292 {offsets = [0, 119], sizes = [16, 9], strides = [1, 1]} : vector<16x128xbf16> to vector<16x9xbf16>
    %300 = vector.extract_strided_slice %292 {offsets = [0, 0], sizes = [16, 119], strides = [1, 1]} : vector<16x128xbf16> to vector<16x119xbf16>
    %301 = tpu.concatenate %299, %300 in 1 : vector<16x9xbf16>, vector<16x119xbf16> -> vector<16x128xbf16>
    %302 = vector.extract_strided_slice %292 {offsets = [0, 127], sizes = [16, 1], strides = [1, 1]} : vector<16x128xbf16> to vector<16x1xbf16>
    %303 = vector.extract_strided_slice %292 {offsets = [0, 0], sizes = [16, 127], strides = [1, 1]} : vector<16x128xbf16> to vector<16x127xbf16>
    %304 = tpu.concatenate %302, %303 in 1 : vector<16x1xbf16>, vector<16x127xbf16> -> vector<16x128xbf16>
    %305 = vector.extract_strided_slice %292 {offsets = [0, 1], sizes = [16, 127], strides = [1, 1]} : vector<16x128xbf16> to vector<16x127xbf16>
    %306 = vector.extract_strided_slice %292 {offsets = [0, 0], sizes = [16, 1], strides = [1, 1]} : vector<16x128xbf16> to vector<16x1xbf16>
    %307 = tpu.concatenate %305, %306 in 1 : vector<16x127xbf16>, vector<16x1xbf16> -> vector<16x128xbf16>
    %308 = vector.extract_strided_slice %292 {offsets = [0, 9], sizes = [16, 119], strides = [1, 1]} : vector<16x128xbf16> to vector<16x119xbf16>
    %309 = vector.extract_strided_slice %292 {offsets = [0, 0], sizes = [16, 9], strides = [1, 1]} : vector<16x128xbf16> to vector<16x9xbf16>
    %310 = tpu.concatenate %308, %309 in 1 : vector<16x119xbf16>, vector<16x9xbf16> -> vector<16x128xbf16>
    %311 = vector.extract_strided_slice %292 {offsets = [0, 10], sizes = [16, 118], strides = [1, 1]} : vector<16x128xbf16> to vector<16x118xbf16>
    %312 = vector.extract_strided_slice %292 {offsets = [0, 0], sizes = [16, 10], strides = [1, 1]} : vector<16x128xbf16> to vector<16x10xbf16>
    %313 = tpu.concatenate %311, %312 in 1 : vector<16x118xbf16>, vector<16x10xbf16> -> vector<16x128xbf16>
    %314 = vector.extract_strided_slice %292 {offsets = [0, 11], sizes = [16, 117], strides = [1, 1]} : vector<16x128xbf16> to vector<16x117xbf16>
    %315 = vector.extract_strided_slice %292 {offsets = [0, 0], sizes = [16, 11], strides = [1, 1]} : vector<16x128xbf16> to vector<16x11xbf16>
    %316 = tpu.concatenate %314, %315 in 1 : vector<16x117xbf16>, vector<16x11xbf16> -> vector<16x128xbf16>
    %317 = tpu.concatenate %295, %298, %301, %304, %292, %307, %310, %313, %316 in 0 : vector<16x128xbf16>, vector<16x128xbf16>, vector<16x128xbf16>, vector<16x128xbf16>, vector<16x128xbf16>, vector<16x128xbf16>, vector<16x128xbf16>, vector<16x128xbf16>, vector<16x128xbf16> -> vector<144x128xbf16>
    %cst_56 = arith.constant dense<0.000000e+00> : vector<16x128xf32>
    %318 = tpu.matmul %289, %317, %cst_56 {dimension_numbers = #tpu.dot_dimension_numbers<[1], [0], [0], [1], [0, 0, 1, 1], [], []>} : vector<16x144xbf16>, vector<144x128xbf16>, vector<16x128xf32> -> vector<16x128xf32>
    %319 = vector.broadcast %291 : vector<16x1xf32> to vector<16x128xf32>
    %320 = arith.addf %318, %319 : vector<16x128xf32>
    %cst_57 = arith.constant 2.000000e-01 : f32
    %321 = vector.broadcast %cst_57 : f32 to vector<16x128xf32>
    %322 = arith.mulf %321, %320 : vector<16x128xf32>
    %323 = arith.maximumf %320, %322 : vector<16x128xf32>
    %324 = vector.broadcast %1 : vector<1x128xf32> to vector<16x128xf32>
    %325 = arith.mulf %323, %324 : vector<16x128xf32>
    %326 = arith.addf %247, %325 : vector<16x128xf32>
    %327 = vector.extract_strided_slice %248 {offsets = [2, 0, 0], sizes = [1, 16, 144], strides = [1, 1, 1]} : vector<4x16x144xbf16> to vector<1x16x144xbf16>
    %328 = vector.shape_cast %327 : vector<1x16x144xbf16> to vector<16x144xbf16>
    %329 = vector.extract_strided_slice %249 {offsets = [2, 0, 0], sizes = [1, 16, 1], strides = [1, 1, 1]} : vector<4x16x1xf32> to vector<1x16x1xf32>
    %330 = vector.shape_cast %329 : vector<1x16x1xf32> to vector<16x1xf32>
    %331 = arith.truncf %326 : vector<16x128xf32> to vector<16x128xbf16>
    %332 = vector.extract_strided_slice %331 {offsets = [0, 117], sizes = [16, 11], strides = [1, 1]} : vector<16x128xbf16> to vector<16x11xbf16>
    %333 = vector.extract_strided_slice %331 {offsets = [0, 0], sizes = [16, 117], strides = [1, 1]} : vector<16x128xbf16> to vector<16x117xbf16>
    %334 = tpu.concatenate %332, %333 in 1 : vector<16x11xbf16>, vector<16x117xbf16> -> vector<16x128xbf16>
    %335 = vector.extract_strided_slice %331 {offsets = [0, 118], sizes = [16, 10], strides = [1, 1]} : vector<16x128xbf16> to vector<16x10xbf16>
    %336 = vector.extract_strided_slice %331 {offsets = [0, 0], sizes = [16, 118], strides = [1, 1]} : vector<16x128xbf16> to vector<16x118xbf16>
    %337 = tpu.concatenate %335, %336 in 1 : vector<16x10xbf16>, vector<16x118xbf16> -> vector<16x128xbf16>
    %338 = vector.extract_strided_slice %331 {offsets = [0, 119], sizes = [16, 9], strides = [1, 1]} : vector<16x128xbf16> to vector<16x9xbf16>
    %339 = vector.extract_strided_slice %331 {offsets = [0, 0], sizes = [16, 119], strides = [1, 1]} : vector<16x128xbf16> to vector<16x119xbf16>
    %340 = tpu.concatenate %338, %339 in 1 : vector<16x9xbf16>, vector<16x119xbf16> -> vector<16x128xbf16>
    %341 = vector.extract_strided_slice %331 {offsets = [0, 127], sizes = [16, 1], strides = [1, 1]} : vector<16x128xbf16> to vector<16x1xbf16>
    %342 = vector.extract_strided_slice %331 {offsets = [0, 0], sizes = [16, 127], strides = [1, 1]} : vector<16x128xbf16> to vector<16x127xbf16>
    %343 = tpu.concatenate %341, %342 in 1 : vector<16x1xbf16>, vector<16x127xbf16> -> vector<16x128xbf16>
    %344 = vector.extract_strided_slice %331 {offsets = [0, 1], sizes = [16, 127], strides = [1, 1]} : vector<16x128xbf16> to vector<16x127xbf16>
    %345 = vector.extract_strided_slice %331 {offsets = [0, 0], sizes = [16, 1], strides = [1, 1]} : vector<16x128xbf16> to vector<16x1xbf16>
    %346 = tpu.concatenate %344, %345 in 1 : vector<16x127xbf16>, vector<16x1xbf16> -> vector<16x128xbf16>
    %347 = vector.extract_strided_slice %331 {offsets = [0, 9], sizes = [16, 119], strides = [1, 1]} : vector<16x128xbf16> to vector<16x119xbf16>
    %348 = vector.extract_strided_slice %331 {offsets = [0, 0], sizes = [16, 9], strides = [1, 1]} : vector<16x128xbf16> to vector<16x9xbf16>
    %349 = tpu.concatenate %347, %348 in 1 : vector<16x119xbf16>, vector<16x9xbf16> -> vector<16x128xbf16>
    %350 = vector.extract_strided_slice %331 {offsets = [0, 10], sizes = [16, 118], strides = [1, 1]} : vector<16x128xbf16> to vector<16x118xbf16>
    %351 = vector.extract_strided_slice %331 {offsets = [0, 0], sizes = [16, 10], strides = [1, 1]} : vector<16x128xbf16> to vector<16x10xbf16>
    %352 = tpu.concatenate %350, %351 in 1 : vector<16x118xbf16>, vector<16x10xbf16> -> vector<16x128xbf16>
    %353 = vector.extract_strided_slice %331 {offsets = [0, 11], sizes = [16, 117], strides = [1, 1]} : vector<16x128xbf16> to vector<16x117xbf16>
    %354 = vector.extract_strided_slice %331 {offsets = [0, 0], sizes = [16, 11], strides = [1, 1]} : vector<16x128xbf16> to vector<16x11xbf16>
    %355 = tpu.concatenate %353, %354 in 1 : vector<16x117xbf16>, vector<16x11xbf16> -> vector<16x128xbf16>
    %356 = tpu.concatenate %334, %337, %340, %343, %331, %346, %349, %352, %355 in 0 : vector<16x128xbf16>, vector<16x128xbf16>, vector<16x128xbf16>, vector<16x128xbf16>, vector<16x128xbf16>, vector<16x128xbf16>, vector<16x128xbf16>, vector<16x128xbf16>, vector<16x128xbf16> -> vector<144x128xbf16>
    %cst_58 = arith.constant dense<0.000000e+00> : vector<16x128xf32>
    %357 = tpu.matmul %328, %356, %cst_58 {dimension_numbers = #tpu.dot_dimension_numbers<[1], [0], [0], [1], [0, 0, 1, 1], [], []>} : vector<16x144xbf16>, vector<144x128xbf16>, vector<16x128xf32> -> vector<16x128xf32>
    %358 = vector.broadcast %330 : vector<16x1xf32> to vector<16x128xf32>
    %359 = arith.addf %357, %358 : vector<16x128xf32>
    %cst_59 = arith.constant 2.000000e-01 : f32
    %360 = vector.broadcast %cst_59 : f32 to vector<16x128xf32>
    %361 = arith.mulf %360, %359 : vector<16x128xf32>
    %362 = arith.maximumf %359, %361 : vector<16x128xf32>
    %363 = vector.broadcast %1 : vector<1x128xf32> to vector<16x128xf32>
    %364 = arith.mulf %362, %363 : vector<16x128xf32>
    %365 = vector.extract_strided_slice %248 {offsets = [3, 0, 0], sizes = [1, 16, 144], strides = [1, 1, 1]} : vector<4x16x144xbf16> to vector<1x16x144xbf16>
    %366 = vector.shape_cast %365 : vector<1x16x144xbf16> to vector<16x144xbf16>
    %367 = vector.extract_strided_slice %249 {offsets = [3, 0, 0], sizes = [1, 16, 1], strides = [1, 1, 1]} : vector<4x16x1xf32> to vector<1x16x1xf32>
    %368 = vector.shape_cast %367 : vector<1x16x1xf32> to vector<16x1xf32>
    %369 = arith.truncf %364 : vector<16x128xf32> to vector<16x128xbf16>
    %370 = vector.extract_strided_slice %369 {offsets = [0, 117], sizes = [16, 11], strides = [1, 1]} : vector<16x128xbf16> to vector<16x11xbf16>
    %371 = vector.extract_strided_slice %369 {offsets = [0, 0], sizes = [16, 117], strides = [1, 1]} : vector<16x128xbf16> to vector<16x117xbf16>
    %372 = tpu.concatenate %370, %371 in 1 : vector<16x11xbf16>, vector<16x117xbf16> -> vector<16x128xbf16>
    %373 = vector.extract_strided_slice %369 {offsets = [0, 118], sizes = [16, 10], strides = [1, 1]} : vector<16x128xbf16> to vector<16x10xbf16>
    %374 = vector.extract_strided_slice %369 {offsets = [0, 0], sizes = [16, 118], strides = [1, 1]} : vector<16x128xbf16> to vector<16x118xbf16>
    %375 = tpu.concatenate %373, %374 in 1 : vector<16x10xbf16>, vector<16x118xbf16> -> vector<16x128xbf16>
    %376 = vector.extract_strided_slice %369 {offsets = [0, 119], sizes = [16, 9], strides = [1, 1]} : vector<16x128xbf16> to vector<16x9xbf16>
    %377 = vector.extract_strided_slice %369 {offsets = [0, 0], sizes = [16, 119], strides = [1, 1]} : vector<16x128xbf16> to vector<16x119xbf16>
    %378 = tpu.concatenate %376, %377 in 1 : vector<16x9xbf16>, vector<16x119xbf16> -> vector<16x128xbf16>
    %379 = vector.extract_strided_slice %369 {offsets = [0, 127], sizes = [16, 1], strides = [1, 1]} : vector<16x128xbf16> to vector<16x1xbf16>
    %380 = vector.extract_strided_slice %369 {offsets = [0, 0], sizes = [16, 127], strides = [1, 1]} : vector<16x128xbf16> to vector<16x127xbf16>
    %381 = tpu.concatenate %379, %380 in 1 : vector<16x1xbf16>, vector<16x127xbf16> -> vector<16x128xbf16>
    %382 = vector.extract_strided_slice %369 {offsets = [0, 1], sizes = [16, 127], strides = [1, 1]} : vector<16x128xbf16> to vector<16x127xbf16>
    %383 = vector.extract_strided_slice %369 {offsets = [0, 0], sizes = [16, 1], strides = [1, 1]} : vector<16x128xbf16> to vector<16x1xbf16>
    %384 = tpu.concatenate %382, %383 in 1 : vector<16x127xbf16>, vector<16x1xbf16> -> vector<16x128xbf16>
    %385 = vector.extract_strided_slice %369 {offsets = [0, 9], sizes = [16, 119], strides = [1, 1]} : vector<16x128xbf16> to vector<16x119xbf16>
    %386 = vector.extract_strided_slice %369 {offsets = [0, 0], sizes = [16, 9], strides = [1, 1]} : vector<16x128xbf16> to vector<16x9xbf16>
    %387 = tpu.concatenate %385, %386 in 1 : vector<16x119xbf16>, vector<16x9xbf16> -> vector<16x128xbf16>
    %388 = vector.extract_strided_slice %369 {offsets = [0, 10], sizes = [16, 118], strides = [1, 1]} : vector<16x128xbf16> to vector<16x118xbf16>
    %389 = vector.extract_strided_slice %369 {offsets = [0, 0], sizes = [16, 10], strides = [1, 1]} : vector<16x128xbf16> to vector<16x10xbf16>
    %390 = tpu.concatenate %388, %389 in 1 : vector<16x118xbf16>, vector<16x10xbf16> -> vector<16x128xbf16>
    %391 = vector.extract_strided_slice %369 {offsets = [0, 11], sizes = [16, 117], strides = [1, 1]} : vector<16x128xbf16> to vector<16x117xbf16>
    %392 = vector.extract_strided_slice %369 {offsets = [0, 0], sizes = [16, 11], strides = [1, 1]} : vector<16x128xbf16> to vector<16x11xbf16>
    %393 = tpu.concatenate %391, %392 in 1 : vector<16x117xbf16>, vector<16x11xbf16> -> vector<16x128xbf16>
    %394 = tpu.concatenate %372, %375, %378, %381, %369, %384, %387, %390, %393 in 0 : vector<16x128xbf16>, vector<16x128xbf16>, vector<16x128xbf16>, vector<16x128xbf16>, vector<16x128xbf16>, vector<16x128xbf16>, vector<16x128xbf16>, vector<16x128xbf16>, vector<16x128xbf16> -> vector<144x128xbf16>
    %cst_60 = arith.constant dense<0.000000e+00> : vector<16x128xf32>
    %395 = tpu.matmul %366, %394, %cst_60 {dimension_numbers = #tpu.dot_dimension_numbers<[1], [0], [0], [1], [0, 0, 1, 1], [], []>} : vector<16x144xbf16>, vector<144x128xbf16>, vector<16x128xf32> -> vector<16x128xf32>
    %396 = vector.broadcast %368 : vector<16x1xf32> to vector<16x128xf32>
    %397 = arith.addf %395, %396 : vector<16x128xf32>
    %cst_61 = arith.constant 2.000000e-01 : f32
    %398 = vector.broadcast %cst_61 : f32 to vector<16x128xf32>
    %399 = arith.mulf %398, %397 : vector<16x128xf32>
    %400 = arith.maximumf %397, %399 : vector<16x128xf32>
    %401 = vector.broadcast %1 : vector<1x128xf32> to vector<16x128xf32>
    %402 = arith.mulf %400, %401 : vector<16x128xf32>
    %403 = arith.addf %326, %402 : vector<16x128xf32>
    %c0_62 = arith.constant 0 : index
    %c0_63 = arith.constant 0 : index
    %404 = vector.load %arg19[%c0_62, %c0_63] : memref<32x64xbf16, #tpu.memory_space<vmem>>, vector<32x64xbf16>
    %c0_64 = arith.constant 0 : index
    %c0_65 = arith.constant 0 : index
    %405 = vector.load %arg20[%c0_64, %c0_65] : memref<32x1xf32, #tpu.memory_space<vmem>>, vector<32x1xf32>
    %c0_66 = arith.constant 0 : index
    %c0_67 = arith.constant 0 : index
    %406 = vector.load %arg21[%c0_66, %c0_67] : memref<32x64xbf16, #tpu.memory_space<vmem>>, vector<32x64xbf16>
    %c0_68 = arith.constant 0 : index
    %c0_69 = arith.constant 0 : index
    %407 = vector.load %arg22[%c0_68, %c0_69] : memref<32x1xf32, #tpu.memory_space<vmem>>, vector<32x1xf32>
    %408 = arith.truncf %403 : vector<16x128xf32> to vector<16x128xbf16>
    %cst_70 = arith.constant dense<0.000000e+00> : vector<16x512xf32>
    %409 = tpu.matmul %408, %6, %cst_70 {dimension_numbers = #tpu.dot_dimension_numbers<[1], [0], [0], [1], [0, 0, 1, 1], [], []>} : vector<16x128xbf16>, vector<128x512xbf16>, vector<16x512xf32> -> vector<16x512xf32>
    %410 = vector.extract_strided_slice %409 {offsets = [0, 0], sizes = [16, 128], strides = [1, 1]} : vector<16x512xf32> to vector<16x128xf32>
    %411 = vector.extract_strided_slice %409 {offsets = [0, 128], sizes = [16, 128], strides = [1, 1]} : vector<16x512xf32> to vector<16x128xf32>
    %412 = vector.extract_strided_slice %409 {offsets = [0, 256], sizes = [16, 128], strides = [1, 1]} : vector<16x512xf32> to vector<16x128xf32>
    %413 = vector.extract_strided_slice %409 {offsets = [0, 384], sizes = [16, 128], strides = [1, 1]} : vector<16x512xf32> to vector<16x128xf32>
    %414 = tpu.concatenate %410, %411, %412, %413 in 0 : vector<16x128xf32>, vector<16x128xf32>, vector<16x128xf32>, vector<16x128xf32> -> vector<64x128xf32>
    %415 = arith.truncf %414 : vector<64x128xf32> to vector<64x128xbf16>
    %cst_71 = arith.constant dense<0.000000e+00> : vector<32x128xf32>
    %416 = tpu.matmul %406, %415, %cst_71 {dimension_numbers = #tpu.dot_dimension_numbers<[1], [0], [0], [1], [0, 0, 1, 1], [], []>} : vector<32x64xbf16>, vector<64x128xbf16>, vector<32x128xf32> -> vector<32x128xf32>
    %417 = vector.broadcast %407 : vector<32x1xf32> to vector<32x128xf32>
    %418 = arith.addf %416, %417 : vector<32x128xf32>
    %cst_72 = arith.constant 2.000000e-01 : f32
    %419 = vector.broadcast %cst_72 : f32 to vector<32x128xf32>
    %420 = arith.mulf %419, %418 : vector<32x128xf32>
    %421 = arith.maximumf %418, %420 : vector<32x128xf32>
    %422 = vector.broadcast %2 : vector<1x128xf32> to vector<32x128xf32>
    %423 = arith.mulf %421, %422 : vector<32x128xf32>
    %424 = arith.addf %231, %423 : vector<32x128xf32>
    %425 = arith.truncf %403 : vector<16x128xf32> to vector<16x128xbf16>
    %cst_73 = arith.constant dense<0.000000e+00> : vector<16x512xf32>
    %426 = tpu.matmul %425, %4, %cst_73 {dimension_numbers = #tpu.dot_dimension_numbers<[1], [0], [0], [1], [0, 0, 1, 1], [], []>} : vector<16x128xbf16>, vector<128x512xbf16>, vector<16x512xf32> -> vector<16x512xf32>
    %427 = vector.extract_strided_slice %426 {offsets = [0, 0], sizes = [16, 128], strides = [1, 1]} : vector<16x512xf32> to vector<16x128xf32>
    %428 = vector.extract_strided_slice %426 {offsets = [0, 128], sizes = [16, 128], strides = [1, 1]} : vector<16x512xf32> to vector<16x128xf32>
    %429 = vector.extract_strided_slice %426 {offsets = [0, 256], sizes = [16, 128], strides = [1, 1]} : vector<16x512xf32> to vector<16x128xf32>
    %430 = vector.extract_strided_slice %426 {offsets = [0, 384], sizes = [16, 128], strides = [1, 1]} : vector<16x512xf32> to vector<16x128xf32>
    %431 = tpu.concatenate %427, %428, %429, %430 in 0 : vector<16x128xf32>, vector<16x128xf32>, vector<16x128xf32>, vector<16x128xf32> -> vector<64x128xf32>
    %432 = arith.truncf %431 : vector<64x128xf32> to vector<64x128xbf16>
    %cst_74 = arith.constant dense<0.000000e+00> : vector<32x128xf32>
    %433 = tpu.matmul %404, %432, %cst_74 {dimension_numbers = #tpu.dot_dimension_numbers<[1], [0], [0], [1], [0, 0, 1, 1], [], []>} : vector<32x64xbf16>, vector<64x128xbf16>, vector<32x128xf32> -> vector<32x128xf32>
    %434 = vector.broadcast %405 : vector<32x1xf32> to vector<32x128xf32>
    %435 = arith.addf %433, %434 : vector<32x128xf32>
    %cst_75 = arith.constant 2.000000e-01 : f32
    %436 = vector.broadcast %cst_75 : f32 to vector<32x128xf32>
    %437 = arith.mulf %436, %435 : vector<32x128xf32>
    %438 = arith.maximumf %435, %437 : vector<32x128xf32>
    %439 = vector.broadcast %2 : vector<1x128xf32> to vector<32x128xf32>
    %440 = arith.mulf %438, %439 : vector<32x128xf32>
    %441 = arith.addf %440, %424 : vector<32x128xf32>
    %c0_76 = arith.constant 0 : index
    %c0_77 = arith.constant 0 : index
    %442 = vector.load %arg23[%c0_76, %c0_77] : memref<32x288xbf16, #tpu.memory_space<vmem>>, vector<32x288xbf16>
    %c0_78 = arith.constant 0 : index
    %c0_79 = arith.constant 0 : index
    %443 = vector.load %arg24[%c0_78, %c0_79] : memref<32x1xf32, #tpu.memory_space<vmem>>, vector<32x1xf32>
    %444 = arith.truncf %441 : vector<32x128xf32> to vector<32x128xbf16>
    %445 = vector.extract_strided_slice %444 {offsets = [0, 121], sizes = [32, 7], strides = [1, 1]} : vector<32x128xbf16> to vector<32x7xbf16>
    %446 = vector.extract_strided_slice %444 {offsets = [0, 0], sizes = [32, 121], strides = [1, 1]} : vector<32x128xbf16> to vector<32x121xbf16>
    %447 = tpu.concatenate %445, %446 in 1 : vector<32x7xbf16>, vector<32x121xbf16> -> vector<32x128xbf16>
    %448 = vector.extract_strided_slice %444 {offsets = [0, 122], sizes = [32, 6], strides = [1, 1]} : vector<32x128xbf16> to vector<32x6xbf16>
    %449 = vector.extract_strided_slice %444 {offsets = [0, 0], sizes = [32, 122], strides = [1, 1]} : vector<32x128xbf16> to vector<32x122xbf16>
    %450 = tpu.concatenate %448, %449 in 1 : vector<32x6xbf16>, vector<32x122xbf16> -> vector<32x128xbf16>
    %451 = vector.extract_strided_slice %444 {offsets = [0, 123], sizes = [32, 5], strides = [1, 1]} : vector<32x128xbf16> to vector<32x5xbf16>
    %452 = vector.extract_strided_slice %444 {offsets = [0, 0], sizes = [32, 123], strides = [1, 1]} : vector<32x128xbf16> to vector<32x123xbf16>
    %453 = tpu.concatenate %451, %452 in 1 : vector<32x5xbf16>, vector<32x123xbf16> -> vector<32x128xbf16>
    %454 = vector.extract_strided_slice %444 {offsets = [0, 127], sizes = [32, 1], strides = [1, 1]} : vector<32x128xbf16> to vector<32x1xbf16>
    %455 = vector.extract_strided_slice %444 {offsets = [0, 0], sizes = [32, 127], strides = [1, 1]} : vector<32x128xbf16> to vector<32x127xbf16>
    %456 = tpu.concatenate %454, %455 in 1 : vector<32x1xbf16>, vector<32x127xbf16> -> vector<32x128xbf16>
    %457 = vector.extract_strided_slice %444 {offsets = [0, 1], sizes = [32, 127], strides = [1, 1]} : vector<32x128xbf16> to vector<32x127xbf16>
    %458 = vector.extract_strided_slice %444 {offsets = [0, 0], sizes = [32, 1], strides = [1, 1]} : vector<32x128xbf16> to vector<32x1xbf16>
    %459 = tpu.concatenate %457, %458 in 1 : vector<32x127xbf16>, vector<32x1xbf16> -> vector<32x128xbf16>
    %460 = vector.extract_strided_slice %444 {offsets = [0, 5], sizes = [32, 123], strides = [1, 1]} : vector<32x128xbf16> to vector<32x123xbf16>
    %461 = vector.extract_strided_slice %444 {offsets = [0, 0], sizes = [32, 5], strides = [1, 1]} : vector<32x128xbf16> to vector<32x5xbf16>
    %462 = tpu.concatenate %460, %461 in 1 : vector<32x123xbf16>, vector<32x5xbf16> -> vector<32x128xbf16>
    %463 = vector.extract_strided_slice %444 {offsets = [0, 6], sizes = [32, 122], strides = [1, 1]} : vector<32x128xbf16> to vector<32x122xbf16>
    %464 = vector.extract_strided_slice %444 {offsets = [0, 0], sizes = [32, 6], strides = [1, 1]} : vector<32x128xbf16> to vector<32x6xbf16>
    %465 = tpu.concatenate %463, %464 in 1 : vector<32x122xbf16>, vector<32x6xbf16> -> vector<32x128xbf16>
    %466 = vector.extract_strided_slice %444 {offsets = [0, 7], sizes = [32, 121], strides = [1, 1]} : vector<32x128xbf16> to vector<32x121xbf16>
    %467 = vector.extract_strided_slice %444 {offsets = [0, 0], sizes = [32, 7], strides = [1, 1]} : vector<32x128xbf16> to vector<32x7xbf16>
    %468 = tpu.concatenate %466, %467 in 1 : vector<32x121xbf16>, vector<32x7xbf16> -> vector<32x128xbf16>
    %469 = tpu.concatenate %447, %450, %453, %456, %444, %459, %462, %465, %468 in 0 : vector<32x128xbf16>, vector<32x128xbf16>, vector<32x128xbf16>, vector<32x128xbf16>, vector<32x128xbf16>, vector<32x128xbf16>, vector<32x128xbf16>, vector<32x128xbf16>, vector<32x128xbf16> -> vector<288x128xbf16>
    %cst_80 = arith.constant dense<0.000000e+00> : vector<32x128xf32>
    %470 = tpu.matmul %442, %469, %cst_80 {dimension_numbers = #tpu.dot_dimension_numbers<[1], [0], [0], [1], [0, 0, 1, 1], [], []>} : vector<32x288xbf16>, vector<288x128xbf16>, vector<32x128xf32> -> vector<32x128xf32>
    %471 = vector.broadcast %443 : vector<32x1xf32> to vector<32x128xf32>
    %472 = arith.addf %470, %471 : vector<32x128xf32>
    %c0_81 = arith.constant 0 : index
    %c0_82 = arith.constant 0 : index
    %473 = vector.load %arg25[%c0_81, %c0_82] : memref<32x128xf32, #tpu.memory_space<vmem>>, vector<32x128xf32>
    tpu.vector_store %arg25[%c0_81, %c0_82], %472 {strides = array<i32>} : memref<32x128xf32, #tpu.memory_space<vmem>>, vector<32x128xf32>,
    return
  }
  func.func @transform_0(%arg0: i32) -> (i32, i32) {
    %c0_i32 = arith.constant 0 : i32
    %c0_i32_0 = arith.constant 0 : i32
    return %c0_i32, %arg0 : i32, i32
  }
  func.func @transform_1(%arg0: i32) -> (i32, i32) {
    %c0_i32 = arith.constant 0 : i32
    %c0_i32_0 = arith.constant 0 : i32
    %c0_i32_1 = arith.constant 0 : i32
    return %c0_i32, %c0_i32_0 : i32, i32
  }
  func.func @transform_2(%arg0: i32) -> (i32, i32) {
    %c0_i32 = arith.constant 0 : i32
    %c0_i32_0 = arith.constant 0 : i32
    %c0_i32_1 = arith.constant 0 : i32
    return %c0_i32, %c0_i32_0 : i32, i32
  }
  func.func @transform_3(%arg0: i32) -> (i32, i32) {
    %c0_i32 = arith.constant 0 : i32
    %c0_i32_0 = arith.constant 0 : i32
    %c0_i32_1 = arith.constant 0 : i32
    return %c0_i32, %c0_i32_0 : i32, i32
  }
  func.func @transform_4(%arg0: i32) -> (i32, i32) {
    %c0_i32 = arith.constant 0 : i32
    %c0_i32_0 = arith.constant 0 : i32
    %c0_i32_1 = arith.constant 0 : i32
    return %c0_i32, %c0_i32_0 : i32, i32
  }
  func.func @transform_5(%arg0: i32) -> (i32, i32) {
    %c0_i32 = arith.constant 0 : i32
    %c0_i32_0 = arith.constant 0 : i32
    %c0_i32_1 = arith.constant 0 : i32
    return %c0_i32, %c0_i32_0 : i32, i32
  }
  func.func @transform_6(%arg0: i32) -> (i32, i32) {
    %c0_i32 = arith.constant 0 : i32
    %c0_i32_0 = arith.constant 0 : i32
    %c0_i32_1 = arith.constant 0 : i32
    return %c0_i32, %c0_i32_0 : i32, i32
  }
  func.func @transform_7(%arg0: i32) -> (i32, i32) {
    %c0_i32 = arith.constant 0 : i32
    %c0_i32_0 = arith.constant 0 : i32
    %c0_i32_1 = arith.constant 0 : i32
    return %c0_i32, %c0_i32_0 : i32, i32
  }
  func.func @transform_8(%arg0: i32) -> (i32, i32) {
    %c0_i32 = arith.constant 0 : i32
    %c0_i32_0 = arith.constant 0 : i32
    %c0_i32_1 = arith.constant 0 : i32
    return %c0_i32, %c0_i32_0 : i32, i32
  }
  func.func @transform_9(%arg0: i32) -> (i32, i32) {
    %c0_i32 = arith.constant 0 : i32
    %c0_i32_0 = arith.constant 0 : i32
    %c0_i32_1 = arith.constant 0 : i32
    return %c0_i32, %c0_i32_0 : i32, i32
  }
  func.func @transform_10(%arg0: i32) -> (i32, i32, i32) {
    %c0_i32 = arith.constant 0 : i32
    %c0_i32_0 = arith.constant 0 : i32
    %c0_i32_1 = arith.constant 0 : i32
    %c0_i32_2 = arith.constant 0 : i32
    return %c0_i32, %c0_i32_0, %c0_i32_1 : i32, i32, i32
  }
  func.func @transform_11(%arg0: i32) -> (i32, i32, i32) {
    %c0_i32 = arith.constant 0 : i32
    %c0_i32_0 = arith.constant 0 : i32
    %c0_i32_1 = arith.constant 0 : i32
    %c0_i32_2 = arith.constant 0 : i32
    return %c0_i32, %c0_i32_0, %c0_i32_1 : i32, i32, i32
  }
  func.func @transform_12(%arg0: i32) -> (i32, i32) {
    %c0_i32 = arith.constant 0 : i32
    %c0_i32_0 = arith.constant 0 : i32
    %c0_i32_1 = arith.constant 0 : i32
    return %c0_i32, %c0_i32_0 : i32, i32
  }
  func.func @transform_13(%arg0: i32) -> (i32, i32) {
    %c0_i32 = arith.constant 0 : i32
    %c0_i32_0 = arith.constant 0 : i32
    %c0_i32_1 = arith.constant 0 : i32
    return %c0_i32, %c0_i32_0 : i32, i32
  }
  func.func @transform_14(%arg0: i32) -> (i32, i32) {
    %c0_i32 = arith.constant 0 : i32
    %c0_i32_0 = arith.constant 0 : i32
    %c0_i32_1 = arith.constant 0 : i32
    return %c0_i32, %c0_i32_0 : i32, i32
  }
  func.func @transform_15(%arg0: i32) -> (i32, i32) {
    %c0_i32 = arith.constant 0 : i32
    %c0_i32_0 = arith.constant 0 : i32
    %c0_i32_1 = arith.constant 0 : i32
    return %c0_i32, %c0_i32_0 : i32, i32
  }
  func.func @transform_16(%arg0: i32) -> (i32, i32, i32) {
    %c0_i32 = arith.constant 0 : i32
    %c0_i32_0 = arith.constant 0 : i32
    %c0_i32_1 = arith.constant 0 : i32
    %c0_i32_2 = arith.constant 0 : i32
    return %c0_i32, %c0_i32_0, %c0_i32_1 : i32, i32, i32
  }
  func.func @transform_17(%arg0: i32) -> (i32, i32, i32) {
    %c0_i32 = arith.constant 0 : i32
    %c0_i32_0 = arith.constant 0 : i32
    %c0_i32_1 = arith.constant 0 : i32
    %c0_i32_2 = arith.constant 0 : i32
    return %c0_i32, %c0_i32_0, %c0_i32_1 : i32, i32, i32
  }
  func.func @transform_18(%arg0: i32) -> (i32, i32) {
    %c0_i32 = arith.constant 0 : i32
    %c0_i32_0 = arith.constant 0 : i32
    %c0_i32_1 = arith.constant 0 : i32
    return %c0_i32, %c0_i32_0 : i32, i32
  }
  func.func @transform_19(%arg0: i32) -> (i32, i32) {
    %c0_i32 = arith.constant 0 : i32
    %c0_i32_0 = arith.constant 0 : i32
    %c0_i32_1 = arith.constant 0 : i32
    return %c0_i32, %c0_i32_0 : i32, i32
  }
  func.func @transform_20(%arg0: i32) -> (i32, i32) {
    %c0_i32 = arith.constant 0 : i32
    %c0_i32_0 = arith.constant 0 : i32
    %c0_i32_1 = arith.constant 0 : i32
    return %c0_i32, %c0_i32_0 : i32, i32
  }
  func.func @transform_21(%arg0: i32) -> (i32, i32) {
    %c0_i32 = arith.constant 0 : i32
    %c0_i32_0 = arith.constant 0 : i32
    %c0_i32_1 = arith.constant 0 : i32
    return %c0_i32, %c0_i32_0 : i32, i32
  }
  func.func @transform_22(%arg0: i32) -> (i32, i32) {
    %c0_i32 = arith.constant 0 : i32
    %c0_i32_0 = arith.constant 0 : i32
    %c0_i32_1 = arith.constant 0 : i32
    return %c0_i32, %c0_i32_0 : i32, i32
  }
  func.func @transform_23(%arg0: i32) -> (i32, i32) {
    %c0_i32 = arith.constant 0 : i32
    %c0_i32_0 = arith.constant 0 : i32
    %c0_i32_1 = arith.constant 0 : i32
    return %c0_i32, %c0_i32_0 : i32, i32
  }
  func.func @transform_24(%arg0: i32) -> (i32, i32) {
    %c0_i32 = arith.constant 0 : i32
    %c0_i32_0 = arith.constant 0 : i32
    return %c0_i32, %arg0 : i32, i32
  }
}

</mosaic_0001>

<llo_original>
// kernel: _lambda_.1
$region0: #{_lambda_.1}
  #allocation0 [shape = 'u32[]', space=smem, size = 0x4, offset = 0x4, fixed_abs, tag = 'smem constant byte address 0x4 - core index']
  #allocation1 [shape = 'u32[144,128]{1,0:T(1,128)}', space=vmem, size = 0x12000, scoped, tag = 'internal scratch']
  %s0 = inlined_call_operand.vmem [shape: f32[1,768], index: 0, kind: input, shape index: {}]
  %s1 = inlined_call_operand.vmem [shape: f32[1,384], index: 1, kind: input, shape index: {}]
  %s2 = inlined_call_operand.vmem [shape: f32[1,128], index: 2, kind: input, shape index: {}]
  %s3 = inlined_call_operand.vmem [shape: f32[1,128], index: 3, kind: input, shape index: {}]
  %s4 = inlined_call_operand.vmem [shape: bf16[384,512], index: 4, kind: input, shape index: {}]
  %s5 = inlined_call_operand.vmem [shape: bf16[128,512], index: 5, kind: input, shape index: {}, may-alias: {5,7}]
  %s6 = inlined_call_operand.vmem [shape: bf16[384,2048], index: 6, kind: input, shape index: {}]
  %s7 = inlined_call_operand.vmem [shape: bf16[128,512], index: 7, kind: input, shape index: {}, may-alias: {5,7}]
  %s8 = inlined_call_operand.vmem [shape: bf16[8,9], index: 8, kind: input, shape index: {}]
  %s9 = inlined_call_operand.vmem [shape: f32[8,1], index: 9, kind: input, shape index: {}]
  %s10 = inlined_call_operand.vmem [shape: bf16[4,8,72], index: 10, kind: input, shape index: {}]
  %s11 = inlined_call_operand.vmem [shape: f32[4,8,1], index: 11, kind: input, shape index: {}]
  %s12 = inlined_call_operand.vmem [shape: bf16[16,32], index: 12, kind: input, shape index: {}]
  %s13 = inlined_call_operand.vmem [shape: f32[16,1], index: 13, kind: input, shape index: {}]
  %s14 = inlined_call_operand.vmem [shape: bf16[32,128], index: 14, kind: input, shape index: {}]
  %s15 = inlined_call_operand.vmem [shape: f32[32,1], index: 15, kind: input, shape index: {}]
  %s16 = inlined_call_operand.vmem [shape: bf16[4,16,144], index: 16, kind: input, shape index: {}]
  %s17 = inlined_call_operand.vmem [shape: f32[4,16,1], index: 17, kind: input, shape index: {}]
  %s18 = inlined_call_operand.vmem [shape: bf16[32,64], index: 18, kind: input, shape index: {}]
  %s19 = inlined_call_operand.vmem [shape: f32[32,1], index: 19, kind: input, shape index: {}]
  %s20 = inlined_call_operand.vmem [shape: bf16[32,64], index: 20, kind: input, shape index: {}]
  %s21 = inlined_call_operand.vmem [shape: f32[32,1], index: 21, kind: input, shape index: {}]
  %s22 = inlined_call_operand.vmem [shape: bf16[32,288], index: 22, kind: input, shape index: {}]
  %s23 = inlined_call_operand.vmem [shape: f32[32,1], index: 23, kind: input, shape index: {}]
  %s24 = inlined_call_operand.vmem [shape: f32[32,256], index: 24, kind: output, shape index: {}]
  %s25 = sld [smem:[#allocation0]]
  $region163: #{_lambda_.1} parent=0
    _
  %s27 = ssub.s32 1, %s25
  %s28 = scalar_select 0, %s27, %s25
  $region1: #{_lambda_.1} parent=0
    #allocation2 [shape = 'u8[32768]{0}', space=vmem, size = 0x8000, scoped, tag = 'output window, operand 0']
    loop: start=0, step=1, limit=4
    $region2: #{_lambda_.1} parent=1 // loop_pre_header
      _
    $region3: #{_lambda_.1} parent=1 // loop_header
      %s30 = sphi 0, %s34
      %p31 = scmp.ge.s32.totalorder %s30, 4
      %s40 = sphi 0, %s42
      %s43 = sphi 0, %s40
      %s44 = sphi 0, %s43
      %s60 = sphi 0, %s44
      %s64 = sphi 0, %s64
      %s66 = sphi 0, %s64
      %s67 = sphi 0, %s66
      %s81 = sphi 0, %s67
      %s85 = sphi 0, %s85
      %s87 = sphi 0, %s85
      %s88 = sphi 0, %s87
      %s102 = sphi 0, %s88
      %s106 = sphi 0, %s106
      %s108 = sphi 0, %s106
      %s109 = sphi 0, %s108
      %s123 = sphi 0, %s109
      %s127 = sphi 0, %s127
      %s129 = sphi 0, %s127
      %s130 = sphi 0, %s129
      %s144 = sphi 0, %s130
      %s148 = sphi 0, %s148
      %s150 = sphi 0, %s148
      %s151 = sphi 0, %s150
      %s165 = sphi 0, %s151
      %s169 = sphi 0, %s169
      %s171 = sphi 0, %s169
      %s172 = sphi 0, %s171
      %s186 = sphi 0, %s172
      %s190 = sphi 0, %s190
      %s192 = sphi 0, %s190
      %s193 = sphi 0, %s192
      %s207 = sphi 0, %s193
      %s211 = sphi 0, %s211
      %s213 = sphi 0, %s211
      %s214 = sphi 0, %s213
      %s228 = sphi 0, %s214
      %s232 = sphi 0, %s232
      %s234 = sphi 0, %s232
      %s235 = sphi 0, %s234
      %s249 = sphi 0, %s235
      %s253 = sphi 0, %s253
      %s255 = sphi 0, %s253
      %s256 = sphi 0, %s255
      %s270 = sphi 0, %s256
      %s274 = sphi 0, %s274
      %s276 = sphi 0, %s274
      %s277 = sphi 0, %s276
      %s291 = sphi 0, %s277
      %s295 = sphi 0, %s295
      %s297 = sphi 0, %s295
      %s298 = sphi 0, %s297
      %s312 = sphi 0, %s298
      %s316 = sphi 0, %s316
      %s318 = sphi 0, %s316
      %s319 = sphi 0, %s318
      %s333 = sphi 0, %s319
      %s337 = sphi 0, %s337
      %s339 = sphi 0, %s337
      %s340 = sphi 0, %s339
      %s354 = sphi 0, %s340
      %s358 = sphi 0, %s358
      %s360 = sphi 0, %s358
      %s361 = sphi 0, %s360
      %s375 = sphi 0, %s361
      %s379 = sphi 0, %s379
      %s381 = sphi 0, %s379
      %s382 = sphi 0, %s381
      %s396 = sphi 0, %s382
      %s400 = sphi 0, %s400
      %s402 = sphi 0, %s400
      %s403 = sphi 0, %s402
      %s417 = sphi 0, %s403
      %s421 = sphi 0, %s421
      %s423 = sphi 0, %s421
      %s424 = sphi 0, %s423
      %s438 = sphi 0, %s424
      %s442 = sphi 0, %s442
      %s444 = sphi 0, %s442
      %s445 = sphi 0, %s444
      %s459 = sphi 0, %s445
      %s463 = sphi 0, %s463
      %s465 = sphi 0, %s463
      %s466 = sphi 0, %s465
      %s480 = sphi 0, %s466
      %s484 = sphi 0, %s484
      %s486 = sphi 0, %s484
      %s487 = sphi 0, %s486
      %s501 = sphi 0, %s487
      %s505 = sphi 0, %s505
      %s507 = sphi 0, %s505
      %s508 = sphi 0, %s507
      %s522 = sphi 0, %s508
      %s526 = sphi 0, %s526
      %s528 = sphi 0, %s526
      %s529 = sphi 0, %s528
      %s543 = sphi 0, %s529
      %s549 = sphi 0, %s551
      %s552 = sphi 0, %s549
      %s553 = sphi 0, %s552
      %s569 = sphi 0, %s553
    $region4: #{_lambda_.1} parent=1 // loop_header_branch
      %33 = sbr.rel (%p31) target = $region8
    $region5: #{_lambda_.1} parent=1 // loop_body
      %s35 = ssub.s32 %s30, 1
      %s36 = ssub.s32 %s30, 2
      %s37 = sadd.s32 %s30, 1
      %s38 = ssub.s32 %s30, %s37
      %p39 = scmp.eq.s32.totalorder %s38, 0
      %s41 = sadd.s32 %s40, 1
      %s42 = scalar_select %p39, %s40, %s41
      %p45 = pneg %p39
      %p46 = scmp.eq.s32.totalorder %s30, 1
      %p47 = por %p45, %p46
      %p48 = scmp.ne.s32.totalorder %s40, %s43
      %p49 = scmp.eq.s32.totalorder %s30, 0
      %p50 = por %p48, %p49
      %p51 = scmp.ne.s32.totalorder %s40, %s43
      %p52 = scmp.eq.s32.totalorder %s35, 1
      %p53 = por %p51, %p52
      %p54 = scmp.ne.s32.totalorder %s43, %s44
      %p55 = scmp.eq.s32.totalorder %s35, 0
      %p56 = por %p54, %p55
      %p57 = scmp.ne.s32.totalorder %s43, %s44
      %p58 = scmp.eq.s32.totalorder %s36, 1
      %p59 = por %p57, %p58
      %p61 = scmp.ne.s32.totalorder %s44, %s60
      %p62 = scmp.eq.s32.totalorder %s36, 0
      %p63 = por %p61, %p62
      %s65 = sadd.s32 %s64, 1
      %p68 = scmp.eq.s32.totalorder %s30, 1
      %p69 = scmp.ne.s32.totalorder %s64, %s66
      %p70 = scmp.eq.s32.totalorder %s30, 0
      %p71 = por %p69, %p70
      %p72 = scmp.ne.s32.totalorder %s64, %s66
      %p73 = scmp.eq.s32.totalorder %s35, 1
      %p74 = por %p72, %p73
      %p75 = scmp.ne.s32.totalorder %s66, %s67
      %p76 = scmp.eq.s32.totalorder %s35, 0
      %p77 = por %p75, %p76
      %p78 = scmp.ne.s32.totalorder %s66, %s67
      %p79 = scmp.eq.s32.totalorder %s36, 1
      %p80 = por %p78, %p79
      %p82 = scmp.ne.s32.totalorder %s67, %s81
      %p83 = scmp.eq.s32.totalorder %s36, 0
      %p84 = por %p82, %p83
      %s86 = sadd.s32 %s85, 1
      %p89 = scmp.eq.s32.totalorder %s30, 1
      %p90 = scmp.ne.s32.totalorder %s85, %s87
      %p91 = scmp.eq.s32.totalorder %s30, 0
      %p92 = por %p90, %p91
      %p93 = scmp.ne.s32.totalorder %s85, %s87
      %p94 = scmp.eq.s32.totalorder %s35, 1
      %p95 = por %p93, %p94
      %p96 = scmp.ne.s32.totalorder %s87, %s88
      %p97 = scmp.eq.s32.totalorder %s35, 0
      %p98 = por %p96, %p97
      %p99 = scmp.ne.s32.totalorder %s87, %s88
      %p100 = scmp.eq.s32.totalorder %s36, 1
      %p101 = por %p99, %p100
      %p103 = scmp.ne.s32.totalorder %s88, %s102
      %p104 = scmp.eq.s32.totalorder %s36, 0
      %p105 = por %p103, %p104
      %s107 = sadd.s32 %s106, 1
      %p110 = scmp.eq.s32.totalorder %s30, 1
      %p111 = scmp.ne.s32.totalorder %s106, %s108
      %p112 = scmp.eq.s32.totalorder %s30, 0
      %p113 = por %p111, %p112
      %p114 = scmp.ne.s32.totalorder %s106, %s108
      %p115 = scmp.eq.s32.totalorder %s35, 1
      %p116 = por %p114, %p115
      %p117 = scmp.ne.s32.totalorder %s108, %s109
      %p118 = scmp.eq.s32.totalorder %s35, 0
      %p119 = por %p117, %p118
      %p120 = scmp.ne.s32.totalorder %s108, %s109
      %p121 = scmp.eq.s32.totalorder %s36, 1
      %p122 = por %p120, %p121
      %p124 = scmp.ne.s32.totalorder %s109, %s123
      %p125 = scmp.eq.s32.totalorder %s36, 0
      %p126 = por %p124, %p125
      %s128 = sadd.s32 %s127, 1
      %p131 = scmp.eq.s32.totalorder %s30, 1
      %p132 = scmp.ne.s32.totalorder %s127, %s129
      %p133 = scmp.eq.s32.totalorder %s30, 0
      %p134 = por %p132, %p133
      %p135 = scmp.ne.s32.totalorder %s127, %s129
      %p136 = scmp.eq.s32.totalorder %s35, 1
      %p137 = por %p135, %p136
      %p138 = scmp.ne.s32.totalorder %s129, %s130
      %p139 = scmp.eq.s32.totalorder %s35, 0
      %p140 = por %p138, %p139
      %p141 = scmp.ne.s32.totalorder %s129, %s130
      %p142 = scmp.eq.s32.totalorder %s36, 1
      %p143 = por %p141, %p142
      %p145 = scmp.ne.s32.totalorder %s130, %s144
      %p146 = scmp.eq.s32.totalorder %s36, 0
      %p147 = por %p145, %p146
      %s149 = sadd.s32 %s148, 1
      %p152 = scmp.eq.s32.totalorder %s30, 1
      %p153 = scmp.ne.s32.totalorder %s148, %s150
      %p154 = scmp.eq.s32.totalorder %s30, 0
      %p155 = por %p153, %p154
      %p156 = scmp.ne.s32.totalorder %s148, %s150
      %p157 = scmp.eq.s32.totalorder %s35, 1
      %p158 = por %p156, %p157
      %p159 = scmp.ne.s32.totalorder %s150, %s151
      %p160 = scmp.eq.s32.totalorder %s35, 0
      %p161 = por %p159, %p160
      %p162 = scmp.ne.s32.totalorder %s150, %s151
      %p163 = scmp.eq.s32.totalorder %s36, 1
      %p164 = por %p162, %p163
      %p166 = scmp.ne.s32.totalorder %s151, %s165
      %p167 = scmp.eq.s32.totalorder %s36, 0
      %p168 = por %p166, %p167
      %s170 = sadd.s32 %s169, 1
      %p173 = scmp.eq.s32.totalorder %s30, 1
      %p174 = scmp.ne.s32.totalorder %s169, %s171
      %p175 = scmp.eq.s32.totalorder %s30, 0
      %p176 = por %p174, %p175
      %p177 = scmp.ne.s32.totalorder %s169, %s171
      %p178 = scmp.eq.s32.totalorder %s35, 1
      %p179 = por %p177, %p178
      %p180 = scmp.ne.s32.totalorder %s171, %s172
      %p181 = scmp.eq.s32.totalorder %s35, 0
      %p182 = por %p180, %p181
      %p183 = scmp.ne.s32.totalorder %s171, %s172
      %p184 = scmp.eq.s32.totalorder %s36, 1
      %p185 = por %p183, %p184
      %p187 = scmp.ne.s32.totalorder %s172, %s186
      %p188 = scmp.eq.s32.totalorder %s36, 0
      %p189 = por %p187, %p188
      %s191 = sadd.s32 %s190, 1
      %p194 = scmp.eq.s32.totalorder %s30, 1
      %p195 = scmp.ne.s32.totalorder %s190, %s192
      %p196 = scmp.eq.s32.totalorder %s30, 0
      %p197 = por %p195, %p196
      %p198 = scmp.ne.s32.totalorder %s190, %s192
      %p199 = scmp.eq.s32.totalorder %s35, 1
      %p200 = por %p198, %p199
      %p201 = scmp.ne.s32.totalorder %s192, %s193
      %p202 = scmp.eq.s32.totalorder %s35, 0
      %p203 = por %p201, %p202
      %p204 = scmp.ne.s32.totalorder %s192, %s193
      %p205 = scmp.eq.s32.totalorder %s36, 1
      %p206 = por %p204, %p205
      %p208 = scmp.ne.s32.totalorder %s193, %s207
      %p209 = scmp.eq.s32.totalorder %s36, 0
      %p210 = por %p208, %p209
      %s212 = sadd.s32 %s211, 1
      %p215 = scmp.eq.s32.totalorder %s30, 1
      %p216 = scmp.ne.s32.totalorder %s211, %s213
      %p217 = scmp.eq.s32.totalorder %s30, 0
      %p218 = por %p216, %p217
      %p219 = scmp.ne.s32.totalorder %s211, %s213
      %p220 = scmp.eq.s32.totalorder %s35, 1
      %p221 = por %p219, %p220
      %p222 = scmp.ne.s32.totalorder %s213, %s214
      %p223 = scmp.eq.s32.totalorder %s35, 0
      %p224 = por %p222, %p223
      %p225 = scmp.ne.s32.totalorder %s213, %s214
      %p226 = scmp.eq.s32.totalorder %s36, 1
      %p227 = por %p225, %p226
      %p229 = scmp.ne.s32.totalorder %s214, %s228
      %p230 = scmp.eq.s32.totalorder %s36, 0
      %p231 = por %p229, %p230
      %s233 = sadd.s32 %s232, 1
      %p236 = scmp.eq.s32.totalorder %s30, 1
      %p237 = scmp.ne.s32.totalorder %s232, %s234
      %p238 = scmp.eq.s32.totalorder %s30, 0
      %p239 = por %p237, %p238
      %p240 = scmp.ne.s32.totalorder %s232, %s234
      %p241 = scmp.eq.s32.totalorder %s35, 1
      %p242 = por %p240, %p241
      %p243 = scmp.ne.s32.totalorder %s234, %s235
      %p244 = scmp.eq.s32.totalorder %s35, 0
      %p245 = por %p243, %p244
      %p246 = scmp.ne.s32.totalorder %s234, %s235
      %p247 = scmp.eq.s32.totalorder %s36, 1
      %p248 = por %p246, %p247
      %p250 = scmp.ne.s32.totalorder %s235, %s249
      %p251 = scmp.eq.s32.totalorder %s36, 0
      %p252 = por %p250, %p251
      %s254 = sadd.s32 %s253, 1
      %p257 = scmp.eq.s32.totalorder %s30, 1
      %p258 = scmp.ne.s32.totalorder %s253, %s255
      %p259 = scmp.eq.s32.totalorder %s30, 0
      %p260 = por %p258, %p259
      %p261 = scmp.ne.s32.totalorder %s253, %s255
      %p262 = scmp.eq.s32.totalorder %s35, 1
      %p263 = por %p261, %p262
      %p264 = scmp.ne.s32.totalorder %s255, %s256
      %p265 = scmp.eq.s32.totalorder %s35, 0
      %p266 = por %p264, %p265
      %p267 = scmp.ne.s32.totalorder %s255, %s256
      %p268 = scmp.eq.s32.totalorder %s36, 1
      %p269 = por %p267, %p268
      %p271 = scmp.ne.s32.totalorder %s256, %s270
      %p272 = scmp.eq.s32.totalorder %s36, 0
      %p273 = por %p271, %p272
      %s275 = sadd.s32 %s274, 1
      %p278 = scmp.eq.s32.totalorder %s30, 1
      %p279 = scmp.ne.s32.totalorder %s274, %s276
      %p280 = scmp.eq.s32.totalorder %s30, 0
      %p281 = por %p279, %p280
      %p282 = scmp.ne.s32.totalorder %s274, %s276
      %p283 = scmp.eq.s32.totalorder %s35, 1
      %p284 = por %p282, %p283
      %p285 = scmp.ne.s32.totalorder %s276, %s277
      %p286 = scmp.eq.s32.totalorder %s35, 0
      %p287 = por %p285, %p286
      %p288 = scmp.ne.s32.totalorder %s276, %s277
      %p289 = scmp.eq.s32.totalorder %s36, 1
      %p290 = por %p288, %p289
      %p292 = scmp.ne.s32.totalorder %s277, %s291
      %p293 = scmp.eq.s32.totalorder %s36, 0
      %p294 = por %p292, %p293
      %s296 = sadd.s32 %s295, 1
      %p299 = scmp.eq.s32.totalorder %s30, 1
      %p300 = scmp.ne.s32.totalorder %s295, %s297
      %p301 = scmp.eq.s32.totalorder %s30, 0
      %p302 = por %p300, %p301
      %p303 = scmp.ne.s32.totalorder %s295, %s297
      %p304 = scmp.eq.s32.totalorder %s35, 1
      %p305 = por %p303, %p304
      %p306 = scmp.ne.s32.totalorder %s297, %s298
      %p307 = scmp.eq.s32.totalorder %s35, 0
      %p308 = por %p306, %p307
      %p309 = scmp.ne.s32.totalorder %s297, %s298
      %p310 = scmp.eq.s32.totalorder %s36, 1
      %p311 = por %p309, %p310
      %p313 = scmp.ne.s32.totalorder %s298, %s312
      %p314 = scmp.eq.s32.totalorder %s36, 0
      %p315 = por %p313, %p314
      %s317 = sadd.s32 %s316, 1
      %p320 = scmp.eq.s32.totalorder %s30, 1
      %p321 = scmp.ne.s32.totalorder %s316, %s318
      %p322 = scmp.eq.s32.totalorder %s30, 0
      %p323 = por %p321, %p322
      %p324 = scmp.ne.s32.totalorder %s316, %s318
      %p325 = scmp.eq.s32.totalorder %s35, 1
      %p326 = por %p324, %p325
      %p327 = scmp.ne.s32.totalorder %s318, %s319
      %p328 = scmp.eq.s32.totalorder %s35, 0
      %p329 = por %p327, %p328
      %p330 = scmp.ne.s32.totalorder %s318, %s319
      %p331 = scmp.eq.s32.totalorder %s36, 1
      %p332 = por %p330, %p331
      %p334 = scmp.ne.s32.totalorder %s319, %s333
      %p335 = scmp.eq.s32.totalorder %s36, 0
      %p336 = por %p334, %p335
      %s338 = sadd.s32 %s337, 1
      %p341 = scmp.eq.s32.totalorder %s30, 1
      %p342 = scmp.ne.s32.totalorder %s337, %s339
      %p343 = scmp.eq.s32.totalorder %s30, 0
      %p344 = por %p342, %p343
      %p345 = scmp.ne.s32.totalorder %s337, %s339
      %p346 = scmp.eq.s32.totalorder %s35, 1
      %p347 = por %p345, %p346
      %p348 = scmp.ne.s32.totalorder %s339, %s340
      %p349 = scmp.eq.s32.totalorder %s35, 0
      %p350 = por %p348, %p349
      %p351 = scmp.ne.s32.totalorder %s339, %s340
      %p352 = scmp.eq.s32.totalorder %s36, 1
      %p353 = por %p351, %p352
      %p355 = scmp.ne.s32.totalorder %s340, %s354
      %p356 = scmp.eq.s32.totalorder %s36, 0
      %p357 = por %p355, %p356
      %s359 = sadd.s32 %s358, 1
      %p362 = scmp.eq.s32.totalorder %s30, 1
      %p363 = scmp.ne.s32.totalorder %s358, %s360
      %p364 = scmp.eq.s32.totalorder %s30, 0
      %p365 = por %p363, %p364
      %p366 = scmp.ne.s32.totalorder %s358, %s360
      %p367 = scmp.eq.s32.totalorder %s35, 1
      %p368 = por %p366, %p367
      %p369 = scmp.ne.s32.totalorder %s360, %s361
      %p370 = scmp.eq.s32.totalorder %s35, 0
      %p371 = por %p369, %p370
      %p372 = scmp.ne.s32.totalorder %s360, %s361
      %p373 = scmp.eq.s32.totalorder %s36, 1
      %p374 = por %p372, %p373
      %p376 = scmp.ne.s32.totalorder %s361, %s375
      %p377 = scmp.eq.s32.totalorder %s36, 0
      %p378 = por %p376, %p377
      %s380 = sadd.s32 %s379, 1
      %p383 = scmp.eq.s32.totalorder %s30, 1
      %p384 = scmp.ne.s32.totalorder %s379, %s381
      %p385 = scmp.eq.s32.totalorder %s30, 0
      %p386 = por %p384, %p385
      %p387 = scmp.ne.s32.totalorder %s379, %s381
      %p388 = scmp.eq.s32.totalorder %s35, 1
      %p389 = por %p387, %p388
      %p390 = scmp.ne.s32.totalorder %s381, %s382
      %p391 = scmp.eq.s32.totalorder %s35, 0
      %p392 = por %p390, %p391
      %p393 = scmp.ne.s32.totalorder %s381, %s382
      %p394 = scmp.eq.s32.totalorder %s36, 1
      %p395 = por %p393, %p394
      %p397 = scmp.ne.s32.totalorder %s382, %s396
      %p398 = scmp.eq.s32.totalorder %s36, 0
      %p399 = por %p397, %p398
      %s401 = sadd.s32 %s400, 1
      %p404 = scmp.eq.s32.totalorder %s30, 1
      %p405 = scmp.ne.s32.totalorder %s400, %s402
      %p406 = scmp.eq.s32.totalorder %s30, 0
      %p407 = por %p405, %p406
      %p408 = scmp.ne.s32.totalorder %s400, %s402
      %p409 = scmp.eq.s32.totalorder %s35, 1
      %p410 = por %p408, %p409
      %p411 = scmp.ne.s32.totalorder %s402, %s403
      %p412 = scmp.eq.s32.totalorder %s35, 0
      %p413 = por %p411, %p412
      %p414 = scmp.ne.s32.totalorder %s402, %s403
      %p415 = scmp.eq.s32.totalorder %s36, 1
      %p416 = por %p414, %p415
      %p418 = scmp.ne.s32.totalorder %s403, %s417
      %p419 = scmp.eq.s32.totalorder %s36, 0
      %p420 = por %p418, %p419
      %s422 = sadd.s32 %s421, 1
      %p425 = scmp.eq.s32.totalorder %s30, 1
      %p426 = scmp.ne.s32.totalorder %s421, %s423
      %p427 = scmp.eq.s32.totalorder %s30, 0
      %p428 = por %p426, %p427
      %p429 = scmp.ne.s32.totalorder %s421, %s423
      %p430 = scmp.eq.s32.totalorder %s35, 1
      %p431 = por %p429, %p430
      %p432 = scmp.ne.s32.totalorder %s423, %s424
      %p433 = scmp.eq.s32.totalorder %s35, 0
      %p434 = por %p432, %p433
      %p435 = scmp.ne.s32.totalorder %s423, %s424
      %p436 = scmp.eq.s32.totalorder %s36, 1
      %p437 = por %p435, %p436
      %p439 = scmp.ne.s32.totalorder %s424, %s438
      %p440 = scmp.eq.s32.totalorder %s36, 0
      %p441 = por %p439, %p440
      %s443 = sadd.s32 %s442, 1
      %p446 = scmp.eq.s32.totalorder %s30, 1
      %p447 = scmp.ne.s32.totalorder %s442, %s444
      %p448 = scmp.eq.s32.totalorder %s30, 0
      %p449 = por %p447, %p448
      %p450 = scmp.ne.s32.totalorder %s442, %s444
      %p451 = scmp.eq.s32.totalorder %s35, 1
      %p452 = por %p450, %p451
      %p453 = scmp.ne.s32.totalorder %s444, %s445
      %p454 = scmp.eq.s32.totalorder %s35, 0
      %p455 = por %p453, %p454
      %p456 = scmp.ne.s32.totalorder %s444, %s445
      %p457 = scmp.eq.s32.totalorder %s36, 1
      %p458 = por %p456, %p457
      %p460 = scmp.ne.s32.totalorder %s445, %s459
      %p461 = scmp.eq.s32.totalorder %s36, 0
      %p462 = por %p460, %p461
      %s464 = sadd.s32 %s463, 1
      %p467 = scmp.eq.s32.totalorder %s30, 1
      %p468 = scmp.ne.s32.totalorder %s463, %s465
      %p469 = scmp.eq.s32.totalorder %s30, 0
      %p470 = por %p468, %p469
      %p471 = scmp.ne.s32.totalorder %s463, %s465
      %p472 = scmp.eq.s32.totalorder %s35, 1
      %p473 = por %p471, %p472
      %p474 = scmp.ne.s32.totalorder %s465, %s466
      %p475 = scmp.eq.s32.totalorder %s35, 0
      %p476 = por %p474, %p475
      %p477 = scmp.ne.s32.totalorder %s465, %s466
      %p478 = scmp.eq.s32.totalorder %s36, 1
      %p479 = por %p477, %p478
      %p481 = scmp.ne.s32.totalorder %s466, %s480
      %p482 = scmp.eq.s32.totalorder %s36, 0
      %p483 = por %p481, %p482
      %s485 = sadd.s32 %s484, 1
      %p488 = scmp.eq.s32.totalorder %s30, 1
      %p489 = scmp.ne.s32.totalorder %s484, %s486
      %p490 = scmp.eq.s32.totalorder %s30, 0
      %p491 = por %p489, %p490
      %p492 = scmp.ne.s32.totalorder %s484, %s486
      %p493 = scmp.eq.s32.totalorder %s35, 1
      %p494 = por %p492, %p493
      %p495 = scmp.ne.s32.totalorder %s486, %s487
      %p496 = scmp.eq.s32.totalorder %s35, 0
      %p497 = por %p495, %p496
      %p498 = scmp.ne.s32.totalorder %s486, %s487
      %p499 = scmp.eq.s32.totalorder %s36, 1
      %p500 = por %p498, %p499
      %p502 = scmp.ne.s32.totalorder %s487, %s501
      %p503 = scmp.eq.s32.totalorder %s36, 0
      %p504 = por %p502, %p503
      %s506 = sadd.s32 %s505, 1
      %p509 = scmp.eq.s32.totalorder %s30, 1
      %p510 = scmp.ne.s32.totalorder %s505, %s507
      %p511 = scmp.eq.s32.totalorder %s30, 0
      %p512 = por %p510, %p511
      %p513 = scmp.ne.s32.totalorder %s505, %s507
      %p514 = scmp.eq.s32.totalorder %s35, 1
      %p515 = por %p513, %p514
      %p516 = scmp.ne.s32.totalorder %s507, %s508
      %p517 = scmp.eq.s32.totalorder %s35, 0
      %p518 = por %p516, %p517
      %p519 = scmp.ne.s32.totalorder %s507, %s508
      %p520 = scmp.eq.s32.totalorder %s36, 1
      %p521 = por %p519, %p520
      %p523 = scmp.ne.s32.totalorder %s508, %s522
      %p524 = scmp.eq.s32.totalorder %s36, 0
      %p525 = por %p523, %p524
      %s527 = sadd.s32 %s526, 1
      %p530 = scmp.eq.s32.totalorder %s30, 1
      %p531 = scmp.ne.s32.totalorder %s526, %s528
      %p532 = scmp.eq.s32.totalorder %s30, 0
      %p533 = por %p531, %p532
      %p534 = scmp.ne.s32.totalorder %s526, %s528
      %p535 = scmp.eq.s32.totalorder %s35, 1
      %p536 = por %p534, %p535
      %p537 = scmp.ne.s32.totalorder %s528, %s529
      %p538 = scmp.eq.s32.totalorder %s35, 0
      %p539 = por %p537, %p538
      %p540 = scmp.ne.s32.totalorder %s528, %s529
      %p541 = scmp.eq.s32.totalorder %s36, 1
      %p542 = por %p540, %p541
      %p544 = scmp.ne.s32.totalorder %s529, %s543
      %p545 = scmp.eq.s32.totalorder %s36, 0
      %p546 = por %p544, %p545
      %s547 = ssub.s32 %s30, %s37
      %p548 = scmp.eq.s32.totalorder %s547, 0
      %s550 = sadd.s32 %s549, 1
      %s551 = scalar_select %p548, %s549, %s550
      %p554 = pneg %p548
      %p555 = scmp.eq.s32.totalorder %s30, 1
      %p556 = por %p554, %p555
      %p557 = scmp.ne.s32.totalorder %s549, %s552
      %p558 = scmp.eq.s32.totalorder %s30, 0
      %p559 = por %p557, %p558
      %p560 = scmp.ne.s32.totalorder %s549, %s552
      %p561 = scmp.eq.s32.totalorder %s35, 1
      %p562 = por %p560, %p561
      %p563 = scmp.ne.s32.totalorder %s552, %s553
      %p564 = scmp.eq.s32.totalorder %s35, 0
      %p565 = por %p563, %p564
      %p566 = scmp.ne.s32.totalorder %s552, %s553
      %p567 = scmp.eq.s32.totalorder %s36, 1
      %p568 = por %p566, %p567
      %p570 = scmp.ne.s32.totalorder %s553, %s569
      %p571 = scmp.eq.s32.totalorder %s36, 0
      %p572 = por %p570, %p571
      %p573 = scmp.le.s32.totalorder 1, %s30
      %p574 = scmp.lt.s32.totalorder %s30, 3
      %p575 = pnand %p573, %p574
      %p576 = pneg %p575
      // Predicated region
      $region9: #{_lambda_.1} parent=5 // pred_check
        _
      $region10: #{_lambda_.1} parent=5 // pred_check_branch
        %578 = sbr.rel (%p575) target = $region12
      $region11: #{_lambda_.1} parent=5 // pred_region
        %s579 = ssub.s32 %s30, 1
        // Predicated region
        $region13: #{_lambda_.1} parent=11 // pred_check
          %p580 = pneg %p77
        $region14: #{_lambda_.1} parent=11 // pred_check_branch
          %582 = sbr.rel (%p580) target = $region16
        $region15: #{_lambda_.1} parent=11 // pred_region
          _
        $region16: #{_lambda_.1} parent=11 // pred_fallthru
          _
        // Predicated region
        $region17: #{_lambda_.1} parent=11 // pred_check
          %p583 = pneg %p98
        $region18: #{_lambda_.1} parent=11 // pred_check_branch
          %585 = sbr.rel (%p583) target = $region20
        $region19: #{_lambda_.1} parent=11 // pred_region
          _
        $region20: #{_lambda_.1} parent=11 // pred_fallthru
          _
        // Predicated region
        $region21: #{_lambda_.1} parent=11 // pred_check
          %p586 = pneg %p119
        $region22: #{_lambda_.1} parent=11 // pred_check_branch
          %588 = sbr.rel (%p586) target = $region24
        $region23: #{_lambda_.1} parent=11 // pred_region
          _
        $region24: #{_lambda_.1} parent=11 // pred_fallthru
          _
        // Predicated region
        $region25: #{_lambda_.1} parent=11 // pred_check
          %p589 = pneg %p140
        $region26: #{_lambda_.1} parent=11 // pred_check_branch
          %591 = sbr.rel (%p589) target = $region28
        $region27: #{_lambda_.1} parent=11 // pred_region
          _
        $region28: #{_lambda_.1} parent=11 // pred_fallthru
          _
        // Predicated region
        $region29: #{_lambda_.1} parent=11 // pred_check
          %p592 = pneg %p161
        $region30: #{_lambda_.1} parent=11 // pred_check_branch
          %594 = sbr.rel (%p592) target = $region32
        $region31: #{_lambda_.1} parent=11 // pred_region
          _
        $region32: #{_lambda_.1} parent=11 // pred_fallthru
          _
        // Predicated region
        $region33: #{_lambda_.1} parent=11 // pred_check
          %p595 = pneg %p182
        $region34: #{_lambda_.1} parent=11 // pred_check_branch
          %597 = sbr.rel (%p595) target = $region36
        $region35: #{_lambda_.1} parent=11 // pred_region
          _
        $region36: #{_lambda_.1} parent=11 // pred_fallthru
          _
        // Predicated region
        $region37: #{_lambda_.1} parent=11 // pred_check
          %p598 = pneg %p203
        $region38: #{_lambda_.1} parent=11 // pred_check_branch
          %600 = sbr.rel (%p598) target = $region40
        $region39: #{_lambda_.1} parent=11 // pred_region
          _
        $region40: #{_lambda_.1} parent=11 // pred_fallthru
          _
        // Predicated region
        $region41: #{_lambda_.1} parent=11 // pred_check
          %p601 = pneg %p224
        $region42: #{_lambda_.1} parent=11 // pred_check_branch
          %603 = sbr.rel (%p601) target = $region44
        $region43: #{_lambda_.1} parent=11 // pred_region
          _
        $region44: #{_lambda_.1} parent=11 // pred_fallthru
          _
        // Predicated region
        $region45: #{_lambda_.1} parent=11 // pred_check
          %p604 = pneg %p245
        $region46: #{_lambda_.1} parent=11 // pred_check_branch
          %606 = sbr.rel (%p604) target = $region48
        $region47: #{_lambda_.1} parent=11 // pred_region
          _
        $region48: #{_lambda_.1} parent=11 // pred_fallthru
          _
        // Predicated region
        $region49: #{_lambda_.1} parent=11 // pred_check
          %p607 = pneg %p266
        $region50: #{_lambda_.1} parent=11 // pred_check_branch
          %609 = sbr.rel (%p607) target = $region52
        $region51: #{_lambda_.1} parent=11 // pred_region
          _
        $region52: #{_lambda_.1} parent=11 // pred_fallthru
          _
        // Predicated region
        $region53: #{_lambda_.1} parent=11 // pred_check
          %p610 = pneg %p287
        $region54: #{_lambda_.1} parent=11 // pred_check_branch
          %612 = sbr.rel (%p610) target = $region56
        $region55: #{_lambda_.1} parent=11 // pred_region
          _
        $region56: #{_lambda_.1} parent=11 // pred_fallthru
          _
        // Predicated region
        $region57: #{_lambda_.1} parent=11 // pred_check
          %p613 = pneg %p308
        $region58: #{_lambda_.1} parent=11 // pred_check_branch
          %615 = sbr.rel (%p613) target = $region60
        $region59: #{_lambda_.1} parent=11 // pred_region
          _
        $region60: #{_lambda_.1} parent=11 // pred_fallthru
          _
        // Predicated region
        $region61: #{_lambda_.1} parent=11 // pred_check
          %p616 = pneg %p329
        $region62: #{_lambda_.1} parent=11 // pred_check_branch
          %618 = sbr.rel (%p616) target = $region64
        $region63: #{_lambda_.1} parent=11 // pred_region
          _
        $region64: #{_lambda_.1} parent=11 // pred_fallthru
          _
        // Predicated region
        $region65: #{_lambda_.1} parent=11 // pred_check
          %p619 = pneg %p350
        $region66: #{_lambda_.1} parent=11 // pred_check_branch
          %621 = sbr.rel (%p619) target = $region68
        $region67: #{_lambda_.1} parent=11 // pred_region
          _
        $region68: #{_lambda_.1} parent=11 // pred_fallthru
          _
        // Predicated region
        $region69: #{_lambda_.1} parent=11 // pred_check
          %p622 = pneg %p371
        $region70: #{_lambda_.1} parent=11 // pred_check_branch
          %624 = sbr.rel (%p622) target = $region72
        $region71: #{_lambda_.1} parent=11 // pred_region
          _
        $region72: #{_lambda_.1} parent=11 // pred_fallthru
          _
        // Predicated region
        $region73: #{_lambda_.1} parent=11 // pred_check
          %p625 = pneg %p392
        $region74: #{_lambda_.1} parent=11 // pred_check_branch
          %627 = sbr.rel (%p625) target = $region76
        $region75: #{_lambda_.1} parent=11 // pred_region
          _
        $region76: #{_lambda_.1} parent=11 // pred_fallthru
          _
        // Predicated region
        $region77: #{_lambda_.1} parent=11 // pred_check
          %p628 = pneg %p413
        $region78: #{_lambda_.1} parent=11 // pred_check_branch
          %630 = sbr.rel (%p628) target = $region80
        $region79: #{_lambda_.1} parent=11 // pred_region
          _
        $region80: #{_lambda_.1} parent=11 // pred_fallthru
          _
        // Predicated region
        $region81: #{_lambda_.1} parent=11 // pred_check
          %p631 = pneg %p434
        $region82: #{_lambda_.1} parent=11 // pred_check_branch
          %633 = sbr.rel (%p631) target = $region84
        $region83: #{_lambda_.1} parent=11 // pred_region
          _
        $region84: #{_lambda_.1} parent=11 // pred_fallthru
          _
        // Predicated region
        $region85: #{_lambda_.1} parent=11 // pred_check
          %p634 = pneg %p455
        $region86: #{_lambda_.1} parent=11 // pred_check_branch
          %636 = sbr.rel (%p634) target = $region88
        $region87: #{_lambda_.1} parent=11 // pred_region
          _
        $region88: #{_lambda_.1} parent=11 // pred_fallthru
          _
        // Predicated region
        $region89: #{_lambda_.1} parent=11 // pred_check
          %p637 = pneg %p476
        $region90: #{_lambda_.1} parent=11 // pred_check_branch
          %639 = sbr.rel (%p637) target = $region92
        $region91: #{_lambda_.1} parent=11 // pred_region
          _
        $region92: #{_lambda_.1} parent=11 // pred_fallthru
          _
        // Predicated region
        $region93: #{_lambda_.1} parent=11 // pred_check
          %p640 = pneg %p497
        $region94: #{_lambda_.1} parent=11 // pred_check_branch
          %642 = sbr.rel (%p640) target = $region96
        $region95: #{_lambda_.1} parent=11 // pred_region
          _
        $region96: #{_lambda_.1} parent=11 // pred_fallthru
          _
        // Predicated region
        $region97: #{_lambda_.1} parent=11 // pred_check
          %p643 = pneg %p518
        $region98: #{_lambda_.1} parent=11 // pred_check_branch
          %645 = sbr.rel (%p643) target = $region100
        $region99: #{_lambda_.1} parent=11 // pred_region
          _
        $region100: #{_lambda_.1} parent=11 // pred_fallthru
          _
        // Predicated region
        $region101: #{_lambda_.1} parent=11 // pred_check
          %p646 = pneg %p539
        $region102: #{_lambda_.1} parent=11 // pred_check_branch
          %648 = sbr.rel (%p646) target = $region104
        $region103: #{_lambda_.1} parent=11 // pred_region
          _
        $region104: #{_lambda_.1} parent=11 // pred_fallthru
          _
      $region12: #{_lambda_.1} parent=5 // pred_fallthru
        _
      %p649 = scmp.lt.s32.totalorder %s30, 2
      // Predicated region
      $region105: #{_lambda_.1} parent=5 // pred_check
        %p650 = pneg %p649
      $region106: #{_lambda_.1} parent=5 // pred_check_branch
        %652 = sbr.rel (%p650) target = $region108
      $region107: #{_lambda_.1} parent=5 // pred_region
        // Predicated region
        $region109: #{_lambda_.1} parent=107 // pred_check
          %p653 = pneg %p50
        $region110: #{_lambda_.1} parent=107 // pred_check_branch
          %655 = sbr.rel (%p653) target = $region112
        $region111: #{_lambda_.1} parent=107 // pred_region
          %s656 = smul.u32 3, %s30
          %p657 = scmp.lt.s32.totalorder %s656, 5
          %s658 = scalar_select %p657, %s656, 5
          %s659 = scalar_lea.vmem %s0, %s658
          %s660 = smul.u32 3, %s30
        $region112: #{_lambda_.1} parent=107 // pred_fallthru
          _
      $region108: #{_lambda_.1} parent=5 // pred_fallthru
        _
      %p661 = scmp.le.s32.totalorder 1, %s30
      %p662 = scmp.lt.s32.totalorder %s30, 3
      %p663 = pnand %p661, %p662
      %p664 = pneg %p663
      // Predicated region
      $region113: #{_lambda_.1} parent=5 // pred_check
        _
      $region114: #{_lambda_.1} parent=5 // pred_check_branch
        %666 = sbr.rel (%p663) target = $region116
      $region115: #{_lambda_.1} parent=5 // pred_region
        %s667 = ssub.s32 %s30, 1
        %s668 = smul.u32 3, %s35
        %p669 = scmp.lt.s32.totalorder %s668, 5
        %s670 = scalar_select %p669, %s668, 5
        %s671 = scalar_lea.vmem %s0, %s670
        %p672 = pneg %p56
        %p673 = pneg %p53
        %p674 = pneg %p77
        %p675 = pneg %p74
        %p676 = pneg %p98
        %p677 = pneg %p95
        %p678 = pneg %p119
        %p679 = pneg %p116
        %p680 = pneg %p140
        %p681 = pneg %p137
        %p682 = pneg %p161
        %p683 = pneg %p158
        %p684 = pneg %p182
        %p685 = pneg %p179
        %p686 = pneg %p203
        %p687 = pneg %p200
        %p688 = pneg %p224
        %p689 = pneg %p221
        %p690 = pneg %p245
        %p691 = pneg %p242
        %p692 = pneg %p266
        %p693 = pneg %p263
        %p694 = pneg %p287
        %p695 = pneg %p284
        %p696 = pneg %p308
        %p697 = pneg %p305
        %p698 = pneg %p329
        %p699 = pneg %p326
        %p700 = pneg %p350
        %p701 = pneg %p347
        %p702 = pneg %p371
        %p703 = pneg %p368
        %p704 = pneg %p392
        %p705 = pneg %p389
        %p706 = pneg %p413
        %p707 = pneg %p410
        %p708 = pneg %p434
        %p709 = pneg %p431
        %p710 = pneg %p455
        %p711 = pneg %p452
        %p712 = pneg %p476
        %p713 = pneg %p473
        %p714 = pneg %p497
        %p715 = pneg %p494
        %p716 = pneg %p518
        %p717 = pneg %p515
        %p718 = pneg %p539
        %p719 = pneg %p536
        %p720 = pneg %p565
        %p721 = pneg %p562
        %s722 = sand.u32 %s552, 1
        %s723 = sand.u32 %s552, 1
        %s724 = smul.addr %s723, 32
        %s725 = scalar_lea.vmem [#allocation2], %s724
        %s726 = smul.u32 3, %s35
        %p727 = scmp.lt.s32.totalorder %s726, 5
        %s728 = scalar_select %p727, %s726, 5
        %s729 = scalar_lea.vmem %s0, %s728
        %s730 = smul.u32 3, %s35
        %v732 = vld [vmem:[%s1] sm:$0x7]
        %v733 = vld [vmem:[%s2] sm:$0x1]
        %v734 = vld [vmem:[%s3] sm:$0x1]
        %v735 = vld [vmem:[%s4] sm:$0xff]
        %v736 = vld [vmem:[%s4 + $0x8] sm:$0xff]
        %v737 = vld [vmem:[%s4 + $0x10] sm:$0xff]
        %v738 = vld [vmem:[%s4 + $0x18] sm:$0xff]
        %v739 = vld [vmem:[%s4 + $0x20] sm:$0xff]
        %v740 = vld [vmem:[%s4 + $0x28] sm:$0xff]
        %v741 = vld [vmem:[%s4 + $0x30] sm:$0xff]
        %v742 = vld [vmem:[%s4 + $0x38] sm:$0xff]
        %v743 = vld [vmem:[%s4 + $0x40] sm:$0xff]
        %v744 = vld [vmem:[%s4 + $0x48] sm:$0xff]
        %v745 = vld [vmem:[%s4 + $0x50] sm:$0xff]
        %v746 = vld [vmem:[%s4 + $0x58] sm:$0xff]
        %v747 = vld [vmem:[%s4 + $0x60] sm:$0xff]
        %v748 = vld [vmem:[%s4 + $0x68] sm:$0xff]
        %v749 = vld [vmem:[%s4 + $0x70] sm:$0xff]
        %v750 = vld [vmem:[%s4 + $0x78] sm:$0xff]
        %v751 = vld [vmem:[%s4 + $0x80] sm:$0xff]
        %v752 = vld [vmem:[%s4 + $0x88] sm:$0xff]
        %v753 = vld [vmem:[%s4 + $0x90] sm:$0xff]
        %v754 = vld [vmem:[%s4 + $0x98] sm:$0xff]
        %v755 = vld [vmem:[%s4 + $0xa0] sm:$0xff]
        %v756 = vld [vmem:[%s4 + $0xa8] sm:$0xff]
        %v757 = vld [vmem:[%s4 + $0xb0] sm:$0xff]
        %v758 = vld [vmem:[%s4 + $0xb8] sm:$0xff]
        %v759 = vld [vmem:[%s4 + $0xc0] sm:$0xff]
        %v760 = vld [vmem:[%s4 + $0xc8] sm:$0xff]
        %v761 = vld [vmem:[%s4 + $0xd0] sm:$0xff]
        %v762 = vld [vmem:[%s4 + $0xd8] sm:$0xff]
        %v763 = vld [vmem:[%s4 + $0xe0] sm:$0xff]
        %v764 = vld [vmem:[%s4 + $0xe8] sm:$0xff]
        %v765 = vld [vmem:[%s4 + $0xf0] sm:$0xff]
        %v766 = vld [vmem:[%s4 + $0xf8] sm:$0xff]
        %v767 = vld [vmem:[%s4 + $0x100] sm:$0xff]
        %v768 = vld [vmem:[%s4 + $0x108] sm:$0xff]
        %v769 = vld [vmem:[%s4 + $0x110] sm:$0xff]
        %v770 = vld [vmem:[%s4 + $0x118] sm:$0xff]
        %v771 = vld [vmem:[%s4 + $0x120] sm:$0xff]
        %v772 = vld [vmem:[%s4 + $0x128] sm:$0xff]
        %v773 = vld [vmem:[%s4 + $0x130] sm:$0xff]
        %v774 = vld [vmem:[%s4 + $0x138] sm:$0xff]
        %v775 = vld [vmem:[%s4 + $0x140] sm:$0xff]
        %v776 = vld [vmem:[%s4 + $0x148] sm:$0xff]
        %v777 = vld [vmem:[%s4 + $0x150] sm:$0xff]
        %v778 = vld [vmem:[%s4 + $0x158] sm:$0xff]
        %v779 = vld [vmem:[%s4 + $0x160] sm:$0xff]
        %v780 = vld [vmem:[%s4 + $0x168] sm:$0xff]
        %v781 = vld [vmem:[%s4 + $0x170] sm:$0xff]
        %v782 = vld [vmem:[%s4 + $0x178] sm:$0xff]
        %v783 = vld [vmem:[%s4 + $0x180] sm:$0xff]
        %v784 = vld [vmem:[%s4 + $0x188] sm:$0xff]
        %v785 = vld [vmem:[%s4 + $0x190] sm:$0xff]
        %v786 = vld [vmem:[%s4 + $0x198] sm:$0xff]
        %v787 = vld [vmem:[%s4 + $0x1a0] sm:$0xff]
        %v788 = vld [vmem:[%s4 + $0x1a8] sm:$0xff]
        %v789 = vld [vmem:[%s4 + $0x1b0] sm:$0xff]
        %v790 = vld [vmem:[%s4 + $0x1b8] sm:$0xff]
        %v791 = vld [vmem:[%s4 + $0x1c0] sm:$0xff]
        %v792 = vld [vmem:[%s4 + $0x1c8] sm:$0xff]
        %v793 = vld [vmem:[%s4 + $0x1d0] sm:$0xff]
        %v794 = vld [vmem:[%s4 + $0x1d8] sm:$0xff]
        %v795 = vld [vmem:[%s4 + $0x1e0] sm:$0xff]
        %v796 = vld [vmem:[%s4 + $0x1e8] sm:$0xff]
        %v797 = vld [vmem:[%s4 + $0x1f0] sm:$0xff]
        %v798 = vld [vmem:[%s4 + $0x1f8] sm:$0xff]
        %v799 = vld [vmem:[%s4 + $0x200] sm:$0xff]
        %v800 = vld [vmem:[%s4 + $0x208] sm:$0xff]
        %v801 = vld [vmem:[%s4 + $0x210] sm:$0xff]
        %v802 = vld [vmem:[%s4 + $0x218] sm:$0xff]
        %v803 = vld [vmem:[%s4 + $0x220] sm:$0xff]
        %v804 = vld [vmem:[%s4 + $0x228] sm:$0xff]
        %v805 = vld [vmem:[%s4 + $0x230] sm:$0xff]
        %v806 = vld [vmem:[%s4 + $0x238] sm:$0xff]
        %v807 = vld [vmem:[%s4 + $0x240] sm:$0xff]
        %v808 = vld [vmem:[%s4 + $0x248] sm:$0xff]
        %v809 = vld [vmem:[%s4 + $0x250] sm:$0xff]
        %v810 = vld [vmem:[%s4 + $0x258] sm:$0xff]
        %v811 = vld [vmem:[%s4 + $0x260] sm:$0xff]
        %v812 = vld [vmem:[%s4 + $0x268] sm:$0xff]
        %v813 = vld [vmem:[%s4 + $0x270] sm:$0xff]
        %v814 = vld [vmem:[%s4 + $0x278] sm:$0xff]
        %v815 = vld [vmem:[%s4 + $0x280] sm:$0xff]
        %v816 = vld [vmem:[%s4 + $0x288] sm:$0xff]
        %v817 = vld [vmem:[%s4 + $0x290] sm:$0xff]
        %v818 = vld [vmem:[%s4 + $0x298] sm:$0xff]
        %v819 = vld [vmem:[%s4 + $0x2a0] sm:$0xff]
        %v820 = vld [vmem:[%s4 + $0x2a8] sm:$0xff]
        %v821 = vld [vmem:[%s4 + $0x2b0] sm:$0xff]
        %v822 = vld [vmem:[%s4 + $0x2b8] sm:$0xff]
        %v823 = vld [vmem:[%s4 + $0x2c0] sm:$0xff]
        %v824 = vld [vmem:[%s4 + $0x2c8] sm:$0xff]
        %v825 = vld [vmem:[%s4 + $0x2d0] sm:$0xff]
        %v826 = vld [vmem:[%s4 + $0x2d8] sm:$0xff]
        %v827 = vld [vmem:[%s4 + $0x2e0] sm:$0xff]
        %v828 = vld [vmem:[%s4 + $0x2e8] sm:$0xff]
        %v829 = vld [vmem:[%s4 + $0x2f0] sm:$0xff]
        %v830 = vld [vmem:[%s4 + $0x2f8] sm:$0xff]
        %v831 = vld [vmem:[%s5] sm:$0xff]
        %v832 = vld [vmem:[%s5 + $0x8] sm:$0xff]
        %v833 = vld [vmem:[%s5 + $0x10] sm:$0xff]
        %v834 = vld [vmem:[%s5 + $0x18] sm:$0xff]
        %v835 = vld [vmem:[%s5 + $0x20] sm:$0xff]
        %v836 = vld [vmem:[%s5 + $0x28] sm:$0xff]
        %v837 = vld [vmem:[%s5 + $0x30] sm:$0xff]
        %v838 = vld [vmem:[%s5 + $0x38] sm:$0xff]
        %v839 = vld [vmem:[%s5 + $0x40] sm:$0xff]
        %v840 = vld [vmem:[%s5 + $0x48] sm:$0xff]
        %v841 = vld [vmem:[%s5 + $0x50] sm:$0xff]
        %v842 = vld [vmem:[%s5 + $0x58] sm:$0xff]
        %v843 = vld [vmem:[%s5 + $0x60] sm:$0xff]
        %v844 = vld [vmem:[%s5 + $0x68] sm:$0xff]
        %v845 = vld [vmem:[%s5 + $0x70] sm:$0xff]
        %v846 = vld [vmem:[%s5 + $0x78] sm:$0xff]
        %v847 = vld [vmem:[%s5 + $0x80] sm:$0xff]
        %v848 = vld [vmem:[%s5 + $0x88] sm:$0xff]
        %v849 = vld [vmem:[%s5 + $0x90] sm:$0xff]
        %v850 = vld [vmem:[%s5 + $0x98] sm:$0xff]
        %v851 = vld [vmem:[%s5 + $0xa0] sm:$0xff]
        %v852 = vld [vmem:[%s5 + $0xa8] sm:$0xff]
        %v853 = vld [vmem:[%s5 + $0xb0] sm:$0xff]
        %v854 = vld [vmem:[%s5 + $0xb8] sm:$0xff]
        %v855 = vld [vmem:[%s5 + $0xc0] sm:$0xff]
        %v856 = vld [vmem:[%s5 + $0xc8] sm:$0xff]
        %v857 = vld [vmem:[%s5 + $0xd0] sm:$0xff]
        %v858 = vld [vmem:[%s5 + $0xd8] sm:$0xff]
        %v859 = vld [vmem:[%s5 + $0xe0] sm:$0xff]
        %v860 = vld [vmem:[%s5 + $0xe8] sm:$0xff]
        %v861 = vld [vmem:[%s5 + $0xf0] sm:$0xff]
        %v862 = vld [vmem:[%s5 + $0xf8] sm:$0xff]
        %v863 = vld [vmem:[%s6] sm:$0xff]
        %v864 = vld [vmem:[%s6 + $0x8] sm:$0xff]
        %v865 = vld [vmem:[%s6 + $0x10] sm:$0xff]
        %v866 = vld [vmem:[%s6 + $0x18] sm:$0xff]
        %v867 = vld [vmem:[%s6 + $0x20] sm:$0xff]
        %v868 = vld [vmem:[%s6 + $0x28] sm:$0xff]
        %v869 = vld [vmem:[%s6 + $0x30] sm:$0xff]
        %v870 = vld [vmem:[%s6 + $0x38] sm:$0xff]
        %v871 = vld [vmem:[%s6 + $0x40] sm:$0xff]
        %v872 = vld [vmem:[%s6 + $0x48] sm:$0xff]
        %v873 = vld [vmem:[%s6 + $0x50] sm:$0xff]
        %v874 = vld [vmem:[%s6 + $0x58] sm:$0xff]
        %v875 = vld [vmem:[%s6 + $0x60] sm:$0xff]
        %v876 = vld [vmem:[%s6 + $0x68] sm:$0xff]
        %v877 = vld [vmem:[%s6 + $0x70] sm:$0xff]
        %v878 = vld [vmem:[%s6 + $0x78] sm:$0xff]
        %v879 = vld [vmem:[%s6 + $0x80] sm:$0xff]
        %v880 = vld [vmem:[%s6 + $0x88] sm:$0xff]
        %v881 = vld [vmem:[%s6 + $0x90] sm:$0xff]
        %v882 = vld [vmem:[%s6 + $0x98] sm:$0xff]
        %v883 = vld [vmem:[%s6 + $0xa0] sm:$0xff]
        %v884 = vld [vmem:[%s6 + $0xa8] sm:$0xff]
        %v885 = vld [vmem:[%s6 + $0xb0] sm:$0xff]
        %v886 = vld [vmem:[%s6 + $0xb8] sm:$0xff]
        %v887 = vld [vmem:[%s6 + $0xc0] sm:$0xff]
        %v888 = vld [vmem:[%s6 + $0xc8] sm:$0xff]
        %v889 = vld [vmem:[%s6 + $0xd0] sm:$0xff]
        %v890 = vld [vmem:[%s6 + $0xd8] sm:$0xff]
        %v891 = vld [vmem:[%s6 + $0xe0] sm:$0xff]
        %v892 = vld [vmem:[%s6 + $0xe8] sm:$0xff]
        %v893 = vld [vmem:[%s6 + $0xf0] sm:$0xff]
        %v894 = vld [vmem:[%s6 + $0xf8] sm:$0xff]
        %v895 = vld [vmem:[%s6 + $0x100] sm:$0xff]
        %v896 = vld [vmem:[%s6 + $0x108] sm:$0xff]
        %v897 = vld [vmem:[%s6 + $0x110] sm:$0xff]
        %v898 = vld [vmem:[%s6 + $0x118] sm:$0xff]
        %v899 = vld [vmem:[%s6 + $0x120] sm:$0xff]
        %v900 = vld [vmem:[%s6 + $0x128] sm:$0xff]
        %v901 = vld [vmem:[%s6 + $0x130] sm:$0xff]
        %v902 = vld [vmem:[%s6 + $0x138] sm:$0xff]
        %v903 = vld [vmem:[%s6 + $0x140] sm:$0xff]
        %v904 = vld [vmem:[%s6 + $0x148] sm:$0xff]
        %v905 = vld [vmem:[%s6 + $0x150] sm:$0xff]
        %v906 = vld [vmem:[%s6 + $0x158] sm:$0xff]
        %v907 = vld [vmem:[%s6 + $0x160] sm:$0xff]
        %v908 = vld [vmem:[%s6 + $0x168] sm:$0xff]
        %v909 = vld [vmem:[%s6 + $0x170] sm:$0xff]
        %v910 = vld [vmem:[%s6 + $0x178] sm:$0xff]
        %v911 = vld [vmem:[%s6 + $0x180] sm:$0xff]
        %v912 = vld [vmem:[%s6 + $0x188] sm:$0xff]
        %v913 = vld [vmem:[%s6 + $0x190] sm:$0xff]
        %v914 = vld [vmem:[%s6 + $0x198] sm:$0xff]
        %v915 = vld [vmem:[%s6 + $0x1a0] sm:$0xff]
        %v916 = vld [vmem:[%s6 + $0x1a8] sm:$0xff]
        %v917 = vld [vmem:[%s6 + $0x1b0] sm:$0xff]
        %v918 = vld [vmem:[%s6 + $0x1b8] sm:$0xff]
        %v919 = vld [vmem:[%s6 + $0x1c0] sm:$0xff]
        %v920 = vld [vmem:[%s6 + $0x1c8] sm:$0xff]
        %v921 = vld [vmem:[%s6 + $0x1d0] sm:$0xff]
        %v922 = vld [vmem:[%s6 + $0x1d8] sm:$0xff]
        %v923 = vld [vmem:[%s6 + $0x1e0] sm:$0xff]
        %v924 = vld [vmem:[%s6 + $0x1e8] sm:$0xff]
        %v925 = vld [vmem:[%s6 + $0x1f0] sm:$0xff]
        %v926 = vld [vmem:[%s6 + $0x1f8] sm:$0xff]
        %v927 = vld [vmem:[%s6 + $0x200] sm:$0xff]
        %v928 = vld [vmem:[%s6 + $0x208] sm:$0xff]
        %v929 = vld [vmem:[%s6 + $0x210] sm:$0xff]
        %v930 = vld [vmem:[%s6 + $0x218] sm:$0xff]
        %v931 = vld [vmem:[%s6 + $0x220] sm:$0xff]
        %v932 = vld [vmem:[%s6 + $0x228] sm:$0xff]
        %v933 = vld [vmem:[%s6 + $0x230] sm:$0xff]
        %v934 = vld [vmem:[%s6 + $0x238] sm:$0xff]
        %v935 = vld [vmem:[%s6 + $0x240] sm:$0xff]
        %v936 = vld [vmem:[%s6 + $0x248] sm:$0xff]
        %v937 = vld [vmem:[%s6 + $0x250] sm:$0xff]
        %v938 = vld [vmem:[%s6 + $0x258] sm:$0xff]
        %v939 = vld [vmem:[%s6 + $0x260] sm:$0xff]
        %v940 = vld [vmem:[%s6 + $0x268] sm:$0xff]
        %v941 = vld [vmem:[%s6 + $0x270] sm:$0xff]
        %v942 = vld [vmem:[%s6 + $0x278] sm:$0xff]
        %v943 = vld [vmem:[%s6 + $0x280] sm:$0xff]
        %v944 = vld [vmem:[%s6 + $0x288] sm:$0xff]
        %v945 = vld [vmem:[%s6 + $0x290] sm:$0xff]
        %v946 = vld [vmem:[%s6 + $0x298] sm:$0xff]
        %v947 = vld [vmem:[%s6 + $0x2a0] sm:$0xff]
        %v948 = vld [vmem:[%s6 + $0x2a8] sm:$0xff]
        %v949 = vld [vmem:[%s6 + $0x2b0] sm:$0xff]
        %v950 = vld [vmem:[%s6 + $0x2b8] sm:$0xff]
        %v951 = vld [vmem:[%s6 + $0x2c0] sm:$0xff]
        %v952 = vld [vmem:[%s6 + $0x2c8] sm:$0xff]
        %v953 = vld [vmem:[%s6 + $0x2d0] sm:$0xff]
        %v954 = vld [vmem:[%s6 + $0x2d8] sm:$0xff]
        %v955 = vld [vmem:[%s6 + $0x2e0] sm:$0xff]
        %v956 = vld [vmem:[%s6 + $0x2e8] sm:$0xff]
        %v957 = vld [vmem:[%s6 + $0x2f0] sm:$0xff]
        %v958 = vld [vmem:[%s6 + $0x2f8] sm:$0xff]
        %v959 = vld [vmem:[%s6 + $0x300] sm:$0xff]
        %v960 = vld [vmem:[%s6 + $0x308] sm:$0xff]
        %v961 = vld [vmem:[%s6 + $0x310] sm:$0xff]
        %v962 = vld [vmem:[%s6 + $0x318] sm:$0xff]
        %v963 = vld [vmem:[%s6 + $0x320] sm:$0xff]
        %v964 = vld [vmem:[%s6 + $0x328] sm:$0xff]
        %v965 = vld [vmem:[%s6 + $0x330] sm:$0xff]
        %v966 = vld [vmem:[%s6 + $0x338] sm:$0xff]
        %v967 = vld [vmem:[%s6 + $0x340] sm:$0xff]
        %v968 = vld [vmem:[%s6 + $0x348] sm:$0xff]
        %v969 = vld [vmem:[%s6 + $0x350] sm:$0xff]
        %v970 = vld [vmem:[%s6 + $0x358] sm:$0xff]
        %v971 = vld [vmem:[%s6 + $0x360] sm:$0xff]
        %v972 = vld [vmem:[%s6 + $0x368] sm:$0xff]
        %v973 = vld [vmem:[%s6 + $0x370] sm:$0xff]
        %v974 = vld [vmem:[%s6 + $0x378] sm:$0xff]
        %v975 = vld [vmem:[%s6 + $0x380] sm:$0xff]
        %v976 = vld [vmem:[%s6 + $0x388] sm:$0xff]
        %v977 = vld [vmem:[%s6 + $0x390] sm:$0xff]
        %v978 = vld [vmem:[%s6 + $0x398] sm:$0xff]
        %v979 = vld [vmem:[%s6 + $0x3a0] sm:$0xff]
        %v980 = vld [vmem:[%s6 + $0x3a8] sm:$0xff]
        %v981 = vld [vmem:[%s6 + $0x3b0] sm:$0xff]
        %v982 = vld [vmem:[%s6 + $0x3b8] sm:$0xff]
        %v983 = vld [vmem:[%s6 + $0x3c0] sm:$0xff]
        %v984 = vld [vmem:[%s6 + $0x3c8] sm:$0xff]
        %v985 = vld [vmem:[%s6 + $0x3d0] sm:$0xff]
        %v986 = vld [vmem:[%s6 + $0x3d8] sm:$0xff]
        %v987 = vld [vmem:[%s6 + $0x3e0] sm:$0xff]
        %v988 = vld [vmem:[%s6 + $0x3e8] sm:$0xff]
        %v989 = vld [vmem:[%s6 + $0x3f0] sm:$0xff]
        %v990 = vld [vmem:[%s6 + $0x3f8] sm:$0xff]
        %v991 = vld [vmem:[%s6 + $0x400] sm:$0xff]
        %v992 = vld [vmem:[%s6 + $0x408] sm:$0xff]
        %v993 = vld [vmem:[%s6 + $0x410] sm:$0xff]
        %v994 = vld [vmem:[%s6 + $0x418] sm:$0xff]
        %v995 = vld [vmem:[%s6 + $0x420] sm:$0xff]
        %v996 = vld [vmem:[%s6 + $0x428] sm:$0xff]
        %v997 = vld [vmem:[%s6 + $0x430] sm:$0xff]
        %v998 = vld [vmem:[%s6 + $0x438] sm:$0xff]
        %v999 = vld [vmem:[%s6 + $0x440] sm:$0xff]
        %v1000 = vld [vmem:[%s6 + $0x448] sm:$0xff]
        %v1001 = vld [vmem:[%s6 + $0x450] sm:$0xff]
        %v1002 = vld [vmem:[%s6 + $0x458] sm:$0xff]
        %v1003 = vld [vmem:[%s6 + $0x460] sm:$0xff]
        %v1004 = vld [vmem:[%s6 + $0x468] sm:$0xff]
        %v1005 = vld [vmem:[%s6 + $0x470] sm:$0xff]
        %v1006 = vld [vmem:[%s6 + $0x478] sm:$0xff]
        %v1007 = vld [vmem:[%s6 + $0x480] sm:$0xff]
        %v1008 = vld [vmem:[%s6 + $0x488] sm:$0xff]
        %v1009 = vld [vmem:[%s6 + $0x490] sm:$0xff]
        %v1010 = vld [vmem:[%s6 + $0x498] sm:$0xff]
        %v1011 = vld [vmem:[%s6 + $0x4a0] sm:$0xff]
        %v1012 = vld [vmem:[%s6 + $0x4a8] sm:$0xff]
        %v1013 = vld [vmem:[%s6 + $0x4b0] sm:$0xff]
        %v1014 = vld [vmem:[%s6 + $0x4b8] sm:$0xff]
        %v1015 = vld [vmem:[%s6 + $0x4c0] sm:$0xff]
        %v1016 = vld [vmem:[%s6 + $0x4c8] sm:$0xff]
        %v1017 = vld [vmem:[%s6 + $0x4d0] sm:$0xff]
        %v1018 = vld [vmem:[%s6 + $0x4d8] sm:$0xff]
        %v1019 = vld [vmem:[%s6 + $0x4e0] sm:$0xff]
        %v1020 = vld [vmem:[%s6 + $0x4e8] sm:$0xff]
        %v1021 = vld [vmem:[%s6 + $0x4f0] sm:$0xff]
        %v1022 = vld [vmem:[%s6 + $0x4f8] sm:$0xff]
        %v1023 = vld [vmem:[%s6 + $0x500] sm:$0xff]
        %v1024 = vld [vmem:[%s6 + $0x508] sm:$0xff]
        %v1025 = vld [vmem:[%s6 + $0x510] sm:$0xff]
        %v1026 = vld [vmem:[%s6 + $0x518] sm:$0xff]
        %v1027 = vld [vmem:[%s6 + $0x520] sm:$0xff]
        %v1028 = vld [vmem:[%s6 + $0x528] sm:$0xff]
        %v1029 = vld [vmem:[%s6 + $0x530] sm:$0xff]
        %v1030 = vld [vmem:[%s6 + $0x538] sm:$0xff]
        %v1031 = vld [vmem:[%s6 + $0x540] sm:$0xff]
        %v1032 = vld [vmem:[%s6 + $0x548] sm:$0xff]
        %v1033 = vld [vmem:[%s6 + $0x550] sm:$0xff]
        %v1034 = vld [vmem:[%s6 + $0x558] sm:$0xff]
        %v1035 = vld [vmem:[%s6 + $0x560] sm:$0xff]
        %v1036 = vld [vmem:[%s6 + $0x568] sm:$0xff]
        %v1037 = vld [vmem:[%s6 + $0x570] sm:$0xff]
        %v1038 = vld [vmem:[%s6 + $0x578] sm:$0xff]
        %v1039 = vld [vmem:[%s6 + $0x580] sm:$0xff]
        %v1040 = vld [vmem:[%s6 + $0x588] sm:$0xff]
        %v1041 = vld [vmem:[%s6 + $0x590] sm:$0xff]
        %v1042 = vld [vmem:[%s6 + $0x598] sm:$0xff]
        %v1043 = vld [vmem:[%s6 + $0x5a0] sm:$0xff]
        %v1044 = vld [vmem:[%s6 + $0x5a8] sm:$0xff]
        %v1045 = vld [vmem:[%s6 + $0x5b0] sm:$0xff]
        %v1046 = vld [vmem:[%s6 + $0x5b8] sm:$0xff]
        %v1047 = vld [vmem:[%s6 + $0x5c0] sm:$0xff]
        %v1048 = vld [vmem:[%s6 + $0x5c8] sm:$0xff]
        %v1049 = vld [vmem:[%s6 + $0x5d0] sm:$0xff]
        %v1050 = vld [vmem:[%s6 + $0x5d8] sm:$0xff]
        %v1051 = vld [vmem:[%s6 + $0x5e0] sm:$0xff]
        %v1052 = vld [vmem:[%s6 + $0x5e8] sm:$0xff]
        %v1053 = vld [vmem:[%s6 + $0x5f0] sm:$0xff]
        %v1054 = vld [vmem:[%s6 + $0x5f8] sm:$0xff]
        %v1055 = vld [vmem:[%s6 + $0x600] sm:$0xff]
        %v1056 = vld [vmem:[%s6 + $0x608] sm:$0xff]
        %v1057 = vld [vmem:[%s6 + $0x610] sm:$0xff]
        %v1058 = vld [vmem:[%s6 + $0x618] sm:$0xff]
        %v1059 = vld [vmem:[%s6 + $0x620] sm:$0xff]
        %v1060 = vld [vmem:[%s6 + $0x628] sm:$0xff]
        %v1061 = vld [vmem:[%s6 + $0x630] sm:$0xff]
        %v1062 = vld [vmem:[%s6 + $0x638] sm:$0xff]
        %v1063 = vld [vmem:[%s6 + $0x640] sm:$0xff]
        %v1064 = vld [vmem:[%s6 + $0x648] sm:$0xff]
        %v1065 = vld [vmem:[%s6 + $0x650] sm:$0xff]
        %v1066 = vld [vmem:[%s6 + $0x658] sm:$0xff]
        %v1067 = vld [vmem:[%s6 + $0x660] sm:$0xff]
        %v1068 = vld [vmem:[%s6 + $0x668] sm:$0xff]
        %v1069 = vld [vmem:[%s6 + $0x670] sm:$0xff]
        %v1070 = vld [vmem:[%s6 + $0x678] sm:$0xff]
        %v1071 = vld [vmem:[%s6 + $0x680] sm:$0xff]
        %v1072 = vld [vmem:[%s6 + $0x688] sm:$0xff]
        %v1073 = vld [vmem:[%s6 + $0x690] sm:$0xff]
        %v1074 = vld [vmem:[%s6 + $0x698] sm:$0xff]
        %v1075 = vld [vmem:[%s6 + $0x6a0] sm:$0xff]
        %v1076 = vld [vmem:[%s6 + $0x6a8] sm:$0xff]
        %v1077 = vld [vmem:[%s6 + $0x6b0] sm:$0xff]
        %v1078 = vld [vmem:[%s6 + $0x6b8] sm:$0xff]
        %v1079 = vld [vmem:[%s6 + $0x6c0] sm:$0xff]
        %v1080 = vld [vmem:[%s6 + $0x6c8] sm:$0xff]
        %v1081 = vld [vmem:[%s6 + $0x6d0] sm:$0xff]
        %v1082 = vld [vmem:[%s6 + $0x6d8] sm:$0xff]
        %v1083 = vld [vmem:[%s6 + $0x6e0] sm:$0xff]
        %v1084 = vld [vmem:[%s6 + $0x6e8] sm:$0xff]
        %v1085 = vld [vmem:[%s6 + $0x6f0] sm:$0xff]
        %v1086 = vld [vmem:[%s6 + $0x6f8] sm:$0xff]
        %v1087 = vld [vmem:[%s6 + $0x700] sm:$0xff]
        %v1088 = vld [vmem:[%s6 + $0x708] sm:$0xff]
        %v1089 = vld [vmem:[%s6 + $0x710] sm:$0xff]
        %v1090 = vld [vmem:[%s6 + $0x718] sm:$0xff]
        %v1091 = vld [vmem:[%s6 + $0x720] sm:$0xff]
        %v1092 = vld [vmem:[%s6 + $0x728] sm:$0xff]
        %v1093 = vld [vmem:[%s6 + $0x730] sm:$0xff]
        %v1094 = vld [vmem:[%s6 + $0x738] sm:$0xff]
        %v1095 = vld [vmem:[%s6 + $0x740] sm:$0xff]
        %v1096 = vld [vmem:[%s6 + $0x748] sm:$0xff]
        %v1097 = vld [vmem:[%s6 + $0x750] sm:$0xff]
        %v1098 = vld [vmem:[%s6 + $0x758] sm:$0xff]
        %v1099 = vld [vmem:[%s6 + $0x760] sm:$0xff]
        %v1100 = vld [vmem:[%s6 + $0x768] sm:$0xff]
        %v1101 = vld [vmem:[%s6 + $0x770] sm:$0xff]
        %v1102 = vld [vmem:[%s6 + $0x778] sm:$0xff]
        %v1103 = vld [vmem:[%s6 + $0x780] sm:$0xff]
        %v1104 = vld [vmem:[%s6 + $0x788] sm:$0xff]
        %v1105 = vld [vmem:[%s6 + $0x790] sm:$0xff]
        %v1106 = vld [vmem:[%s6 + $0x798] sm:$0xff]
        %v1107 = vld [vmem:[%s6 + $0x7a0] sm:$0xff]
        %v1108 = vld [vmem:[%s6 + $0x7a8] sm:$0xff]
        %v1109 = vld [vmem:[%s6 + $0x7b0] sm:$0xff]
        %v1110 = vld [vmem:[%s6 + $0x7b8] sm:$0xff]
        %v1111 = vld [vmem:[%s6 + $0x7c0] sm:$0xff]
        %v1112 = vld [vmem:[%s6 + $0x7c8] sm:$0xff]
        %v1113 = vld [vmem:[%s6 + $0x7d0] sm:$0xff]
        %v1114 = vld [vmem:[%s6 + $0x7d8] sm:$0xff]
        %v1115 = vld [vmem:[%s6 + $0x7e0] sm:$0xff]
        %v1116 = vld [vmem:[%s6 + $0x7e8] sm:$0xff]
        %v1117 = vld [vmem:[%s6 + $0x7f0] sm:$0xff]
        %v1118 = vld [vmem:[%s6 + $0x7f8] sm:$0xff]
        %v1119 = vld [vmem:[%s6 + $0x800] sm:$0xff]
        %v1120 = vld [vmem:[%s6 + $0x808] sm:$0xff]
        %v1121 = vld [vmem:[%s6 + $0x810] sm:$0xff]
        %v1122 = vld [vmem:[%s6 + $0x818] sm:$0xff]
        %v1123 = vld [vmem:[%s6 + $0x820] sm:$0xff]
        %v1124 = vld [vmem:[%s6 + $0x828] sm:$0xff]
        %v1125 = vld [vmem:[%s6 + $0x830] sm:$0xff]
        %v1126 = vld [vmem:[%s6 + $0x838] sm:$0xff]
        %v1127 = vld [vmem:[%s6 + $0x840] sm:$0xff]
        %v1128 = vld [vmem:[%s6 + $0x848] sm:$0xff]
        %v1129 = vld [vmem:[%s6 + $0x850] sm:$0xff]
        %v1130 = vld [vmem:[%s6 + $0x858] sm:$0xff]
        %v1131 = vld [vmem:[%s6 + $0x860] sm:$0xff]
        %v1132 = vld [vmem:[%s6 + $0x868] sm:$0xff]
        %v1133 = vld [vmem:[%s6 + $0x870] sm:$0xff]
        %v1134 = vld [vmem:[%s6 + $0x878] sm:$0xff]
        %v1135 = vld [vmem:[%s6 + $0x880] sm:$0xff]
        %v1136 = vld [vmem:[%s6 + $0x888] sm:$0xff]
        %v1137 = vld [vmem:[%s6 + $0x890] sm:$0xff]
        %v1138 = vld [vmem:[%s6 + $0x898] sm:$0xff]
        %v1139 = vld [vmem:[%s6 + $0x8a0] sm:$0xff]
        %v1140 = vld [vmem:[%s6 + $0x8a8] sm:$0xff]
        %v1141 = vld [vmem:[%s6 + $0x8b0] sm:$0xff]
        %v1142 = vld [vmem:[%s6 + $0x8b8] sm:$0xff]
        %v1143 = vld [vmem:[%s6 + $0x8c0] sm:$0xff]
        %v1144 = vld [vmem:[%s6 + $0x8c8] sm:$0xff]
        %v1145 = vld [vmem:[%s6 + $0x8d0] sm:$0xff]
        %v1146 = vld [vmem:[%s6 + $0x8d8] sm:$0xff]
        %v1147 = vld [vmem:[%s6 + $0x8e0] sm:$0xff]
        %v1148 = vld [vmem:[%s6 + $0x8e8] sm:$0xff]
        %v1149 = vld [vmem:[%s6 + $0x8f0] sm:$0xff]
        %v1150 = vld [vmem:[%s6 + $0x8f8] sm:$0xff]
        %v1151 = vld [vmem:[%s6 + $0x900] sm:$0xff]
        %v1152 = vld [vmem:[%s6 + $0x908] sm:$0xff]
        %v1153 = vld [vmem:[%s6 + $0x910] sm:$0xff]
        %v1154 = vld [vmem:[%s6 + $0x918] sm:$0xff]
        %v1155 = vld [vmem:[%s6 + $0x920] sm:$0xff]
        %v1156 = vld [vmem:[%s6 + $0x928] sm:$0xff]
        %v1157 = vld [vmem:[%s6 + $0x930] sm:$0xff]
        %v1158 = vld [vmem:[%s6 + $0x938] sm:$0xff]
        %v1159 = vld [vmem:[%s6 + $0x940] sm:$0xff]
        %v1160 = vld [vmem:[%s6 + $0x948] sm:$0xff]
        %v1161 = vld [vmem:[%s6 + $0x950] sm:$0xff]
        %v1162 = vld [vmem:[%s6 + $0x958] sm:$0xff]
        %v1163 = vld [vmem:[%s6 + $0x960] sm:$0xff]
        %v1164 = vld [vmem:[%s6 + $0x968] sm:$0xff]
        %v1165 = vld [vmem:[%s6 + $0x970] sm:$0xff]
        %v1166 = vld [vmem:[%s6 + $0x978] sm:$0xff]
        %v1167 = vld [vmem:[%s6 + $0x980] sm:$0xff]
        %v1168 = vld [vmem:[%s6 + $0x988] sm:$0xff]
        %v1169 = vld [vmem:[%s6 + $0x990] sm:$0xff]
        %v1170 = vld [vmem:[%s6 + $0x998] sm:$0xff]
        %v1171 = vld [vmem:[%s6 + $0x9a0] sm:$0xff]
        %v1172 = vld [vmem:[%s6 + $0x9a8] sm:$0xff]
        %v1173 = vld [vmem:[%s6 + $0x9b0] sm:$0xff]
        %v1174 = vld [vmem:[%s6 + $0x9b8] sm:$0xff]
        %v1175 = vld [vmem:[%s6 + $0x9c0] sm:$0xff]
        %v1176 = vld [vmem:[%s6 + $0x9c8] sm:$0xff]
        %v1177 = vld [vmem:[%s6 + $0x9d0] sm:$0xff]
        %v1178 = vld [vmem:[%s6 + $0x9d8] sm:$0xff]
        %v1179 = vld [vmem:[%s6 + $0x9e0] sm:$0xff]
        %v1180 = vld [vmem:[%s6 + $0x9e8] sm:$0xff]
        %v1181 = vld [vmem:[%s6 + $0x9f0] sm:$0xff]
        %v1182 = vld [vmem:[%s6 + $0x9f8] sm:$0xff]
        %v1183 = vld [vmem:[%s6 + $0xa00] sm:$0xff]
        %v1184 = vld [vmem:[%s6 + $0xa08] sm:$0xff]
        %v1185 = vld [vmem:[%s6 + $0xa10] sm:$0xff]
        %v1186 = vld [vmem:[%s6 + $0xa18] sm:$0xff]
        %v1187 = vld [vmem:[%s6 + $0xa20] sm:$0xff]
        %v1188 = vld [vmem:[%s6 + $0xa28] sm:$0xff]
        %v1189 = vld [vmem:[%s6 + $0xa30] sm:$0xff]
        %v1190 = vld [vmem:[%s6 + $0xa38] sm:$0xff]
        %v1191 = vld [vmem:[%s6 + $0xa40] sm:$0xff]
        %v1192 = vld [vmem:[%s6 + $0xa48] sm:$0xff]
        %v1193 = vld [vmem:[%s6 + $0xa50] sm:$0xff]
        %v1194 = vld [vmem:[%s6 + $0xa58] sm:$0xff]
        %v1195 = vld [vmem:[%s6 + $0xa60] sm:$0xff]
        %v1196 = vld [vmem:[%s6 + $0xa68] sm:$0xff]
        %v1197 = vld [vmem:[%s6 + $0xa70] sm:$0xff]
        %v1198 = vld [vmem:[%s6 + $0xa78] sm:$0xff]
        %v1199 = vld [vmem:[%s6 + $0xa80] sm:$0xff]
        %v1200 = vld [vmem:[%s6 + $0xa88] sm:$0xff]
        %v1201 = vld [vmem:[%s6 + $0xa90] sm:$0xff]
        %v1202 = vld [vmem:[%s6 + $0xa98] sm:$0xff]
        %v1203 = vld [vmem:[%s6 + $0xaa0] sm:$0xff]
        %v1204 = vld [vmem:[%s6 + $0xaa8] sm:$0xff]
        %v1205 = vld [vmem:[%s6 + $0xab0] sm:$0xff]
        %v1206 = vld [vmem:[%s6 + $0xab8] sm:$0xff]
        %v1207 = vld [vmem:[%s6 + $0xac0] sm:$0xff]
        %v1208 = vld [vmem:[%s6 + $0xac8] sm:$0xff]
        %v1209 = vld [vmem:[%s6 + $0xad0] sm:$0xff]
        %v1210 = vld [vmem:[%s6 + $0xad8] sm:$0xff]
        %v1211 = vld [vmem:[%s6 + $0xae0] sm:$0xff]
        %v1212 = vld [vmem:[%s6 + $0xae8] sm:$0xff]
        %v1213 = vld [vmem:[%s6 + $0xaf0] sm:$0xff]
        %v1214 = vld [vmem:[%s6 + $0xaf8] sm:$0xff]
        %v1215 = vld [vmem:[%s6 + $0xb00] sm:$0xff]
        %v1216 = vld [vmem:[%s6 + $0xb08] sm:$0xff]
        %v1217 = vld [vmem:[%s6 + $0xb10] sm:$0xff]
        %v1218 = vld [vmem:[%s6 + $0xb18] sm:$0xff]
        %v1219 = vld [vmem:[%s6 + $0xb20] sm:$0xff]
        %v1220 = vld [vmem:[%s6 + $0xb28] sm:$0xff]
        %v1221 = vld [vmem:[%s6 + $0xb30] sm:$0xff]
        %v1222 = vld [vmem:[%s6 + $0xb38] sm:$0xff]
        %v1223 = vld [vmem:[%s6 + $0xb40] sm:$0xff]
        %v1224 = vld [vmem:[%s6 + $0xb48] sm:$0xff]
        %v1225 = vld [vmem:[%s6 + $0xb50] sm:$0xff]
        %v1226 = vld [vmem:[%s6 + $0xb58] sm:$0xff]
        %v1227 = vld [vmem:[%s6 + $0xb60] sm:$0xff]
        %v1228 = vld [vmem:[%s6 + $0xb68] sm:$0xff]
        %v1229 = vld [vmem:[%s6 + $0xb70] sm:$0xff]
        %v1230 = vld [vmem:[%s6 + $0xb78] sm:$0xff]
        %v1231 = vld [vmem:[%s6 + $0xb80] sm:$0xff]
        %v1232 = vld [vmem:[%s6 + $0xb88] sm:$0xff]
        %v1233 = vld [vmem:[%s6 + $0xb90] sm:$0xff]
        %v1234 = vld [vmem:[%s6 + $0xb98] sm:$0xff]
        %v1235 = vld [vmem:[%s6 + $0xba0] sm:$0xff]
        %v1236 = vld [vmem:[%s6 + $0xba8] sm:$0xff]
        %v1237 = vld [vmem:[%s6 + $0xbb0] sm:$0xff]
        %v1238 = vld [vmem:[%s6 + $0xbb8] sm:$0xff]
        %v1239 = vld [vmem:[%s6 + $0xbc0] sm:$0xff]
        %v1240 = vld [vmem:[%s6 + $0xbc8] sm:$0xff]
        %v1241 = vld [vmem:[%s6 + $0xbd0] sm:$0xff]
        %v1242 = vld [vmem:[%s6 + $0xbd8] sm:$0xff]
        %v1243 = vld [vmem:[%s6 + $0xbe0] sm:$0xff]
        %v1244 = vld [vmem:[%s6 + $0xbe8] sm:$0xff]
        %v1245 = vld [vmem:[%s6 + $0xbf0] sm:$0xff]
        %v1246 = vld [vmem:[%s6 + $0xbf8] sm:$0xff]
        %v1247 = vld [vmem:[%s7] sm:$0xff]
        %v1248 = vld [vmem:[%s7 + $0x8] sm:$0xff]
        %v1249 = vld [vmem:[%s7 + $0x10] sm:$0xff]
        %v1250 = vld [vmem:[%s7 + $0x18] sm:$0xff]
        %v1251 = vld [vmem:[%s7 + $0x20] sm:$0xff]
        %v1252 = vld [vmem:[%s7 + $0x28] sm:$0xff]
        %v1253 = vld [vmem:[%s7 + $0x30] sm:$0xff]
        %v1254 = vld [vmem:[%s7 + $0x38] sm:$0xff]
        %v1255 = vld [vmem:[%s7 + $0x40] sm:$0xff]
        %v1256 = vld [vmem:[%s7 + $0x48] sm:$0xff]
        %v1257 = vld [vmem:[%s7 + $0x50] sm:$0xff]
        %v1258 = vld [vmem:[%s7 + $0x58] sm:$0xff]
        %v1259 = vld [vmem:[%s7 + $0x60] sm:$0xff]
        %v1260 = vld [vmem:[%s7 + $0x68] sm:$0xff]
        %v1261 = vld [vmem:[%s7 + $0x70] sm:$0xff]
        %v1262 = vld [vmem:[%s7 + $0x78] sm:$0xff]
        %v1263 = vld [vmem:[%s7 + $0x80] sm:$0xff]
        %v1264 = vld [vmem:[%s7 + $0x88] sm:$0xff]
        %v1265 = vld [vmem:[%s7 + $0x90] sm:$0xff]
        %v1266 = vld [vmem:[%s7 + $0x98] sm:$0xff]
        %v1267 = vld [vmem:[%s7 + $0xa0] sm:$0xff]
        %v1268 = vld [vmem:[%s7 + $0xa8] sm:$0xff]
        %v1269 = vld [vmem:[%s7 + $0xb0] sm:$0xff]
        %v1270 = vld [vmem:[%s7 + $0xb8] sm:$0xff]
        %v1271 = vld [vmem:[%s7 + $0xc0] sm:$0xff]
        %v1272 = vld [vmem:[%s7 + $0xc8] sm:$0xff]
        %v1273 = vld [vmem:[%s7 + $0xd0] sm:$0xff]
        %v1274 = vld [vmem:[%s7 + $0xd8] sm:$0xff]
        %v1275 = vld [vmem:[%s7 + $0xe0] sm:$0xff]
        %v1276 = vld [vmem:[%s7 + $0xe8] sm:$0xff]
        %v1277 = vld [vmem:[%s7 + $0xf0] sm:$0xff]
        %v1278 = vld [vmem:[%s7 + $0xf8] sm:$0xff]
        %v1279 = vld [vmem:[%s8] sm:$0xf]
        %v1280 = vld [vmem:[%s9] sm:$0xff]
        %v1281 = vld [vmem:[%s729] sm:$0x7]
        %v1283 = vlaneseq
        %v1284 = vshrl.u32 %v1283, 7
        %v1285 = vsub.s32 0, %v1284
        %v1286 = vrot.slane %v1281, %v1285
        %v1287 = vlaneseq
        %v1288 = vshrl.u32 %v1287, 7
        %v1289 = vsub.s32 1, %v1288
        %v1290 = vrot.slane %v1281, %v1289
        %v1291 = vlaneseq
        %v1292 = vshrl.u32 %v1291, 7
        %v1293 = vsub.s32 2, %v1292
        %v1294 = vrot.slane %v1281, %v1293
        %v1298 = vpack.c.bf16 %v1286, %v1286
        %v1299 = vpack.c.bf16 %v1290, %v1290
        %v1300 = vpack.c.bf16 %v1294, %v1294
        %1302 = vrot.lane.b32.xlu0 %v1300, 19
        %v1303 = vpop.permute.xlu0 %1302
        %1306 = vrot.lane.b32.xlu0 %v1298, 19
        %v1307 = vpop.permute.xlu0 %1306
        %1308 = vrot.lane.b32.xlu0 %v1299, 19
        %v1309 = vpop.permute.xlu0 %1308
        %vm1310 = vcmask 154624
        %v1311 = vsel %vm1310, %v1307, %v1309
        %v1312 = vsel %vm1310, %v1309, %v1303
        %vm1315 = vcmask 154624
        %v1318 = vsel %vm1315, %v1303, %v1307
        %1320 = vrot.lane.b32.xlu0 %v1300, 18
        %v1321 = vpop.permute.xlu0 %1320
        %1322 = vrot.lane.b32.xlu0 %v1298, 18
        %v1323 = vpop.permute.xlu0 %1322
        %1324 = vrot.lane.b32.xlu0 %v1299, 18
        %v1325 = vpop.permute.xlu0 %1324
        %vm1326 = vcmask 146432
        %v1327 = vsel %vm1326, %v1323, %v1325
        %v1328 = vsel %vm1326, %v1325, %v1321
        %vm1329 = vcmask 146432
        %v1332 = vsel %vm1329, %v1321, %v1323
        %1333 = vrot.lane.b32.xlu0 %v1300, 17
        %v1334 = vpop.permute.xlu0 %1333
        %1335 = vrot.lane.b32.xlu0 %v1298, 17
        %v1336 = vpop.permute.xlu0 %1335
        %1337 = vrot.lane.b32.xlu0 %v1299, 17
        %v1338 = vpop.permute.xlu0 %1337
        %vm1339 = vcmask 138240
        %v1340 = vsel %vm1339, %v1336, %v1338
        %v1341 = vsel %vm1339, %v1338, %v1334
        %vm1342 = vcmask 138240
        %v1345 = vsel %vm1342, %v1334, %v1336
        %1346 = vrot.lane.b32.xlu0 %v1300, 1
        %v1347 = vpop.permute.xlu0 %1346
        %1348 = vrot.lane.b32.xlu0 %v1298, 1
        %v1349 = vpop.permute.xlu0 %1348
        %1350 = vrot.lane.b32.xlu0 %v1299, 1
        %v1351 = vpop.permute.xlu0 %1350
        %vm1352 = vcmask 7168
        %v1353 = vsel %vm1352, %v1349, %v1351
        %v1354 = vsel %vm1352, %v1351, %v1347
        %vm1355 = vcmask 7168
        %v1358 = vsel %vm1355, %v1347, %v1349
        %1359 = vrot.lane.b32.xlu0 %v1298, 127
        %v1360 = vpop.permute.xlu0 %1359
        %1361 = vrot.lane.b32.xlu0 %v1299, 127
        %v1362 = vpop.permute.xlu0 %1361
        %1363 = vrot.lane.b32.xlu0 %v1300, 127
        %v1364 = vpop.permute.xlu0 %1363
        %vm1365 = vcmask 1039360
        %v1366 = vsel %vm1365, %v1360, %v1362
        %v1367 = vsel %vm1365, %v1362, %v1364
        %vm1368 = vcmask 1039360
        %v1371 = vsel %vm1368, %v1364, %v1360
        %1372 = vrot.lane.b32.xlu0 %v1298, 111
        %v1373 = vpop.permute.xlu0 %1372
        %1374 = vrot.lane.b32.xlu0 %v1299, 111
        %v1375 = vpop.permute.xlu0 %1374
        %1376 = vrot.lane.b32.xlu0 %v1300, 111
        %v1377 = vpop.permute.xlu0 %1376
        %vm1378 = vcmask 908288
        %v1379 = vsel %vm1378, %v1373, %v1375
        %v1380 = vsel %vm1378, %v1375, %v1377
        %vm1381 = vcmask 908288
        %v1384 = vsel %vm1381, %v1377, %v1373
        %1385 = vrot.lane.b32.xlu0 %v1298, 110
        %v1386 = vpop.permute.xlu0 %1385
        %1387 = vrot.lane.b32.xlu0 %v1299, 110
        %v1388 = vpop.permute.xlu0 %1387
        %1389 = vrot.lane.b32.xlu0 %v1300, 110
        %v1390 = vpop.permute.xlu0 %1389
        %vm1391 = vcmask 900096
        %v1392 = vsel %vm1391, %v1386, %v1388
        %v1393 = vsel %vm1391, %v1388, %v1390
        %vm1394 = vcmask 900096
        %v1397 = vsel %vm1394, %v1390, %v1386
        %1398 = vrot.lane.b32.xlu0 %v1298, 109
        %v1399 = vpop.permute.xlu0 %1398
        %1400 = vrot.lane.b32.xlu0 %v1299, 109
        %v1401 = vpop.permute.xlu0 %1400
        %1402 = vrot.lane.b32.xlu0 %v1300, 109
        %v1403 = vpop.permute.xlu0 %1402
        %vm1404 = vcmask 891904
        %v1405 = vsel %vm1404, %v1399, %v1401
        %v1406 = vsel %vm1404, %v1401, %v1403
        %vm1407 = vcmask 891904
        %v1410 = vsel %vm1407, %v1403, %v1399
        %v1411 = vshll.u32 %v1332, 16
        %v1414 = vshll.u32 %v1327, 16
        %v1417 = vshll.u32 %v1328, 16
        %v1423 = vrot.slane %v1345, 7
        %v1424 = vrot.slane %v1340, 7
        %v1425 = vrot.slane %v1341, 7
        %v1426 = vshll.u32 %v1358, 16
        %v1428 = vrot.slane %v1426, 7
        %v1430 = vshll.u32 %v1353, 16
        %v1432 = vrot.slane %v1430, 7
        %v1434 = vshll.u32 %v1354, 16
        %v1436 = vrot.slane %v1434, 7
        %v1440 = vrot.slane %v1298, 6
        %v1441 = vrot.slane %v1299, 6
        %v1442 = vrot.slane %v1300, 6
        %v1444 = vshll.u32 %v1366, 16
        %v1446 = vrot.slane %v1444, 6
        %v1448 = vshll.u32 %v1367, 16
        %v1450 = vrot.slane %v1448, 6
        %v1451 = vshll.u32 %v1371, 16
        %v1453 = vrot.slane %v1451, 6
        %v1458 = vrot.slane %v1379, 5
        %v1459 = vrot.slane %v1380, 5
        %v1460 = vrot.slane %v1384, 5
        %v1462 = vshll.u32 %v1392, 16
        %v1464 = vrot.slane %v1462, 5
        %v1466 = vshll.u32 %v1393, 16
        %v1468 = vrot.slane %v1466, 5
        %v1469 = vshll.u32 %v1397, 16
        %v1471 = vrot.slane %v1469, 5
        %v1476 = vrot.slane %v1405, 4
        %v1477 = vrot.slane %v1406, 4
        %v1478 = vrot.slane %v1410, 4
        %vm1479 = vcmask 1040384
        %vm1480 = vsmask.f32 256
        %vm1481 = vmand %vm1479, %vm1480
        %v1482 = vsel %vm1481, %v1318, %v1411
        %v1483 = vsel %vm1481, %v1311, %v1414
        %v1484 = vsel %vm1481, %v1312, %v1417
        %vm1485 = vcmask 1040384
        %v1488 = vsel %vm1485, %v1482, %v1423
        %v1492 = vsel %vm1485, %v1483, %v1424
        %v1496 = vsel %vm1485, %v1484, %v1425
        %vm1498 = vcmask 1041408
        %vm1499 = vsmask.f32 1280
        %vm1500 = vmand %vm1498, %vm1499
        %v1501 = vsel %vm1500, %v1488, %v1428
        %v1502 = vsel %vm1500, %v1492, %v1432
        %v1503 = vsel %vm1500, %v1496, %v1436
        %vm1504 = vcmask 1041408
        %v1507 = vsel %vm1504, %v1501, %v1440
        %v1511 = vsel %vm1504, %v1502, %v1441
        %v1515 = vsel %vm1504, %v1503, %v1442
        %vm1517 = vcmask 1042432
        %vm1518 = vsmask.f32 2304
        %vm1519 = vmand %vm1517, %vm1518
        %v1520 = vsel %vm1519, %v1507, %v1446
        %v1521 = vsel %vm1519, %v1511, %v1450
        %v1522 = vsel %vm1519, %v1515, %v1453
        %vm1523 = vcmask 1042432
        %v1526 = vsel %vm1523, %v1520, %v1458
        %v1530 = vsel %vm1523, %v1521, %v1459
        %v1534 = vsel %vm1523, %v1522, %v1460
        %vm1536 = vcmask 1043456
        %vm1537 = vsmask.f32 3328
        %vm1538 = vmand %vm1536, %vm1537
        %v1539 = vsel %vm1538, %v1526, %v1464
        %v1540 = vsel %vm1538, %v1530, %v1468
        %v1541 = vsel %vm1538, %v1534, %v1471
        %vm1542 = vcmask 1043456
        %v1545 = vsel %vm1542, %v1539, %v1476
        %v1548 = vsel %vm1542, %v1540, %v1477
        %v1551 = vsel %vm1542, %v1541, %v1478
        %1553 = vset.pattern.permute.xlu0 0
        %1554 = vperm.xlu0 %1553, %v1280
        %v1555 = vpop.permute.xlu0 %1554
        %vm1557 = vcmask 72704
        %v1559 = vsel %vm1557, %v1279, 0
        %vm1561 = vcmask 1044480
        %v1562 = vsel %vm1542, 4294967295, 65535
        %v1563 = vsel %vm1561, %v1562, 0
        %v1564 = vand.u32 %v1545, %v1563
        %v1566 = vand.u32 %v1548, %v1563
        %v1568 = vand.u32 %v1551, %v1563
        %1570 = vmatprep.subr.bf16.mxu0 %v1566
        %1571 = vmatpush1.bf16.msra.mxu0 %v1564
        %1572 = vmatprep.subr.bf16.mxu0 0
        %1573 = vmatpush1.bf16.msra.mxu0 0
        %1574 = vmatprep.subr.bf16.mxu0 0
        %1575 = vmatpush1.bf16.msra.mxu0 0
        %1576 = vmatprep.subr.bf16.mxu0 0
        %1577 = vmatpush1.bf16.msra.mxu0 0
        %1578 = vmatprep.subr.bf16.mxu0 0
        %1579 = vmatpush1.bf16.msra.mxu0 0
        %1580 = vmatprep.subr.bf16.mxu0 0
        %1581 = vmatpush1.bf16.msra.mxu0 0
        %1582 = vmatprep.subr.bf16.mxu0 0
        %1583 = vmatpush1.bf16.msra.mxu0 0
        %1584 = vmatprep.subr.bf16.mxu0 0
        %1585 = vmatpush1.bf16.msra.mxu0 0
        %1586 = vmatprep.subr.bf16.mxu0 0
        %1587 = vmatpush1.bf16.msra.mxu0 0
        %1588 = vmatprep.subr.bf16.mxu0 0
        %1589 = vmatpush1.bf16.msra.mxu0 0
        %1590 = vmatprep.subr.bf16.mxu0 0
        %1591 = vmatpush1.bf16.msra.mxu0 0
        %1592 = vmatprep.subr.bf16.mxu0 0
        %1593 = vmatpush1.bf16.msra.mxu0 0
        %1594 = vmatprep.subr.bf16.mxu0 0
        %1595 = vmatpush1.bf16.msra.mxu0 0
        %1596 = vmatprep.subr.bf16.mxu0 0
        %1597 = vmatpush1.bf16.msra.mxu0 0
        %1598 = vmatprep.subr.bf16.mxu0 0
        %1599 = vmatpush1.bf16.msra.mxu0 0
        %1600 = vmatprep.subr.bf16.mxu0 0
        %1601 = vmatpush1.bf16.msra.mxu0 0
        %1602 = vmatprep.mubr.bf16.mxu0 0
        %1603 = vmatmul.mubr.bf16.gmra.mrb[0].mxu0 %v1559
        %v1604 = vpop.f32.mrb[0].mxu0
        %v1605 = vadd.f32 %v1555, %v1604
        %v1606 = vpop.f32.mrb[0].mxu0
        %v1607 = vadd.f32 %v1555, %v1606
        %v1608 = vpop.f32.mrb[0].mxu0
        %v1609 = vpop.f32.mrb[0].mxu0
        %1610 = vdwg.mxu0
        %1611 = vmatprep.subr.bf16.mxu0 0
        %1612 = vmatpush1.bf16.msra.mxu0 %v1568
        %1613 = vmatprep.subr.bf16.mxu0 0
        %1614 = vmatpush1.bf16.msra.mxu0 0
        %1615 = vmatprep.subr.bf16.mxu0 0
        %1616 = vmatpush1.bf16.msra.mxu0 0
        %1617 = vmatprep.subr.bf16.mxu0 0
        %1618 = vmatpush1.bf16.msra.mxu0 0
        %1619 = vmatprep.subr.bf16.mxu0 0
        %1620 = vmatpush1.bf16.msra.mxu0 0
        %1621 = vmatprep.subr.bf16.mxu0 0
        %1622 = vmatpush1.bf16.msra.mxu0 0
        %1623 = vmatprep.subr.bf16.mxu0 0
        %1624 = vmatpush1.bf16.msra.mxu0 0
        %1625 = vmatprep.subr.bf16.mxu0 0
        %1626 = vmatpush1.bf16.msra.mxu0 0
        %1627 = vmatprep.subr.bf16.mxu0 0
        %1628 = vmatpush1.bf16.msra.mxu0 0
        %1629 = vmatprep.subr.bf16.mxu0 0
        %1630 = vmatpush1.bf16.msra.mxu0 0
        %1631 = vmatprep.subr.bf16.mxu0 0
        %1632 = vmatpush1.bf16.msra.mxu0 0
        %1633 = vmatprep.subr.bf16.mxu0 0
        %1634 = vmatpush1.bf16.msra.mxu0 0
        %1635 = vmatprep.subr.bf16.mxu0 0
        %1636 = vmatpush1.bf16.msra.mxu0 0
        %1637 = vmatprep.subr.bf16.mxu0 0
        %1638 = vmatpush1.bf16.msra.mxu0 0
        %1639 = vmatprep.subr.bf16.mxu0 0
        %1640 = vmatpush1.bf16.msra.mxu0 0
        %1641 = vmatprep.subr.bf16.mxu0 0
        %1642 = vmatpush1.bf16.msra.mxu0 0
        %1643 = vmatprep.mubr.bf16.mxu0 0
        %1644 = vmatmul.mubr.bf16.gmra.mrb[0].mxu0 %v1559
        %v1645 = vpop.f32.mrb[0].mxu0
        %v1646 = vadd.f32 %v1555, %v1645
        %v1647 = vpop.f32.mrb[0].mxu0
        %v1648 = vpop.f32.mrb[0].mxu0
        %v1649 = vpop.f32.mrb[0].mxu0
        %1650 = vdwg.mxu0
        %v1651 = vmul.f32 %v1605, 0.2
        %v1652 = vmul.f32 %v1607, 0.2
        %v1653 = vmul.f32 %v1646, 0.2
        %v1654 = vmax.f32 %v1605, %v1651
        %v1655 = vmax.f32 %v1607, %v1652
        %v1656 = vmax.f32 %v1646, %v1653
        %v1658 = vlaneseq
        %v1659 = vshrl.u32 %v1658, 7
        %v1660 = vsub.s32 0, %v1659
        %v1661 = vrot.slane %v732, %v1660
        %v1662 = vlaneseq
        %v1663 = vshrl.u32 %v1662, 7
        %v1664 = vsub.s32 1, %v1663
        %v1665 = vrot.slane %v732, %v1664
        %v1666 = vlaneseq
        %v1667 = vshrl.u32 %v1666, 7
        %v1668 = vsub.s32 2, %v1667
        %v1669 = vrot.slane %v732, %v1668
        %v1673 = vmul.f32 %v1654, %v1661
        %v1674 = vmul.f32 %v1655, %v1665
        %v1675 = vmul.f32 %v1656, %v1669
        %v1676 = vld [vmem:[%s10] sm:$0xf]
        %v1677 = vld [vmem:[%s10 + $0x4] sm:$0xf]
        %v1678 = vld [vmem:[%s10 + $0x8] sm:$0xf]
        %v1679 = vld [vmem:[%s10 + $0xc] sm:$0xf]
        %v1680 = vld [vmem:[%s11] sm:$0xff]
        %v1681 = vld [vmem:[%s11 + $0x8] sm:$0xff]
        %v1682 = vld [vmem:[%s11 + $0x10] sm:$0xff]
        %v1683 = vld [vmem:[%s11 + $0x18] sm:$0xff]
        %v1684 = vpack.c.bf16 %v1673, %v1673
        %v1685 = vpack.c.bf16 %v1674, %v1674
        %v1686 = vpack.c.bf16 %v1675, %v1675
        %1688 = vrot.lane.b32.xlu0 %v1686, 19
        %v1689 = vpop.permute.xlu0 %1688
        %1692 = vrot.lane.b32.xlu0 %v1684, 19
        %v1693 = vpop.permute.xlu0 %1692
        %1694 = vrot.lane.b32.xlu0 %v1685, 19
        %v1695 = vpop.permute.xlu0 %1694
        %v1696 = vsel %vm1310, %v1693, %v1695
        %v1697 = vsel %vm1310, %v1695, %v1689
        %v1700 = vsel %vm1315, %v1689, %v1693
        %1701 = vrot.lane.b32.xlu0 %v1686, 18
        %v1702 = vpop.permute.xlu0 %1701
        %1703 = vrot.lane.b32.xlu0 %v1684, 18
        %v1704 = vpop.permute.xlu0 %1703
        %1705 = vrot.lane.b32.xlu0 %v1685, 18
        %v1706 = vpop.permute.xlu0 %1705
        %v1707 = vsel %vm1326, %v1704, %v1706
        %v1708 = vsel %vm1326, %v1706, %v1702
        %v1711 = vsel %vm1329, %v1702, %v1704
        %1712 = vrot.lane.b32.xlu0 %v1686, 17
        %v1713 = vpop.permute.xlu0 %1712
        %1714 = vrot.lane.b32.xlu0 %v1684, 17
        %v1715 = vpop.permute.xlu0 %1714
        %1716 = vrot.lane.b32.xlu0 %v1685, 17
        %v1717 = vpop.permute.xlu0 %1716
        %v1718 = vsel %vm1339, %v1715, %v1717
        %v1719 = vsel %vm1339, %v1717, %v1713
        %v1722 = vsel %vm1342, %v1713, %v1715
        %1723 = vrot.lane.b32.xlu0 %v1686, 1
        %v1724 = vpop.permute.xlu0 %1723
        %1725 = vrot.lane.b32.xlu0 %v1684, 1
        %v1726 = vpop.permute.xlu0 %1725
        %1727 = vrot.lane.b32.xlu0 %v1685, 1
        %v1728 = vpop.permute.xlu0 %1727
        %v1729 = vsel %vm1352, %v1726, %v1728
        %v1730 = vsel %vm1352, %v1728, %v1724
        %v1733 = vsel %vm1355, %v1724, %v1726
        %1734 = vrot.lane.b32.xlu0 %v1684, 127
        %v1735 = vpop.permute.xlu0 %1734
        %1736 = vrot.lane.b32.xlu0 %v1685, 127
        %v1737 = vpop.permute.xlu0 %1736
        %1738 = vrot.lane.b32.xlu0 %v1686, 127
        %v1739 = vpop.permute.xlu0 %1738
        %v1740 = vsel %vm1365, %v1735, %v1737
        %v1741 = vsel %vm1365, %v1737, %v1739
        %v1744 = vsel %vm1368, %v1739, %v1735
        %1745 = vrot.lane.b32.xlu0 %v1684, 111
        %v1746 = vpop.permute.xlu0 %1745
        %1747 = vrot.lane.b32.xlu0 %v1685, 111
        %v1748 = vpop.permute.xlu0 %1747
        %1749 = vrot.lane.b32.xlu0 %v1686, 111
        %v1750 = vpop.permute.xlu0 %1749
        %v1751 = vsel %vm1378, %v1746, %v1748
        %v1752 = vsel %vm1378, %v1748, %v1750
        %v1755 = vsel %vm1381, %v1750, %v1746
        %1756 = vrot.lane.b32.xlu0 %v1684, 110
        %v1757 = vpop.permute.xlu0 %1756
        %1758 = vrot.lane.b32.xlu0 %v1685, 110
        %v1759 = vpop.permute.xlu0 %1758
        %1760 = vrot.lane.b32.xlu0 %v1686, 110
        %v1761 = vpop.permute.xlu0 %1760
        %v1762 = vsel %vm1391, %v1757, %v1759
        %v1763 = vsel %vm1391, %v1759, %v1761
        %v1766 = vsel %vm1394, %v1761, %v1757
        %1767 = vrot.lane.b32.xlu0 %v1684, 109
        %v1768 = vpop.permute.xlu0 %1767
        %1769 = vrot.lane.b32.xlu0 %v1685, 109
        %v1770 = vpop.permute.xlu0 %1769
        %1771 = vrot.lane.b32.xlu0 %v1686, 109
        %v1772 = vpop.permute.xlu0 %1771
        %v1773 = vsel %vm1404, %v1768, %v1770
        %v1774 = vsel %vm1404, %v1770, %v1772
        %v1777 = vsel %vm1407, %v1772, %v1768
        %v1779 = vrot.slane %v1711, 4
        %v1780 = vrot.slane %v1707, 4
        %v1781 = vrot.slane %v1708, 4
        %v1783 = vrot.slane %v1733, 4
        %v1784 = vrot.slane %v1729, 4
        %v1785 = vrot.slane %v1730, 4
        %v1787 = vrot.slane %v1740, 4
        %v1788 = vrot.slane %v1741, 4
        %v1789 = vrot.slane %v1744, 4
        %v1791 = vrot.slane %v1762, 4
        %v1792 = vrot.slane %v1763, 4
        %v1793 = vrot.slane %v1766, 4
        %v1795 = vsel %vm1542, %v1700, %v1779
        %v1799 = vsel %vm1542, %v1696, %v1780
        %v1803 = vsel %vm1542, %v1697, %v1781
        %v1806 = vsel %vm1542, %v1722, %v1783
        %v1810 = vsel %vm1542, %v1718, %v1784
        %v1814 = vsel %vm1542, %v1719, %v1785
        %v1818 = vsel %vm1542, %v1684, %v1787
        %v1822 = vsel %vm1542, %v1685, %v1788
        %v1826 = vsel %vm1542, %v1686, %v1789
        %v1830 = vsel %vm1542, %v1751, %v1791
        %v1834 = vsel %vm1542, %v1752, %v1792
        %v1837 = vsel %vm1542, %v1755, %v1793
        %1840 = vset.pattern.permute.xlu0 0
        %1841 = vperm.xlu0 %1840, %v1680
        %v1842 = vpop.permute.xlu0 %1841
        %vm1844 = vcmask 588800
        %v1846 = vsel %vm1844, %v1676, 0
        %v1849 = vsel %vm1542, %v1773, 0
        %v1852 = vsel %vm1542, %v1774, 0
        %v1854 = vsel %vm1542, %v1777, 0
        %1856 = vmatprep.subr.bf16.mxu0 %v1799
        %1857 = vmatpush1.bf16.msra.mxu0 %v1795
        %1858 = vmatprep.subr.bf16.mxu0 %v1810
        %1859 = vmatpush1.bf16.msra.mxu0 %v1806
        %1860 = vmatprep.subr.bf16.mxu0 %v1822
        %1861 = vmatpush1.bf16.msra.mxu0 %v1818
        %1862 = vmatprep.subr.bf16.mxu0 %v1834
        %1863 = vmatpush1.bf16.msra.mxu0 %v1830
        %1864 = vmatprep.subr.bf16.mxu0 %v1852
        %1865 = vmatpush1.bf16.msra.mxu0 %v1849
        %1866 = vmatprep.subr.bf16.mxu0 0
        %1867 = vmatpush1.bf16.msra.mxu0 0
        %1868 = vmatprep.subr.bf16.mxu0 0
        %1869 = vmatpush1.bf16.msra.mxu0 0
        %1870 = vmatprep.subr.bf16.mxu0 0
        %1871 = vmatpush1.bf16.msra.mxu0 0
        %1872 = vmatprep.subr.bf16.mxu0 0
        %1873 = vmatpush1.bf16.msra.mxu0 0
        %1874 = vmatprep.subr.bf16.mxu0 0
        %1875 = vmatpush1.bf16.msra.mxu0 0
        %1876 = vmatprep.subr.bf16.mxu0 0
        %1877 = vmatpush1.bf16.msra.mxu0 0
        %1878 = vmatprep.subr.bf16.mxu0 0
        %1879 = vmatpush1.bf16.msra.mxu0 0
        %1880 = vmatprep.subr.bf16.mxu0 0
        %1881 = vmatpush1.bf16.msra.mxu0 0
        %1882 = vmatprep.subr.bf16.mxu0 0
        %1883 = vmatpush1.bf16.msra.mxu0 0
        %1884 = vmatprep.subr.bf16.mxu0 0
        %1885 = vmatpush1.bf16.msra.mxu0 0
        %1886 = vmatprep.subr.bf16.mxu0 0
        %1887 = vmatpush1.bf16.msra.mxu0 0
        %1888 = vmatprep.mubr.bf16.mxu0 0
        %1889 = vmatmul.mubr.bf16.gmra.mrb[0].mxu0 %v1846
        %v1890 = vpop.f32.mrb[0].mxu0
        %v1891 = vadd.f32 %v1842, %v1890
        %v1892 = vpop.f32.mrb[0].mxu0
        %v1893 = vadd.f32 %v1842, %v1892
        %v1894 = vpop.f32.mrb[0].mxu0
        %v1895 = vpop.f32.mrb[0].mxu0
        %1896 = vdwg.mxu0
        %1897 = vmatprep.subr.bf16.mxu0 0
        %1898 = vmatpush1.bf16.msra.mxu0 %v1803
        %1899 = vmatprep.subr.bf16.mxu0 0
        %1900 = vmatpush1.bf16.msra.mxu0 %v1814
        %1901 = vmatprep.subr.bf16.mxu0 0
        %1902 = vmatpush1.bf16.msra.mxu0 %v1826
        %1903 = vmatprep.subr.bf16.mxu0 0
        %1904 = vmatpush1.bf16.msra.mxu0 %v1837
        %1905 = vmatprep.subr.bf16.mxu0 0
        %1906 = vmatpush1.bf16.msra.mxu0 %v1854
        %1907 = vmatprep.subr.bf16.mxu0 0
        %1908 = vmatpush1.bf16.msra.mxu0 0
        %1909 = vmatprep.subr.bf16.mxu0 0
        %1910 = vmatpush1.bf16.msra.mxu0 0
        %1911 = vmatprep.subr.bf16.mxu0 0
        %1912 = vmatpush1.bf16.msra.mxu0 0
        %1913 = vmatprep.subr.bf16.mxu0 0
        %1914 = vmatpush1.bf16.msra.mxu0 0
        %1915 = vmatprep.subr.bf16.mxu0 0
        %1916 = vmatpush1.bf16.msra.mxu0 0
        %1917 = vmatprep.subr.bf16.mxu0 0
        %1918 = vmatpush1.bf16.msra.mxu0 0
        %1919 = vmatprep.subr.bf16.mxu0 0
        %1920 = vmatpush1.bf16.msra.mxu0 0
        %1921 = vmatprep.subr.bf16.mxu0 0
        %1922 = vmatpush1.bf16.msra.mxu0 0
        %1923 = vmatprep.subr.bf16.mxu0 0
        %1924 = vmatpush1.bf16.msra.mxu0 0
        %1925 = vmatprep.subr.bf16.mxu0 0
        %1926 = vmatpush1.bf16.msra.mxu0 0
        %1927 = vmatprep.subr.bf16.mxu0 0
        %1928 = vmatpush1.bf16.msra.mxu0 0
        %1929 = vmatprep.mubr.bf16.mxu0 0
        %1930 = vmatmul.mubr.bf16.gmra.mrb[0].mxu0 %v1846
        %v1931 = vpop.f32.mrb[0].mxu0
        %v1932 = vadd.f32 %v1842, %v1931
        %v1933 = vpop.f32.mrb[0].mxu0
        %v1934 = vpop.f32.mrb[0].mxu0
        %v1935 = vpop.f32.mrb[0].mxu0
        %1936 = vdwg.mxu0
        %v1937 = vmul.f32 %v1891, 0.2
        %v1938 = vmul.f32 %v1893, 0.2
        %v1939 = vmul.f32 %v1932, 0.2
        %v1940 = vmax.f32 %v1891, %v1937
        %v1941 = vmax.f32 %v1893, %v1938
        %v1942 = vmax.f32 %v1932, %v1939
        %v1943 = vmul.f32 %v1940, %v1661
        %v1944 = vmul.f32 %v1941, %v1665
        %v1945 = vmul.f32 %v1942, %v1669
        %v1946 = vpack.c.bf16 %v1943, %v1943
        %v1947 = vpack.c.bf16 %v1944, %v1944
        %v1948 = vpack.c.bf16 %v1945, %v1945
        %1950 = vrot.lane.b32.xlu0 %v1948, 19
        %v1951 = vpop.permute.xlu0 %1950
        %1954 = vrot.lane.b32.xlu0 %v1946, 19
        %v1955 = vpop.permute.xlu0 %1954
        %1956 = vrot.lane.b32.xlu0 %v1947, 19
        %v1957 = vpop.permute.xlu0 %1956
        %v1958 = vsel %vm1310, %v1955, %v1957
        %v1959 = vsel %vm1310, %v1957, %v1951
        %v1962 = vsel %vm1315, %v1951, %v1955
        %1963 = vrot.lane.b32.xlu0 %v1948, 18
        %v1964 = vpop.permute.xlu0 %1963
        %1965 = vrot.lane.b32.xlu0 %v1946, 18
        %v1966 = vpop.permute.xlu0 %1965
        %1967 = vrot.lane.b32.xlu0 %v1947, 18
        %v1968 = vpop.permute.xlu0 %1967
        %v1969 = vsel %vm1326, %v1966, %v1968
        %v1970 = vsel %vm1326, %v1968, %v1964
        %v1973 = vsel %vm1329, %v1964, %v1966
        %1974 = vrot.lane.b32.xlu0 %v1948, 17
        %v1975 = vpop.permute.xlu0 %1974
        %1976 = vrot.lane.b32.xlu0 %v1946, 17
        %v1977 = vpop.permute.xlu0 %1976
        %1978 = vrot.lane.b32.xlu0 %v1947, 17
        %v1979 = vpop.permute.xlu0 %1978
        %v1980 = vsel %vm1339, %v1977, %v1979
        %v1981 = vsel %vm1339, %v1979, %v1975
        %v1984 = vsel %vm1342, %v1975, %v1977
        %1985 = vrot.lane.b32.xlu0 %v1948, 1
        %v1986 = vpop.permute.xlu0 %1985
        %1987 = vrot.lane.b32.xlu0 %v1946, 1
        %v1988 = vpop.permute.xlu0 %1987
        %1989 = vrot.lane.b32.xlu0 %v1947, 1
        %v1990 = vpop.permute.xlu0 %1989
        %v1991 = vsel %vm1352, %v1988, %v1990
        %v1992 = vsel %vm1352, %v1990, %v1986
        %v1995 = vsel %vm1355, %v1986, %v1988
        %1996 = vrot.lane.b32.xlu0 %v1946, 127
        %v1997 = vpop.permute.xlu0 %1996
        %1998 = vrot.lane.b32.xlu0 %v1947, 127
        %v1999 = vpop.permute.xlu0 %1998
        %2000 = vrot.lane.b32.xlu0 %v1948, 127
        %v2001 = vpop.permute.xlu0 %2000
        %v2002 = vsel %vm1365, %v1997, %v1999
        %v2003 = vsel %vm1365, %v1999, %v2001
        %v2006 = vsel %vm1368, %v2001, %v1997
        %2007 = vrot.lane.b32.xlu0 %v1946, 111
        %v2008 = vpop.permute.xlu0 %2007
        %2009 = vrot.lane.b32.xlu0 %v1947, 111
        %v2010 = vpop.permute.xlu0 %2009
        %2011 = vrot.lane.b32.xlu0 %v1948, 111
        %v2012 = vpop.permute.xlu0 %2011
        %v2013 = vsel %vm1378, %v2008, %v2010
        %v2014 = vsel %vm1378, %v2010, %v2012
        %v2017 = vsel %vm1381, %v2012, %v2008
        %2018 = vrot.lane.b32.xlu0 %v1946, 110
        %v2019 = vpop.permute.xlu0 %2018
        %2020 = vrot.lane.b32.xlu0 %v1947, 110
        %v2021 = vpop.permute.xlu0 %2020
        %2022 = vrot.lane.b32.xlu0 %v1948, 110
        %v2023 = vpop.permute.xlu0 %2022
        %v2024 = vsel %vm1391, %v2019, %v2021
        %v2025 = vsel %vm1391, %v2021, %v2023
        %v2028 = vsel %vm1394, %v2023, %v2019
        %2029 = vrot.lane.b32.xlu0 %v1946, 109
        %v2030 = vpop.permute.xlu0 %2029
        %2031 = vrot.lane.b32.xlu0 %v1947, 109
        %v2032 = vpop.permute.xlu0 %2031
        %2033 = vrot.lane.b32.xlu0 %v1948, 109
        %v2034 = vpop.permute.xlu0 %2033
        %v2035 = vsel %vm1404, %v2030, %v2032
        %v2036 = vsel %vm1404, %v2032, %v2034
        %v2039 = vsel %vm1407, %v2034, %v2030
        %v2041 = vrot.slane %v1973, 4
        %v2042 = vrot.slane %v1969, 4
        %v2043 = vrot.slane %v1970, 4
        %v2045 = vrot.slane %v1995, 4
        %v2046 = vrot.slane %v1991, 4
        %v2047 = vrot.slane %v1992, 4
        %v2049 = vrot.slane %v2002, 4
        %v2050 = vrot.slane %v2003, 4
        %v2051 = vrot.slane %v2006, 4
        %v2053 = vrot.slane %v2024, 4
        %v2054 = vrot.slane %v2025, 4
        %v2055 = vrot.slane %v2028, 4
        %v2057 = vsel %vm1542, %v1962, %v2041
        %v2061 = vsel %vm1542, %v1958, %v2042
        %v2065 = vsel %vm1542, %v1959, %v2043
        %v2068 = vsel %vm1542, %v1984, %v2045
        %v2072 = vsel %vm1542, %v1980, %v2046
        %v2076 = vsel %vm1542, %v1981, %v2047
        %v2080 = vsel %vm1542, %v1946, %v2049
        %v2084 = vsel %vm1542, %v1947, %v2050
        %v2088 = vsel %vm1542, %v1948, %v2051
        %v2092 = vsel %vm1542, %v2013, %v2053
        %v2096 = vsel %vm1542, %v2014, %v2054
        %v2099 = vsel %vm1542, %v2017, %v2055
        %2102 = vset.pattern.permute.xlu0 0
        %2103 = vperm.xlu0 %2102, %v1681
        %v2104 = vpop.permute.xlu0 %2103
        %v2107 = vsel %vm1844, %v1677, 0
        %v2110 = vsel %vm1542, %v2035, 0
        %v2113 = vsel %vm1542, %v2036, 0
        %v2115 = vsel %vm1542, %v2039, 0
        %2117 = vmatprep.subr.bf16.mxu0 %v2061
        %2118 = vmatpush1.bf16.msra.mxu0 %v2057
        %2119 = vmatprep.subr.bf16.mxu0 %v2072
        %2120 = vmatpush1.bf16.msra.mxu0 %v2068
        %2121 = vmatprep.subr.bf16.mxu0 %v2084
        %2122 = vmatpush1.bf16.msra.mxu0 %v2080
        %2123 = vmatprep.subr.bf16.mxu0 %v2096
        %2124 = vmatpush1.bf16.msra.mxu0 %v2092
        %2125 = vmatprep.subr.bf16.mxu0 %v2113
        %2126 = vmatpush1.bf16.msra.mxu0 %v2110
        %2127 = vmatprep.subr.bf16.mxu0 0
        %2128 = vmatpush1.bf16.msra.mxu0 0
        %2129 = vmatprep.subr.bf16.mxu0 0
        %2130 = vmatpush1.bf16.msra.mxu0 0
        %2131 = vmatprep.subr.bf16.mxu0 0
        %2132 = vmatpush1.bf16.msra.mxu0 0
        %2133 = vmatprep.subr.bf16.mxu0 0
        %2134 = vmatpush1.bf16.msra.mxu0 0
        %2135 = vmatprep.subr.bf16.mxu0 0
        %2136 = vmatpush1.bf16.msra.mxu0 0
        %2137 = vmatprep.subr.bf16.mxu0 0
        %2138 = vmatpush1.bf16.msra.mxu0 0
        %2139 = vmatprep.subr.bf16.mxu0 0
        %2140 = vmatpush1.bf16.msra.mxu0 0
        %2141 = vmatprep.subr.bf16.mxu0 0
        %2142 = vmatpush1.bf16.msra.mxu0 0
        %2143 = vmatprep.subr.bf16.mxu0 0
        %2144 = vmatpush1.bf16.msra.mxu0 0
        %2145 = vmatprep.subr.bf16.mxu0 0
        %2146 = vmatpush1.bf16.msra.mxu0 0
        %2147 = vmatprep.subr.bf16.mxu0 0
        %2148 = vmatpush1.bf16.msra.mxu0 0
        %2149 = vmatprep.mubr.bf16.mxu0 0
        %2150 = vmatmul.mubr.bf16.gmra.mrb[0].mxu0 %v2107
        %v2151 = vpop.f32.mrb[0].mxu0
        %v2152 = vadd.f32 %v2104, %v2151
        %v2153 = vpop.f32.mrb[0].mxu0
        %v2154 = vadd.f32 %v2104, %v2153
        %v2155 = vpop.f32.mrb[0].mxu0
        %v2156 = vpop.f32.mrb[0].mxu0
        %2157 = vdwg.mxu0
        %2158 = vmatprep.subr.bf16.mxu0 0
        %2159 = vmatpush1.bf16.msra.mxu0 %v2065
        %2160 = vmatprep.subr.bf16.mxu0 0
        %2161 = vmatpush1.bf16.msra.mxu0 %v2076
        %2162 = vmatprep.subr.bf16.mxu0 0
        %2163 = vmatpush1.bf16.msra.mxu0 %v2088
        %2164 = vmatprep.subr.bf16.mxu0 0
        %2165 = vmatpush1.bf16.msra.mxu0 %v2099
        %2166 = vmatprep.subr.bf16.mxu0 0
        %2167 = vmatpush1.bf16.msra.mxu0 %v2115
        %2168 = vmatprep.subr.bf16.mxu0 0
        %2169 = vmatpush1.bf16.msra.mxu0 0
        %2170 = vmatprep.subr.bf16.mxu0 0
        %2171 = vmatpush1.bf16.msra.mxu0 0
        %2172 = vmatprep.subr.bf16.mxu0 0
        %2173 = vmatpush1.bf16.msra.mxu0 0
        %2174 = vmatprep.subr.bf16.mxu0 0
        %2175 = vmatpush1.bf16.msra.mxu0 0
        %2176 = vmatprep.subr.bf16.mxu0 0
        %2177 = vmatpush1.bf16.msra.mxu0 0
        %2178 = vmatprep.subr.bf16.mxu0 0
        %2179 = vmatpush1.bf16.msra.mxu0 0
        %2180 = vmatprep.subr.bf16.mxu0 0
        %2181 = vmatpush1.bf16.msra.mxu0 0
        %2182 = vmatprep.subr.bf16.mxu0 0
        %2183 = vmatpush1.bf16.msra.mxu0 0
        %2184 = vmatprep.subr.bf16.mxu0 0
        %2185 = vmatpush1.bf16.msra.mxu0 0
        %2186 = vmatprep.subr.bf16.mxu0 0
        %2187 = vmatpush1.bf16.msra.mxu0 0
        %2188 = vmatprep.subr.bf16.mxu0 0
        %2189 = vmatpush1.bf16.msra.mxu0 0
        %2190 = vmatprep.mubr.bf16.mxu0 0
        %2191 = vmatmul.mubr.bf16.gmra.mrb[0].mxu0 %v2107
        %v2192 = vpop.f32.mrb[0].mxu0
        %v2193 = vadd.f32 %v2104, %v2192
        %v2194 = vpop.f32.mrb[0].mxu0
        %v2195 = vpop.f32.mrb[0].mxu0
        %v2196 = vpop.f32.mrb[0].mxu0
        %2197 = vdwg.mxu0
        %v2198 = vmul.f32 %v2152, 0.2
        %v2199 = vmul.f32 %v2154, 0.2
        %v2200 = vmul.f32 %v2193, 0.2
        %v2201 = vmax.f32 %v2152, %v2198
        %v2202 = vmax.f32 %v2154, %v2199
        %v2203 = vmax.f32 %v2193, %v2200
        %v2204 = vmul.f32 %v2201, %v1661
        %v2205 = vmul.f32 %v2202, %v1665
        %v2206 = vmul.f32 %v2203, %v1669
        %v2207 = vadd.f32 %v1673, %v2204
        %v2208 = vadd.f32 %v1674, %v2205
        %v2209 = vadd.f32 %v1675, %v2206
        %v2210 = vpack.c.bf16 %v2207, %v2207
        %v2211 = vpack.c.bf16 %v2208, %v2208
        %v2212 = vpack.c.bf16 %v2209, %v2209
        %2214 = vrot.lane.b32.xlu0 %v2212, 19
        %v2215 = vpop.permute.xlu0 %2214
        %2218 = vrot.lane.b32.xlu0 %v2210, 19
        %v2219 = vpop.permute.xlu0 %2218
        %2220 = vrot.lane.b32.xlu0 %v2211, 19
        %v2221 = vpop.permute.xlu0 %2220
        %v2222 = vsel %vm1310, %v2219, %v2221
        %v2223 = vsel %vm1310, %v2221, %v2215
        %v2226 = vsel %vm1315, %v2215, %v2219
        %2227 = vrot.lane.b32.xlu0 %v2212, 18
        %v2228 = vpop.permute.xlu0 %2227
        %2229 = vrot.lane.b32.xlu0 %v2210, 18
        %v2230 = vpop.permute.xlu0 %2229
        %2231 = vrot.lane.b32.xlu0 %v2211, 18
        %v2232 = vpop.permute.xlu0 %2231
        %v2233 = vsel %vm1326, %v2230, %v2232
        %v2234 = vsel %vm1326, %v2232, %v2228
        %v2237 = vsel %vm1329, %v2228, %v2230
        %2238 = vrot.lane.b32.xlu0 %v2212, 17
        %v2239 = vpop.permute.xlu0 %2238
        %2240 = vrot.lane.b32.xlu0 %v2210, 17
        %v2241 = vpop.permute.xlu0 %2240
        %2242 = vrot.lane.b32.xlu0 %v2211, 17
        %v2243 = vpop.permute.xlu0 %2242
        %v2244 = vsel %vm1339, %v2241, %v2243
        %v2245 = vsel %vm1339, %v2243, %v2239
        %v2248 = vsel %vm1342, %v2239, %v2241
        %2249 = vrot.lane.b32.xlu0 %v2212, 1
        %v2250 = vpop.permute.xlu0 %2249
        %2251 = vrot.lane.b32.xlu0 %v2210, 1
        %v2252 = vpop.permute.xlu0 %2251
        %2253 = vrot.lane.b32.xlu0 %v2211, 1
        %v2254 = vpop.permute.xlu0 %2253
        %v2255 = vsel %vm1352, %v2252, %v2254
        %v2256 = vsel %vm1352, %v2254, %v2250
        %v2259 = vsel %vm1355, %v2250, %v2252
        %2260 = vrot.lane.b32.xlu0 %v2210, 127
        %v2261 = vpop.permute.xlu0 %2260
        %2262 = vrot.lane.b32.xlu0 %v2211, 127
        %v2263 = vpop.permute.xlu0 %2262
        %2264 = vrot.lane.b32.xlu0 %v2212, 127
        %v2265 = vpop.permute.xlu0 %2264
        %v2266 = vsel %vm1365, %v2261, %v2263
        %v2267 = vsel %vm1365, %v2263, %v2265
        %v2270 = vsel %vm1368, %v2265, %v2261
        %2271 = vrot.lane.b32.xlu0 %v2210, 111
        %v2272 = vpop.permute.xlu0 %2271
        %2273 = vrot.lane.b32.xlu0 %v2211, 111
        %v2274 = vpop.permute.xlu0 %2273
        %2275 = vrot.lane.b32.xlu0 %v2212, 111
        %v2276 = vpop.permute.xlu0 %2275
        %v2277 = vsel %vm1378, %v2272, %v2274
        %v2278 = vsel %vm1378, %v2274, %v2276
        %v2281 = vsel %vm1381, %v2276, %v2272
        %2282 = vrot.lane.b32.xlu0 %v2210, 110
        %v2283 = vpop.permute.xlu0 %2282
        %2284 = vrot.lane.b32.xlu0 %v2211, 110
        %v2285 = vpop.permute.xlu0 %2284
        %2286 = vrot.lane.b32.xlu0 %v2212, 110
        %v2287 = vpop.permute.xlu0 %2286
        %v2288 = vsel %vm1391, %v2283, %v2285
        %v2289 = vsel %vm1391, %v2285, %v2287
        %v2292 = vsel %vm1394, %v2287, %v2283
        %2293 = vrot.lane.b32.xlu0 %v2210, 109
        %v2294 = vpop.permute.xlu0 %2293
        %2295 = vrot.lane.b32.xlu0 %v2211, 109
        %v2296 = vpop.permute.xlu0 %2295
        %2297 = vrot.lane.b32.xlu0 %v2212, 109
        %v2298 = vpop.permute.xlu0 %2297
        %v2299 = vsel %vm1404, %v2294, %v2296
        %v2300 = vsel %vm1404, %v2296, %v2298
        %v2303 = vsel %vm1407, %v2298, %v2294
        %v2305 = vrot.slane %v2237, 4
        %v2306 = vrot.slane %v2233, 4
        %v2307 = vrot.slane %v2234, 4
        %v2309 = vrot.slane %v2259, 4
        %v2310 = vrot.slane %v2255, 4
        %v2311 = vrot.slane %v2256, 4
        %v2313 = vrot.slane %v2266, 4
        %v2314 = vrot.slane %v2267, 4
        %v2315 = vrot.slane %v2270, 4
        %v2317 = vrot.slane %v2288, 4
        %v2318 = vrot.slane %v2289, 4
        %v2319 = vrot.slane %v2292, 4
        %v2321 = vsel %vm1542, %v2226, %v2305
        %v2325 = vsel %vm1542, %v2222, %v2306
        %v2329 = vsel %vm1542, %v2223, %v2307
        %v2332 = vsel %vm1542, %v2248, %v2309
        %v2336 = vsel %vm1542, %v2244, %v2310
        %v2340 = vsel %vm1542, %v2245, %v2311
        %v2344 = vsel %vm1542, %v2210, %v2313
        %v2348 = vsel %vm1542, %v2211, %v2314
        %v2352 = vsel %vm1542, %v2212, %v2315
        %v2356 = vsel %vm1542, %v2277, %v2317
        %v2360 = vsel %vm1542, %v2278, %v2318
        %v2363 = vsel %vm1542, %v2281, %v2319
        %2366 = vset.pattern.permute.xlu0 0
        %2367 = vperm.xlu0 %2366, %v1682
        %v2368 = vpop.permute.xlu0 %2367
        %v2371 = vsel %vm1844, %v1678, 0
        %v2374 = vsel %vm1542, %v2299, 0
        %v2377 = vsel %vm1542, %v2300, 0
        %v2379 = vsel %vm1542, %v2303, 0
        %2381 = vmatprep.subr.bf16.mxu0 %v2325
        %2382 = vmatpush1.bf16.msra.mxu0 %v2321
        %2383 = vmatprep.subr.bf16.mxu0 %v2336
        %2384 = vmatpush1.bf16.msra.mxu0 %v2332
        %2385 = vmatprep.subr.bf16.mxu0 %v2348
        %2386 = vmatpush1.bf16.msra.mxu0 %v2344
        %2387 = vmatprep.subr.bf16.mxu0 %v2360
        %2388 = vmatpush1.bf16.msra.mxu0 %v2356
        %2389 = vmatprep.subr.bf16.mxu0 %v2377
        %2390 = vmatpush1.bf16.msra.mxu0 %v2374
        %2391 = vmatprep.subr.bf16.mxu0 0
        %2392 = vmatpush1.bf16.msra.mxu0 0
        %2393 = vmatprep.subr.bf16.mxu0 0
        %2394 = vmatpush1.bf16.msra.mxu0 0
        %2395 = vmatprep.subr.bf16.mxu0 0
        %2396 = vmatpush1.bf16.msra.mxu0 0
        %2397 = vmatprep.subr.bf16.mxu0 0
        %2398 = vmatpush1.bf16.msra.mxu0 0
        %2399 = vmatprep.subr.bf16.mxu0 0
        %2400 = vmatpush1.bf16.msra.mxu0 0
        %2401 = vmatprep.subr.bf16.mxu0 0
        %2402 = vmatpush1.bf16.msra.mxu0 0
        %2403 = vmatprep.subr.bf16.mxu0 0
        %2404 = vmatpush1.bf16.msra.mxu0 0
        %2405 = vmatprep.subr.bf16.mxu0 0
        %2406 = vmatpush1.bf16.msra.mxu0 0
        %2407 = vmatprep.subr.bf16.mxu0 0
        %2408 = vmatpush1.bf16.msra.mxu0 0
        %2409 = vmatprep.subr.bf16.mxu0 0
        %2410 = vmatpush1.bf16.msra.mxu0 0
        %2411 = vmatprep.subr.bf16.mxu0 0
        %2412 = vmatpush1.bf16.msra.mxu0 0
        %2413 = vmatprep.mubr.bf16.mxu0 0
        %2414 = vmatmul.mubr.bf16.gmra.mrb[0].mxu0 %v2371
        %v2415 = vpop.f32.mrb[0].mxu0
        %v2416 = vadd.f32 %v2368, %v2415
        %v2417 = vpop.f32.mrb[0].mxu0
        %v2418 = vadd.f32 %v2368, %v2417
        %v2419 = vpop.f32.mrb[0].mxu0
        %v2420 = vpop.f32.mrb[0].mxu0
        %2421 = vdwg.mxu0
        %2422 = vmatprep.subr.bf16.mxu0 0
        %2423 = vmatpush1.bf16.msra.mxu0 %v2329
        %2424 = vmatprep.subr.bf16.mxu0 0
        %2425 = vmatpush1.bf16.msra.mxu0 %v2340
        %2426 = vmatprep.subr.bf16.mxu0 0
        %2427 = vmatpush1.bf16.msra.mxu0 %v2352
        %2428 = vmatprep.subr.bf16.mxu0 0
        %2429 = vmatpush1.bf16.msra.mxu0 %v2363
        %2430 = vmatprep.subr.bf16.mxu0 0
        %2431 = vmatpush1.bf16.msra.mxu0 %v2379
        %2432 = vmatprep.subr.bf16.mxu0 0
        %2433 = vmatpush1.bf16.msra.mxu0 0
        %2434 = vmatprep.subr.bf16.mxu0 0
        %2435 = vmatpush1.bf16.msra.mxu0 0
        %2436 = vmatprep.subr.bf16.mxu0 0
        %2437 = vmatpush1.bf16.msra.mxu0 0
        %2438 = vmatprep.subr.bf16.mxu0 0
        %2439 = vmatpush1.bf16.msra.mxu0 0
        %2440 = vmatprep.subr.bf16.mxu0 0
        %2441 = vmatpush1.bf16.msra.mxu0 0
        %2442 = vmatprep.subr.bf16.mxu0 0
        %2443 = vmatpush1.bf16.msra.mxu0 0
        %2444 = vmatprep.subr.bf16.mxu0 0
        %2445 = vmatpush1.bf16.msra.mxu0 0
        %2446 = vmatprep.subr.bf16.mxu0 0
        %2447 = vmatpush1.bf16.msra.mxu0 0
        %2448 = vmatprep.subr.bf16.mxu0 0
        %2449 = vmatpush1.bf16.msra.mxu0 0
        %2450 = vmatprep.subr.bf16.mxu0 0
        %2451 = vmatpush1.bf16.msra.mxu0 0
        %2452 = vmatprep.subr.bf16.mxu0 0
        %2453 = vmatpush1.bf16.msra.mxu0 0
        %2454 = vmatprep.mubr.bf16.mxu0 0
        %2455 = vmatmul.mubr.bf16.gmra.mrb[0].mxu0 %v2371
        %v2456 = vpop.f32.mrb[0].mxu0
        %v2457 = vadd.f32 %v2368, %v2456
        %v2458 = vpop.f32.mrb[0].mxu0
        %v2459 = vpop.f32.mrb[0].mxu0
        %v2460 = vpop.f32.mrb[0].mxu0
        %2461 = vdwg.mxu0
        %v2462 = vmul.f32 %v2416, 0.2
        %v2463 = vmul.f32 %v2418, 0.2
        %v2464 = vmul.f32 %v2457, 0.2
        %v2465 = vmax.f32 %v2416, %v2462
        %v2466 = vmax.f32 %v2418, %v2463
        %v2467 = vmax.f32 %v2457, %v2464
        %v2468 = vmul.f32 %v2465, %v1661
        %v2469 = vmul.f32 %v2466, %v1665
        %v2470 = vmul.f32 %v2467, %v1669
        %v2471 = vpack.c.bf16 %v2468, %v2468
        %v2472 = vpack.c.bf16 %v2469, %v2469
        %v2473 = vpack.c.bf16 %v2470, %v2470
        %2475 = vrot.lane.b32.xlu0 %v2473, 19
        %v2476 = vpop.permute.xlu0 %2475
        %2479 = vrot.lane.b32.xlu0 %v2471, 19
        %v2480 = vpop.permute.xlu0 %2479
        %2481 = vrot.lane.b32.xlu0 %v2472, 19
        %v2482 = vpop.permute.xlu0 %2481
        %v2483 = vsel %vm1310, %v2480, %v2482
        %v2484 = vsel %vm1310, %v2482, %v2476
        %v2487 = vsel %vm1315, %v2476, %v2480
        %2488 = vrot.lane.b32.xlu0 %v2473, 18
        %v2489 = vpop.permute.xlu0 %2488
        %2490 = vrot.lane.b32.xlu0 %v2471, 18
        %v2491 = vpop.permute.xlu0 %2490
        %2492 = vrot.lane.b32.xlu0 %v2472, 18
        %v2493 = vpop.permute.xlu0 %2492
        %v2494 = vsel %vm1326, %v2491, %v2493
        %v2495 = vsel %vm1326, %v2493, %v2489
        %v2498 = vsel %vm1329, %v2489, %v2491
        %2499 = vrot.lane.b32.xlu0 %v2473, 17
        %v2500 = vpop.permute.xlu0 %2499
        %2501 = vrot.lane.b32.xlu0 %v2471, 17
        %v2502 = vpop.permute.xlu0 %2501
        %2503 = vrot.lane.b32.xlu0 %v2472, 17
        %v2504 = vpop.permute.xlu0 %2503
        %v2505 = vsel %vm1339, %v2502, %v2504
        %v2506 = vsel %vm1339, %v2504, %v2500
        %v2509 = vsel %vm1342, %v2500, %v2502
        %2510 = vrot.lane.b32.xlu0 %v2473, 1
        %v2511 = vpop.permute.xlu0 %2510
        %2512 = vrot.lane.b32.xlu0 %v2471, 1
        %v2513 = vpop.permute.xlu0 %2512
        %2514 = vrot.lane.b32.xlu0 %v2472, 1
        %v2515 = vpop.permute.xlu0 %2514
        %v2516 = vsel %vm1352, %v2513, %v2515
        %v2517 = vsel %vm1352, %v2515, %v2511
        %v2520 = vsel %vm1355, %v2511, %v2513
        %2521 = vrot.lane.b32.xlu0 %v2471, 127
        %v2522 = vpop.permute.xlu0 %2521
        %2523 = vrot.lane.b32.xlu0 %v2472, 127
        %v2524 = vpop.permute.xlu0 %2523
        %2525 = vrot.lane.b32.xlu0 %v2473, 127
        %v2526 = vpop.permute.xlu0 %2525
        %v2527 = vsel %vm1365, %v2522, %v2524
        %v2528 = vsel %vm1365, %v2524, %v2526
        %v2531 = vsel %vm1368, %v2526, %v2522
        %2532 = vrot.lane.b32.xlu0 %v2471, 111
        %v2533 = vpop.permute.xlu0 %2532
        %2534 = vrot.lane.b32.xlu0 %v2472, 111
        %v2535 = vpop.permute.xlu0 %2534
        %2536 = vrot.lane.b32.xlu0 %v2473, 111
        %v2537 = vpop.permute.xlu0 %2536
        %v2538 = vsel %vm1378, %v2533, %v2535
        %v2539 = vsel %vm1378, %v2535, %v2537
        %v2542 = vsel %vm1381, %v2537, %v2533
        %2543 = vrot.lane.b32.xlu0 %v2471, 110
        %v2544 = vpop.permute.xlu0 %2543
        %2545 = vrot.lane.b32.xlu0 %v2472, 110
        %v2546 = vpop.permute.xlu0 %2545
        %2547 = vrot.lane.b32.xlu0 %v2473, 110
        %v2548 = vpop.permute.xlu0 %2547
        %v2549 = vsel %vm1391, %v2544, %v2546
        %v2550 = vsel %vm1391, %v2546, %v2548
        %v2553 = vsel %vm1394, %v2548, %v2544
        %2554 = vrot.lane.b32.xlu0 %v2471, 109
        %v2555 = vpop.permute.xlu0 %2554
        %2556 = vrot.lane.b32.xlu0 %v2472, 109
        %v2557 = vpop.permute.xlu0 %2556
        %2558 = vrot.lane.b32.xlu0 %v2473, 109
        %v2559 = vpop.permute.xlu0 %2558
        %v2560 = vsel %vm1404, %v2555, %v2557
        %v2561 = vsel %vm1404, %v2557, %v2559
        %v2564 = vsel %vm1407, %v2559, %v2555
        %v2566 = vrot.slane %v2498, 4
        %v2567 = vrot.slane %v2494, 4
        %v2568 = vrot.slane %v2495, 4
        %v2570 = vrot.slane %v2520, 4
        %v2571 = vrot.slane %v2516, 4
        %v2572 = vrot.slane %v2517, 4
        %v2574 = vrot.slane %v2527, 4
        %v2575 = vrot.slane %v2528, 4
        %v2576 = vrot.slane %v2531, 4
        %v2578 = vrot.slane %v2549, 4
        %v2579 = vrot.slane %v2550, 4
        %v2580 = vrot.slane %v2553, 4
        %v2582 = vsel %vm1542, %v2487, %v2566
        %v2586 = vsel %vm1542, %v2483, %v2567
        %v2590 = vsel %vm1542, %v2484, %v2568
        %v2593 = vsel %vm1542, %v2509, %v2570
        %v2597 = vsel %vm1542, %v2505, %v2571
        %v2601 = vsel %vm1542, %v2506, %v2572
        %v2605 = vsel %vm1542, %v2471, %v2574
        %v2609 = vsel %vm1542, %v2472, %v2575
        %v2613 = vsel %vm1542, %v2473, %v2576
        %v2617 = vsel %vm1542, %v2538, %v2578
        %v2621 = vsel %vm1542, %v2539, %v2579
        %v2624 = vsel %vm1542, %v2542, %v2580
        %2627 = vset.pattern.permute.xlu0 0
        %2628 = vperm.xlu0 %2627, %v1683
        %v2629 = vpop.permute.xlu0 %2628
        %v2632 = vsel %vm1844, %v1679, 0
        %v2635 = vsel %vm1542, %v2560, 0
        %v2638 = vsel %vm1542, %v2561, 0
        %v2640 = vsel %vm1542, %v2564, 0
        %2642 = vmatprep.subr.bf16.mxu0 %v2586
        %2643 = vmatpush1.bf16.msra.mxu0 %v2582
        %2644 = vmatprep.subr.bf16.mxu0 %v2597
        %2645 = vmatpush1.bf16.msra.mxu0 %v2593
        %2646 = vmatprep.subr.bf16.mxu0 %v2609
        %2647 = vmatpush1.bf16.msra.mxu0 %v2605
        %2648 = vmatprep.subr.bf16.mxu0 %v2621
        %2649 = vmatpush1.bf16.msra.mxu0 %v2617
        %2650 = vmatprep.subr.bf16.mxu0 %v2638
        %2651 = vmatpush1.bf16.msra.mxu0 %v2635
        %2652 = vmatprep.subr.bf16.mxu0 0
        %2653 = vmatpush1.bf16.msra.mxu0 0
        %2654 = vmatprep.subr.bf16.mxu0 0
        %2655 = vmatpush1.bf16.msra.mxu0 0
        %2656 = vmatprep.subr.bf16.mxu0 0
        %2657 = vmatpush1.bf16.msra.mxu0 0
        %2658 = vmatprep.subr.bf16.mxu0 0
        %2659 = vmatpush1.bf16.msra.mxu0 0
        %2660 = vmatprep.subr.bf16.mxu0 0
        %2661 = vmatpush1.bf16.msra.mxu0 0
        %2662 = vmatprep.subr.bf16.mxu0 0
        %2663 = vmatpush1.bf16.msra.mxu0 0
        %2664 = vmatprep.subr.bf16.mxu0 0
        %2665 = vmatpush1.bf16.msra.mxu0 0
        %2666 = vmatprep.subr.bf16.mxu0 0
        %2667 = vmatpush1.bf16.msra.mxu0 0
        %2668 = vmatprep.subr.bf16.mxu0 0
        %2669 = vmatpush1.bf16.msra.mxu0 0
        %2670 = vmatprep.subr.bf16.mxu0 0
        %2671 = vmatpush1.bf16.msra.mxu0 0
        %2672 = vmatprep.subr.bf16.mxu0 0
        %2673 = vmatpush1.bf16.msra.mxu0 0
        %2674 = vmatprep.mubr.bf16.mxu0 0
        %2675 = vmatmul.mubr.bf16.gmra.mrb[0].mxu0 %v2632
        %v2676 = vpop.f32.mrb[0].mxu0
        %v2677 = vadd.f32 %v2629, %v2676
        %v2678 = vpop.f32.mrb[0].mxu0
        %v2679 = vadd.f32 %v2629, %v2678
        %v2680 = vpop.f32.mrb[0].mxu0
        %v2681 = vpop.f32.mrb[0].mxu0
        %2682 = vdwg.mxu0
        %2683 = vmatprep.subr.bf16.mxu0 0
        %2684 = vmatpush1.bf16.msra.mxu0 %v2590
        %2685 = vmatprep.subr.bf16.mxu0 0
        %2686 = vmatpush1.bf16.msra.mxu0 %v2601
        %2687 = vmatprep.subr.bf16.mxu0 0
        %2688 = vmatpush1.bf16.msra.mxu0 %v2613
        %2689 = vmatprep.subr.bf16.mxu0 0
        %2690 = vmatpush1.bf16.msra.mxu0 %v2624
        %2691 = vmatprep.subr.bf16.mxu0 0
        %2692 = vmatpush1.bf16.msra.mxu0 %v2640
        %2693 = vmatprep.subr.bf16.mxu0 0
        %2694 = vmatpush1.bf16.msra.mxu0 0
        %2695 = vmatprep.subr.bf16.mxu0 0
        %2696 = vmatpush1.bf16.msra.mxu0 0
        %2697 = vmatprep.subr.bf16.mxu0 0
        %2698 = vmatpush1.bf16.msra.mxu0 0
        %2699 = vmatprep.subr.bf16.mxu0 0
        %2700 = vmatpush1.bf16.msra.mxu0 0
        %2701 = vmatprep.subr.bf16.mxu0 0
        %2702 = vmatpush1.bf16.msra.mxu0 0
        %2703 = vmatprep.subr.bf16.mxu0 0
        %2704 = vmatpush1.bf16.msra.mxu0 0
        %2705 = vmatprep.subr.bf16.mxu0 0
        %2706 = vmatpush1.bf16.msra.mxu0 0
        %2707 = vmatprep.subr.bf16.mxu0 0
        %2708 = vmatpush1.bf16.msra.mxu0 0
        %2709 = vmatprep.subr.bf16.mxu0 0
        %2710 = vmatpush1.bf16.msra.mxu0 0
        %2711 = vmatprep.subr.bf16.mxu0 0
        %2712 = vmatpush1.bf16.msra.mxu0 0
        %2713 = vmatprep.subr.bf16.mxu0 0
        %2714 = vmatpush1.bf16.msra.mxu0 0
        %2715 = vmatprep.mubr.bf16.mxu0 0
        %2716 = vmatmul.mubr.bf16.gmra.mrb[0].mxu0 %v2632
        %v2717 = vpop.f32.mrb[0].mxu0
        %v2718 = vadd.f32 %v2629, %v2717
        %v2719 = vpop.f32.mrb[0].mxu0
        %v2720 = vpop.f32.mrb[0].mxu0
        %v2721 = vpop.f32.mrb[0].mxu0
        %2722 = vdwg.mxu0
        %v2723 = vmul.f32 %v2677, 0.2
        %v2724 = vmul.f32 %v2679, 0.2
        %v2725 = vmul.f32 %v2718, 0.2
        %v2726 = vmax.f32 %v2677, %v2723
        %v2727 = vmax.f32 %v2679, %v2724
        %v2728 = vmax.f32 %v2718, %v2725
        %v2729 = vmul.f32 %v2726, %v1661
        %v2730 = vmul.f32 %v2727, %v1665
        %v2731 = vmul.f32 %v2728, %v1669
        %v2732 = vadd.f32 %v2207, %v2729
        %v2733 = vadd.f32 %v2208, %v2730
        %v2734 = vadd.f32 %v2209, %v2731
        %v2735 = vld [vmem:[%s12] sm:$0xf]
        %v2736 = vld [vmem:[%s12 + $0x4] sm:$0xf]
        %v2737 = vld [vmem:[%s13] sm:$0xff]
        %v2738 = vld [vmem:[%s13 + $0x8] sm:$0xff]
        %v2739 = vld [vmem:[%s14] sm:$0xf]
        %v2740 = vld [vmem:[%s14 + $0x4] sm:$0xf]
        %v2741 = vld [vmem:[%s14 + $0x8] sm:$0xf]
        %v2742 = vld [vmem:[%s14 + $0xc] sm:$0xf]
        %v2743 = vld [vmem:[%s15] sm:$0xff]
        %v2744 = vld [vmem:[%s15 + $0x8] sm:$0xff]
        %v2745 = vld [vmem:[%s15 + $0x10] sm:$0xff]
        %v2746 = vld [vmem:[%s15 + $0x18] sm:$0xff]
        %v2747 = vpack.c.bf16 %v2732, %v2732
        %v2748 = vpack.c.bf16 %v2733, %v2733
        %v2749 = vpack.c.bf16 %v2734, %v2734
        %v3134 = vunpack.c.l.b16 %v863
        %v3135 = vunpack.c.h.b16 %v863
        %v3136 = vunpack.c.l.b16 %v864
        %v3137 = vunpack.c.h.b16 %v864
        %v3138 = vunpack.c.l.b16 %v865
        %v3139 = vunpack.c.h.b16 %v865
        %v3140 = vunpack.c.l.b16 %v866
        %v3141 = vunpack.c.h.b16 %v866
        %v3142 = vunpack.c.l.b16 %v867
        %v3143 = vunpack.c.h.b16 %v867
        %v3144 = vunpack.c.l.b16 %v868
        %v3145 = vunpack.c.h.b16 %v868
        %v3146 = vunpack.c.l.b16 %v869
        %v3147 = vunpack.c.h.b16 %v869
        %v3148 = vunpack.c.l.b16 %v870
        %v3149 = vunpack.c.h.b16 %v870
        %v3150 = vunpack.c.l.b16 %v871
        %v3151 = vunpack.c.h.b16 %v871
        %v3152 = vunpack.c.l.b16 %v872
        %v3153 = vunpack.c.h.b16 %v872
        %v3154 = vunpack.c.l.b16 %v873
        %v3155 = vunpack.c.h.b16 %v873
        %v3156 = vunpack.c.l.b16 %v874
        %v3157 = vunpack.c.h.b16 %v874
        %v3158 = vunpack.c.l.b16 %v875
        %v3159 = vunpack.c.h.b16 %v875
        %v3160 = vunpack.c.l.b16 %v876
        %v3161 = vunpack.c.h.b16 %v876
        %v3162 = vunpack.c.l.b16 %v877
        %v3163 = vunpack.c.h.b16 %v877
        %v3164 = vunpack.c.l.b16 %v878
        %v3165 = vunpack.c.h.b16 %v878
        %v3166 = vunpack.c.l.b16 %v879
        %v3167 = vunpack.c.h.b16 %v879
        %v3168 = vunpack.c.l.b16 %v880
        %v3169 = vunpack.c.h.b16 %v880
        %v3170 = vunpack.c.l.b16 %v881
        %v3171 = vunpack.c.h.b16 %v881
        %v3172 = vunpack.c.l.b16 %v882
        %v3173 = vunpack.c.h.b16 %v882
        %v3174 = vunpack.c.l.b16 %v883
        %v3175 = vunpack.c.h.b16 %v883
        %v3176 = vunpack.c.l.b16 %v884
        %v3177 = vunpack.c.h.b16 %v884
        %v3178 = vunpack.c.l.b16 %v885
        %v3179 = vunpack.c.h.b16 %v885
        %v3180 = vunpack.c.l.b16 %v886
        %v3181 = vunpack.c.h.b16 %v886
        %v3182 = vunpack.c.l.b16 %v887
        %v3183 = vunpack.c.h.b16 %v887
        %v3184 = vunpack.c.l.b16 %v888
        %v3185 = vunpack.c.h.b16 %v888
        %v3186 = vunpack.c.l.b16 %v889
        %v3187 = vunpack.c.h.b16 %v889
        %v3188 = vunpack.c.l.b16 %v890
        %v3189 = vunpack.c.h.b16 %v890
        %v3190 = vunpack.c.l.b16 %v891
        %v3191 = vunpack.c.h.b16 %v891
        %v3192 = vunpack.c.l.b16 %v892
        %v3193 = vunpack.c.h.b16 %v892
        %v3194 = vunpack.c.l.b16 %v893
        %v3195 = vunpack.c.h.b16 %v893
        %v3196 = vunpack.c.l.b16 %v894
        %v3197 = vunpack.c.h.b16 %v894
        %v3198 = vunpack.c.l.b16 %v895
        %v3199 = vunpack.c.h.b16 %v895
        %v3200 = vunpack.c.l.b16 %v896
        %v3201 = vunpack.c.h.b16 %v896
        %v3202 = vunpack.c.l.b16 %v897
        %v3203 = vunpack.c.h.b16 %v897
        %v3204 = vunpack.c.l.b16 %v898
        %v3205 = vunpack.c.h.b16 %v898
        %v3206 = vunpack.c.l.b16 %v899
        %v3207 = vunpack.c.h.b16 %v899
        %v3208 = vunpack.c.l.b16 %v900
        %v3209 = vunpack.c.h.b16 %v900
        %v3210 = vunpack.c.l.b16 %v901
        %v3211 = vunpack.c.h.b16 %v901
        %v3212 = vunpack.c.l.b16 %v902
        %v3213 = vunpack.c.h.b16 %v902
        %v3214 = vunpack.c.l.b16 %v903
        %v3215 = vunpack.c.h.b16 %v903
        %v3216 = vunpack.c.l.b16 %v904
        %v3217 = vunpack.c.h.b16 %v904
        %v3218 = vunpack.c.l.b16 %v905
        %v3219 = vunpack.c.h.b16 %v905
        %v3220 = vunpack.c.l.b16 %v906
        %v3221 = vunpack.c.h.b16 %v906
        %v3222 = vunpack.c.l.b16 %v907
        %v3223 = vunpack.c.h.b16 %v907
        %v3224 = vunpack.c.l.b16 %v908
        %v3225 = vunpack.c.h.b16 %v908
        %v3226 = vunpack.c.l.b16 %v909
        %v3227 = vunpack.c.h.b16 %v909
        %v3228 = vunpack.c.l.b16 %v910
        %v3229 = vunpack.c.h.b16 %v910
        %v3230 = vunpack.c.l.b16 %v911
        %v3231 = vunpack.c.h.b16 %v911
        %v3232 = vunpack.c.l.b16 %v912
        %v3233 = vunpack.c.h.b16 %v912
        %v3234 = vunpack.c.l.b16 %v913
        %v3235 = vunpack.c.h.b16 %v913
        %v3236 = vunpack.c.l.b16 %v914
        %v3237 = vunpack.c.h.b16 %v914
        %v3238 = vunpack.c.l.b16 %v915
        %v3239 = vunpack.c.h.b16 %v915
        %v3240 = vunpack.c.l.b16 %v916
        %v3241 = vunpack.c.h.b16 %v916
        %v3242 = vunpack.c.l.b16 %v917
        %v3243 = vunpack.c.h.b16 %v917
        %v3244 = vunpack.c.l.b16 %v918
        %v3245 = vunpack.c.h.b16 %v918
        %v3246 = vunpack.c.l.b16 %v919
        %v3247 = vunpack.c.h.b16 %v919
        %v3248 = vunpack.c.l.b16 %v920
        %v3249 = vunpack.c.h.b16 %v920
        %v3250 = vunpack.c.l.b16 %v921
        %v3251 = vunpack.c.h.b16 %v921
        %v3252 = vunpack.c.l.b16 %v922
        %v3253 = vunpack.c.h.b16 %v922
        %v3254 = vunpack.c.l.b16 %v923
        %v3255 = vunpack.c.h.b16 %v923
        %v3256 = vunpack.c.l.b16 %v924
        %v3257 = vunpack.c.h.b16 %v924
        %v3258 = vunpack.c.l.b16 %v925
        %v3259 = vunpack.c.h.b16 %v925
        %v3260 = vunpack.c.l.b16 %v926
        %v3261 = vunpack.c.h.b16 %v926
        %v3262 = vunpack.c.l.b16 %v927
        %v3263 = vunpack.c.h.b16 %v927
        %v3264 = vunpack.c.l.b16 %v928
        %v3265 = vunpack.c.h.b16 %v928
        %v3266 = vunpack.c.l.b16 %v929
        %v3267 = vunpack.c.h.b16 %v929
        %v3268 = vunpack.c.l.b16 %v930
        %v3269 = vunpack.c.h.b16 %v930
        %v3270 = vunpack.c.l.b16 %v931
        %v3271 = vunpack.c.h.b16 %v931
        %v3272 = vunpack.c.l.b16 %v932
        %v3273 = vunpack.c.h.b16 %v932
        %v3274 = vunpack.c.l.b16 %v933
        %v3275 = vunpack.c.h.b16 %v933
        %v3276 = vunpack.c.l.b16 %v934
        %v3277 = vunpack.c.h.b16 %v934
        %v3278 = vunpack.c.l.b16 %v935
        %v3279 = vunpack.c.h.b16 %v935
        %v3280 = vunpack.c.l.b16 %v936
        %v3281 = vunpack.c.h.b16 %v936
        %v3282 = vunpack.c.l.b16 %v937
        %v3283 = vunpack.c.h.b16 %v937
        %v3284 = vunpack.c.l.b16 %v938
        %v3285 = vunpack.c.h.b16 %v938
        %v3286 = vunpack.c.l.b16 %v939
        %v3287 = vunpack.c.h.b16 %v939
        %v3288 = vunpack.c.l.b16 %v940
        %v3289 = vunpack.c.h.b16 %v940
        %v3290 = vunpack.c.l.b16 %v941
        %v3291 = vunpack.c.h.b16 %v941
        %v3292 = vunpack.c.l.b16 %v942
        %v3293 = vunpack.c.h.b16 %v942
        %v3294 = vunpack.c.l.b16 %v943
        %v3295 = vunpack.c.h.b16 %v943
        %v3296 = vunpack.c.l.b16 %v944
        %v3297 = vunpack.c.h.b16 %v944
        %v3298 = vunpack.c.l.b16 %v945
        %v3299 = vunpack.c.h.b16 %v945
        %v3300 = vunpack.c.l.b16 %v946
        %v3301 = vunpack.c.h.b16 %v946
        %v3302 = vunpack.c.l.b16 %v947
        %v3303 = vunpack.c.h.b16 %v947
        %v3304 = vunpack.c.l.b16 %v948
        %v3305 = vunpack.c.h.b16 %v948
        %v3306 = vunpack.c.l.b16 %v949
        %v3307 = vunpack.c.h.b16 %v949
        %v3308 = vunpack.c.l.b16 %v950
        %v3309 = vunpack.c.h.b16 %v950
        %v3310 = vunpack.c.l.b16 %v951
        %v3311 = vunpack.c.h.b16 %v951
        %v3312 = vunpack.c.l.b16 %v952
        %v3313 = vunpack.c.h.b16 %v952
        %v3314 = vunpack.c.l.b16 %v953
        %v3315 = vunpack.c.h.b16 %v953
        %v3316 = vunpack.c.l.b16 %v954
        %v3317 = vunpack.c.h.b16 %v954
        %v3318 = vunpack.c.l.b16 %v955
        %v3319 = vunpack.c.h.b16 %v955
        %v3320 = vunpack.c.l.b16 %v956
        %v3321 = vunpack.c.h.b16 %v956
        %v3322 = vunpack.c.l.b16 %v957
        %v3323 = vunpack.c.h.b16 %v957
        %v3324 = vunpack.c.l.b16 %v958
        %v3325 = vunpack.c.h.b16 %v958
        %v3326 = vunpack.c.l.b16 %v959
        %v3327 = vunpack.c.h.b16 %v959
        %v3328 = vunpack.c.l.b16 %v960
        %v3329 = vunpack.c.h.b16 %v960
        %v3330 = vunpack.c.l.b16 %v961
        %v3331 = vunpack.c.h.b16 %v961
        %v3332 = vunpack.c.l.b16 %v962
        %v3333 = vunpack.c.h.b16 %v962
        %v3334 = vunpack.c.l.b16 %v963
        %v3335 = vunpack.c.h.b16 %v963
        %v3336 = vunpack.c.l.b16 %v964
        %v3337 = vunpack.c.h.b16 %v964
        %v3338 = vunpack.c.l.b16 %v965
        %v3339 = vunpack.c.h.b16 %v965
        %v3340 = vunpack.c.l.b16 %v966
        %v3341 = vunpack.c.h.b16 %v966
        %v3342 = vunpack.c.l.b16 %v967
        %v3343 = vunpack.c.h.b16 %v967
        %v3344 = vunpack.c.l.b16 %v968
        %v3345 = vunpack.c.h.b16 %v968
        %v3346 = vunpack.c.l.b16 %v969
        %v3347 = vunpack.c.h.b16 %v969
        %v3348 = vunpack.c.l.b16 %v970
        %v3349 = vunpack.c.h.b16 %v970
        %v3350 = vunpack.c.l.b16 %v971
        %v3351 = vunpack.c.h.b16 %v971
        %v3352 = vunpack.c.l.b16 %v972
        %v3353 = vunpack.c.h.b16 %v972
        %v3354 = vunpack.c.l.b16 %v973
        %v3355 = vunpack.c.h.b16 %v973
        %v3356 = vunpack.c.l.b16 %v974
        %v3357 = vunpack.c.h.b16 %v974
        %v3358 = vunpack.c.l.b16 %v975
        %v3359 = vunpack.c.h.b16 %v975
        %v3360 = vunpack.c.l.b16 %v976
        %v3361 = vunpack.c.h.b16 %v976
        %v3362 = vunpack.c.l.b16 %v977
        %v3363 = vunpack.c.h.b16 %v977
        %v3364 = vunpack.c.l.b16 %v978
        %v3365 = vunpack.c.h.b16 %v978
        %v3366 = vunpack.c.l.b16 %v979
        %v3367 = vunpack.c.h.b16 %v979
        %v3368 = vunpack.c.l.b16 %v980
        %v3369 = vunpack.c.h.b16 %v980
        %v3370 = vunpack.c.l.b16 %v981
        %v3371 = vunpack.c.h.b16 %v981
        %v3372 = vunpack.c.l.b16 %v982
        %v3373 = vunpack.c.h.b16 %v982
        %v3374 = vunpack.c.l.b16 %v983
        %v3375 = vunpack.c.h.b16 %v983
        %v3376 = vunpack.c.l.b16 %v984
        %v3377 = vunpack.c.h.b16 %v984
        %v3378 = vunpack.c.l.b16 %v985
        %v3379 = vunpack.c.h.b16 %v985
        %v3380 = vunpack.c.l.b16 %v986
        %v3381 = vunpack.c.h.b16 %v986
        %v3382 = vunpack.c.l.b16 %v987
        %v3383 = vunpack.c.h.b16 %v987
        %v3384 = vunpack.c.l.b16 %v988
        %v3385 = vunpack.c.h.b16 %v988
        %v3386 = vunpack.c.l.b16 %v989
        %v3387 = vunpack.c.h.b16 %v989
        %v3388 = vunpack.c.l.b16 %v990
        %v3389 = vunpack.c.h.b16 %v990
        %v3390 = vunpack.c.l.b16 %v991
        %v3391 = vunpack.c.h.b16 %v991
        %v3392 = vunpack.c.l.b16 %v992
        %v3393 = vunpack.c.h.b16 %v992
        %v3394 = vunpack.c.l.b16 %v993
        %v3395 = vunpack.c.h.b16 %v993
        %v3396 = vunpack.c.l.b16 %v994
        %v3397 = vunpack.c.h.b16 %v994
        %v3398 = vunpack.c.l.b16 %v995
        %v3399 = vunpack.c.h.b16 %v995
        %v3400 = vunpack.c.l.b16 %v996
        %v3401 = vunpack.c.h.b16 %v996
        %v3402 = vunpack.c.l.b16 %v997
        %v3403 = vunpack.c.h.b16 %v997
        %v3404 = vunpack.c.l.b16 %v998
        %v3405 = vunpack.c.h.b16 %v998
        %v3406 = vunpack.c.l.b16 %v999
        %v3407 = vunpack.c.h.b16 %v999
        %v3408 = vunpack.c.l.b16 %v1000
        %v3409 = vunpack.c.h.b16 %v1000
        %v3410 = vunpack.c.l.b16 %v1001
        %v3411 = vunpack.c.h.b16 %v1001
        %v3412 = vunpack.c.l.b16 %v1002
        %v3413 = vunpack.c.h.b16 %v1002
        %v3414 = vunpack.c.l.b16 %v1003
        %v3415 = vunpack.c.h.b16 %v1003
        %v3416 = vunpack.c.l.b16 %v1004
        %v3417 = vunpack.c.h.b16 %v1004
        %v3418 = vunpack.c.l.b16 %v1005
        %v3419 = vunpack.c.h.b16 %v1005
        %v3420 = vunpack.c.l.b16 %v1006
        %v3421 = vunpack.c.h.b16 %v1006
        %v3422 = vunpack.c.l.b16 %v1007
        %v3423 = vunpack.c.h.b16 %v1007
        %v3424 = vunpack.c.l.b16 %v1008
        %v3425 = vunpack.c.h.b16 %v1008
        %v3426 = vunpack.c.l.b16 %v1009
        %v3427 = vunpack.c.h.b16 %v1009
        %v3428 = vunpack.c.l.b16 %v1010
        %v3429 = vunpack.c.h.b16 %v1010
        %v3430 = vunpack.c.l.b16 %v1011
        %v3431 = vunpack.c.h.b16 %v1011
        %v3432 = vunpack.c.l.b16 %v1012
        %v3433 = vunpack.c.h.b16 %v1012
        %v3434 = vunpack.c.l.b16 %v1013
        %v3435 = vunpack.c.h.b16 %v1013
        %v3436 = vunpack.c.l.b16 %v1014
        %v3437 = vunpack.c.h.b16 %v1014
        %v3438 = vunpack.c.l.b16 %v1015
        %v3439 = vunpack.c.h.b16 %v1015
        %v3440 = vunpack.c.l.b16 %v1016
        %v3441 = vunpack.c.h.b16 %v1016
        %v3442 = vunpack.c.l.b16 %v1017
        %v3443 = vunpack.c.h.b16 %v1017
        %v3444 = vunpack.c.l.b16 %v1018
        %v3445 = vunpack.c.h.b16 %v1018
        %v3446 = vunpack.c.l.b16 %v1019
        %v3447 = vunpack.c.h.b16 %v1019
        %v3448 = vunpack.c.l.b16 %v1020
        %v3449 = vunpack.c.h.b16 %v1020
        %v3450 = vunpack.c.l.b16 %v1021
        %v3451 = vunpack.c.h.b16 %v1021
        %v3452 = vunpack.c.l.b16 %v1022
        %v3453 = vunpack.c.h.b16 %v1022
        %v3454 = vunpack.c.l.b16 %v1023
        %v3455 = vunpack.c.h.b16 %v1023
        %v3456 = vunpack.c.l.b16 %v1024
        %v3457 = vunpack.c.h.b16 %v1024
        %v3458 = vunpack.c.l.b16 %v1025
        %v3459 = vunpack.c.h.b16 %v1025
        %v3460 = vunpack.c.l.b16 %v1026
        %v3461 = vunpack.c.h.b16 %v1026
        %v3462 = vunpack.c.l.b16 %v1027
        %v3463 = vunpack.c.h.b16 %v1027
        %v3464 = vunpack.c.l.b16 %v1028
        %v3465 = vunpack.c.h.b16 %v1028
        %v3466 = vunpack.c.l.b16 %v1029
        %v3467 = vunpack.c.h.b16 %v1029
        %v3468 = vunpack.c.l.b16 %v1030
        %v3469 = vunpack.c.h.b16 %v1030
        %v3470 = vunpack.c.l.b16 %v1031
        %v3471 = vunpack.c.h.b16 %v1031
        %v3472 = vunpack.c.l.b16 %v1032
        %v3473 = vunpack.c.h.b16 %v1032
        %v3474 = vunpack.c.l.b16 %v1033
        %v3475 = vunpack.c.h.b16 %v1033
        %v3476 = vunpack.c.l.b16 %v1034
        %v3477 = vunpack.c.h.b16 %v1034
        %v3478 = vunpack.c.l.b16 %v1035
        %v3479 = vunpack.c.h.b16 %v1035
        %v3480 = vunpack.c.l.b16 %v1036
        %v3481 = vunpack.c.h.b16 %v1036
        %v3482 = vunpack.c.l.b16 %v1037
        %v3483 = vunpack.c.h.b16 %v1037
        %v3484 = vunpack.c.l.b16 %v1038
        %v3485 = vunpack.c.h.b16 %v1038
        %v3486 = vunpack.c.l.b16 %v1039
        %v3487 = vunpack.c.h.b16 %v1039
        %v3488 = vunpack.c.l.b16 %v1040
        %v3489 = vunpack.c.h.b16 %v1040
        %v3490 = vunpack.c.l.b16 %v1041
        %v3491 = vunpack.c.h.b16 %v1041
        %v3492 = vunpack.c.l.b16 %v1042
        %v3493 = vunpack.c.h.b16 %v1042
        %v3494 = vunpack.c.l.b16 %v1043
        %v3495 = vunpack.c.h.b16 %v1043
        %v3496 = vunpack.c.l.b16 %v1044
        %v3497 = vunpack.c.h.b16 %v1044
        %v3498 = vunpack.c.l.b16 %v1045
        %v3499 = vunpack.c.h.b16 %v1045
        %v3500 = vunpack.c.l.b16 %v1046
        %v3501 = vunpack.c.h.b16 %v1046
        %v3502 = vunpack.c.l.b16 %v1047
        %v3503 = vunpack.c.h.b16 %v1047
        %v3504 = vunpack.c.l.b16 %v1048
        %v3505 = vunpack.c.h.b16 %v1048
        %v3506 = vunpack.c.l.b16 %v1049
        %v3507 = vunpack.c.h.b16 %v1049
        %v3508 = vunpack.c.l.b16 %v1050
        %v3509 = vunpack.c.h.b16 %v1050
        %v3510 = vunpack.c.l.b16 %v1051
        %v3511 = vunpack.c.h.b16 %v1051
        %v3512 = vunpack.c.l.b16 %v1052
        %v3513 = vunpack.c.h.b16 %v1052
        %v3514 = vunpack.c.l.b16 %v1053
        %v3515 = vunpack.c.h.b16 %v1053
        %v3516 = vunpack.c.l.b16 %v1054
        %v3517 = vunpack.c.h.b16 %v1054
        %v3518 = vunpack.c.l.b16 %v1055
        %v3519 = vunpack.c.h.b16 %v1055
        %v3520 = vunpack.c.l.b16 %v1056
        %v3521 = vunpack.c.h.b16 %v1056
        %v3522 = vunpack.c.l.b16 %v1057
        %v3523 = vunpack.c.h.b16 %v1057
        %v3524 = vunpack.c.l.b16 %v1058
        %v3525 = vunpack.c.h.b16 %v1058
        %v3526 = vunpack.c.l.b16 %v1059
        %v3527 = vunpack.c.h.b16 %v1059
        %v3528 = vunpack.c.l.b16 %v1060
        %v3529 = vunpack.c.h.b16 %v1060
        %v3530 = vunpack.c.l.b16 %v1061
        %v3531 = vunpack.c.h.b16 %v1061
        %v3532 = vunpack.c.l.b16 %v1062
        %v3533 = vunpack.c.h.b16 %v1062
        %v3534 = vunpack.c.l.b16 %v1063
        %v3535 = vunpack.c.h.b16 %v1063
        %v3536 = vunpack.c.l.b16 %v1064
        %v3537 = vunpack.c.h.b16 %v1064
        %v3538 = vunpack.c.l.b16 %v1065
        %v3539 = vunpack.c.h.b16 %v1065
        %v3540 = vunpack.c.l.b16 %v1066
        %v3541 = vunpack.c.h.b16 %v1066
        %v3542 = vunpack.c.l.b16 %v1067
        %v3543 = vunpack.c.h.b16 %v1067
        %v3544 = vunpack.c.l.b16 %v1068
        %v3545 = vunpack.c.h.b16 %v1068
        %v3546 = vunpack.c.l.b16 %v1069
        %v3547 = vunpack.c.h.b16 %v1069
        %v3548 = vunpack.c.l.b16 %v1070
        %v3549 = vunpack.c.h.b16 %v1070
        %v3550 = vunpack.c.l.b16 %v1071
        %v3551 = vunpack.c.h.b16 %v1071
        %v3552 = vunpack.c.l.b16 %v1072
        %v3553 = vunpack.c.h.b16 %v1072
        %v3554 = vunpack.c.l.b16 %v1073
        %v3555 = vunpack.c.h.b16 %v1073
        %v3556 = vunpack.c.l.b16 %v1074
        %v3557 = vunpack.c.h.b16 %v1074
        %v3558 = vunpack.c.l.b16 %v1075
        %v3559 = vunpack.c.h.b16 %v1075
        %v3560 = vunpack.c.l.b16 %v1076
        %v3561 = vunpack.c.h.b16 %v1076
        %v3562 = vunpack.c.l.b16 %v1077
        %v3563 = vunpack.c.h.b16 %v1077
        %v3564 = vunpack.c.l.b16 %v1078
        %v3565 = vunpack.c.h.b16 %v1078
        %v3566 = vunpack.c.l.b16 %v1079
        %v3567 = vunpack.c.h.b16 %v1079
        %v3568 = vunpack.c.l.b16 %v1080
        %v3569 = vunpack.c.h.b16 %v1080
        %v3570 = vunpack.c.l.b16 %v1081
        %v3571 = vunpack.c.h.b16 %v1081
        %v3572 = vunpack.c.l.b16 %v1082
        %v3573 = vunpack.c.h.b16 %v1082
        %v3574 = vunpack.c.l.b16 %v1083
        %v3575 = vunpack.c.h.b16 %v1083
        %v3576 = vunpack.c.l.b16 %v1084
        %v3577 = vunpack.c.h.b16 %v1084
        %v3578 = vunpack.c.l.b16 %v1085
        %v3579 = vunpack.c.h.b16 %v1085
        %v3580 = vunpack.c.l.b16 %v1086
        %v3581 = vunpack.c.h.b16 %v1086
        %v3582 = vunpack.c.l.b16 %v1087
        %v3583 = vunpack.c.h.b16 %v1087
        %v3584 = vunpack.c.l.b16 %v1088
        %v3585 = vunpack.c.h.b16 %v1088
        %v3586 = vunpack.c.l.b16 %v1089
        %v3587 = vunpack.c.h.b16 %v1089
        %v3588 = vunpack.c.l.b16 %v1090
        %v3589 = vunpack.c.h.b16 %v1090
        %v3590 = vunpack.c.l.b16 %v1091
        %v3591 = vunpack.c.h.b16 %v1091
        %v3592 = vunpack.c.l.b16 %v1092
        %v3593 = vunpack.c.h.b16 %v1092
        %v3594 = vunpack.c.l.b16 %v1093
        %v3595 = vunpack.c.h.b16 %v1093
        %v3596 = vunpack.c.l.b16 %v1094
        %v3597 = vunpack.c.h.b16 %v1094
        %v3598 = vunpack.c.l.b16 %v1095
        %v3599 = vunpack.c.h.b16 %v1095
        %v3600 = vunpack.c.l.b16 %v1096
        %v3601 = vunpack.c.h.b16 %v1096
        %v3602 = vunpack.c.l.b16 %v1097
        %v3603 = vunpack.c.h.b16 %v1097
        %v3604 = vunpack.c.l.b16 %v1098
        %v3605 = vunpack.c.h.b16 %v1098
        %v3606 = vunpack.c.l.b16 %v1099
        %v3607 = vunpack.c.h.b16 %v1099
        %v3608 = vunpack.c.l.b16 %v1100
        %v3609 = vunpack.c.h.b16 %v1100
        %v3610 = vunpack.c.l.b16 %v1101
        %v3611 = vunpack.c.h.b16 %v1101
        %v3612 = vunpack.c.l.b16 %v1102
        %v3613 = vunpack.c.h.b16 %v1102
        %v3614 = vunpack.c.l.b16 %v1103
        %v3615 = vunpack.c.h.b16 %v1103
        %v3616 = vunpack.c.l.b16 %v1104
        %v3617 = vunpack.c.h.b16 %v1104
        %v3618 = vunpack.c.l.b16 %v1105
        %v3619 = vunpack.c.h.b16 %v1105
        %v3620 = vunpack.c.l.b16 %v1106
        %v3621 = vunpack.c.h.b16 %v1106
        %v3622 = vunpack.c.l.b16 %v1107
        %v3623 = vunpack.c.h.b16 %v1107
        %v3624 = vunpack.c.l.b16 %v1108
        %v3625 = vunpack.c.h.b16 %v1108
        %v3626 = vunpack.c.l.b16 %v1109
        %v3627 = vunpack.c.h.b16 %v1109
        %v3628 = vunpack.c.l.b16 %v1110
        %v3629 = vunpack.c.h.b16 %v1110
        %v3630 = vunpack.c.l.b16 %v1111
        %v3631 = vunpack.c.h.b16 %v1111
        %v3632 = vunpack.c.l.b16 %v1112
        %v3633 = vunpack.c.h.b16 %v1112
        %v3634 = vunpack.c.l.b16 %v1113
        %v3635 = vunpack.c.h.b16 %v1113
        %v3636 = vunpack.c.l.b16 %v1114
        %v3637 = vunpack.c.h.b16 %v1114
        %v3638 = vunpack.c.l.b16 %v1115
        %v3639 = vunpack.c.h.b16 %v1115
        %v3640 = vunpack.c.l.b16 %v1116
        %v3641 = vunpack.c.h.b16 %v1116
        %v3642 = vunpack.c.l.b16 %v1117
        %v3643 = vunpack.c.h.b16 %v1117
        %v3644 = vunpack.c.l.b16 %v1118
        %v3645 = vunpack.c.h.b16 %v1118
        %v3646 = vunpack.c.l.b16 %v1119
        %v3647 = vunpack.c.h.b16 %v1119
        %v3648 = vunpack.c.l.b16 %v1120
        %v3649 = vunpack.c.h.b16 %v1120
        %v3650 = vunpack.c.l.b16 %v1121
        %v3651 = vunpack.c.h.b16 %v1121
        %v3652 = vunpack.c.l.b16 %v1122
        %v3653 = vunpack.c.h.b16 %v1122
        %v3654 = vunpack.c.l.b16 %v1123
        %v3655 = vunpack.c.h.b16 %v1123
        %v3656 = vunpack.c.l.b16 %v1124
        %v3657 = vunpack.c.h.b16 %v1124
        %v3658 = vunpack.c.l.b16 %v1125
        %v3659 = vunpack.c.h.b16 %v1125
        %v3660 = vunpack.c.l.b16 %v1126
        %v3661 = vunpack.c.h.b16 %v1126
        %v3662 = vunpack.c.l.b16 %v1127
        %v3663 = vunpack.c.h.b16 %v1127
        %v3664 = vunpack.c.l.b16 %v1128
        %v3665 = vunpack.c.h.b16 %v1128
        %v3666 = vunpack.c.l.b16 %v1129
        %v3667 = vunpack.c.h.b16 %v1129
        %v3668 = vunpack.c.l.b16 %v1130
        %v3669 = vunpack.c.h.b16 %v1130
        %v3670 = vunpack.c.l.b16 %v1131
        %v3671 = vunpack.c.h.b16 %v1131
        %v3672 = vunpack.c.l.b16 %v1132
        %v3673 = vunpack.c.h.b16 %v1132
        %v3674 = vunpack.c.l.b16 %v1133
        %v3675 = vunpack.c.h.b16 %v1133
        %v3676 = vunpack.c.l.b16 %v1134
        %v3677 = vunpack.c.h.b16 %v1134
        %v3678 = vunpack.c.l.b16 %v1135
        %v3679 = vunpack.c.h.b16 %v1135
        %v3680 = vunpack.c.l.b16 %v1136
        %v3681 = vunpack.c.h.b16 %v1136
        %v3682 = vunpack.c.l.b16 %v1137
        %v3683 = vunpack.c.h.b16 %v1137
        %v3684 = vunpack.c.l.b16 %v1138
        %v3685 = vunpack.c.h.b16 %v1138
        %v3686 = vunpack.c.l.b16 %v1139
        %v3687 = vunpack.c.h.b16 %v1139
        %v3688 = vunpack.c.l.b16 %v1140
        %v3689 = vunpack.c.h.b16 %v1140
        %v3690 = vunpack.c.l.b16 %v1141
        %v3691 = vunpack.c.h.b16 %v1141
        %v3692 = vunpack.c.l.b16 %v1142
        %v3693 = vunpack.c.h.b16 %v1142
        %v3694 = vunpack.c.l.b16 %v1143
        %v3695 = vunpack.c.h.b16 %v1143
        %v3696 = vunpack.c.l.b16 %v1144
        %v3697 = vunpack.c.h.b16 %v1144
        %v3698 = vunpack.c.l.b16 %v1145
        %v3699 = vunpack.c.h.b16 %v1145
        %v3700 = vunpack.c.l.b16 %v1146
        %v3701 = vunpack.c.h.b16 %v1146
        %v3702 = vunpack.c.l.b16 %v1147
        %v3703 = vunpack.c.h.b16 %v1147
        %v3704 = vunpack.c.l.b16 %v1148
        %v3705 = vunpack.c.h.b16 %v1148
        %v3706 = vunpack.c.l.b16 %v1149
        %v3707 = vunpack.c.h.b16 %v1149
        %v3708 = vunpack.c.l.b16 %v1150
        %v3709 = vunpack.c.h.b16 %v1150
        %v3710 = vunpack.c.l.b16 %v1151
        %v3711 = vunpack.c.h.b16 %v1151
        %v3712 = vunpack.c.l.b16 %v1152
        %v3713 = vunpack.c.h.b16 %v1152
        %v3714 = vunpack.c.l.b16 %v1153
        %v3715 = vunpack.c.h.b16 %v1153
        %v3716 = vunpack.c.l.b16 %v1154
        %v3717 = vunpack.c.h.b16 %v1154
        %v3718 = vunpack.c.l.b16 %v1155
        %v3719 = vunpack.c.h.b16 %v1155
        %v3720 = vunpack.c.l.b16 %v1156
        %v3721 = vunpack.c.h.b16 %v1156
        %v3722 = vunpack.c.l.b16 %v1157
        %v3723 = vunpack.c.h.b16 %v1157
        %v3724 = vunpack.c.l.b16 %v1158
        %v3725 = vunpack.c.h.b16 %v1158
        %v3726 = vunpack.c.l.b16 %v1159
        %v3727 = vunpack.c.h.b16 %v1159
        %v3728 = vunpack.c.l.b16 %v1160
        %v3729 = vunpack.c.h.b16 %v1160
        %v3730 = vunpack.c.l.b16 %v1161
        %v3731 = vunpack.c.h.b16 %v1161
        %v3732 = vunpack.c.l.b16 %v1162
        %v3733 = vunpack.c.h.b16 %v1162
        %v3734 = vunpack.c.l.b16 %v1163
        %v3735 = vunpack.c.h.b16 %v1163
        %v3736 = vunpack.c.l.b16 %v1164
        %v3737 = vunpack.c.h.b16 %v1164
        %v3738 = vunpack.c.l.b16 %v1165
        %v3739 = vunpack.c.h.b16 %v1165
        %v3740 = vunpack.c.l.b16 %v1166
        %v3741 = vunpack.c.h.b16 %v1166
        %v3742 = vunpack.c.l.b16 %v1167
        %v3743 = vunpack.c.h.b16 %v1167
        %v3744 = vunpack.c.l.b16 %v1168
        %v3745 = vunpack.c.h.b16 %v1168
        %v3746 = vunpack.c.l.b16 %v1169
        %v3747 = vunpack.c.h.b16 %v1169
        %v3748 = vunpack.c.l.b16 %v1170
        %v3749 = vunpack.c.h.b16 %v1170
        %v3750 = vunpack.c.l.b16 %v1171
        %v3751 = vunpack.c.h.b16 %v1171
        %v3752 = vunpack.c.l.b16 %v1172
        %v3753 = vunpack.c.h.b16 %v1172
        %v3754 = vunpack.c.l.b16 %v1173
        %v3755 = vunpack.c.h.b16 %v1173
        %v3756 = vunpack.c.l.b16 %v1174
        %v3757 = vunpack.c.h.b16 %v1174
        %v3758 = vunpack.c.l.b16 %v1175
        %v3759 = vunpack.c.h.b16 %v1175
        %v3760 = vunpack.c.l.b16 %v1176
        %v3761 = vunpack.c.h.b16 %v1176
        %v3762 = vunpack.c.l.b16 %v1177
        %v3763 = vunpack.c.h.b16 %v1177
        %v3764 = vunpack.c.l.b16 %v1178
        %v3765 = vunpack.c.h.b16 %v1178
        %v3766 = vunpack.c.l.b16 %v1179
        %v3767 = vunpack.c.h.b16 %v1179
        %v3768 = vunpack.c.l.b16 %v1180
        %v3769 = vunpack.c.h.b16 %v1180
        %v3770 = vunpack.c.l.b16 %v1181
        %v3771 = vunpack.c.h.b16 %v1181
        %v3772 = vunpack.c.l.b16 %v1182
        %v3773 = vunpack.c.h.b16 %v1182
        %v3774 = vunpack.c.l.b16 %v1183
        %v3775 = vunpack.c.h.b16 %v1183
        %v3776 = vunpack.c.l.b16 %v1184
        %v3777 = vunpack.c.h.b16 %v1184
        %v3778 = vunpack.c.l.b16 %v1185
        %v3779 = vunpack.c.h.b16 %v1185
        %v3780 = vunpack.c.l.b16 %v1186
        %v3781 = vunpack.c.h.b16 %v1186
        %v3782 = vunpack.c.l.b16 %v1187
        %v3783 = vunpack.c.h.b16 %v1187
        %v3784 = vunpack.c.l.b16 %v1188
        %v3785 = vunpack.c.h.b16 %v1188
        %v3786 = vunpack.c.l.b16 %v1189
        %v3787 = vunpack.c.h.b16 %v1189
        %v3788 = vunpack.c.l.b16 %v1190
        %v3789 = vunpack.c.h.b16 %v1190
        %v3790 = vunpack.c.l.b16 %v1191
        %v3791 = vunpack.c.h.b16 %v1191
        %v3792 = vunpack.c.l.b16 %v1192
        %v3793 = vunpack.c.h.b16 %v1192
        %v3794 = vunpack.c.l.b16 %v1193
        %v3795 = vunpack.c.h.b16 %v1193
        %v3796 = vunpack.c.l.b16 %v1194
        %v3797 = vunpack.c.h.b16 %v1194
        %v3798 = vunpack.c.l.b16 %v1195
        %v3799 = vunpack.c.h.b16 %v1195
        %v3800 = vunpack.c.l.b16 %v1196
        %v3801 = vunpack.c.h.b16 %v1196
        %v3802 = vunpack.c.l.b16 %v1197
        %v3803 = vunpack.c.h.b16 %v1197
        %v3804 = vunpack.c.l.b16 %v1198
        %v3805 = vunpack.c.h.b16 %v1198
        %v3806 = vunpack.c.l.b16 %v1199
        %v3807 = vunpack.c.h.b16 %v1199
        %v3808 = vunpack.c.l.b16 %v1200
        %v3809 = vunpack.c.h.b16 %v1200
        %v3810 = vunpack.c.l.b16 %v1201
        %v3811 = vunpack.c.h.b16 %v1201
        %v3812 = vunpack.c.l.b16 %v1202
        %v3813 = vunpack.c.h.b16 %v1202
        %v3814 = vunpack.c.l.b16 %v1203
        %v3815 = vunpack.c.h.b16 %v1203
        %v3816 = vunpack.c.l.b16 %v1204
        %v3817 = vunpack.c.h.b16 %v1204
        %v3818 = vunpack.c.l.b16 %v1205
        %v3819 = vunpack.c.h.b16 %v1205
        %v3820 = vunpack.c.l.b16 %v1206
        %v3821 = vunpack.c.h.b16 %v1206
        %v3822 = vunpack.c.l.b16 %v1207
        %v3823 = vunpack.c.h.b16 %v1207
        %v3824 = vunpack.c.l.b16 %v1208
        %v3825 = vunpack.c.h.b16 %v1208
        %v3826 = vunpack.c.l.b16 %v1209
        %v3827 = vunpack.c.h.b16 %v1209
        %v3828 = vunpack.c.l.b16 %v1210
        %v3829 = vunpack.c.h.b16 %v1210
        %v3830 = vunpack.c.l.b16 %v1211
        %v3831 = vunpack.c.h.b16 %v1211
        %v3832 = vunpack.c.l.b16 %v1212
        %v3833 = vunpack.c.h.b16 %v1212
        %v3834 = vunpack.c.l.b16 %v1213
        %v3835 = vunpack.c.h.b16 %v1213
        %v3836 = vunpack.c.l.b16 %v1214
        %v3837 = vunpack.c.h.b16 %v1214
        %v3838 = vunpack.c.l.b16 %v1215
        %v3839 = vunpack.c.h.b16 %v1215
        %v3840 = vunpack.c.l.b16 %v1216
        %v3841 = vunpack.c.h.b16 %v1216
        %v3842 = vunpack.c.l.b16 %v1217
        %v3843 = vunpack.c.h.b16 %v1217
        %v3844 = vunpack.c.l.b16 %v1218
        %v3845 = vunpack.c.h.b16 %v1218
        %v3846 = vunpack.c.l.b16 %v1219
        %v3847 = vunpack.c.h.b16 %v1219
        %v3848 = vunpack.c.l.b16 %v1220
        %v3849 = vunpack.c.h.b16 %v1220
        %v3850 = vunpack.c.l.b16 %v1221
        %v3851 = vunpack.c.h.b16 %v1221
        %v3852 = vunpack.c.l.b16 %v1222
        %v3853 = vunpack.c.h.b16 %v1222
        %v3854 = vunpack.c.l.b16 %v1223
        %v3855 = vunpack.c.h.b16 %v1223
        %v3856 = vunpack.c.l.b16 %v1224
        %v3857 = vunpack.c.h.b16 %v1224
        %v3858 = vunpack.c.l.b16 %v1225
        %v3859 = vunpack.c.h.b16 %v1225
        %v3860 = vunpack.c.l.b16 %v1226
        %v3861 = vunpack.c.h.b16 %v1226
        %v3862 = vunpack.c.l.b16 %v1227
        %v3863 = vunpack.c.h.b16 %v1227
        %v3864 = vunpack.c.l.b16 %v1228
        %v3865 = vunpack.c.h.b16 %v1228
        %v3866 = vunpack.c.l.b16 %v1229
        %v3867 = vunpack.c.h.b16 %v1229
        %v3868 = vunpack.c.l.b16 %v1230
        %v3869 = vunpack.c.h.b16 %v1230
        %v3870 = vunpack.c.l.b16 %v1231
        %v3871 = vunpack.c.h.b16 %v1231
        %v3872 = vunpack.c.l.b16 %v1232
        %v3873 = vunpack.c.h.b16 %v1232
        %v3874 = vunpack.c.l.b16 %v1233
        %v3875 = vunpack.c.h.b16 %v1233
        %v3876 = vunpack.c.l.b16 %v1234
        %v3877 = vunpack.c.h.b16 %v1234
        %v3878 = vunpack.c.l.b16 %v1235
        %v3879 = vunpack.c.h.b16 %v1235
        %v3880 = vunpack.c.l.b16 %v1236
        %v3881 = vunpack.c.h.b16 %v1236
        %v3882 = vunpack.c.l.b16 %v1237
        %v3883 = vunpack.c.h.b16 %v1237
        %v3884 = vunpack.c.l.b16 %v1238
        %v3885 = vunpack.c.h.b16 %v1238
        %v3886 = vunpack.c.l.b16 %v1239
        %v3887 = vunpack.c.h.b16 %v1239
        %v3888 = vunpack.c.l.b16 %v1240
        %v3889 = vunpack.c.h.b16 %v1240
        %v3890 = vunpack.c.l.b16 %v1241
        %v3891 = vunpack.c.h.b16 %v1241
        %v3892 = vunpack.c.l.b16 %v1242
        %v3893 = vunpack.c.h.b16 %v1242
        %v3894 = vunpack.c.l.b16 %v1243
        %v3895 = vunpack.c.h.b16 %v1243
        %v3896 = vunpack.c.l.b16 %v1244
        %v3897 = vunpack.c.h.b16 %v1244
        %v3898 = vunpack.c.l.b16 %v1245
        %v3899 = vunpack.c.h.b16 %v1245
        %v3900 = vunpack.c.l.b16 %v1246
        %v3901 = vunpack.c.h.b16 %v1246
        %v3902 = vpack.c.b16 %v3150, %v3134
        %v3903 = vpack.c.b16 %v3151, %v3135
        %v3904 = vpack.c.b16 %v3152, %v3136
        %v3905 = vpack.c.b16 %v3153, %v3137
        %v3906 = vpack.c.b16 %v3154, %v3138
        %v3907 = vpack.c.b16 %v3155, %v3139
        %v3908 = vpack.c.b16 %v3156, %v3140
        %v3909 = vpack.c.b16 %v3157, %v3141
        %v3910 = vpack.c.b16 %v3158, %v3142
        %v3911 = vpack.c.b16 %v3159, %v3143
        %v3912 = vpack.c.b16 %v3160, %v3144
        %v3913 = vpack.c.b16 %v3161, %v3145
        %v3914 = vpack.c.b16 %v3162, %v3146
        %v3915 = vpack.c.b16 %v3163, %v3147
        %v3916 = vpack.c.b16 %v3164, %v3148
        %v3917 = vpack.c.b16 %v3165, %v3149
        %v3918 = vpack.c.b16 %v3182, %v3166
        %v3919 = vpack.c.b16 %v3183, %v3167
        %v3920 = vpack.c.b16 %v3184, %v3168
        %v3921 = vpack.c.b16 %v3185, %v3169
        %v3922 = vpack.c.b16 %v3186, %v3170
        %v3923 = vpack.c.b16 %v3187, %v3171
        %v3924 = vpack.c.b16 %v3188, %v3172
        %v3925 = vpack.c.b16 %v3189, %v3173
        %v3926 = vpack.c.b16 %v3190, %v3174
        %v3927 = vpack.c.b16 %v3191, %v3175
        %v3928 = vpack.c.b16 %v3192, %v3176
        %v3929 = vpack.c.b16 %v3193, %v3177
        %v3930 = vpack.c.b16 %v3194, %v3178
        %v3931 = vpack.c.b16 %v3195, %v3179
        %v3932 = vpack.c.b16 %v3196, %v3180
        %v3933 = vpack.c.b16 %v3197, %v3181
        %v3934 = vpack.c.b16 %v3214, %v3198
        %v3935 = vpack.c.b16 %v3215, %v3199
        %v3936 = vpack.c.b16 %v3216, %v3200
        %v3937 = vpack.c.b16 %v3217, %v3201
        %v3938 = vpack.c.b16 %v3218, %v3202
        %v3939 = vpack.c.b16 %v3219, %v3203
        %v3940 = vpack.c.b16 %v3220, %v3204
        %v3941 = vpack.c.b16 %v3221, %v3205
        %v3942 = vpack.c.b16 %v3222, %v3206
        %v3943 = vpack.c.b16 %v3223, %v3207
        %v3944 = vpack.c.b16 %v3224, %v3208
        %v3945 = vpack.c.b16 %v3225, %v3209
        %v3946 = vpack.c.b16 %v3226, %v3210
        %v3947 = vpack.c.b16 %v3227, %v3211
        %v3948 = vpack.c.b16 %v3228, %v3212
        %v3949 = vpack.c.b16 %v3229, %v3213
        %v3950 = vpack.c.b16 %v3246, %v3230
        %v3951 = vpack.c.b16 %v3247, %v3231
        %v3952 = vpack.c.b16 %v3248, %v3232
        %v3953 = vpack.c.b16 %v3249, %v3233
        %v3954 = vpack.c.b16 %v3250, %v3234
        %v3955 = vpack.c.b16 %v3251, %v3235
        %v3956 = vpack.c.b16 %v3252, %v3236
        %v3957 = vpack.c.b16 %v3253, %v3237
        %v3958 = vpack.c.b16 %v3254, %v3238
        %v3959 = vpack.c.b16 %v3255, %v3239
        %v3960 = vpack.c.b16 %v3256, %v3240
        %v3961 = vpack.c.b16 %v3257, %v3241
        %v3962 = vpack.c.b16 %v3258, %v3242
        %v3963 = vpack.c.b16 %v3259, %v3243
        %v3964 = vpack.c.b16 %v3260, %v3244
        %v3965 = vpack.c.b16 %v3261, %v3245
        %v3966 = vpack.c.b16 %v3278, %v3262
        %v3967 = vpack.c.b16 %v3279, %v3263
        %v3968 = vpack.c.b16 %v3280, %v3264
        %v3969 = vpack.c.b16 %v3281, %v3265
        %v3970 = vpack.c.b16 %v3282, %v3266
        %v3971 = vpack.c.b16 %v3283, %v3267
        %v3972 = vpack.c.b16 %v3284, %v3268
        %v3973 = vpack.c.b16 %v3285, %v3269
        %v3974 = vpack.c.b16 %v3286, %v3270
        %v3975 = vpack.c.b16 %v3287, %v3271
        %v3976 = vpack.c.b16 %v3288, %v3272
        %v3977 = vpack.c.b16 %v3289, %v3273
        %v3978 = vpack.c.b16 %v3290, %v3274
        %v3979 = vpack.c.b16 %v3291, %v3275
        %v3980 = vpack.c.b16 %v3292, %v3276
        %v3981 = vpack.c.b16 %v3293, %v3277
        %v3982 = vpack.c.b16 %v3310, %v3294
        %v3983 = vpack.c.b16 %v3311, %v3295
        %v3984 = vpack.c.b16 %v3312, %v3296
        %v3985 = vpack.c.b16 %v3313, %v3297
        %v3986 = vpack.c.b16 %v3314, %v3298
        %v3987 = vpack.c.b16 %v3315, %v3299
        %v3988 = vpack.c.b16 %v3316, %v3300
        %v3989 = vpack.c.b16 %v3317, %v3301
        %v3990 = vpack.c.b16 %v3318, %v3302
        %v3991 = vpack.c.b16 %v3319, %v3303
        %v3992 = vpack.c.b16 %v3320, %v3304
        %v3993 = vpack.c.b16 %v3321, %v3305
        %v3994 = vpack.c.b16 %v3322, %v3306
        %v3995 = vpack.c.b16 %v3323, %v3307
        %v3996 = vpack.c.b16 %v3324, %v3308
        %v3997 = vpack.c.b16 %v3325, %v3309
        %v3998 = vpack.c.b16 %v3342, %v3326
        %v3999 = vpack.c.b16 %v3343, %v3327
        %v4000 = vpack.c.b16 %v3344, %v3328
        %v4001 = vpack.c.b16 %v3345, %v3329
        %v4002 = vpack.c.b16 %v3346, %v3330
        %v4003 = vpack.c.b16 %v3347, %v3331
        %v4004 = vpack.c.b16 %v3348, %v3332
        %v4005 = vpack.c.b16 %v3349, %v3333
        %v4006 = vpack.c.b16 %v3350, %v3334
        %v4007 = vpack.c.b16 %v3351, %v3335
        %v4008 = vpack.c.b16 %v3352, %v3336
        %v4009 = vpack.c.b16 %v3353, %v3337
        %v4010 = vpack.c.b16 %v3354, %v3338
        %v4011 = vpack.c.b16 %v3355, %v3339
        %v4012 = vpack.c.b16 %v3356, %v3340
        %v4013 = vpack.c.b16 %v3357, %v3341
        %v4014 = vpack.c.b16 %v3374, %v3358
        %v4015 = vpack.c.b16 %v3375, %v3359
        %v4016 = vpack.c.b16 %v3376, %v3360
        %v4017 = vpack.c.b16 %v3377, %v3361
        %v4018 = vpack.c.b16 %v3378, %v3362
        %v4019 = vpack.c.b16 %v3379, %v3363
        %v4020 = vpack.c.b16 %v3380, %v3364
        %v4021 = vpack.c.b16 %v3381, %v3365
        %v4022 = vpack.c.b16 %v3382, %v3366
        %v4023 = vpack.c.b16 %v3383, %v3367
        %v4024 = vpack.c.b16 %v3384, %v3368
        %v4025 = vpack.c.b16 %v3385, %v3369
        %v4026 = vpack.c.b16 %v3386, %v3370
        %v4027 = vpack.c.b16 %v3387, %v3371
        %v4028 = vpack.c.b16 %v3388, %v3372
        %v4029 = vpack.c.b16 %v3389, %v3373
        %v4030 = vpack.c.b16 %v3406, %v3390
        %v4031 = vpack.c.b16 %v3407, %v3391
        %v4032 = vpack.c.b16 %v3408, %v3392
        %v4033 = vpack.c.b16 %v3409, %v3393
        %v4034 = vpack.c.b16 %v3410, %v3394
        %v4035 = vpack.c.b16 %v3411, %v3395
        %v4036 = vpack.c.b16 %v3412, %v3396
        %v4037 = vpack.c.b16 %v3413, %v3397
        %v4038 = vpack.c.b16 %v3414, %v3398
        %v4039 = vpack.c.b16 %v3415, %v3399
        %v4040 = vpack.c.b16 %v3416, %v3400
        %v4041 = vpack.c.b16 %v3417, %v3401
        %v4042 = vpack.c.b16 %v3418, %v3402
        %v4043 = vpack.c.b16 %v3419, %v3403
        %v4044 = vpack.c.b16 %v3420, %v3404
        %v4045 = vpack.c.b16 %v3421, %v3405
        %v4046 = vpack.c.b16 %v3438, %v3422
        %v4047 = vpack.c.b16 %v3439, %v3423
        %v4048 = vpack.c.b16 %v3440, %v3424
        %v4049 = vpack.c.b16 %v3441, %v3425
        %v4050 = vpack.c.b16 %v3442, %v3426
        %v4051 = vpack.c.b16 %v3443, %v3427
        %v4052 = vpack.c.b16 %v3444, %v3428
        %v4053 = vpack.c.b16 %v3445, %v3429
        %v4054 = vpack.c.b16 %v3446, %v3430
        %v4055 = vpack.c.b16 %v3447, %v3431
        %v4056 = vpack.c.b16 %v3448, %v3432
        %v4057 = vpack.c.b16 %v3449, %v3433
        %v4058 = vpack.c.b16 %v3450, %v3434
        %v4059 = vpack.c.b16 %v3451, %v3435
        %v4060 = vpack.c.b16 %v3452, %v3436
        %v4061 = vpack.c.b16 %v3453, %v3437
        %v4062 = vpack.c.b16 %v3470, %v3454
        %v4063 = vpack.c.b16 %v3471, %v3455
        %v4064 = vpack.c.b16 %v3472, %v3456
        %v4065 = vpack.c.b16 %v3473, %v3457
        %v4066 = vpack.c.b16 %v3474, %v3458
        %v4067 = vpack.c.b16 %v3475, %v3459
        %v4068 = vpack.c.b16 %v3476, %v3460
        %v4069 = vpack.c.b16 %v3477, %v3461
        %v4070 = vpack.c.b16 %v3478, %v3462
        %v4071 = vpack.c.b16 %v3479, %v3463
        %v4072 = vpack.c.b16 %v3480, %v3464
        %v4073 = vpack.c.b16 %v3481, %v3465
        %v4074 = vpack.c.b16 %v3482, %v3466
        %v4075 = vpack.c.b16 %v3483, %v3467
        %v4076 = vpack.c.b16 %v3484, %v3468
        %v4077 = vpack.c.b16 %v3485, %v3469
        %v4078 = vpack.c.b16 %v3502, %v3486
        %v4079 = vpack.c.b16 %v3503, %v3487
        %v4080 = vpack.c.b16 %v3504, %v3488
        %v4081 = vpack.c.b16 %v3505, %v3489
        %v4082 = vpack.c.b16 %v3506, %v3490
        %v4083 = vpack.c.b16 %v3507, %v3491
        %v4084 = vpack.c.b16 %v3508, %v3492
        %v4085 = vpack.c.b16 %v3509, %v3493
        %v4086 = vpack.c.b16 %v3510, %v3494
        %v4087 = vpack.c.b16 %v3511, %v3495
        %v4088 = vpack.c.b16 %v3512, %v3496
        %v4089 = vpack.c.b16 %v3513, %v3497
        %v4090 = vpack.c.b16 %v3514, %v3498
        %v4091 = vpack.c.b16 %v3515, %v3499
        %v4092 = vpack.c.b16 %v3516, %v3500
        %v4093 = vpack.c.b16 %v3517, %v3501
        %v4094 = vpack.c.b16 %v3534, %v3518
        %v4095 = vpack.c.b16 %v3535, %v3519
        %v4096 = vpack.c.b16 %v3536, %v3520
        %v4097 = vpack.c.b16 %v3537, %v3521
        %v4098 = vpack.c.b16 %v3538, %v3522
        %v4099 = vpack.c.b16 %v3539, %v3523
        %v4100 = vpack.c.b16 %v3540, %v3524
        %v4101 = vpack.c.b16 %v3541, %v3525
        %v4102 = vpack.c.b16 %v3542, %v3526
        %v4103 = vpack.c.b16 %v3543, %v3527
        %v4104 = vpack.c.b16 %v3544, %v3528
        %v4105 = vpack.c.b16 %v3545, %v3529
        %v4106 = vpack.c.b16 %v3546, %v3530
        %v4107 = vpack.c.b16 %v3547, %v3531
        %v4108 = vpack.c.b16 %v3548, %v3532
        %v4109 = vpack.c.b16 %v3549, %v3533
        %v4110 = vpack.c.b16 %v3566, %v3550
        %v4111 = vpack.c.b16 %v3567, %v3551
        %v4112 = vpack.c.b16 %v3568, %v3552
        %v4113 = vpack.c.b16 %v3569, %v3553
        %v4114 = vpack.c.b16 %v3570, %v3554
        %v4115 = vpack.c.b16 %v3571, %v3555
        %v4116 = vpack.c.b16 %v3572, %v3556
        %v4117 = vpack.c.b16 %v3573, %v3557
        %v4118 = vpack.c.b16 %v3574, %v3558
        %v4119 = vpack.c.b16 %v3575, %v3559
        %v4120 = vpack.c.b16 %v3576, %v3560
        %v4121 = vpack.c.b16 %v3577, %v3561
        %v4122 = vpack.c.b16 %v3578, %v3562
        %v4123 = vpack.c.b16 %v3579, %v3563
        %v4124 = vpack.c.b16 %v3580, %v3564
        %v4125 = vpack.c.b16 %v3581, %v3565
        %v4126 = vpack.c.b16 %v3598, %v3582
        %v4127 = vpack.c.b16 %v3599, %v3583
        %v4128 = vpack.c.b16 %v3600, %v3584
        %v4129 = vpack.c.b16 %v3601, %v3585
        %v4130 = vpack.c.b16 %v3602, %v3586
        %v4131 = vpack.c.b16 %v3603, %v3587
        %v4132 = vpack.c.b16 %v3604, %v3588
        %v4133 = vpack.c.b16 %v3605, %v3589
        %v4134 = vpack.c.b16 %v3606, %v3590
        %v4135 = vpack.c.b16 %v3607, %v3591
        %v4136 = vpack.c.b16 %v3608, %v3592
        %v4137 = vpack.c.b16 %v3609, %v3593
        %v4138 = vpack.c.b16 %v3610, %v3594
        %v4139 = vpack.c.b16 %v3611, %v3595
        %v4140 = vpack.c.b16 %v3612, %v3596
        %v4141 = vpack.c.b16 %v3613, %v3597
        %v4142 = vpack.c.b16 %v3630, %v3614
        %v4143 = vpack.c.b16 %v3631, %v3615
        %v4144 = vpack.c.b16 %v3632, %v3616
        %v4145 = vpack.c.b16 %v3633, %v3617
        %v4146 = vpack.c.b16 %v3634, %v3618
        %v4147 = vpack.c.b16 %v3635, %v3619
        %v4148 = vpack.c.b16 %v3636, %v3620
        %v4149 = vpack.c.b16 %v3637, %v3621
        %v4150 = vpack.c.b16 %v3638, %v3622
        %v4151 = vpack.c.b16 %v3639, %v3623
        %v4152 = vpack.c.b16 %v3640, %v3624
        %v4153 = vpack.c.b16 %v3641, %v3625
        %v4154 = vpack.c.b16 %v3642, %v3626
        %v4155 = vpack.c.b16 %v3643, %v3627
        %v4156 = vpack.c.b16 %v3644, %v3628
        %v4157 = vpack.c.b16 %v3645, %v3629
        %v4158 = vpack.c.b16 %v3662, %v3646
        %v4159 = vpack.c.b16 %v3663, %v3647
        %v4160 = vpack.c.b16 %v3664, %v3648
        %v4161 = vpack.c.b16 %v3665, %v3649
        %v4162 = vpack.c.b16 %v3666, %v3650
        %v4163 = vpack.c.b16 %v3667, %v3651
        %v4164 = vpack.c.b16 %v3668, %v3652
        %v4165 = vpack.c.b16 %v3669, %v3653
        %v4166 = vpack.c.b16 %v3670, %v3654
        %v4167 = vpack.c.b16 %v3671, %v3655
        %v4168 = vpack.c.b16 %v3672, %v3656
        %v4169 = vpack.c.b16 %v3673, %v3657
        %v4170 = vpack.c.b16 %v3674, %v3658
        %v4171 = vpack.c.b16 %v3675, %v3659
        %v4172 = vpack.c.b16 %v3676, %v3660
        %v4173 = vpack.c.b16 %v3677, %v3661
        %v4174 = vpack.c.b16 %v3694, %v3678
        %v4175 = vpack.c.b16 %v3695, %v3679
        %v4176 = vpack.c.b16 %v3696, %v3680
        %v4177 = vpack.c.b16 %v3697, %v3681
        %v4178 = vpack.c.b16 %v3698, %v3682
        %v4179 = vpack.c.b16 %v3699, %v3683
        %v4180 = vpack.c.b16 %v3700, %v3684
        %v4181 = vpack.c.b16 %v3701, %v3685
        %v4182 = vpack.c.b16 %v3702, %v3686
        %v4183 = vpack.c.b16 %v3703, %v3687
        %v4184 = vpack.c.b16 %v3704, %v3688
        %v4185 = vpack.c.b16 %v3705, %v3689
        %v4186 = vpack.c.b16 %v3706, %v3690
        %v4187 = vpack.c.b16 %v3707, %v3691
        %v4188 = vpack.c.b16 %v3708, %v3692
        %v4189 = vpack.c.b16 %v3709, %v3693
        %v4190 = vpack.c.b16 %v3726, %v3710
        %v4191 = vpack.c.b16 %v3727, %v3711
        %v4192 = vpack.c.b16 %v3728, %v3712
        %v4193 = vpack.c.b16 %v3729, %v3713
        %v4194 = vpack.c.b16 %v3730, %v3714
        %v4195 = vpack.c.b16 %v3731, %v3715
        %v4196 = vpack.c.b16 %v3732, %v3716
        %v4197 = vpack.c.b16 %v3733, %v3717
        %v4198 = vpack.c.b16 %v3734, %v3718
        %v4199 = vpack.c.b16 %v3735, %v3719
        %v4200 = vpack.c.b16 %v3736, %v3720
        %v4201 = vpack.c.b16 %v3737, %v3721
        %v4202 = vpack.c.b16 %v3738, %v3722
        %v4203 = vpack.c.b16 %v3739, %v3723
        %v4204 = vpack.c.b16 %v3740, %v3724
        %v4205 = vpack.c.b16 %v3741, %v3725
        %v4206 = vpack.c.b16 %v3758, %v3742
        %v4207 = vpack.c.b16 %v3759, %v3743
        %v4208 = vpack.c.b16 %v3760, %v3744
        %v4209 = vpack.c.b16 %v3761, %v3745
        %v4210 = vpack.c.b16 %v3762, %v3746
        %v4211 = vpack.c.b16 %v3763, %v3747
        %v4212 = vpack.c.b16 %v3764, %v3748
        %v4213 = vpack.c.b16 %v3765, %v3749
        %v4214 = vpack.c.b16 %v3766, %v3750
        %v4215 = vpack.c.b16 %v3767, %v3751
        %v4216 = vpack.c.b16 %v3768, %v3752
        %v4217 = vpack.c.b16 %v3769, %v3753
        %v4218 = vpack.c.b16 %v3770, %v3754
        %v4219 = vpack.c.b16 %v3771, %v3755
        %v4220 = vpack.c.b16 %v3772, %v3756
        %v4221 = vpack.c.b16 %v3773, %v3757
        %v4222 = vpack.c.b16 %v3790, %v3774
        %v4223 = vpack.c.b16 %v3791, %v3775
        %v4224 = vpack.c.b16 %v3792, %v3776
        %v4225 = vpack.c.b16 %v3793, %v3777
        %v4226 = vpack.c.b16 %v3794, %v3778
        %v4227 = vpack.c.b16 %v3795, %v3779
        %v4228 = vpack.c.b16 %v3796, %v3780
        %v4229 = vpack.c.b16 %v3797, %v3781
        %v4230 = vpack.c.b16 %v3798, %v3782
        %v4231 = vpack.c.b16 %v3799, %v3783
        %v4232 = vpack.c.b16 %v3800, %v3784
        %v4233 = vpack.c.b16 %v3801, %v3785
        %v4234 = vpack.c.b16 %v3802, %v3786
        %v4235 = vpack.c.b16 %v3803, %v3787
        %v4236 = vpack.c.b16 %v3804, %v3788
        %v4237 = vpack.c.b16 %v3805, %v3789
        %v4238 = vpack.c.b16 %v3822, %v3806
        %v4239 = vpack.c.b16 %v3823, %v3807
        %v4240 = vpack.c.b16 %v3824, %v3808
        %v4241 = vpack.c.b16 %v3825, %v3809
        %v4242 = vpack.c.b16 %v3826, %v3810
        %v4243 = vpack.c.b16 %v3827, %v3811
        %v4244 = vpack.c.b16 %v3828, %v3812
        %v4245 = vpack.c.b16 %v3829, %v3813
        %v4246 = vpack.c.b16 %v3830, %v3814
        %v4247 = vpack.c.b16 %v3831, %v3815
        %v4248 = vpack.c.b16 %v3832, %v3816
        %v4249 = vpack.c.b16 %v3833, %v3817
        %v4250 = vpack.c.b16 %v3834, %v3818
        %v4251 = vpack.c.b16 %v3835, %v3819
        %v4252 = vpack.c.b16 %v3836, %v3820
        %v4253 = vpack.c.b16 %v3837, %v3821
        %v4254 = vpack.c.b16 %v3854, %v3838
        %v4255 = vpack.c.b16 %v3855, %v3839
        %v4256 = vpack.c.b16 %v3856, %v3840
        %v4257 = vpack.c.b16 %v3857, %v3841
        %v4258 = vpack.c.b16 %v3858, %v3842
        %v4259 = vpack.c.b16 %v3859, %v3843
        %v4260 = vpack.c.b16 %v3860, %v3844
        %v4261 = vpack.c.b16 %v3861, %v3845
        %v4262 = vpack.c.b16 %v3862, %v3846
        %v4263 = vpack.c.b16 %v3863, %v3847
        %v4264 = vpack.c.b16 %v3864, %v3848
        %v4265 = vpack.c.b16 %v3865, %v3849
        %v4266 = vpack.c.b16 %v3866, %v3850
        %v4267 = vpack.c.b16 %v3867, %v3851
        %v4268 = vpack.c.b16 %v3868, %v3852
        %v4269 = vpack.c.b16 %v3869, %v3853
        %v4270 = vpack.c.b16 %v3886, %v3870
        %v4271 = vpack.c.b16 %v3887, %v3871
        %v4272 = vpack.c.b16 %v3888, %v3872
        %v4273 = vpack.c.b16 %v3889, %v3873
        %v4274 = vpack.c.b16 %v3890, %v3874
        %v4275 = vpack.c.b16 %v3891, %v3875
        %v4276 = vpack.c.b16 %v3892, %v3876
        %v4277 = vpack.c.b16 %v3893, %v3877
        %v4278 = vpack.c.b16 %v3894, %v3878
        %v4279 = vpack.c.b16 %v3895, %v3879
        %v4280 = vpack.c.b16 %v3896, %v3880
        %v4281 = vpack.c.b16 %v3897, %v3881
        %v4282 = vpack.c.b16 %v3898, %v3882
        %v4283 = vpack.c.b16 %v3899, %v3883
        %v4284 = vpack.c.b16 %v3900, %v3884
        %v4285 = vpack.c.b16 %v3901, %v3885
        %4670 = vmatprep.subr.bf16.mxu0 %v3903
        %4671 = vmatpush1.bf16.msra.mxu0 %v3902
        %4672 = vmatprep.subr.bf16.mxu0 %v3919
        %4673 = vmatpush1.bf16.msra.mxu0 %v3918
        %4674 = vmatprep.subr.bf16.mxu0 %v3935
        %4675 = vmatpush1.bf16.msra.mxu0 %v3934
        %4676 = vmatprep.subr.bf16.mxu0 %v3951
        %4677 = vmatpush1.bf16.msra.mxu0 %v3950
        %4678 = vmatprep.subr.bf16.mxu0 %v3967
        %4679 = vmatpush1.bf16.msra.mxu0 %v3966
        %4680 = vmatprep.subr.bf16.mxu0 %v3983
        %4681 = vmatpush1.bf16.msra.mxu0 %v3982
        %4682 = vmatprep.subr.bf16.mxu0 %v3999
        %4683 = vmatpush1.bf16.msra.mxu0 %v3998
        %4684 = vmatprep.subr.bf16.mxu0 %v4015
        %4685 = vmatpush1.bf16.msra.mxu0 %v4014
        %4686 = vmatprep.subr.bf16.mxu0 %v4031
        %4687 = vmatpush1.bf16.msra.mxu0 %v4030
        %4688 = vmatprep.subr.bf16.mxu0 %v4047
        %4689 = vmatpush1.bf16.msra.mxu0 %v4046
        %4690 = vmatprep.subr.bf16.mxu0 %v4063
        %4691 = vmatpush1.bf16.msra.mxu0 %v4062
        %4692 = vmatprep.subr.bf16.mxu0 %v4079
        %4693 = vmatpush1.bf16.msra.mxu0 %v4078
        %4694 = vmatprep.subr.bf16.mxu0 %v4095
        %4695 = vmatpush1.bf16.msra.mxu0 %v4094
        %4696 = vmatprep.subr.bf16.mxu0 %v4111
        %4697 = vmatpush1.bf16.msra.mxu0 %v4110
        %4698 = vmatprep.subr.bf16.mxu0 %v4127
        %4699 = vmatpush1.bf16.msra.mxu0 %v4126
        %4700 = vmatprep.subr.bf16.mxu0 %v4143
        %4701 = vmatpush1.bf16.msra.mxu0 %v4142
        %4702 = vmatprep.mubr.bf16.mxu0 %v2748
        %4703 = vmatmul.mubr.bf16.gmra.mrb[0].mxu0 %v2747
        %v4704 = vpop.f32.mrb[0].mxu0
        %v4705 = vadd.f32 0.0, %v4704
        %v4706 = vpop.f32.mrb[0].mxu0
        %v4707 = vadd.f32 0.0, %v4706
        %v4708 = vpop.f32.mrb[0].mxu0
        %v4709 = vpop.f32.mrb[0].mxu0
        %4710 = vdwg.mxu0
        %4711 = vmatprep.subr.bf16.mxu0 %v4159
        %4712 = vmatpush1.bf16.msra.mxu0 %v4158
        %4713 = vmatprep.subr.bf16.mxu0 %v4175
        %4714 = vmatpush1.bf16.msra.mxu0 %v4174
        %4715 = vmatprep.subr.bf16.mxu0 %v4191
        %4716 = vmatpush1.bf16.msra.mxu0 %v4190
        %4717 = vmatprep.subr.bf16.mxu0 %v4207
        %4718 = vmatpush1.bf16.msra.mxu0 %v4206
        %4719 = vmatprep.subr.bf16.mxu0 %v4223
        %4720 = vmatpush1.bf16.msra.mxu0 %v4222
        %4721 = vmatprep.subr.bf16.mxu0 %v4239
        %4722 = vmatpush1.bf16.msra.mxu0 %v4238
        %4723 = vmatprep.subr.bf16.mxu0 %v4255
        %4724 = vmatpush1.bf16.msra.mxu0 %v4254
        %4725 = vmatprep.subr.bf16.mxu0 %v4271
        %4726 = vmatpush1.bf16.msra.mxu0 %v4270
        %4727 = vmatprep.subr.bf16.mxu0 0
        %4728 = vmatpush1.bf16.msra.mxu0 0
        %4729 = vmatprep.subr.bf16.mxu0 0
        %4730 = vmatpush1.bf16.msra.mxu0 0
        %4731 = vmatprep.subr.bf16.mxu0 0
        %4732 = vmatpush1.bf16.msra.mxu0 0
        %4733 = vmatprep.subr.bf16.mxu0 0
        %4734 = vmatpush1.bf16.msra.mxu0 0
        %4735 = vmatprep.subr.bf16.mxu0 0
        %4736 = vmatpush1.bf16.msra.mxu0 0
        %4737 = vmatprep.subr.bf16.mxu0 0
        %4738 = vmatpush1.bf16.msra.mxu0 0
        %4739 = vmatprep.subr.bf16.mxu0 0
        %4740 = vmatpush1.bf16.msra.mxu0 0
        %4741 = vmatprep.subr.bf16.mxu0 0
        %4742 = vmatpush1.bf16.msra.mxu0 0
        %4743 = vmatprep.mubr.bf16.mxu0 0
        %4744 = vmatmul.mubr.bf16.gmra.mrb[0].mxu0 %v2749
        %v4745 = vpop.f32.mrb[0].mxu0
        %v4746 = vadd.f32 %v4705, %v4745
        %v4747 = vpop.f32.mrb[0].mxu0
        %v4748 = vadd.f32 %v4707, %v4747
        %v4749 = vpop.f32.mrb[0].mxu0
        %v4750 = vpop.f32.mrb[0].mxu0
        %4751 = vdwg.mxu0
        %4752 = vmatprep.subr.bf16.mxu0 %v3905
        %4753 = vmatpush1.bf16.msra.mxu0 %v3904
        %4754 = vmatprep.subr.bf16.mxu0 %v3921
        %4755 = vmatpush1.bf16.msra.mxu0 %v3920
        %4756 = vmatprep.subr.bf16.mxu0 %v3937
        %4757 = vmatpush1.bf16.msra.mxu0 %v3936
        %4758 = vmatprep.subr.bf16.mxu0 %v3953
        %4759 = vmatpush1.bf16.msra.mxu0 %v3952
        %4760 = vmatprep.subr.bf16.mxu0 %v3969
        %4761 = vmatpush1.bf16.msra.mxu0 %v3968
        %4762 = vmatprep.subr.bf16.mxu0 %v3985
        %4763 = vmatpush1.bf16.msra.mxu0 %v3984
        %4764 = vmatprep.subr.bf16.mxu0 %v4001
        %4765 = vmatpush1.bf16.msra.mxu0 %v4000
        %4766 = vmatprep.subr.bf16.mxu0 %v4017
        %4767 = vmatpush1.bf16.msra.mxu0 %v4016
        %4768 = vmatprep.subr.bf16.mxu0 %v4033
        %4769 = vmatpush1.bf16.msra.mxu0 %v4032
        %4770 = vmatprep.subr.bf16.mxu0 %v4049
        %4771 = vmatpush1.bf16.msra.mxu0 %v4048
        %4772 = vmatprep.subr.bf16.mxu0 %v4065
        %4773 = vmatpush1.bf16.msra.mxu0 %v4064
        %4774 = vmatprep.subr.bf16.mxu0 %v4081
        %4775 = vmatpush1.bf16.msra.mxu0 %v4080
        %4776 = vmatprep.subr.bf16.mxu0 %v4097
        %4777 = vmatpush1.bf16.msra.mxu0 %v4096
        %4778 = vmatprep.subr.bf16.mxu0 %v4113
        %4779 = vmatpush1.bf16.msra.mxu0 %v4112
        %4780 = vmatprep.subr.bf16.mxu0 %v4129
        %4781 = vmatpush1.bf16.msra.mxu0 %v4128
        %4782 = vmatprep.subr.bf16.mxu0 %v4145
        %4783 = vmatpush1.bf16.msra.mxu0 %v4144
        %4784 = vmatprep.mubr.bf16.mxu0 %v2748
        %4785 = vmatmul.mubr.bf16.gmra.mrb[0].mxu0 %v2747
        %v4786 = vpop.f32.mrb[0].mxu0
        %v4787 = vadd.f32 0.0, %v4786
        %v4788 = vpop.f32.mrb[0].mxu0
        %v4789 = vadd.f32 0.0, %v4788
        %v4790 = vpop.f32.mrb[0].mxu0
        %v4791 = vpop.f32.mrb[0].mxu0
        %4792 = vdwg.mxu0
        %4793 = vmatprep.subr.bf16.mxu0 %v4161
        %4794 = vmatpush1.bf16.msra.mxu0 %v4160
        %4795 = vmatprep.subr.bf16.mxu0 %v4177
        %4796 = vmatpush1.bf16.msra.mxu0 %v4176
        %4797 = vmatprep.subr.bf16.mxu0 %v4193
        %4798 = vmatpush1.bf16.msra.mxu0 %v4192
        %4799 = vmatprep.subr.bf16.mxu0 %v4209
        %4800 = vmatpush1.bf16.msra.mxu0 %v4208
        %4801 = vmatprep.subr.bf16.mxu0 %v4225
        %4802 = vmatpush1.bf16.msra.mxu0 %v4224
        %4803 = vmatprep.subr.bf16.mxu0 %v4241
        %4804 = vmatpush1.bf16.msra.mxu0 %v4240
        %4805 = vmatprep.subr.bf16.mxu0 %v4257
        %4806 = vmatpush1.bf16.msra.mxu0 %v4256
        %4807 = vmatprep.subr.bf16.mxu0 %v4273
        %4808 = vmatpush1.bf16.msra.mxu0 %v4272
        %4809 = vmatprep.subr.bf16.mxu0 0
        %4810 = vmatpush1.bf16.msra.mxu0 0
        %4811 = vmatprep.subr.bf16.mxu0 0
        %4812 = vmatpush1.bf16.msra.mxu0 0
        %4813 = vmatprep.subr.bf16.mxu0 0
        %4814 = vmatpush1.bf16.msra.mxu0 0
        %4815 = vmatprep.subr.bf16.mxu0 0
        %4816 = vmatpush1.bf16.msra.mxu0 0
        %4817 = vmatprep.subr.bf16.mxu0 0
        %4818 = vmatpush1.bf16.msra.mxu0 0
        %4819 = vmatprep.subr.bf16.mxu0 0
        %4820 = vmatpush1.bf16.msra.mxu0 0
        %4821 = vmatprep.subr.bf16.mxu0 0
        %4822 = vmatpush1.bf16.msra.mxu0 0
        %4823 = vmatprep.subr.bf16.mxu0 0
        %4824 = vmatpush1.bf16.msra.mxu0 0
        %4825 = vmatprep.mubr.bf16.mxu0 0
        %4826 = vmatmul.mubr.bf16.gmra.mrb[0].mxu0 %v2749
        %v4827 = vpop.f32.mrb[0].mxu0
        %v4828 = vadd.f32 %v4787, %v4827
        %v4829 = vpop.f32.mrb[0].mxu0
        %v4830 = vadd.f32 %v4789, %v4829
        %v4831 = vpop.f32.mrb[0].mxu0
        %v4832 = vpop.f32.mrb[0].mxu0
        %4833 = vdwg.mxu0
        %4834 = vmatprep.subr.bf16.mxu0 %v3907
        %4835 = vmatpush1.bf16.msra.mxu0 %v3906
        %4836 = vmatprep.subr.bf16.mxu0 %v3923
        %4837 = vmatpush1.bf16.msra.mxu0 %v3922
        %4838 = vmatprep.subr.bf16.mxu0 %v3939
        %4839 = vmatpush1.bf16.msra.mxu0 %v3938
        %4840 = vmatprep.subr.bf16.mxu0 %v3955
        %4841 = vmatpush1.bf16.msra.mxu0 %v3954
        %4842 = vmatprep.subr.bf16.mxu0 %v3971
        %4843 = vmatpush1.bf16.msra.mxu0 %v3970
        %4844 = vmatprep.subr.bf16.mxu0 %v3987
        %4845 = vmatpush1.bf16.msra.mxu0 %v3986
        %4846 = vmatprep.subr.bf16.mxu0 %v4003
        %4847 = vmatpush1.bf16.msra.mxu0 %v4002
        %4848 = vmatprep.subr.bf16.mxu0 %v4019
        %4849 = vmatpush1.bf16.msra.mxu0 %v4018
        %4850 = vmatprep.subr.bf16.mxu0 %v4035
        %4851 = vmatpush1.bf16.msra.mxu0 %v4034
        %4852 = vmatprep.subr.bf16.mxu0 %v4051
        %4853 = vmatpush1.bf16.msra.mxu0 %v4050
        %4854 = vmatprep.subr.bf16.mxu0 %v4067
        %4855 = vmatpush1.bf16.msra.mxu0 %v4066
        %4856 = vmatprep.subr.bf16.mxu0 %v4083
        %4857 = vmatpush1.bf16.msra.mxu0 %v4082
        %4858 = vmatprep.subr.bf16.mxu0 %v4099
        %4859 = vmatpush1.bf16.msra.mxu0 %v4098
        %4860 = vmatprep.subr.bf16.mxu0 %v4115
        %4861 = vmatpush1.bf16.msra.mxu0 %v4114
        %4862 = vmatprep.subr.bf16.mxu0 %v4131
        %4863 = vmatpush1.bf16.msra.mxu0 %v4130
        %4864 = vmatprep.subr.bf16.mxu0 %v4147
        %4865 = vmatpush1.bf16.msra.mxu0 %v4146
        %4866 = vmatprep.mubr.bf16.mxu0 %v2748
        %4867 = vmatmul.mubr.bf16.gmra.mrb[0].mxu0 %v2747
        %v4868 = vpop.f32.mrb[0].mxu0
        %v4869 = vadd.f32 0.0, %v4868
        %v4870 = vpop.f32.mrb[0].mxu0
        %v4871 = vadd.f32 0.0, %v4870
        %v4872 = vpop.f32.mrb[0].mxu0
        %v4873 = vpop.f32.mrb[0].mxu0
        %4874 = vdwg.mxu0
        %4875 = vmatprep.subr.bf16.mxu0 %v4163
        %4876 = vmatpush1.bf16.msra.mxu0 %v4162
        %4877 = vmatprep.subr.bf16.mxu0 %v4179
        %4878 = vmatpush1.bf16.msra.mxu0 %v4178
        %4879 = vmatprep.subr.bf16.mxu0 %v4195
        %4880 = vmatpush1.bf16.msra.mxu0 %v4194
        %4881 = vmatprep.subr.bf16.mxu0 %v4211
        %4882 = vmatpush1.bf16.msra.mxu0 %v4210
        %4883 = vmatprep.subr.bf16.mxu0 %v4227
        %4884 = vmatpush1.bf16.msra.mxu0 %v4226
        %4885 = vmatprep.subr.bf16.mxu0 %v4243
        %4886 = vmatpush1.bf16.msra.mxu0 %v4242
        %4887 = vmatprep.subr.bf16.mxu0 %v4259
        %4888 = vmatpush1.bf16.msra.mxu0 %v4258
        %4889 = vmatprep.subr.bf16.mxu0 %v4275
        %4890 = vmatpush1.bf16.msra.mxu0 %v4274
        %4891 = vmatprep.subr.bf16.mxu0 0
        %4892 = vmatpush1.bf16.msra.mxu0 0
        %4893 = vmatprep.subr.bf16.mxu0 0
        %4894 = vmatpush1.bf16.msra.mxu0 0
        %4895 = vmatprep.subr.bf16.mxu0 0
        %4896 = vmatpush1.bf16.msra.mxu0 0
        %4897 = vmatprep.subr.bf16.mxu0 0
        %4898 = vmatpush1.bf16.msra.mxu0 0
        %4899 = vmatprep.subr.bf16.mxu0 0
        %4900 = vmatpush1.bf16.msra.mxu0 0
        %4901 = vmatprep.subr.bf16.mxu0 0
        %4902 = vmatpush1.bf16.msra.mxu0 0
        %4903 = vmatprep.subr.bf16.mxu0 0
        %4904 = vmatpush1.bf16.msra.mxu0 0
        %4905 = vmatprep.subr.bf16.mxu0 0
        %4906 = vmatpush1.bf16.msra.mxu0 0
        %4907 = vmatprep.mubr.bf16.mxu0 0
        %4908 = vmatmul.mubr.bf16.gmra.mrb[0].mxu0 %v2749
        %v4909 = vpop.f32.mrb[0].mxu0
        %v4910 = vadd.f32 %v4869, %v4909
        %v4911 = vpop.f32.mrb[0].mxu0
        %v4912 = vadd.f32 %v4871, %v4911
        %v4913 = vpop.f32.mrb[0].mxu0
        %v4914 = vpop.f32.mrb[0].mxu0
        %4915 = vdwg.mxu0
        %4916 = vmatprep.subr.bf16.mxu0 %v3909
        %4917 = vmatpush1.bf16.msra.mxu0 %v3908
        %4918 = vmatprep.subr.bf16.mxu0 %v3925
        %4919 = vmatpush1.bf16.msra.mxu0 %v3924
        %4920 = vmatprep.subr.bf16.mxu0 %v3941
        %4921 = vmatpush1.bf16.msra.mxu0 %v3940
        %4922 = vmatprep.subr.bf16.mxu0 %v3957
        %4923 = vmatpush1.bf16.msra.mxu0 %v3956
        %4924 = vmatprep.subr.bf16.mxu0 %v3973
        %4925 = vmatpush1.bf16.msra.mxu0 %v3972
        %4926 = vmatprep.subr.bf16.mxu0 %v3989
        %4927 = vmatpush1.bf16.msra.mxu0 %v3988
        %4928 = vmatprep.subr.bf16.mxu0 %v4005
        %4929 = vmatpush1.bf16.msra.mxu0 %v4004
        %4930 = vmatprep.subr.bf16.mxu0 %v4021
        %4931 = vmatpush1.bf16.msra.mxu0 %v4020
        %4932 = vmatprep.subr.bf16.mxu0 %v4037
        %4933 = vmatpush1.bf16.msra.mxu0 %v4036
        %4934 = vmatprep.subr.bf16.mxu0 %v4053
        %4935 = vmatpush1.bf16.msra.mxu0 %v4052
        %4936 = vmatprep.subr.bf16.mxu0 %v4069
        %4937 = vmatpush1.bf16.msra.mxu0 %v4068
        %4938 = vmatprep.subr.bf16.mxu0 %v4085
        %4939 = vmatpush1.bf16.msra.mxu0 %v4084
        %4940 = vmatprep.subr.bf16.mxu0 %v4101
        %4941 = vmatpush1.bf16.msra.mxu0 %v4100
        %4942 = vmatprep.subr.bf16.mxu0 %v4117
        %4943 = vmatpush1.bf16.msra.mxu0 %v4116
        %4944 = vmatprep.subr.bf16.mxu0 %v4133
        %4945 = vmatpush1.bf16.msra.mxu0 %v4132
        %4946 = vmatprep.subr.bf16.mxu0 %v4149
        %4947 = vmatpush1.bf16.msra.mxu0 %v4148
        %4948 = vmatprep.mubr.bf16.mxu0 %v2748
        %4949 = vmatmul.mubr.bf16.gmra.mrb[0].mxu0 %v2747
        %v4950 = vpop.f32.mrb[0].mxu0
        %v4951 = vadd.f32 0.0, %v4950
        %v4952 = vpop.f32.mrb[0].mxu0
        %v4953 = vadd.f32 0.0, %v4952
        %v4954 = vpop.f32.mrb[0].mxu0
        %v4955 = vpop.f32.mrb[0].mxu0
        %4956 = vdwg.mxu0
        %4957 = vmatprep.subr.bf16.mxu0 %v4165
        %4958 = vmatpush1.bf16.msra.mxu0 %v4164
        %4959 = vmatprep.subr.bf16.mxu0 %v4181
        %4960 = vmatpush1.bf16.msra.mxu0 %v4180
        %4961 = vmatprep.subr.bf16.mxu0 %v4197
        %4962 = vmatpush1.bf16.msra.mxu0 %v4196
        %4963 = vmatprep.subr.bf16.mxu0 %v4213
        %4964 = vmatpush1.bf16.msra.mxu0 %v4212
        %4965 = vmatprep.subr.bf16.mxu0 %v4229
        %4966 = vmatpush1.bf16.msra.mxu0 %v4228
        %4967 = vmatprep.subr.bf16.mxu0 %v4245
        %4968 = vmatpush1.bf16.msra.mxu0 %v4244
        %4969 = vmatprep.subr.bf16.mxu0 %v4261
        %4970 = vmatpush1.bf16.msra.mxu0 %v4260
        %4971 = vmatprep.subr.bf16.mxu0 %v4277
        %4972 = vmatpush1.bf16.msra.mxu0 %v4276
        %4973 = vmatprep.subr.bf16.mxu0 0
        %4974 = vmatpush1.bf16.msra.mxu0 0
        %4975 = vmatprep.subr.bf16.mxu0 0
        %4976 = vmatpush1.bf16.msra.mxu0 0
        %4977 = vmatprep.subr.bf16.mxu0 0
        %4978 = vmatpush1.bf16.msra.mxu0 0
        %4979 = vmatprep.subr.bf16.mxu0 0
        %4980 = vmatpush1.bf16.msra.mxu0 0
        %4981 = vmatprep.subr.bf16.mxu0 0
        %4982 = vmatpush1.bf16.msra.mxu0 0
        %4983 = vmatprep.subr.bf16.mxu0 0
        %4984 = vmatpush1.bf16.msra.mxu0 0
        %4985 = vmatprep.subr.bf16.mxu0 0
        %4986 = vmatpush1.bf16.msra.mxu0 0
        %4987 = vmatprep.subr.bf16.mxu0 0
        %4988 = vmatpush1.bf16.msra.mxu0 0
        %4989 = vmatprep.mubr.bf16.mxu0 0
        %4990 = vmatmul.mubr.bf16.gmra.mrb[0].mxu0 %v2749
        %v4991 = vpop.f32.mrb[0].mxu0
        %v4992 = vadd.f32 %v4951, %v4991
        %v4993 = vpop.f32.mrb[0].mxu0
        %v4994 = vadd.f32 %v4953, %v4993
        %v4995 = vpop.f32.mrb[0].mxu0
        %v4996 = vpop.f32.mrb[0].mxu0
        %4997 = vdwg.mxu0
        %4998 = vmatprep.subr.bf16.mxu0 %v3911
        %4999 = vmatpush1.bf16.msra.mxu0 %v3910
        %5000 = vmatprep.subr.bf16.mxu0 %v3927
        %5001 = vmatpush1.bf16.msra.mxu0 %v3926
        %5002 = vmatprep.subr.bf16.mxu0 %v3943
        %5003 = vmatpush1.bf16.msra.mxu0 %v3942
        %5004 = vmatprep.subr.bf16.mxu0 %v3959
        %5005 = vmatpush1.bf16.msra.mxu0 %v3958
        %5006 = vmatprep.subr.bf16.mxu0 %v3975
        %5007 = vmatpush1.bf16.msra.mxu0 %v3974
        %5008 = vmatprep.subr.bf16.mxu0 %v3991
        %5009 = vmatpush1.bf16.msra.mxu0 %v3990
        %5010 = vmatprep.subr.bf16.mxu0 %v4007
        %5011 = vmatpush1.bf16.msra.mxu0 %v4006
        %5012 = vmatprep.subr.bf16.mxu0 %v4023
        %5013 = vmatpush1.bf16.msra.mxu0 %v4022
        %5014 = vmatprep.subr.bf16.mxu0 %v4039
        %5015 = vmatpush1.bf16.msra.mxu0 %v4038
        %5016 = vmatprep.subr.bf16.mxu0 %v4055
        %5017 = vmatpush1.bf16.msra.mxu0 %v4054
        %5018 = vmatprep.subr.bf16.mxu0 %v4071
        %5019 = vmatpush1.bf16.msra.mxu0 %v4070
        %5020 = vmatprep.subr.bf16.mxu0 %v4087
        %5021 = vmatpush1.bf16.msra.mxu0 %v4086
        %5022 = vmatprep.subr.bf16.mxu0 %v4103
        %5023 = vmatpush1.bf16.msra.mxu0 %v4102
        %5024 = vmatprep.subr.bf16.mxu0 %v4119
        %5025 = vmatpush1.bf16.msra.mxu0 %v4118
        %5026 = vmatprep.subr.bf16.mxu0 %v4135
        %5027 = vmatpush1.bf16.msra.mxu0 %v4134
        %5028 = vmatprep.subr.bf16.mxu0 %v4151
        %5029 = vmatpush1.bf16.msra.mxu0 %v4150
        %5030 = vmatprep.mubr.bf16.mxu0 %v2748
        %5031 = vmatmul.mubr.bf16.gmra.mrb[0].mxu0 %v2747
        %v5032 = vpop.f32.mrb[0].mxu0
        %v5033 = vadd.f32 0.0, %v5032
        %v5034 = vpop.f32.mrb[0].mxu0
        %v5035 = vadd.f32 0.0, %v5034
        %v5036 = vpop.f32.mrb[0].mxu0
        %v5037 = vpop.f32.mrb[0].mxu0
        %5038 = vdwg.mxu0
        %5039 = vmatprep.subr.bf16.mxu0 %v4167
        %5040 = vmatpush1.bf16.msra.mxu0 %v4166
        %5041 = vmatprep.subr.bf16.mxu0 %v4183
        %5042 = vmatpush1.bf16.msra.mxu0 %v4182
        %5043 = vmatprep.subr.bf16.mxu0 %v4199
        %5044 = vmatpush1.bf16.msra.mxu0 %v4198
        %5045 = vmatprep.subr.bf16.mxu0 %v4215
        %5046 = vmatpush1.bf16.msra.mxu0 %v4214
        %5047 = vmatprep.subr.bf16.mxu0 %v4231
        %5048 = vmatpush1.bf16.msra.mxu0 %v4230
        %5049 = vmatprep.subr.bf16.mxu0 %v4247
        %5050 = vmatpush1.bf16.msra.mxu0 %v4246
        %5051 = vmatprep.subr.bf16.mxu0 %v4263
        %5052 = vmatpush1.bf16.msra.mxu0 %v4262
        %5053 = vmatprep.subr.bf16.mxu0 %v4279
        %5054 = vmatpush1.bf16.msra.mxu0 %v4278
        %5055 = vmatprep.subr.bf16.mxu0 0
        %5056 = vmatpush1.bf16.msra.mxu0 0
        %5057 = vmatprep.subr.bf16.mxu0 0
        %5058 = vmatpush1.bf16.msra.mxu0 0
        %5059 = vmatprep.subr.bf16.mxu0 0
        %5060 = vmatpush1.bf16.msra.mxu0 0
        %5061 = vmatprep.subr.bf16.mxu0 0
        %5062 = vmatpush1.bf16.msra.mxu0 0
        %5063 = vmatprep.subr.bf16.mxu0 0
        %5064 = vmatpush1.bf16.msra.mxu0 0
        %5065 = vmatprep.subr.bf16.mxu0 0
        %5066 = vmatpush1.bf16.msra.mxu0 0
        %5067 = vmatprep.subr.bf16.mxu0 0
        %5068 = vmatpush1.bf16.msra.mxu0 0
        %5069 = vmatprep.subr.bf16.mxu0 0
        %5070 = vmatpush1.bf16.msra.mxu0 0
        %5071 = vmatprep.mubr.bf16.mxu0 0
        %5072 = vmatmul.mubr.bf16.gmra.mrb[0].mxu0 %v2749
        %v5073 = vpop.f32.mrb[0].mxu0
        %v5074 = vadd.f32 %v5033, %v5073
        %v5075 = vpop.f32.mrb[0].mxu0
        %v5076 = vadd.f32 %v5035, %v5075
        %v5077 = vpop.f32.mrb[0].mxu0
        %v5078 = vpop.f32.mrb[0].mxu0
        %5079 = vdwg.mxu0
        %5080 = vmatprep.subr.bf16.mxu0 %v3913
        %5081 = vmatpush1.bf16.msra.mxu0 %v3912
        %5082 = vmatprep.subr.bf16.mxu0 %v3929
        %5083 = vmatpush1.bf16.msra.mxu0 %v3928
        %5084 = vmatprep.subr.bf16.mxu0 %v3945
        %5085 = vmatpush1.bf16.msra.mxu0 %v3944
        %5086 = vmatprep.subr.bf16.mxu0 %v3961
        %5087 = vmatpush1.bf16.msra.mxu0 %v3960
        %5088 = vmatprep.subr.bf16.mxu0 %v3977
        %5089 = vmatpush1.bf16.msra.mxu0 %v3976
        %5090 = vmatprep.subr.bf16.mxu0 %v3993
        %5091 = vmatpush1.bf16.msra.mxu0 %v3992
        %5092 = vmatprep.subr.bf16.mxu0 %v4009
        %5093 = vmatpush1.bf16.msra.mxu0 %v4008
        %5094 = vmatprep.subr.bf16.mxu0 %v4025
        %5095 = vmatpush1.bf16.msra.mxu0 %v4024
        %5096 = vmatprep.subr.bf16.mxu0 %v4041
        %5097 = vmatpush1.bf16.msra.mxu0 %v4040
        %5098 = vmatprep.subr.bf16.mxu0 %v4057
        %5099 = vmatpush1.bf16.msra.mxu0 %v4056
        %5100 = vmatprep.subr.bf16.mxu0 %v4073
        %5101 = vmatpush1.bf16.msra.mxu0 %v4072
        %5102 = vmatprep.subr.bf16.mxu0 %v4089
        %5103 = vmatpush1.bf16.msra.mxu0 %v4088
        %5104 = vmatprep.subr.bf16.mxu0 %v4105
        %5105 = vmatpush1.bf16.msra.mxu0 %v4104
        %5106 = vmatprep.subr.bf16.mxu0 %v4121
        %5107 = vmatpush1.bf16.msra.mxu0 %v4120
        %5108 = vmatprep.subr.bf16.mxu0 %v4137
        %5109 = vmatpush1.bf16.msra.mxu0 %v4136
        %5110 = vmatprep.subr.bf16.mxu0 %v4153
        %5111 = vmatpush1.bf16.msra.mxu0 %v4152
        %5112 = vmatprep.mubr.bf16.mxu0 %v2748
        %5113 = vmatmul.mubr.bf16.gmra.mrb[0].mxu0 %v2747
        %v5114 = vpop.f32.mrb[0].mxu0
        %v5115 = vadd.f32 0.0, %v5114
        %v5116 = vpop.f32.mrb[0].mxu0
        %v5117 = vadd.f32 0.0, %v5116
        %v5118 = vpop.f32.mrb[0].mxu0
        %v5119 = vpop.f32.mrb[0].mxu0
        %5120 = vdwg.mxu0
        %5121 = vmatprep.subr.bf16.mxu0 %v4169
        %5122 = vmatpush1.bf16.msra.mxu0 %v4168
        %5123 = vmatprep.subr.bf16.mxu0 %v4185
        %5124 = vmatpush1.bf16.msra.mxu0 %v4184
        %5125 = vmatprep.subr.bf16.mxu0 %v4201
        %5126 = vmatpush1.bf16.msra.mxu0 %v4200
        %5127 = vmatprep.subr.bf16.mxu0 %v4217
        %5128 = vmatpush1.bf16.msra.mxu0 %v4216
        %5129 = vmatprep.subr.bf16.mxu0 %v4233
        %5130 = vmatpush1.bf16.msra.mxu0 %v4232
        %5131 = vmatprep.subr.bf16.mxu0 %v4249
        %5132 = vmatpush1.bf16.msra.mxu0 %v4248
        %5133 = vmatprep.subr.bf16.mxu0 %v4265
        %5134 = vmatpush1.bf16.msra.mxu0 %v4264
        %5135 = vmatprep.subr.bf16.mxu0 %v4281
        %5136 = vmatpush1.bf16.msra.mxu0 %v4280
        %5137 = vmatprep.subr.bf16.mxu0 0
        %5138 = vmatpush1.bf16.msra.mxu0 0
        %5139 = vmatprep.subr.bf16.mxu0 0
        %5140 = vmatpush1.bf16.msra.mxu0 0
        %5141 = vmatprep.subr.bf16.mxu0 0
        %5142 = vmatpush1.bf16.msra.mxu0 0
        %5143 = vmatprep.subr.bf16.mxu0 0
        %5144 = vmatpush1.bf16.msra.mxu0 0
        %5145 = vmatprep.subr.bf16.mxu0 0
        %5146 = vmatpush1.bf16.msra.mxu0 0
        %5147 = vmatprep.subr.bf16.mxu0 0
        %5148 = vmatpush1.bf16.msra.mxu0 0
        %5149 = vmatprep.subr.bf16.mxu0 0
        %5150 = vmatpush1.bf16.msra.mxu0 0
        %5151 = vmatprep.subr.bf16.mxu0 0
        %5152 = vmatpush1.bf16.msra.mxu0 0
        %5153 = vmatprep.mubr.bf16.mxu0 0
        %5154 = vmatmul.mubr.bf16.gmra.mrb[0].mxu0 %v2749
        %v5155 = vpop.f32.mrb[0].mxu0
        %v5156 = vadd.f32 %v5115, %v5155
        %v5157 = vpop.f32.mrb[0].mxu0
        %v5158 = vadd.f32 %v5117, %v5157
        %v5159 = vpop.f32.mrb[0].mxu0
        %v5160 = vpop.f32.mrb[0].mxu0
        %5161 = vdwg.mxu0
        %5162 = vmatprep.subr.bf16.mxu0 %v3915
        %5163 = vmatpush1.bf16.msra.mxu0 %v3914
        %5164 = vmatprep.subr.bf16.mxu0 %v3931
        %5165 = vmatpush1.bf16.msra.mxu0 %v3930
        %5166 = vmatprep.subr.bf16.mxu0 %v3947
        %5167 = vmatpush1.bf16.msra.mxu0 %v3946
        %5168 = vmatprep.subr.bf16.mxu0 %v3963
        %5169 = vmatpush1.bf16.msra.mxu0 %v3962
        %5170 = vmatprep.subr.bf16.mxu0 %v3979
        %5171 = vmatpush1.bf16.msra.mxu0 %v3978
        %5172 = vmatprep.subr.bf16.mxu0 %v3995
        %5173 = vmatpush1.bf16.msra.mxu0 %v3994
        %5174 = vmatprep.subr.bf16.mxu0 %v4011
        %5175 = vmatpush1.bf16.msra.mxu0 %v4010
        %5176 = vmatprep.subr.bf16.mxu0 %v4027
        %5177 = vmatpush1.bf16.msra.mxu0 %v4026
        %5178 = vmatprep.subr.bf16.mxu0 %v4043
        %5179 = vmatpush1.bf16.msra.mxu0 %v4042
        %5180 = vmatprep.subr.bf16.mxu0 %v4059
        %5181 = vmatpush1.bf16.msra.mxu0 %v4058
        %5182 = vmatprep.subr.bf16.mxu0 %v4075
        %5183 = vmatpush1.bf16.msra.mxu0 %v4074
        %5184 = vmatprep.subr.bf16.mxu0 %v4091
        %5185 = vmatpush1.bf16.msra.mxu0 %v4090
        %5186 = vmatprep.subr.bf16.mxu0 %v4107
        %5187 = vmatpush1.bf16.msra.mxu0 %v4106
        %5188 = vmatprep.subr.bf16.mxu0 %v4123
        %5189 = vmatpush1.bf16.msra.mxu0 %v4122
        %5190 = vmatprep.subr.bf16.mxu0 %v4139
        %5191 = vmatpush1.bf16.msra.mxu0 %v4138
        %5192 = vmatprep.subr.bf16.mxu0 %v4155
        %5193 = vmatpush1.bf16.msra.mxu0 %v4154
        %5194 = vmatprep.mubr.bf16.mxu0 %v2748
        %5195 = vmatmul.mubr.bf16.gmra.mrb[0].mxu0 %v2747
        %v5196 = vpop.f32.mrb[0].mxu0
        %v5197 = vadd.f32 0.0, %v5196
        %v5198 = vpop.f32.mrb[0].mxu0
        %v5199 = vadd.f32 0.0, %v5198
        %v5200 = vpop.f32.mrb[0].mxu0
        %v5201 = vpop.f32.mrb[0].mxu0
        %5202 = vdwg.mxu0
        %5203 = vmatprep.subr.bf16.mxu0 %v4171
        %5204 = vmatpush1.bf16.msra.mxu0 %v4170
        %5205 = vmatprep.subr.bf16.mxu0 %v4187
        %5206 = vmatpush1.bf16.msra.mxu0 %v4186
        %5207 = vmatprep.subr.bf16.mxu0 %v4203
        %5208 = vmatpush1.bf16.msra.mxu0 %v4202
        %5209 = vmatprep.subr.bf16.mxu0 %v4219
        %5210 = vmatpush1.bf16.msra.mxu0 %v4218
        %5211 = vmatprep.subr.bf16.mxu0 %v4235
        %5212 = vmatpush1.bf16.msra.mxu0 %v4234
        %5213 = vmatprep.subr.bf16.mxu0 %v4251
        %5214 = vmatpush1.bf16.msra.mxu0 %v4250
        %5215 = vmatprep.subr.bf16.mxu0 %v4267
        %5216 = vmatpush1.bf16.msra.mxu0 %v4266
        %5217 = vmatprep.subr.bf16.mxu0 %v4283
        %5218 = vmatpush1.bf16.msra.mxu0 %v4282
        %5219 = vmatprep.subr.bf16.mxu0 0
        %5220 = vmatpush1.bf16.msra.mxu0 0
        %5221 = vmatprep.subr.bf16.mxu0 0
        %5222 = vmatpush1.bf16.msra.mxu0 0
        %5223 = vmatprep.subr.bf16.mxu0 0
        %5224 = vmatpush1.bf16.msra.mxu0 0
        %5225 = vmatprep.subr.bf16.mxu0 0
        %5226 = vmatpush1.bf16.msra.mxu0 0
        %5227 = vmatprep.subr.bf16.mxu0 0
        %5228 = vmatpush1.bf16.msra.mxu0 0
        %5229 = vmatprep.subr.bf16.mxu0 0
        %5230 = vmatpush1.bf16.msra.mxu0 0
        %5231 = vmatprep.subr.bf16.mxu0 0
        %5232 = vmatpush1.bf16.msra.mxu0 0
        %5233 = vmatprep.subr.bf16.mxu0 0
        %5234 = vmatpush1.bf16.msra.mxu0 0
        %5235 = vmatprep.mubr.bf16.mxu0 0
        %5236 = vmatmul.mubr.bf16.gmra.mrb[0].mxu0 %v2749
        %v5237 = vpop.f32.mrb[0].mxu0
        %v5238 = vadd.f32 %v5197, %v5237
        %v5239 = vpop.f32.mrb[0].mxu0
        %v5240 = vadd.f32 %v5199, %v5239
        %v5241 = vpop.f32.mrb[0].mxu0
        %v5242 = vpop.f32.mrb[0].mxu0
        %5243 = vdwg.mxu0
        %5244 = vmatprep.subr.bf16.mxu0 %v3917
        %5245 = vmatpush1.bf16.msra.mxu0 %v3916
        %5246 = vmatprep.subr.bf16.mxu0 %v3933
        %5247 = vmatpush1.bf16.msra.mxu0 %v3932
        %5248 = vmatprep.subr.bf16.mxu0 %v3949
        %5249 = vmatpush1.bf16.msra.mxu0 %v3948
        %5250 = vmatprep.subr.bf16.mxu0 %v3965
        %5251 = vmatpush1.bf16.msra.mxu0 %v3964
        %5252 = vmatprep.subr.bf16.mxu0 %v3981
        %5253 = vmatpush1.bf16.msra.mxu0 %v3980
        %5254 = vmatprep.subr.bf16.mxu0 %v3997
        %5255 = vmatpush1.bf16.msra.mxu0 %v3996
        %5256 = vmatprep.subr.bf16.mxu0 %v4013
        %5257 = vmatpush1.bf16.msra.mxu0 %v4012
        %5258 = vmatprep.subr.bf16.mxu0 %v4029
        %5259 = vmatpush1.bf16.msra.mxu0 %v4028
        %5260 = vmatprep.subr.bf16.mxu0 %v4045
        %5261 = vmatpush1.bf16.msra.mxu0 %v4044
        %5262 = vmatprep.subr.bf16.mxu0 %v4061
        %5263 = vmatpush1.bf16.msra.mxu0 %v4060
        %5264 = vmatprep.subr.bf16.mxu0 %v4077
        %5265 = vmatpush1.bf16.msra.mxu0 %v4076
        %5266 = vmatprep.subr.bf16.mxu0 %v4093
        %5267 = vmatpush1.bf16.msra.mxu0 %v4092
        %5268 = vmatprep.subr.bf16.mxu0 %v4109
        %5269 = vmatpush1.bf16.msra.mxu0 %v4108
        %5270 = vmatprep.subr.bf16.mxu0 %v4125
        %5271 = vmatpush1.bf16.msra.mxu0 %v4124
        %5272 = vmatprep.subr.bf16.mxu0 %v4141
        %5273 = vmatpush1.bf16.msra.mxu0 %v4140
        %5274 = vmatprep.subr.bf16.mxu0 %v4157
        %5275 = vmatpush1.bf16.msra.mxu0 %v4156
        %5276 = vmatprep.mubr.bf16.mxu0 %v2748
        %5277 = vmatmul.mubr.bf16.gmra.mrb[0].mxu0 %v2747
        %v5278 = vpop.f32.mrb[0].mxu0
        %v5279 = vadd.f32 0.0, %v5278
        %v5280 = vpop.f32.mrb[0].mxu0
        %v5281 = vadd.f32 0.0, %v5280
        %v5282 = vpop.f32.mrb[0].mxu0
        %v5283 = vpop.f32.mrb[0].mxu0
        %5284 = vdwg.mxu0
        %5285 = vmatprep.subr.bf16.mxu0 %v4173
        %5286 = vmatpush1.bf16.msra.mxu0 %v4172
        %5287 = vmatprep.subr.bf16.mxu0 %v4189
        %5288 = vmatpush1.bf16.msra.mxu0 %v4188
        %5289 = vmatprep.subr.bf16.mxu0 %v4205
        %5290 = vmatpush1.bf16.msra.mxu0 %v4204
        %5291 = vmatprep.subr.bf16.mxu0 %v4221
        %5292 = vmatpush1.bf16.msra.mxu0 %v4220
        %5293 = vmatprep.subr.bf16.mxu0 %v4237
        %5294 = vmatpush1.bf16.msra.mxu0 %v4236
        %5295 = vmatprep.subr.bf16.mxu0 %v4253
        %5296 = vmatpush1.bf16.msra.mxu0 %v4252
        %5297 = vmatprep.subr.bf16.mxu0 %v4269
        %5298 = vmatpush1.bf16.msra.mxu0 %v4268
        %5299 = vmatprep.subr.bf16.mxu0 %v4285
        %5300 = vmatpush1.bf16.msra.mxu0 %v4284
        %5301 = vmatprep.subr.bf16.mxu0 0
        %5302 = vmatpush1.bf16.msra.mxu0 0
        %5303 = vmatprep.subr.bf16.mxu0 0
        %5304 = vmatpush1.bf16.msra.mxu0 0
        %5305 = vmatprep.subr.bf16.mxu0 0
        %5306 = vmatpush1.bf16.msra.mxu0 0
        %5307 = vmatprep.subr.bf16.mxu0 0
        %5308 = vmatpush1.bf16.msra.mxu0 0
        %5309 = vmatprep.subr.bf16.mxu0 0
        %5310 = vmatpush1.bf16.msra.mxu0 0
        %5311 = vmatprep.subr.bf16.mxu0 0
        %5312 = vmatpush1.bf16.msra.mxu0 0
        %5313 = vmatprep.subr.bf16.mxu0 0
        %5314 = vmatpush1.bf16.msra.mxu0 0
        %5315 = vmatprep.subr.bf16.mxu0 0
        %5316 = vmatpush1.bf16.msra.mxu0 0
        %5317 = vmatprep.mubr.bf16.mxu0 0
        %5318 = vmatmul.mubr.bf16.gmra.mrb[0].mxu0 %v2749
        %v5319 = vpop.f32.mrb[0].mxu0
        %v5320 = vadd.f32 %v5279, %v5319
        %v5321 = vpop.f32.mrb[0].mxu0
        %v5322 = vadd.f32 %v5281, %v5321
        %v5323 = vpop.f32.mrb[0].mxu0
        %v5324 = vpop.f32.mrb[0].mxu0
        %5325 = vdwg.mxu0
        %v5326 = vpack.c.bf16 %v4748, %v4746
        %v5327 = vpack.c.bf16 %v4830, %v4828
        %v5328 = vpack.c.bf16 %v4912, %v4910
        %v5329 = vpack.c.bf16 %v4994, %v4992
        %v5330 = vpack.c.bf16 %v5076, %v5074
        %v5331 = vpack.c.bf16 %v5158, %v5156
        %v5332 = vpack.c.bf16 %v5240, %v5238
        %v5333 = vpack.c.bf16 %v5322, %v5320
        %5335 = vset.pattern.permute.xlu0 0
        %5336 = vperm.xlu0 %5335, %v2743
        %v5337 = vpop.permute.xlu0 %5336
        %5340 = vset.pattern.permute.xlu0 0
        %5341 = vperm.xlu0 %5340, %v2744
        %v5342 = vpop.permute.xlu0 %5341
        %5345 = vset.pattern.permute.xlu0 0
        %5346 = vperm.xlu0 %5345, %v2745
        %v5347 = vpop.permute.xlu0 %5346
        %5350 = vset.pattern.permute.xlu0 0
        %5351 = vperm.xlu0 %5350, %v2746
        %v5352 = vpop.permute.xlu0 %5351
        %v5358 = vunpack.c.l.b16 %v2739
        %v5359 = vunpack.c.l.b16 %v2740
        %v5360 = vunpack.c.l.b16 %v2741
        %v5361 = vunpack.c.l.b16 %v2742
        %v5362 = vpack.c.b16 %v5359, %v5358
        %v5363 = vpack.c.b16 %v5361, %v5360
        %5366 = vmatprep.subr.bf16.mxu0 0
        %5367 = vmatpush1.bf16.msra.mxu0 %v5326
        %5368 = vmatprep.subr.bf16.mxu0 0
        %5369 = vmatpush1.bf16.msra.mxu0 %v5327
        %5370 = vmatprep.subr.bf16.mxu0 0
        %5371 = vmatpush1.bf16.msra.mxu0 %v5328
        %5372 = vmatprep.subr.bf16.mxu0 0
        %5373 = vmatpush1.bf16.msra.mxu0 %v5329
        %5374 = vmatprep.subr.bf16.mxu0 0
        %5375 = vmatpush1.bf16.msra.mxu0 %v5330
        %5376 = vmatprep.subr.bf16.mxu0 0
        %5377 = vmatpush1.bf16.msra.mxu0 %v5331
        %5378 = vmatprep.subr.bf16.mxu0 0
        %5379 = vmatpush1.bf16.msra.mxu0 %v5332
        %5380 = vmatprep.subr.bf16.mxu0 0
        %5381 = vmatpush1.bf16.msra.mxu0 %v5333
        %5382 = vmatprep.subr.bf16.mxu0 0
        %5383 = vmatpush1.bf16.msra.mxu0 0
        %5384 = vmatprep.subr.bf16.mxu0 0
        %5385 = vmatpush1.bf16.msra.mxu0 0
        %5386 = vmatprep.subr.bf16.mxu0 0
        %5387 = vmatpush1.bf16.msra.mxu0 0
        %5388 = vmatprep.subr.bf16.mxu0 0
        %5389 = vmatpush1.bf16.msra.mxu0 0
        %5390 = vmatprep.subr.bf16.mxu0 0
        %5391 = vmatpush1.bf16.msra.mxu0 0
        %5392 = vmatprep.subr.bf16.mxu0 0
        %5393 = vmatpush1.bf16.msra.mxu0 0
        %5394 = vmatprep.subr.bf16.mxu0 0
        %5395 = vmatpush1.bf16.msra.mxu0 0
        %5396 = vmatprep.subr.bf16.mxu0 0
        %5397 = vmatpush1.bf16.msra.mxu0 0
        %5398 = vmatprep.mubr.bf16.mxu0 0
        %5399 = vmatmul.mubr.bf16.gmra.mrb[0].mxu0 %v5362
        %v5400 = vpop.f32.mrb[0].mxu0
        %v5401 = vadd.f32 %v5337, %v5400
        %v5402 = vpop.f32.mrb[0].mxu0
        %v5403 = vpop.f32.mrb[0].mxu0
        %v5404 = vadd.f32 %v5342, %v5403
        %v5405 = vpop.f32.mrb[0].mxu0
        %5406 = vmatprep.mubr.bf16.mxu0 0
        %5407 = vmatmul.mubr.bf16.gmra.mrb[0].mxu0 %v5363
        %v5408 = vpop.f32.mrb[0].mxu0
        %v5409 = vadd.f32 %v5347, %v5408
        %v5410 = vpop.f32.mrb[0].mxu0
        %v5411 = vpop.f32.mrb[0].mxu0
        %v5412 = vadd.f32 %v5352, %v5411
        %v5413 = vpop.f32.mrb[0].mxu0
        %5414 = vdwg.mxu0
        %v5415 = vmul.f32 %v5401, 0.2
        %v5416 = vmul.f32 %v5404, 0.2
        %v5417 = vmul.f32 %v5409, 0.2
        %v5418 = vmul.f32 %v5412, 0.2
        %v5419 = vmax.f32 %v5401, %v5415
        %v5420 = vmax.f32 %v5404, %v5416
        %v5421 = vmax.f32 %v5409, %v5417
        %v5422 = vmax.f32 %v5412, %v5418
        %v5424 = vlaneseq
        %v5425 = vshrl.u32 %v5424, 7
        %v5426 = vsub.s32 0, %v5425
        %v5427 = vrot.slane %v734, %v5426
        %v5429 = vmul.f32 %v5419, %v5427
        %v5430 = vmul.f32 %v5420, %v5427
        %v5431 = vmul.f32 %v5421, %v5427
        %v5432 = vmul.f32 %v5422, %v5427
        %v5529 = vunpack.c.l.b16 %v735
        %v5530 = vunpack.c.h.b16 %v735
        %v5531 = vunpack.c.l.b16 %v736
        %v5532 = vunpack.c.h.b16 %v736
        %v5533 = vunpack.c.l.b16 %v737
        %v5534 = vunpack.c.h.b16 %v737
        %v5535 = vunpack.c.l.b16 %v738
        %v5536 = vunpack.c.h.b16 %v738
        %v5537 = vunpack.c.l.b16 %v739
        %v5538 = vunpack.c.h.b16 %v739
        %v5539 = vunpack.c.l.b16 %v740
        %v5540 = vunpack.c.h.b16 %v740
        %v5541 = vunpack.c.l.b16 %v741
        %v5542 = vunpack.c.h.b16 %v741
        %v5543 = vunpack.c.l.b16 %v742
        %v5544 = vunpack.c.h.b16 %v742
        %v5545 = vunpack.c.l.b16 %v743
        %v5546 = vunpack.c.h.b16 %v743
        %v5547 = vunpack.c.l.b16 %v744
        %v5548 = vunpack.c.h.b16 %v744
        %v5549 = vunpack.c.l.b16 %v745
        %v5550 = vunpack.c.h.b16 %v745
        %v5551 = vunpack.c.l.b16 %v746
        %v5552 = vunpack.c.h.b16 %v746
        %v5553 = vunpack.c.l.b16 %v747
        %v5554 = vunpack.c.h.b16 %v747
        %v5555 = vunpack.c.l.b16 %v748
        %v5556 = vunpack.c.h.b16 %v748
        %v5557 = vunpack.c.l.b16 %v749
        %v5558 = vunpack.c.h.b16 %v749
        %v5559 = vunpack.c.l.b16 %v750
        %v5560 = vunpack.c.h.b16 %v750
        %v5561 = vunpack.c.l.b16 %v751
        %v5562 = vunpack.c.h.b16 %v751
        %v5563 = vunpack.c.l.b16 %v752
        %v5564 = vunpack.c.h.b16 %v752
        %v5565 = vunpack.c.l.b16 %v753
        %v5566 = vunpack.c.h.b16 %v753
        %v5567 = vunpack.c.l.b16 %v754
        %v5568 = vunpack.c.h.b16 %v754
        %v5569 = vunpack.c.l.b16 %v755
        %v5570 = vunpack.c.h.b16 %v755
        %v5571 = vunpack.c.l.b16 %v756
        %v5572 = vunpack.c.h.b16 %v756
        %v5573 = vunpack.c.l.b16 %v757
        %v5574 = vunpack.c.h.b16 %v757
        %v5575 = vunpack.c.l.b16 %v758
        %v5576 = vunpack.c.h.b16 %v758
        %v5577 = vunpack.c.l.b16 %v759
        %v5578 = vunpack.c.h.b16 %v759
        %v5579 = vunpack.c.l.b16 %v760
        %v5580 = vunpack.c.h.b16 %v760
        %v5581 = vunpack.c.l.b16 %v761
        %v5582 = vunpack.c.h.b16 %v761
        %v5583 = vunpack.c.l.b16 %v762
        %v5584 = vunpack.c.h.b16 %v762
        %v5585 = vunpack.c.l.b16 %v763
        %v5586 = vunpack.c.h.b16 %v763
        %v5587 = vunpack.c.l.b16 %v764
        %v5588 = vunpack.c.h.b16 %v764
        %v5589 = vunpack.c.l.b16 %v765
        %v5590 = vunpack.c.h.b16 %v765
        %v5591 = vunpack.c.l.b16 %v766
        %v5592 = vunpack.c.h.b16 %v766
        %v5593 = vunpack.c.l.b16 %v767
        %v5594 = vunpack.c.h.b16 %v767
        %v5595 = vunpack.c.l.b16 %v768
        %v5596 = vunpack.c.h.b16 %v768
        %v5597 = vunpack.c.l.b16 %v769
        %v5598 = vunpack.c.h.b16 %v769
        %v5599 = vunpack.c.l.b16 %v770
        %v5600 = vunpack.c.h.b16 %v770
        %v5601 = vunpack.c.l.b16 %v771
        %v5602 = vunpack.c.h.b16 %v771
        %v5603 = vunpack.c.l.b16 %v772
        %v5604 = vunpack.c.h.b16 %v772
        %v5605 = vunpack.c.l.b16 %v773
        %v5606 = vunpack.c.h.b16 %v773
        %v5607 = vunpack.c.l.b16 %v774
        %v5608 = vunpack.c.h.b16 %v774
        %v5609 = vunpack.c.l.b16 %v775
        %v5610 = vunpack.c.h.b16 %v775
        %v5611 = vunpack.c.l.b16 %v776
        %v5612 = vunpack.c.h.b16 %v776
        %v5613 = vunpack.c.l.b16 %v777
        %v5614 = vunpack.c.h.b16 %v777
        %v5615 = vunpack.c.l.b16 %v778
        %v5616 = vunpack.c.h.b16 %v778
        %v5617 = vunpack.c.l.b16 %v779
        %v5618 = vunpack.c.h.b16 %v779
        %v5619 = vunpack.c.l.b16 %v780
        %v5620 = vunpack.c.h.b16 %v780
        %v5621 = vunpack.c.l.b16 %v781
        %v5622 = vunpack.c.h.b16 %v781
        %v5623 = vunpack.c.l.b16 %v782
        %v5624 = vunpack.c.h.b16 %v782
        %v5625 = vunpack.c.l.b16 %v783
        %v5626 = vunpack.c.h.b16 %v783
        %v5627 = vunpack.c.l.b16 %v784
        %v5628 = vunpack.c.h.b16 %v784
        %v5629 = vunpack.c.l.b16 %v785
        %v5630 = vunpack.c.h.b16 %v785
        %v5631 = vunpack.c.l.b16 %v786
        %v5632 = vunpack.c.h.b16 %v786
        %v5633 = vunpack.c.l.b16 %v787
        %v5634 = vunpack.c.h.b16 %v787
        %v5635 = vunpack.c.l.b16 %v788
        %v5636 = vunpack.c.h.b16 %v788
        %v5637 = vunpack.c.l.b16 %v789
        %v5638 = vunpack.c.h.b16 %v789
        %v5639 = vunpack.c.l.b16 %v790
        %v5640 = vunpack.c.h.b16 %v790
        %v5641 = vunpack.c.l.b16 %v791
        %v5642 = vunpack.c.h.b16 %v791
        %v5643 = vunpack.c.l.b16 %v792
        %v5644 = vunpack.c.h.b16 %v792
        %v5645 = vunpack.c.l.b16 %v793
        %v5646 = vunpack.c.h.b16 %v793
        %v5647 = vunpack.c.l.b16 %v794
        %v5648 = vunpack.c.h.b16 %v794
        %v5649 = vunpack.c.l.b16 %v795
        %v5650 = vunpack.c.h.b16 %v795
        %v5651 = vunpack.c.l.b16 %v796
        %v5652 = vunpack.c.h.b16 %v796
        %v5653 = vunpack.c.l.b16 %v797
        %v5654 = vunpack.c.h.b16 %v797
        %v5655 = vunpack.c.l.b16 %v798
        %v5656 = vunpack.c.h.b16 %v798
        %v5657 = vunpack.c.l.b16 %v799
        %v5658 = vunpack.c.h.b16 %v799
        %v5659 = vunpack.c.l.b16 %v800
        %v5660 = vunpack.c.h.b16 %v800
        %v5661 = vunpack.c.l.b16 %v801
        %v5662 = vunpack.c.h.b16 %v801
        %v5663 = vunpack.c.l.b16 %v802
        %v5664 = vunpack.c.h.b16 %v802
        %v5665 = vunpack.c.l.b16 %v803
        %v5666 = vunpack.c.h.b16 %v803
        %v5667 = vunpack.c.l.b16 %v804
        %v5668 = vunpack.c.h.b16 %v804
        %v5669 = vunpack.c.l.b16 %v805
        %v5670 = vunpack.c.h.b16 %v805
        %v5671 = vunpack.c.l.b16 %v806
        %v5672 = vunpack.c.h.b16 %v806
        %v5673 = vunpack.c.l.b16 %v807
        %v5674 = vunpack.c.h.b16 %v807
        %v5675 = vunpack.c.l.b16 %v808
        %v5676 = vunpack.c.h.b16 %v808
        %v5677 = vunpack.c.l.b16 %v809
        %v5678 = vunpack.c.h.b16 %v809
        %v5679 = vunpack.c.l.b16 %v810
        %v5680 = vunpack.c.h.b16 %v810
        %v5681 = vunpack.c.l.b16 %v811
        %v5682 = vunpack.c.h.b16 %v811
        %v5683 = vunpack.c.l.b16 %v812
        %v5684 = vunpack.c.h.b16 %v812
        %v5685 = vunpack.c.l.b16 %v813
        %v5686 = vunpack.c.h.b16 %v813
        %v5687 = vunpack.c.l.b16 %v814
        %v5688 = vunpack.c.h.b16 %v814
        %v5689 = vunpack.c.l.b16 %v815
        %v5690 = vunpack.c.h.b16 %v815
        %v5691 = vunpack.c.l.b16 %v816
        %v5692 = vunpack.c.h.b16 %v816
        %v5693 = vunpack.c.l.b16 %v817
        %v5694 = vunpack.c.h.b16 %v817
        %v5695 = vunpack.c.l.b16 %v818
        %v5696 = vunpack.c.h.b16 %v818
        %v5697 = vunpack.c.l.b16 %v819
        %v5698 = vunpack.c.h.b16 %v819
        %v5699 = vunpack.c.l.b16 %v820
        %v5700 = vunpack.c.h.b16 %v820
        %v5701 = vunpack.c.l.b16 %v821
        %v5702 = vunpack.c.h.b16 %v821
        %v5703 = vunpack.c.l.b16 %v822
        %v5704 = vunpack.c.h.b16 %v822
        %v5705 = vunpack.c.l.b16 %v823
        %v5706 = vunpack.c.h.b16 %v823
        %v5707 = vunpack.c.l.b16 %v824
        %v5708 = vunpack.c.h.b16 %v824
        %v5709 = vunpack.c.l.b16 %v825
        %v5710 = vunpack.c.h.b16 %v825
        %v5711 = vunpack.c.l.b16 %v826
        %v5712 = vunpack.c.h.b16 %v826
        %v5713 = vunpack.c.l.b16 %v827
        %v5714 = vunpack.c.h.b16 %v827
        %v5715 = vunpack.c.l.b16 %v828
        %v5716 = vunpack.c.h.b16 %v828
        %v5717 = vunpack.c.l.b16 %v829
        %v5718 = vunpack.c.h.b16 %v829
        %v5719 = vunpack.c.l.b16 %v830
        %v5720 = vunpack.c.h.b16 %v830
        %v5721 = vpack.c.b16 %v5533, %v5529
        %v5722 = vpack.c.b16 %v5534, %v5530
        %v5723 = vpack.c.b16 %v5535, %v5531
        %v5724 = vpack.c.b16 %v5536, %v5532
        %v5725 = vpack.c.b16 %v5541, %v5537
        %v5726 = vpack.c.b16 %v5542, %v5538
        %v5727 = vpack.c.b16 %v5543, %v5539
        %v5728 = vpack.c.b16 %v5544, %v5540
        %v5729 = vpack.c.b16 %v5549, %v5545
        %v5730 = vpack.c.b16 %v5550, %v5546
        %v5731 = vpack.c.b16 %v5551, %v5547
        %v5732 = vpack.c.b16 %v5552, %v5548
        %v5733 = vpack.c.b16 %v5557, %v5553
        %v5734 = vpack.c.b16 %v5558, %v5554
        %v5735 = vpack.c.b16 %v5559, %v5555
        %v5736 = vpack.c.b16 %v5560, %v5556
        %v5737 = vpack.c.b16 %v5565, %v5561
        %v5738 = vpack.c.b16 %v5566, %v5562
        %v5739 = vpack.c.b16 %v5567, %v5563
        %v5740 = vpack.c.b16 %v5568, %v5564
        %v5741 = vpack.c.b16 %v5573, %v5569
        %v5742 = vpack.c.b16 %v5574, %v5570
        %v5743 = vpack.c.b16 %v5575, %v5571
        %v5744 = vpack.c.b16 %v5576, %v5572
        %v5745 = vpack.c.b16 %v5581, %v5577
        %v5746 = vpack.c.b16 %v5582, %v5578
        %v5747 = vpack.c.b16 %v5583, %v5579
        %v5748 = vpack.c.b16 %v5584, %v5580
        %v5749 = vpack.c.b16 %v5589, %v5585
        %v5750 = vpack.c.b16 %v5590, %v5586
        %v5751 = vpack.c.b16 %v5591, %v5587
        %v5752 = vpack.c.b16 %v5592, %v5588
        %v5753 = vpack.c.b16 %v5597, %v5593
        %v5754 = vpack.c.b16 %v5598, %v5594
        %v5755 = vpack.c.b16 %v5599, %v5595
        %v5756 = vpack.c.b16 %v5600, %v5596
        %v5757 = vpack.c.b16 %v5605, %v5601
        %v5758 = vpack.c.b16 %v5606, %v5602
        %v5759 = vpack.c.b16 %v5607, %v5603
        %v5760 = vpack.c.b16 %v5608, %v5604
        %v5761 = vpack.c.b16 %v5613, %v5609
        %v5762 = vpack.c.b16 %v5614, %v5610
        %v5763 = vpack.c.b16 %v5615, %v5611
        %v5764 = vpack.c.b16 %v5616, %v5612
        %v5765 = vpack.c.b16 %v5621, %v5617
        %v5766 = vpack.c.b16 %v5622, %v5618
        %v5767 = vpack.c.b16 %v5623, %v5619
        %v5768 = vpack.c.b16 %v5624, %v5620
        %v5769 = vpack.c.b16 %v5629, %v5625
        %v5770 = vpack.c.b16 %v5630, %v5626
        %v5771 = vpack.c.b16 %v5631, %v5627
        %v5772 = vpack.c.b16 %v5632, %v5628
        %v5773 = vpack.c.b16 %v5637, %v5633
        %v5774 = vpack.c.b16 %v5638, %v5634
        %v5775 = vpack.c.b16 %v5639, %v5635
        %v5776 = vpack.c.b16 %v5640, %v5636
        %v5777 = vpack.c.b16 %v5645, %v5641
        %v5778 = vpack.c.b16 %v5646, %v5642
        %v5779 = vpack.c.b16 %v5647, %v5643
        %v5780 = vpack.c.b16 %v5648, %v5644
        %v5781 = vpack.c.b16 %v5653, %v5649
        %v5782 = vpack.c.b16 %v5654, %v5650
        %v5783 = vpack.c.b16 %v5655, %v5651
        %v5784 = vpack.c.b16 %v5656, %v5652
        %v5785 = vpack.c.b16 %v5661, %v5657
        %v5786 = vpack.c.b16 %v5662, %v5658
        %v5787 = vpack.c.b16 %v5663, %v5659
        %v5788 = vpack.c.b16 %v5664, %v5660
        %v5789 = vpack.c.b16 %v5669, %v5665
        %v5790 = vpack.c.b16 %v5670, %v5666
        %v5791 = vpack.c.b16 %v5671, %v5667
        %v5792 = vpack.c.b16 %v5672, %v5668
        %v5793 = vpack.c.b16 %v5677, %v5673
        %v5794 = vpack.c.b16 %v5678, %v5674
        %v5795 = vpack.c.b16 %v5679, %v5675
        %v5796 = vpack.c.b16 %v5680, %v5676
        %v5797 = vpack.c.b16 %v5685, %v5681
        %v5798 = vpack.c.b16 %v5686, %v5682
        %v5799 = vpack.c.b16 %v5687, %v5683
        %v5800 = vpack.c.b16 %v5688, %v5684
        %v5801 = vpack.c.b16 %v5693, %v5689
        %v5802 = vpack.c.b16 %v5694, %v5690
        %v5803 = vpack.c.b16 %v5695, %v5691
        %v5804 = vpack.c.b16 %v5696, %v5692
        %v5805 = vpack.c.b16 %v5701, %v5697
        %v5806 = vpack.c.b16 %v5702, %v5698
        %v5807 = vpack.c.b16 %v5703, %v5699
        %v5808 = vpack.c.b16 %v5704, %v5700
        %v5809 = vpack.c.b16 %v5709, %v5705
        %v5810 = vpack.c.b16 %v5710, %v5706
        %v5811 = vpack.c.b16 %v5711, %v5707
        %v5812 = vpack.c.b16 %v5712, %v5708
        %v5813 = vpack.c.b16 %v5717, %v5713
        %v5814 = vpack.c.b16 %v5718, %v5714
        %v5815 = vpack.c.b16 %v5719, %v5715
        %v5816 = vpack.c.b16 %v5720, %v5716
        %5913 = vmatprep.subr.bf16.mxu0 %v5722
        %5914 = vmatpush1.bf16.msra.mxu0 %v5721
        %5915 = vmatprep.subr.bf16.mxu0 %v5726
        %5916 = vmatpush1.bf16.msra.mxu0 %v5725
        %5917 = vmatprep.subr.bf16.mxu0 %v5730
        %5918 = vmatpush1.bf16.msra.mxu0 %v5729
        %5919 = vmatprep.subr.bf16.mxu0 %v5734
        %5920 = vmatpush1.bf16.msra.mxu0 %v5733
        %5921 = vmatprep.subr.bf16.mxu0 %v5738
        %5922 = vmatpush1.bf16.msra.mxu0 %v5737
        %5923 = vmatprep.subr.bf16.mxu0 %v5742
        %5924 = vmatpush1.bf16.msra.mxu0 %v5741
        %5925 = vmatprep.subr.bf16.mxu0 %v5746
        %5926 = vmatpush1.bf16.msra.mxu0 %v5745
        %5927 = vmatprep.subr.bf16.mxu0 %v5750
        %5928 = vmatpush1.bf16.msra.mxu0 %v5749
        %5929 = vmatprep.subr.bf16.mxu0 %v5754
        %5930 = vmatpush1.bf16.msra.mxu0 %v5753
        %5931 = vmatprep.subr.bf16.mxu0 %v5758
        %5932 = vmatpush1.bf16.msra.mxu0 %v5757
        %5933 = vmatprep.subr.bf16.mxu0 %v5762
        %5934 = vmatpush1.bf16.msra.mxu0 %v5761
        %5935 = vmatprep.subr.bf16.mxu0 %v5766
        %5936 = vmatpush1.bf16.msra.mxu0 %v5765
        %5937 = vmatprep.subr.bf16.mxu0 %v5770
        %5938 = vmatpush1.bf16.msra.mxu0 %v5769
        %5939 = vmatprep.subr.bf16.mxu0 %v5774
        %5940 = vmatpush1.bf16.msra.mxu0 %v5773
        %5941 = vmatprep.subr.bf16.mxu0 %v5778
        %5942 = vmatpush1.bf16.msra.mxu0 %v5777
        %5943 = vmatprep.subr.bf16.mxu0 %v5782
        %5944 = vmatpush1.bf16.msra.mxu0 %v5781
        %5945 = vmatprep.mubr.bf16.mxu0 %v2748
        %5946 = vmatmul.mubr.bf16.gmra.mrb[0].mxu0 %v2747
        %v5947 = vpop.f32.mrb[0].mxu0
        %v5948 = vadd.f32 0.0, %v5947
        %v5949 = vpop.f32.mrb[0].mxu0
        %v5950 = vadd.f32 0.0, %v5949
        %v5951 = vpop.f32.mrb[0].mxu0
        %v5952 = vpop.f32.mrb[0].mxu0
        %5953 = vdwg.mxu0
        %5954 = vmatprep.subr.bf16.mxu0 %v5786
        %5955 = vmatpush1.bf16.msra.mxu0 %v5785
        %5956 = vmatprep.subr.bf16.mxu0 %v5790
        %5957 = vmatpush1.bf16.msra.mxu0 %v5789
        %5958 = vmatprep.subr.bf16.mxu0 %v5794
        %5959 = vmatpush1.bf16.msra.mxu0 %v5793
        %5960 = vmatprep.subr.bf16.mxu0 %v5798
        %5961 = vmatpush1.bf16.msra.mxu0 %v5797
        %5962 = vmatprep.subr.bf16.mxu0 %v5802
        %5963 = vmatpush1.bf16.msra.mxu0 %v5801
        %5964 = vmatprep.subr.bf16.mxu0 %v5806
        %5965 = vmatpush1.bf16.msra.mxu0 %v5805
        %5966 = vmatprep.subr.bf16.mxu0 %v5810
        %5967 = vmatpush1.bf16.msra.mxu0 %v5809
        %5968 = vmatprep.subr.bf16.mxu0 %v5814
        %5969 = vmatpush1.bf16.msra.mxu0 %v5813
        %5970 = vmatprep.subr.bf16.mxu0 0
        %5971 = vmatpush1.bf16.msra.mxu0 0
        %5972 = vmatprep.subr.bf16.mxu0 0
        %5973 = vmatpush1.bf16.msra.mxu0 0
        %5974 = vmatprep.subr.bf16.mxu0 0
        %5975 = vmatpush1.bf16.msra.mxu0 0
        %5976 = vmatprep.subr.bf16.mxu0 0
        %5977 = vmatpush1.bf16.msra.mxu0 0
        %5978 = vmatprep.subr.bf16.mxu0 0
        %5979 = vmatpush1.bf16.msra.mxu0 0
        %5980 = vmatprep.subr.bf16.mxu0 0
        %5981 = vmatpush1.bf16.msra.mxu0 0
        %5982 = vmatprep.subr.bf16.mxu0 0
        %5983 = vmatpush1.bf16.msra.mxu0 0
        %5984 = vmatprep.subr.bf16.mxu0 0
        %5985 = vmatpush1.bf16.msra.mxu0 0
        %5986 = vmatprep.mubr.bf16.mxu0 0
        %5987 = vmatmul.mubr.bf16.gmra.mrb[0].mxu0 %v2749
        %v5988 = vpop.f32.mrb[0].mxu0
        %v5989 = vadd.f32 %v5948, %v5988
        %v5990 = vpop.f32.mrb[0].mxu0
        %v5991 = vadd.f32 %v5950, %v5990
        %v5992 = vpop.f32.mrb[0].mxu0
        %v5993 = vpop.f32.mrb[0].mxu0
        %5994 = vdwg.mxu0
        %5995 = vmatprep.subr.bf16.mxu0 %v5724
        %5996 = vmatpush1.bf16.msra.mxu0 %v5723
        %5997 = vmatprep.subr.bf16.mxu0 %v5728
        %5998 = vmatpush1.bf16.msra.mxu0 %v5727
        %5999 = vmatprep.subr.bf16.mxu0 %v5732
        %6000 = vmatpush1.bf16.msra.mxu0 %v5731
        %6001 = vmatprep.subr.bf16.mxu0 %v5736
        %6002 = vmatpush1.bf16.msra.mxu0 %v5735
        %6003 = vmatprep.subr.bf16.mxu0 %v5740
        %6004 = vmatpush1.bf16.msra.mxu0 %v5739
        %6005 = vmatprep.subr.bf16.mxu0 %v5744
        %6006 = vmatpush1.bf16.msra.mxu0 %v5743
        %6007 = vmatprep.subr.bf16.mxu0 %v5748
        %6008 = vmatpush1.bf16.msra.mxu0 %v5747
        %6009 = vmatprep.subr.bf16.mxu0 %v5752
        %6010 = vmatpush1.bf16.msra.mxu0 %v5751
        %6011 = vmatprep.subr.bf16.mxu0 %v5756
        %6012 = vmatpush1.bf16.msra.mxu0 %v5755
        %6013 = vmatprep.subr.bf16.mxu0 %v5760
        %6014 = vmatpush1.bf16.msra.mxu0 %v5759
        %6015 = vmatprep.subr.bf16.mxu0 %v5764
        %6016 = vmatpush1.bf16.msra.mxu0 %v5763
        %6017 = vmatprep.subr.bf16.mxu0 %v5768
        %6018 = vmatpush1.bf16.msra.mxu0 %v5767
        %6019 = vmatprep.subr.bf16.mxu0 %v5772
        %6020 = vmatpush1.bf16.msra.mxu0 %v5771
        %6021 = vmatprep.subr.bf16.mxu0 %v5776
        %6022 = vmatpush1.bf16.msra.mxu0 %v5775
        %6023 = vmatprep.subr.bf16.mxu0 %v5780
        %6024 = vmatpush1.bf16.msra.mxu0 %v5779
        %6025 = vmatprep.subr.bf16.mxu0 %v5784
        %6026 = vmatpush1.bf16.msra.mxu0 %v5783
        %6027 = vmatprep.mubr.bf16.mxu0 %v2748
        %6028 = vmatmul.mubr.bf16.gmra.mrb[0].mxu0 %v2747
        %v6029 = vpop.f32.mrb[0].mxu0
        %v6030 = vadd.f32 0.0, %v6029
        %v6031 = vpop.f32.mrb[0].mxu0
        %v6032 = vadd.f32 0.0, %v6031
        %v6033 = vpop.f32.mrb[0].mxu0
        %v6034 = vpop.f32.mrb[0].mxu0
        %6035 = vdwg.mxu0
        %6036 = vmatprep.subr.bf16.mxu0 %v5788
        %6037 = vmatpush1.bf16.msra.mxu0 %v5787
        %6038 = vmatprep.subr.bf16.mxu0 %v5792
        %6039 = vmatpush1.bf16.msra.mxu0 %v5791
        %6040 = vmatprep.subr.bf16.mxu0 %v5796
        %6041 = vmatpush1.bf16.msra.mxu0 %v5795
        %6042 = vmatprep.subr.bf16.mxu0 %v5800
        %6043 = vmatpush1.bf16.msra.mxu0 %v5799
        %6044 = vmatprep.subr.bf16.mxu0 %v5804
        %6045 = vmatpush1.bf16.msra.mxu0 %v5803
        %6046 = vmatprep.subr.bf16.mxu0 %v5808
        %6047 = vmatpush1.bf16.msra.mxu0 %v5807
        %6048 = vmatprep.subr.bf16.mxu0 %v5812
        %6049 = vmatpush1.bf16.msra.mxu0 %v5811
        %6050 = vmatprep.subr.bf16.mxu0 %v5816
        %6051 = vmatpush1.bf16.msra.mxu0 %v5815
        %6052 = vmatprep.subr.bf16.mxu0 0
        %6053 = vmatpush1.bf16.msra.mxu0 0
        %6054 = vmatprep.subr.bf16.mxu0 0
        %6055 = vmatpush1.bf16.msra.mxu0 0
        %6056 = vmatprep.subr.bf16.mxu0 0
        %6057 = vmatpush1.bf16.msra.mxu0 0
        %6058 = vmatprep.subr.bf16.mxu0 0
        %6059 = vmatpush1.bf16.msra.mxu0 0
        %6060 = vmatprep.subr.bf16.mxu0 0
        %6061 = vmatpush1.bf16.msra.mxu0 0
        %6062 = vmatprep.subr.bf16.mxu0 0
        %6063 = vmatpush1.bf16.msra.mxu0 0
        %6064 = vmatprep.subr.bf16.mxu0 0
        %6065 = vmatpush1.bf16.msra.mxu0 0
        %6066 = vmatprep.subr.bf16.mxu0 0
        %6067 = vmatpush1.bf16.msra.mxu0 0
        %6068 = vmatprep.mubr.bf16.mxu0 0
        %6069 = vmatmul.mubr.bf16.gmra.mrb[0].mxu0 %v2749
        %v6070 = vpop.f32.mrb[0].mxu0
        %v6071 = vadd.f32 %v6030, %v6070
        %v6072 = vpop.f32.mrb[0].mxu0
        %v6073 = vadd.f32 %v6032, %v6072
        %v6074 = vpop.f32.mrb[0].mxu0
        %v6075 = vpop.f32.mrb[0].mxu0
        %6076 = vdwg.mxu0
        %v6077 = vpack.c.bf16 %v5991, %v5989
        %v6078 = vpack.c.bf16 %v6073, %v6071
        %6080 = vset.pattern.permute.xlu0 0
        %6081 = vperm.xlu0 %6080, %v2737
        %v6082 = vpop.permute.xlu0 %6081
        %6085 = vset.pattern.permute.xlu0 0
        %6086 = vperm.xlu0 %6085, %v2738
        %v6087 = vpop.permute.xlu0 %6086
        %v6091 = vunpack.c.l.b16 %v2735
        %v6092 = vunpack.c.l.b16 %v2736
        %v6093 = vpack.c.b16 %v6092, %v6091
        %vm6094 = vcmask 261120
        %v6096 = vsel %vm6094, %v6093, 0
        %6098 = vmatprep.subr.bf16.mxu0 0
        %6099 = vmatpush1.bf16.msra.mxu0 %v6077
        %6100 = vmatprep.subr.bf16.mxu0 0
        %6101 = vmatpush1.bf16.msra.mxu0 %v6078
        %6102 = vmatprep.subr.bf16.mxu0 0
        %6103 = vmatpush1.bf16.msra.mxu0 0
        %6104 = vmatprep.subr.bf16.mxu0 0
        %6105 = vmatpush1.bf16.msra.mxu0 0
        %6106 = vmatprep.subr.bf16.mxu0 0
        %6107 = vmatpush1.bf16.msra.mxu0 0
        %6108 = vmatprep.subr.bf16.mxu0 0
        %6109 = vmatpush1.bf16.msra.mxu0 0
        %6110 = vmatprep.subr.bf16.mxu0 0
        %6111 = vmatpush1.bf16.msra.mxu0 0
        %6112 = vmatprep.subr.bf16.mxu0 0
        %6113 = vmatpush1.bf16.msra.mxu0 0
        %6114 = vmatprep.subr.bf16.mxu0 0
        %6115 = vmatpush1.bf16.msra.mxu0 0
        %6116 = vmatprep.subr.bf16.mxu0 0
        %6117 = vmatpush1.bf16.msra.mxu0 0
        %6118 = vmatprep.subr.bf16.mxu0 0
        %6119 = vmatpush1.bf16.msra.mxu0 0
        %6120 = vmatprep.subr.bf16.mxu0 0
        %6121 = vmatpush1.bf16.msra.mxu0 0
        %6122 = vmatprep.subr.bf16.mxu0 0
        %6123 = vmatpush1.bf16.msra.mxu0 0
        %6124 = vmatprep.subr.bf16.mxu0 0
        %6125 = vmatpush1.bf16.msra.mxu0 0
        %6126 = vmatprep.subr.bf16.mxu0 0
        %6127 = vmatpush1.bf16.msra.mxu0 0
        %6128 = vmatprep.subr.bf16.mxu0 0
        %6129 = vmatpush1.bf16.msra.mxu0 0
        %6130 = vmatprep.mubr.bf16.mxu0 0
        %6131 = vmatmul.mubr.bf16.gmra.mrb[0].mxu0 %v6096
        %v6132 = vpop.f32.mrb[0].mxu0
        %v6133 = vadd.f32 %v6082, %v6132
        %v6134 = vpop.f32.mrb[0].mxu0
        %v6135 = vpop.f32.mrb[0].mxu0
        %v6136 = vadd.f32 %v6087, %v6135
        %v6137 = vpop.f32.mrb[0].mxu0
        %6138 = vdwg.mxu0
        %v6139 = vmul.f32 %v6133, 0.2
        %v6140 = vmul.f32 %v6136, 0.2
        %v6141 = vmax.f32 %v6133, %v6139
        %v6142 = vmax.f32 %v6136, %v6140
        %v6144 = vlaneseq
        %v6145 = vshrl.u32 %v6144, 7
        %v6146 = vsub.s32 0, %v6145
        %v6147 = vrot.slane %v733, %v6146
        %v6149 = vmul.f32 %v6141, %v6147
        %v6150 = vmul.f32 %v6142, %v6147
        %v6151 = vld [vmem:[%s16] sm:$0xff]
        %v6152 = vld [vmem:[%s16 + $0x8] sm:$0xff]
        %v6153 = vld [vmem:[%s16 + $0x10] sm:$0xff]
        %v6154 = vld [vmem:[%s16 + $0x18] sm:$0xff]
        %v6155 = vld [vmem:[%s16 + $0x20] sm:$0xff]
        %v6156 = vld [vmem:[%s16 + $0x28] sm:$0xff]
        %v6157 = vld [vmem:[%s16 + $0x30] sm:$0xff]
        %v6158 = vld [vmem:[%s16 + $0x38] sm:$0xff]
        %v6159 = vld [vmem:[%s17] sm:$0xff]
        %v6160 = vld [vmem:[%s17 + $0x8] sm:$0xff]
        %v6161 = vld [vmem:[%s17 + $0x10] sm:$0xff]
        %v6162 = vld [vmem:[%s17 + $0x18] sm:$0xff]
        %v6163 = vld [vmem:[%s17 + $0x20] sm:$0xff]
        %v6164 = vld [vmem:[%s17 + $0x28] sm:$0xff]
        %v6165 = vld [vmem:[%s17 + $0x30] sm:$0xff]
        %v6166 = vld [vmem:[%s17 + $0x38] sm:$0xff]
        %v6167 = vpack.c.bf16 %v6150, %v6149
        %6169 = vrot.lane.b32.xlu0 %v6167, 11
        %v6170 = vpop.permute.xlu0 %6169
        %6173 = vrot.lane.b32.xlu0 %v6167, 10
        %v6174 = vpop.permute.xlu0 %6173
        %6177 = vrot.lane.b32.xlu0 %v6167, 9
        %v6178 = vpop.permute.xlu0 %6177
        %6181 = vrot.lane.b32.xlu0 %v6167, 1
        %v6182 = vpop.permute.xlu0 %6181
        %6185 = vrot.lane.b32.xlu0 %v6167, 127
        %v6186 = vpop.permute.xlu0 %6185
        %6189 = vrot.lane.b32.xlu0 %v6167, 119
        %v6190 = vpop.permute.xlu0 %6189
        %6193 = vrot.lane.b32.xlu0 %v6167, 118
        %v6194 = vpop.permute.xlu0 %6193
        %6197 = vrot.lane.b32.xlu0 %v6167, 117
        %v6198 = vpop.permute.xlu0 %6197
        %6202 = vset.pattern.permute.xlu0 0
        %6203 = vperm.xlu0 %6202, %v6159
        %v6204 = vpop.permute.xlu0 %6203
        %6207 = vset.pattern.permute.xlu0 0
        %6208 = vperm.xlu0 %6207, %v6160
        %v6209 = vpop.permute.xlu0 %6208
        %v6213 = vunpack.c.l.b16 %v6151
        %v6214 = vunpack.c.h.b16 %v6151
        %v6215 = vunpack.c.l.b16 %v6152
        %v6216 = vunpack.c.h.b16 %v6152
        %v6217 = vpack.c.b16 %v6215, %v6213
        %v6218 = vpack.c.b16 %v6216, %v6214
        %vm6220 = vcmask 130048
        %v6222 = vsel %vm6220, %v6218, 0
        %6224 = vmatprep.subr.bf16.mxu0 0
        %6225 = vmatpush1.bf16.msra.mxu0 %v6170
        %6226 = vmatprep.subr.bf16.mxu0 0
        %6227 = vmatpush1.bf16.msra.mxu0 %v6174
        %6228 = vmatprep.subr.bf16.mxu0 0
        %6229 = vmatpush1.bf16.msra.mxu0 %v6178
        %6230 = vmatprep.subr.bf16.mxu0 0
        %6231 = vmatpush1.bf16.msra.mxu0 %v6182
        %6232 = vmatprep.subr.bf16.mxu0 0
        %6233 = vmatpush1.bf16.msra.mxu0 %v6167
        %6234 = vmatprep.subr.bf16.mxu0 0
        %6235 = vmatpush1.bf16.msra.mxu0 %v6186
        %6236 = vmatprep.subr.bf16.mxu0 0
        %6237 = vmatpush1.bf16.msra.mxu0 %v6190
        %6238 = vmatprep.subr.bf16.mxu0 0
        %6239 = vmatpush1.bf16.msra.mxu0 %v6194
        %6240 = vmatprep.subr.bf16.mxu0 0
        %6241 = vmatpush1.bf16.msra.mxu0 %v6198
        %6242 = vmatprep.subr.bf16.mxu0 0
        %6243 = vmatpush1.bf16.msra.mxu0 0
        %6244 = vmatprep.subr.bf16.mxu0 0
        %6245 = vmatpush1.bf16.msra.mxu0 0
        %6246 = vmatprep.subr.bf16.mxu0 0
        %6247 = vmatpush1.bf16.msra.mxu0 0
        %6248 = vmatprep.subr.bf16.mxu0 0
        %6249 = vmatpush1.bf16.msra.mxu0 0
        %6250 = vmatprep.subr.bf16.mxu0 0
        %6251 = vmatpush1.bf16.msra.mxu0 0
        %6252 = vmatprep.subr.bf16.mxu0 0
        %6253 = vmatpush1.bf16.msra.mxu0 0
        %6254 = vmatprep.subr.bf16.mxu0 0
        %6255 = vmatpush1.bf16.msra.mxu0 0
        %6256 = vmatprep.mubr.bf16.mxu0 %v6222
        %6257 = vmatmul.mubr.bf16.gmra.mrb[0].mxu0 %v6217
        %v6258 = vpop.f32.mrb[0].mxu0
        %v6259 = vadd.f32 %v6204, %v6258
        %v6260 = vpop.f32.mrb[0].mxu0
        %v6261 = vpop.f32.mrb[0].mxu0
        %v6262 = vadd.f32 %v6209, %v6261
        %v6263 = vpop.f32.mrb[0].mxu0
        %6264 = vdwg.mxu0
        %v6265 = vmul.f32 %v6259, 0.2
        %v6266 = vmul.f32 %v6262, 0.2
        %v6267 = vmax.f32 %v6259, %v6265
        %v6268 = vmax.f32 %v6262, %v6266
        %v6269 = vmul.f32 %v6267, %v6147
        %v6270 = vmul.f32 %v6268, %v6147
        %v6271 = vpack.c.bf16 %v6270, %v6269
        %6273 = vrot.lane.b32.xlu0 %v6271, 11
        %v6274 = vpop.permute.xlu0 %6273
        %6277 = vrot.lane.b32.xlu0 %v6271, 10
        %v6278 = vpop.permute.xlu0 %6277
        %6281 = vrot.lane.b32.xlu0 %v6271, 9
        %v6282 = vpop.permute.xlu0 %6281
        %6285 = vrot.lane.b32.xlu0 %v6271, 1
        %v6286 = vpop.permute.xlu0 %6285
        %6289 = vrot.lane.b32.xlu0 %v6271, 127
        %v6290 = vpop.permute.xlu0 %6289
        %6293 = vrot.lane.b32.xlu0 %v6271, 119
        %v6294 = vpop.permute.xlu0 %6293
        %6297 = vrot.lane.b32.xlu0 %v6271, 118
        %v6298 = vpop.permute.xlu0 %6297
        %6301 = vrot.lane.b32.xlu0 %v6271, 117
        %v6302 = vpop.permute.xlu0 %6301
        %6306 = vset.pattern.permute.xlu0 0
        %6307 = vperm.xlu0 %6306, %v6161
        %v6308 = vpop.permute.xlu0 %6307
        %6311 = vset.pattern.permute.xlu0 0
        %6312 = vperm.xlu0 %6311, %v6162
        %v6313 = vpop.permute.xlu0 %6312
        %v6317 = vunpack.c.l.b16 %v6153
        %v6318 = vunpack.c.h.b16 %v6153
        %v6319 = vunpack.c.l.b16 %v6154
        %v6320 = vunpack.c.h.b16 %v6154
        %v6321 = vpack.c.b16 %v6319, %v6317
        %v6322 = vpack.c.b16 %v6320, %v6318
        %v6325 = vsel %vm6220, %v6322, 0
        %6327 = vmatprep.subr.bf16.mxu0 0
        %6328 = vmatpush1.bf16.msra.mxu0 %v6274
        %6329 = vmatprep.subr.bf16.mxu0 0
        %6330 = vmatpush1.bf16.msra.mxu0 %v6278
        %6331 = vmatprep.subr.bf16.mxu0 0
        %6332 = vmatpush1.bf16.msra.mxu0 %v6282
        %6333 = vmatprep.subr.bf16.mxu0 0
        %6334 = vmatpush1.bf16.msra.mxu0 %v6286
        %6335 = vmatprep.subr.bf16.mxu0 0
        %6336 = vmatpush1.bf16.msra.mxu0 %v6271
        %6337 = vmatprep.subr.bf16.mxu0 0
        %6338 = vmatpush1.bf16.msra.mxu0 %v6290
        %6339 = vmatprep.subr.bf16.mxu0 0
        %6340 = vmatpush1.bf16.msra.mxu0 %v6294
        %6341 = vmatprep.subr.bf16.mxu0 0
        %6342 = vmatpush1.bf16.msra.mxu0 %v6298
        %6343 = vmatprep.subr.bf16.mxu0 0
        %6344 = vmatpush1.bf16.msra.mxu0 %v6302
        %6345 = vmatprep.subr.bf16.mxu0 0
        %6346 = vmatpush1.bf16.msra.mxu0 0
        %6347 = vmatprep.subr.bf16.mxu0 0
        %6348 = vmatpush1.bf16.msra.mxu0 0
        %6349 = vmatprep.subr.bf16.mxu0 0
        %6350 = vmatpush1.bf16.msra.mxu0 0
        %6351 = vmatprep.subr.bf16.mxu0 0
        %6352 = vmatpush1.bf16.msra.mxu0 0
        %6353 = vmatprep.subr.bf16.mxu0 0
        %6354 = vmatpush1.bf16.msra.mxu0 0
        %6355 = vmatprep.subr.bf16.mxu0 0
        %6356 = vmatpush1.bf16.msra.mxu0 0
        %6357 = vmatprep.subr.bf16.mxu0 0
        %6358 = vmatpush1.bf16.msra.mxu0 0
        %6359 = vmatprep.mubr.bf16.mxu0 %v6325
        %6360 = vmatmul.mubr.bf16.gmra.mrb[0].mxu0 %v6321
        %v6361 = vpop.f32.mrb[0].mxu0
        %v6362 = vadd.f32 %v6308, %v6361
        %v6363 = vpop.f32.mrb[0].mxu0
        %v6364 = vpop.f32.mrb[0].mxu0
        %v6365 = vadd.f32 %v6313, %v6364
        %v6366 = vpop.f32.mrb[0].mxu0
        %6367 = vdwg.mxu0
        %v6368 = vmul.f32 %v6362, 0.2
        %v6369 = vmul.f32 %v6365, 0.2
        %v6370 = vmax.f32 %v6362, %v6368
        %v6371 = vmax.f32 %v6365, %v6369
        %v6372 = vmul.f32 %v6370, %v6147
        %v6373 = vmul.f32 %v6371, %v6147
        %v6374 = vadd.f32 %v6149, %v6372
        %v6375 = vadd.f32 %v6150, %v6373
        %v6376 = vpack.c.bf16 %v6375, %v6374
        %6378 = vrot.lane.b32.xlu0 %v6376, 11
        %v6379 = vpop.permute.xlu0 %6378
        %6382 = vrot.lane.b32.xlu0 %v6376, 10
        %v6383 = vpop.permute.xlu0 %6382
        %6386 = vrot.lane.b32.xlu0 %v6376, 9
        %v6387 = vpop.permute.xlu0 %6386
        %6390 = vrot.lane.b32.xlu0 %v6376, 1
        %v6391 = vpop.permute.xlu0 %6390
        %6394 = vrot.lane.b32.xlu0 %v6376, 127
        %v6395 = vpop.permute.xlu0 %6394
        %6398 = vrot.lane.b32.xlu0 %v6376, 119
        %v6399 = vpop.permute.xlu0 %6398
        %6402 = vrot.lane.b32.xlu0 %v6376, 118
        %v6403 = vpop.permute.xlu0 %6402
        %6406 = vrot.lane.b32.xlu0 %v6376, 117
        %v6407 = vpop.permute.xlu0 %6406
        %6411 = vset.pattern.permute.xlu0 0
        %6412 = vperm.xlu0 %6411, %v6163
        %v6413 = vpop.permute.xlu0 %6412
        %6416 = vset.pattern.permute.xlu0 0
        %6417 = vperm.xlu0 %6416, %v6164
        %v6418 = vpop.permute.xlu0 %6417
        %v6422 = vunpack.c.l.b16 %v6155
        %v6423 = vunpack.c.h.b16 %v6155
        %v6424 = vunpack.c.l.b16 %v6156
        %v6425 = vunpack.c.h.b16 %v6156
        %v6426 = vpack.c.b16 %v6424, %v6422
        %v6427 = vpack.c.b16 %v6425, %v6423
        %v6430 = vsel %vm6220, %v6427, 0
        %6432 = vmatprep.subr.bf16.mxu0 0
        %6433 = vmatpush1.bf16.msra.mxu0 %v6379
        %6434 = vmatprep.subr.bf16.mxu0 0
        %6435 = vmatpush1.bf16.msra.mxu0 %v6383
        %6436 = vmatprep.subr.bf16.mxu0 0
        %6437 = vmatpush1.bf16.msra.mxu0 %v6387
        %6438 = vmatprep.subr.bf16.mxu0 0
        %6439 = vmatpush1.bf16.msra.mxu0 %v6391
        %6440 = vmatprep.subr.bf16.mxu0 0
        %6441 = vmatpush1.bf16.msra.mxu0 %v6376
        %6442 = vmatprep.subr.bf16.mxu0 0
        %6443 = vmatpush1.bf16.msra.mxu0 %v6395
        %6444 = vmatprep.subr.bf16.mxu0 0
        %6445 = vmatpush1.bf16.msra.mxu0 %v6399
        %6446 = vmatprep.subr.bf16.mxu0 0
        %6447 = vmatpush1.bf16.msra.mxu0 %v6403
        %6448 = vmatprep.subr.bf16.mxu0 0
        %6449 = vmatpush1.bf16.msra.mxu0 %v6407
        %6450 = vmatprep.subr.bf16.mxu0 0
        %6451 = vmatpush1.bf16.msra.mxu0 0
        %6452 = vmatprep.subr.bf16.mxu0 0
        %6453 = vmatpush1.bf16.msra.mxu0 0
        %6454 = vmatprep.subr.bf16.mxu0 0
        %6455 = vmatpush1.bf16.msra.mxu0 0
        %6456 = vmatprep.subr.bf16.mxu0 0
        %6457 = vmatpush1.bf16.msra.mxu0 0
        %6458 = vmatprep.subr.bf16.mxu0 0
        %6459 = vmatpush1.bf16.msra.mxu0 0
        %6460 = vmatprep.subr.bf16.mxu0 0
        %6461 = vmatpush1.bf16.msra.mxu0 0
        %6462 = vmatprep.subr.bf16.mxu0 0
        %6463 = vmatpush1.bf16.msra.mxu0 0
        %6464 = vmatprep.mubr.bf16.mxu0 %v6430
        %6465 = vmatmul.mubr.bf16.gmra.mrb[0].mxu0 %v6426
        %v6466 = vpop.f32.mrb[0].mxu0
        %v6467 = vadd.f32 %v6413, %v6466
        %v6468 = vpop.f32.mrb[0].mxu0
        %v6469 = vpop.f32.mrb[0].mxu0
        %v6470 = vadd.f32 %v6418, %v6469
        %v6471 = vpop.f32.mrb[0].mxu0
        %6472 = vdwg.mxu0
        %v6473 = vmul.f32 %v6467, 0.2
        %v6474 = vmul.f32 %v6470, 0.2
        %v6475 = vmax.f32 %v6467, %v6473
        %v6476 = vmax.f32 %v6470, %v6474
        %v6477 = vmul.f32 %v6475, %v6147
        %v6478 = vmul.f32 %v6476, %v6147
        %v6479 = vpack.c.bf16 %v6478, %v6477
        %6481 = vrot.lane.b32.xlu0 %v6479, 11
        %v6482 = vpop.permute.xlu0 %6481
        %6485 = vrot.lane.b32.xlu0 %v6479, 10
        %v6486 = vpop.permute.xlu0 %6485
        %6489 = vrot.lane.b32.xlu0 %v6479, 9
        %v6490 = vpop.permute.xlu0 %6489
        %6493 = vrot.lane.b32.xlu0 %v6479, 1
        %v6494 = vpop.permute.xlu0 %6493
        %6497 = vrot.lane.b32.xlu0 %v6479, 127
        %v6498 = vpop.permute.xlu0 %6497
        %6501 = vrot.lane.b32.xlu0 %v6479, 119
        %v6502 = vpop.permute.xlu0 %6501
        %6505 = vrot.lane.b32.xlu0 %v6479, 118
        %v6506 = vpop.permute.xlu0 %6505
        %6509 = vrot.lane.b32.xlu0 %v6479, 117
        %v6510 = vpop.permute.xlu0 %6509
        %6514 = vset.pattern.permute.xlu0 0
        %6515 = vperm.xlu0 %6514, %v6165
        %v6516 = vpop.permute.xlu0 %6515
        %6519 = vset.pattern.permute.xlu0 0
        %6520 = vperm.xlu0 %6519, %v6166
        %v6521 = vpop.permute.xlu0 %6520
        %v6525 = vunpack.c.l.b16 %v6157
        %v6526 = vunpack.c.h.b16 %v6157
        %v6527 = vunpack.c.l.b16 %v6158
        %v6528 = vunpack.c.h.b16 %v6158
        %v6529 = vpack.c.b16 %v6527, %v6525
        %v6530 = vpack.c.b16 %v6528, %v6526
        %v6533 = vsel %vm6220, %v6530, 0
        %6535 = vmatprep.subr.bf16.mxu0 0
        %6536 = vmatpush1.bf16.msra.mxu0 %v6482
        %6537 = vmatprep.subr.bf16.mxu0 0
        %6538 = vmatpush1.bf16.msra.mxu0 %v6486
        %6539 = vmatprep.subr.bf16.mxu0 0
        %6540 = vmatpush1.bf16.msra.mxu0 %v6490
        %6541 = vmatprep.subr.bf16.mxu0 0
        %6542 = vmatpush1.bf16.msra.mxu0 %v6494
        %6543 = vmatprep.subr.bf16.mxu0 0
        %6544 = vmatpush1.bf16.msra.mxu0 %v6479
        %6545 = vmatprep.subr.bf16.mxu0 0
        %6546 = vmatpush1.bf16.msra.mxu0 %v6498
        %6547 = vmatprep.subr.bf16.mxu0 0
        %6548 = vmatpush1.bf16.msra.mxu0 %v6502
        %6549 = vmatprep.subr.bf16.mxu0 0
        %6550 = vmatpush1.bf16.msra.mxu0 %v6506
        %6551 = vmatprep.subr.bf16.mxu0 0
        %6552 = vmatpush1.bf16.msra.mxu0 %v6510
        %6553 = vmatprep.subr.bf16.mxu0 0
        %6554 = vmatpush1.bf16.msra.mxu0 0
        %6555 = vmatprep.subr.bf16.mxu0 0
        %6556 = vmatpush1.bf16.msra.mxu0 0
        %6557 = vmatprep.subr.bf16.mxu0 0
        %6558 = vmatpush1.bf16.msra.mxu0 0
        %6559 = vmatprep.subr.bf16.mxu0 0
        %6560 = vmatpush1.bf16.msra.mxu0 0
        %6561 = vmatprep.subr.bf16.mxu0 0
        %6562 = vmatpush1.bf16.msra.mxu0 0
        %6563 = vmatprep.subr.bf16.mxu0 0
        %6564 = vmatpush1.bf16.msra.mxu0 0
        %6565 = vmatprep.subr.bf16.mxu0 0
        %6566 = vmatpush1.bf16.msra.mxu0 0
        %6567 = vmatprep.mubr.bf16.mxu0 %v6533
        %6568 = vmatmul.mubr.bf16.gmra.mrb[0].mxu0 %v6529
        %v6569 = vpop.f32.mrb[0].mxu0
        %v6570 = vadd.f32 %v6516, %v6569
        %v6571 = vpop.f32.mrb[0].mxu0
        %v6572 = vpop.f32.mrb[0].mxu0
        %v6573 = vadd.f32 %v6521, %v6572
        %v6574 = vpop.f32.mrb[0].mxu0
        %6575 = vdwg.mxu0
        %v6576 = vmul.f32 %v6570, 0.2
        %v6577 = vmul.f32 %v6573, 0.2
        %v6578 = vmax.f32 %v6570, %v6576
        %v6579 = vmax.f32 %v6573, %v6577
        %v6580 = vmul.f32 %v6578, %v6147
        %v6581 = vmul.f32 %v6579, %v6147
        %v6582 = vadd.f32 %v6374, %v6580
        %v6583 = vadd.f32 %v6375, %v6581
        %v6584 = vld [vmem:[%s18] sm:$0xf]
        %v6585 = vld [vmem:[%s18 + $0x4] sm:$0xf]
        %v6586 = vld [vmem:[%s18 + $0x8] sm:$0xf]
        %v6587 = vld [vmem:[%s18 + $0xc] sm:$0xf]
        %v6588 = vld [vmem:[%s19] sm:$0xff]
        %v6589 = vld [vmem:[%s19 + $0x8] sm:$0xff]
        %v6590 = vld [vmem:[%s19 + $0x10] sm:$0xff]
        %v6591 = vld [vmem:[%s19 + $0x18] sm:$0xff]
        %v6592 = vld [vmem:[%s20] sm:$0xf]
        %v6593 = vld [vmem:[%s20 + $0x4] sm:$0xf]
        %v6594 = vld [vmem:[%s20 + $0x8] sm:$0xf]
        %v6595 = vld [vmem:[%s20 + $0xc] sm:$0xf]
        %v6596 = vld [vmem:[%s21] sm:$0xff]
        %v6597 = vld [vmem:[%s21 + $0x8] sm:$0xff]
        %v6598 = vld [vmem:[%s21 + $0x10] sm:$0xff]
        %v6599 = vld [vmem:[%s21 + $0x18] sm:$0xff]
        %v6600 = vpack.c.bf16 %v6583, %v6582
        %v6633 = vunpack.c.l.b16 %v1247
        %v6634 = vunpack.c.h.b16 %v1247
        %v6635 = vunpack.c.l.b16 %v1248
        %v6636 = vunpack.c.h.b16 %v1248
        %v6637 = vunpack.c.l.b16 %v1249
        %v6638 = vunpack.c.h.b16 %v1249
        %v6639 = vunpack.c.l.b16 %v1250
        %v6640 = vunpack.c.h.b16 %v1250
        %v6641 = vunpack.c.l.b16 %v1251
        %v6642 = vunpack.c.h.b16 %v1251
        %v6643 = vunpack.c.l.b16 %v1252
        %v6644 = vunpack.c.h.b16 %v1252
        %v6645 = vunpack.c.l.b16 %v1253
        %v6646 = vunpack.c.h.b16 %v1253
        %v6647 = vunpack.c.l.b16 %v1254
        %v6648 = vunpack.c.h.b16 %v1254
        %v6649 = vunpack.c.l.b16 %v1255
        %v6650 = vunpack.c.h.b16 %v1255
        %v6651 = vunpack.c.l.b16 %v1256
        %v6652 = vunpack.c.h.b16 %v1256
        %v6653 = vunpack.c.l.b16 %v1257
        %v6654 = vunpack.c.h.b16 %v1257
        %v6655 = vunpack.c.l.b16 %v1258
        %v6656 = vunpack.c.h.b16 %v1258
        %v6657 = vunpack.c.l.b16 %v1259
        %v6658 = vunpack.c.h.b16 %v1259
        %v6659 = vunpack.c.l.b16 %v1260
        %v6660 = vunpack.c.h.b16 %v1260
        %v6661 = vunpack.c.l.b16 %v1261
        %v6662 = vunpack.c.h.b16 %v1261
        %v6663 = vunpack.c.l.b16 %v1262
        %v6664 = vunpack.c.h.b16 %v1262
        %v6665 = vunpack.c.l.b16 %v1263
        %v6666 = vunpack.c.h.b16 %v1263
        %v6667 = vunpack.c.l.b16 %v1264
        %v6668 = vunpack.c.h.b16 %v1264
        %v6669 = vunpack.c.l.b16 %v1265
        %v6670 = vunpack.c.h.b16 %v1265
        %v6671 = vunpack.c.l.b16 %v1266
        %v6672 = vunpack.c.h.b16 %v1266
        %v6673 = vunpack.c.l.b16 %v1267
        %v6674 = vunpack.c.h.b16 %v1267
        %v6675 = vunpack.c.l.b16 %v1268
        %v6676 = vunpack.c.h.b16 %v1268
        %v6677 = vunpack.c.l.b16 %v1269
        %v6678 = vunpack.c.h.b16 %v1269
        %v6679 = vunpack.c.l.b16 %v1270
        %v6680 = vunpack.c.h.b16 %v1270
        %v6681 = vunpack.c.l.b16 %v1271
        %v6682 = vunpack.c.h.b16 %v1271
        %v6683 = vunpack.c.l.b16 %v1272
        %v6684 = vunpack.c.h.b16 %v1272
        %v6685 = vunpack.c.l.b16 %v1273
        %v6686 = vunpack.c.h.b16 %v1273
        %v6687 = vunpack.c.l.b16 %v1274
        %v6688 = vunpack.c.h.b16 %v1274
        %v6689 = vunpack.c.l.b16 %v1275
        %v6690 = vunpack.c.h.b16 %v1275
        %v6691 = vunpack.c.l.b16 %v1276
        %v6692 = vunpack.c.h.b16 %v1276
        %v6693 = vunpack.c.l.b16 %v1277
        %v6694 = vunpack.c.h.b16 %v1277
        %v6695 = vunpack.c.l.b16 %v1278
        %v6696 = vunpack.c.h.b16 %v1278
        %v6697 = vpack.c.b16 %v6637, %v6633
        %v6698 = vpack.c.b16 %v6638, %v6634
        %v6699 = vpack.c.b16 %v6639, %v6635
        %v6700 = vpack.c.b16 %v6640, %v6636
        %v6701 = vpack.c.b16 %v6645, %v6641
        %v6702 = vpack.c.b16 %v6646, %v6642
        %v6703 = vpack.c.b16 %v6647, %v6643
        %v6704 = vpack.c.b16 %v6648, %v6644
        %v6705 = vpack.c.b16 %v6653, %v6649
        %v6706 = vpack.c.b16 %v6654, %v6650
        %v6707 = vpack.c.b16 %v6655, %v6651
        %v6708 = vpack.c.b16 %v6656, %v6652
        %v6709 = vpack.c.b16 %v6661, %v6657
        %v6710 = vpack.c.b16 %v6662, %v6658
        %v6711 = vpack.c.b16 %v6663, %v6659
        %v6712 = vpack.c.b16 %v6664, %v6660
        %v6713 = vpack.c.b16 %v6669, %v6665
        %v6714 = vpack.c.b16 %v6670, %v6666
        %v6715 = vpack.c.b16 %v6671, %v6667
        %v6716 = vpack.c.b16 %v6672, %v6668
        %v6717 = vpack.c.b16 %v6677, %v6673
        %v6718 = vpack.c.b16 %v6678, %v6674
        %v6719 = vpack.c.b16 %v6679, %v6675
        %v6720 = vpack.c.b16 %v6680, %v6676
        %v6721 = vpack.c.b16 %v6685, %v6681
        %v6722 = vpack.c.b16 %v6686, %v6682
        %v6723 = vpack.c.b16 %v6687, %v6683
        %v6724 = vpack.c.b16 %v6688, %v6684
        %v6725 = vpack.c.b16 %v6693, %v6689
        %v6726 = vpack.c.b16 %v6694, %v6690
        %v6727 = vpack.c.b16 %v6695, %v6691
        %v6728 = vpack.c.b16 %v6696, %v6692
        %6761 = vmatprep.subr.bf16.mxu0 %v6698
        %6762 = vmatpush1.bf16.msra.mxu0 %v6697
        %6763 = vmatprep.subr.bf16.mxu0 %v6702
        %6764 = vmatpush1.bf16.msra.mxu0 %v6701
        %6765 = vmatprep.subr.bf16.mxu0 %v6706
        %6766 = vmatpush1.bf16.msra.mxu0 %v6705
        %6767 = vmatprep.subr.bf16.mxu0 %v6710
        %6768 = vmatpush1.bf16.msra.mxu0 %v6709
        %6769 = vmatprep.subr.bf16.mxu0 %v6714
        %6770 = vmatpush1.bf16.msra.mxu0 %v6713
        %6771 = vmatprep.subr.bf16.mxu0 %v6718
        %6772 = vmatpush1.bf16.msra.mxu0 %v6717
        %6773 = vmatprep.subr.bf16.mxu0 %v6722
        %6774 = vmatpush1.bf16.msra.mxu0 %v6721
        %6775 = vmatprep.subr.bf16.mxu0 %v6726
        %6776 = vmatpush1.bf16.msra.mxu0 %v6725
        %6777 = vmatprep.subr.bf16.mxu0 0
        %6778 = vmatpush1.bf16.msra.mxu0 0
        %6779 = vmatprep.subr.bf16.mxu0 0
        %6780 = vmatpush1.bf16.msra.mxu0 0
        %6781 = vmatprep.subr.bf16.mxu0 0
        %6782 = vmatpush1.bf16.msra.mxu0 0
        %6783 = vmatprep.subr.bf16.mxu0 0
        %6784 = vmatpush1.bf16.msra.mxu0 0
        %6785 = vmatprep.subr.bf16.mxu0 0
        %6786 = vmatpush1.bf16.msra.mxu0 0
        %6787 = vmatprep.subr.bf16.mxu0 0
        %6788 = vmatpush1.bf16.msra.mxu0 0
        %6789 = vmatprep.subr.bf16.mxu0 0
        %6790 = vmatpush1.bf16.msra.mxu0 0
        %6791 = vmatprep.subr.bf16.mxu0 0
        %6792 = vmatpush1.bf16.msra.mxu0 0
        %6793 = vmatprep.mubr.bf16.mxu0 0
        %6794 = vmatmul.mubr.bf16.gmra.mrb[0].mxu0 %v6600
        %v6795 = vpop.f32.mrb[0].mxu0
        %v6796 = vadd.f32 0.0, %v6795
        %v6797 = vpop.f32.mrb[0].mxu0
        %v6798 = vadd.f32 0.0, %v6797
        %v6799 = vpop.f32.mrb[0].mxu0
        %v6800 = vadd.f32 0.0, %v6799
        %v6801 = vpop.f32.mrb[0].mxu0
        %v6802 = vadd.f32 0.0, %v6801
        %6803 = vdwg.mxu0
        %6804 = vmatprep.subr.bf16.mxu0 %v6700
        %6805 = vmatpush1.bf16.msra.mxu0 %v6699
        %6806 = vmatprep.subr.bf16.mxu0 %v6704
        %6807 = vmatpush1.bf16.msra.mxu0 %v6703
        %6808 = vmatprep.subr.bf16.mxu0 %v6708
        %6809 = vmatpush1.bf16.msra.mxu0 %v6707
        %6810 = vmatprep.subr.bf16.mxu0 %v6712
        %6811 = vmatpush1.bf16.msra.mxu0 %v6711
        %6812 = vmatprep.subr.bf16.mxu0 %v6716
        %6813 = vmatpush1.bf16.msra.mxu0 %v6715
        %6814 = vmatprep.subr.bf16.mxu0 %v6720
        %6815 = vmatpush1.bf16.msra.mxu0 %v6719
        %6816 = vmatprep.subr.bf16.mxu0 %v6724
        %6817 = vmatpush1.bf16.msra.mxu0 %v6723
        %6818 = vmatprep.subr.bf16.mxu0 %v6728
        %6819 = vmatpush1.bf16.msra.mxu0 %v6727
        %6820 = vmatprep.subr.bf16.mxu0 0
        %6821 = vmatpush1.bf16.msra.mxu0 0
        %6822 = vmatprep.subr.bf16.mxu0 0
        %6823 = vmatpush1.bf16.msra.mxu0 0
        %6824 = vmatprep.subr.bf16.mxu0 0
        %6825 = vmatpush1.bf16.msra.mxu0 0
        %6826 = vmatprep.subr.bf16.mxu0 0
        %6827 = vmatpush1.bf16.msra.mxu0 0
        %6828 = vmatprep.subr.bf16.mxu0 0
        %6829 = vmatpush1.bf16.msra.mxu0 0
        %6830 = vmatprep.subr.bf16.mxu0 0
        %6831 = vmatpush1.bf16.msra.mxu0 0
        %6832 = vmatprep.subr.bf16.mxu0 0
        %6833 = vmatpush1.bf16.msra.mxu0 0
        %6834 = vmatprep.subr.bf16.mxu0 0
        %6835 = vmatpush1.bf16.msra.mxu0 0
        %6836 = vmatprep.mubr.bf16.mxu0 0
        %6837 = vmatmul.mubr.bf16.gmra.mrb[0].mxu0 %v6600
        %v6838 = vpop.f32.mrb[0].mxu0
        %v6839 = vadd.f32 0.0, %v6838
        %v6840 = vpop.f32.mrb[0].mxu0
        %v6841 = vadd.f32 0.0, %v6840
        %v6842 = vpop.f32.mrb[0].mxu0
        %v6843 = vadd.f32 0.0, %v6842
        %v6844 = vpop.f32.mrb[0].mxu0
        %v6845 = vadd.f32 0.0, %v6844
        %6846 = vdwg.mxu0
        %v6847 = vpack.c.bf16 %v6800, %v6796
        %v6848 = vpack.c.bf16 %v6802, %v6798
        %v6849 = vpack.c.bf16 %v6843, %v6839
        %v6850 = vpack.c.bf16 %v6845, %v6841
        %6852 = vset.pattern.permute.xlu0 0
        %6853 = vperm.xlu0 %6852, %v6596
        %v6854 = vpop.permute.xlu0 %6853
        %6857 = vset.pattern.permute.xlu0 0
        %6858 = vperm.xlu0 %6857, %v6597
        %v6859 = vpop.permute.xlu0 %6858
        %6862 = vset.pattern.permute.xlu0 0
        %6863 = vperm.xlu0 %6862, %v6598
        %v6864 = vpop.permute.xlu0 %6863
        %6867 = vset.pattern.permute.xlu0 0
        %6868 = vperm.xlu0 %6867, %v6599
        %v6869 = vpop.permute.xlu0 %6868
        %v6875 = vunpack.c.l.b16 %v6592
        %v6876 = vunpack.c.l.b16 %v6593
        %v6877 = vunpack.c.l.b16 %v6594
        %v6878 = vunpack.c.l.b16 %v6595
        %v6879 = vpack.c.b16 %v6876, %v6875
        %v6880 = vpack.c.b16 %v6878, %v6877
        %vm6881 = vcmask 523264
        %v6883 = vsel %vm6881, %v6879, 0
        %v6886 = vsel %vm6881, %v6880, 0
        %6888 = vmatprep.subr.bf16.mxu0 0
        %6889 = vmatpush1.bf16.msra.mxu0 %v6847
        %6890 = vmatprep.subr.bf16.mxu0 0
        %6891 = vmatpush1.bf16.msra.mxu0 %v6848
        %6892 = vmatprep.subr.bf16.mxu0 0
        %6893 = vmatpush1.bf16.msra.mxu0 %v6849
        %6894 = vmatprep.subr.bf16.mxu0 0
        %6895 = vmatpush1.bf16.msra.mxu0 %v6850
        %6896 = vmatprep.subr.bf16.mxu0 0
        %6897 = vmatpush1.bf16.msra.mxu0 0
        %6898 = vmatprep.subr.bf16.mxu0 0
        %6899 = vmatpush1.bf16.msra.mxu0 0
        %6900 = vmatprep.subr.bf16.mxu0 0
        %6901 = vmatpush1.bf16.msra.mxu0 0
        %6902 = vmatprep.subr.bf16.mxu0 0
        %6903 = vmatpush1.bf16.msra.mxu0 0
        %6904 = vmatprep.subr.bf16.mxu0 0
        %6905 = vmatpush1.bf16.msra.mxu0 0
        %6906 = vmatprep.subr.bf16.mxu0 0
        %6907 = vmatpush1.bf16.msra.mxu0 0
        %6908 = vmatprep.subr.bf16.mxu0 0
        %6909 = vmatpush1.bf16.msra.mxu0 0
        %6910 = vmatprep.subr.bf16.mxu0 0
        %6911 = vmatpush1.bf16.msra.mxu0 0
        %6912 = vmatprep.subr.bf16.mxu0 0
        %6913 = vmatpush1.bf16.msra.mxu0 0
        %6914 = vmatprep.subr.bf16.mxu0 0
        %6915 = vmatpush1.bf16.msra.mxu0 0
        %6916 = vmatprep.subr.bf16.mxu0 0
        %6917 = vmatpush1.bf16.msra.mxu0 0
        %6918 = vmatprep.subr.bf16.mxu0 0
        %6919 = vmatpush1.bf16.msra.mxu0 0
        %6920 = vmatprep.mubr.bf16.mxu0 0
        %6921 = vmatmul.mubr.bf16.gmra.mrb[0].mxu0 %v6883
        %v6922 = vpop.f32.mrb[0].mxu0
        %v6923 = vadd.f32 %v6854, %v6922
        %v6924 = vpop.f32.mrb[0].mxu0
        %v6925 = vpop.f32.mrb[0].mxu0
        %v6926 = vadd.f32 %v6859, %v6925
        %v6927 = vpop.f32.mrb[0].mxu0
        %6928 = vmatprep.mubr.bf16.mxu0 0
        %6929 = vmatmul.mubr.bf16.gmra.mrb[0].mxu0 %v6886
        %v6930 = vpop.f32.mrb[0].mxu0
        %v6931 = vadd.f32 %v6864, %v6930
        %v6932 = vpop.f32.mrb[0].mxu0
        %v6933 = vpop.f32.mrb[0].mxu0
        %v6934 = vadd.f32 %v6869, %v6933
        %v6935 = vpop.f32.mrb[0].mxu0
        %6936 = vdwg.mxu0
        %v6937 = vmul.f32 %v6923, 0.2
        %v6938 = vmul.f32 %v6926, 0.2
        %v6939 = vmul.f32 %v6931, 0.2
        %v6940 = vmul.f32 %v6934, 0.2
        %v6941 = vmax.f32 %v6923, %v6937
        %v6942 = vmax.f32 %v6926, %v6938
        %v6943 = vmax.f32 %v6931, %v6939
        %v6944 = vmax.f32 %v6934, %v6940
        %v6945 = vmul.f32 %v6941, %v5427
        %v6946 = vmul.f32 %v6942, %v5427
        %v6947 = vmul.f32 %v6943, %v5427
        %v6948 = vmul.f32 %v6944, %v5427
        %v6949 = vadd.f32 %v5429, %v6945
        %v6950 = vadd.f32 %v5430, %v6946
        %v6951 = vadd.f32 %v5431, %v6947
        %v6952 = vadd.f32 %v5432, %v6948
        %v6985 = vunpack.c.l.b16 %v831
        %v6986 = vunpack.c.h.b16 %v831
        %v6987 = vunpack.c.l.b16 %v832
        %v6988 = vunpack.c.h.b16 %v832
        %v6989 = vunpack.c.l.b16 %v833
        %v6990 = vunpack.c.h.b16 %v833
        %v6991 = vunpack.c.l.b16 %v834
        %v6992 = vunpack.c.h.b16 %v834
        %v6993 = vunpack.c.l.b16 %v835
        %v6994 = vunpack.c.h.b16 %v835
        %v6995 = vunpack.c.l.b16 %v836
        %v6996 = vunpack.c.h.b16 %v836
        %v6997 = vunpack.c.l.b16 %v837
        %v6998 = vunpack.c.h.b16 %v837
        %v6999 = vunpack.c.l.b16 %v838
        %v7000 = vunpack.c.h.b16 %v838
        %v7001 = vunpack.c.l.b16 %v839
        %v7002 = vunpack.c.h.b16 %v839
        %v7003 = vunpack.c.l.b16 %v840
        %v7004 = vunpack.c.h.b16 %v840
        %v7005 = vunpack.c.l.b16 %v841
        %v7006 = vunpack.c.h.b16 %v841
        %v7007 = vunpack.c.l.b16 %v842
        %v7008 = vunpack.c.h.b16 %v842
        %v7009 = vunpack.c.l.b16 %v843
        %v7010 = vunpack.c.h.b16 %v843
        %v7011 = vunpack.c.l.b16 %v844
        %v7012 = vunpack.c.h.b16 %v844
        %v7013 = vunpack.c.l.b16 %v845
        %v7014 = vunpack.c.h.b16 %v845
        %v7015 = vunpack.c.l.b16 %v846
        %v7016 = vunpack.c.h.b16 %v846
        %v7017 = vunpack.c.l.b16 %v847
        %v7018 = vunpack.c.h.b16 %v847
        %v7019 = vunpack.c.l.b16 %v848
        %v7020 = vunpack.c.h.b16 %v848
        %v7021 = vunpack.c.l.b16 %v849
        %v7022 = vunpack.c.h.b16 %v849
        %v7023 = vunpack.c.l.b16 %v850
        %v7024 = vunpack.c.h.b16 %v850
        %v7025 = vunpack.c.l.b16 %v851
        %v7026 = vunpack.c.h.b16 %v851
        %v7027 = vunpack.c.l.b16 %v852
        %v7028 = vunpack.c.h.b16 %v852
        %v7029 = vunpack.c.l.b16 %v853
        %v7030 = vunpack.c.h.b16 %v853
        %v7031 = vunpack.c.l.b16 %v854
        %v7032 = vunpack.c.h.b16 %v854
        %v7033 = vunpack.c.l.b16 %v855
        %v7034 = vunpack.c.h.b16 %v855
        %v7035 = vunpack.c.l.b16 %v856
        %v7036 = vunpack.c.h.b16 %v856
        %v7037 = vunpack.c.l.b16 %v857
        %v7038 = vunpack.c.h.b16 %v857
        %v7039 = vunpack.c.l.b16 %v858
        %v7040 = vunpack.c.h.b16 %v858
        %v7041 = vunpack.c.l.b16 %v859
        %v7042 = vunpack.c.h.b16 %v859
        %v7043 = vunpack.c.l.b16 %v860
        %v7044 = vunpack.c.h.b16 %v860
        %v7045 = vunpack.c.l.b16 %v861
        %v7046 = vunpack.c.h.b16 %v861
        %v7047 = vunpack.c.l.b16 %v862
        %v7048 = vunpack.c.h.b16 %v862
        %v7049 = vpack.c.b16 %v6989, %v6985
        %v7050 = vpack.c.b16 %v6990, %v6986
        %v7051 = vpack.c.b16 %v6991, %v6987
        %v7052 = vpack.c.b16 %v6992, %v6988
        %v7053 = vpack.c.b16 %v6997, %v6993
        %v7054 = vpack.c.b16 %v6998, %v6994
        %v7055 = vpack.c.b16 %v6999, %v6995
        %v7056 = vpack.c.b16 %v7000, %v6996
        %v7057 = vpack.c.b16 %v7005, %v7001
        %v7058 = vpack.c.b16 %v7006, %v7002
        %v7059 = vpack.c.b16 %v7007, %v7003
        %v7060 = vpack.c.b16 %v7008, %v7004
        %v7061 = vpack.c.b16 %v7013, %v7009
        %v7062 = vpack.c.b16 %v7014, %v7010
        %v7063 = vpack.c.b16 %v7015, %v7011
        %v7064 = vpack.c.b16 %v7016, %v7012
        %v7065 = vpack.c.b16 %v7021, %v7017
        %v7066 = vpack.c.b16 %v7022, %v7018
        %v7067 = vpack.c.b16 %v7023, %v7019
        %v7068 = vpack.c.b16 %v7024, %v7020
        %v7069 = vpack.c.b16 %v7029, %v7025
        %v7070 = vpack.c.b16 %v7030, %v7026
        %v7071 = vpack.c.b16 %v7031, %v7027
        %v7072 = vpack.c.b16 %v7032, %v7028
        %v7073 = vpack.c.b16 %v7037, %v7033
        %v7074 = vpack.c.b16 %v7038, %v7034
        %v7075 = vpack.c.b16 %v7039, %v7035
        %v7076 = vpack.c.b16 %v7040, %v7036
        %v7077 = vpack.c.b16 %v7045, %v7041
        %v7078 = vpack.c.b16 %v7046, %v7042
        %v7079 = vpack.c.b16 %v7047, %v7043
        %v7080 = vpack.c.b16 %v7048, %v7044
        %7113 = vmatprep.subr.bf16.mxu0 %v7050
        %7114 = vmatpush1.bf16.msra.mxu0 %v7049
        %7115 = vmatprep.subr.bf16.mxu0 %v7054
        %7116 = vmatpush1.bf16.msra.mxu0 %v7053
        %7117 = vmatprep.subr.bf16.mxu0 %v7058
        %7118 = vmatpush1.bf16.msra.mxu0 %v7057
        %7119 = vmatprep.subr.bf16.mxu0 %v7062
        %7120 = vmatpush1.bf16.msra.mxu0 %v7061
        %7121 = vmatprep.subr.bf16.mxu0 %v7066
        %7122 = vmatpush1.bf16.msra.mxu0 %v7065
        %7123 = vmatprep.subr.bf16.mxu0 %v7070
        %7124 = vmatpush1.bf16.msra.mxu0 %v7069
        %7125 = vmatprep.subr.bf16.mxu0 %v7074
        %7126 = vmatpush1.bf16.msra.mxu0 %v7073
        %7127 = vmatprep.subr.bf16.mxu0 %v7078
        %7128 = vmatpush1.bf16.msra.mxu0 %v7077
        %7129 = vmatprep.subr.bf16.mxu0 0
        %7130 = vmatpush1.bf16.msra.mxu0 0
        %7131 = vmatprep.subr.bf16.mxu0 0
        %7132 = vmatpush1.bf16.msra.mxu0 0
        %7133 = vmatprep.subr.bf16.mxu0 0
        %7134 = vmatpush1.bf16.msra.mxu0 0
        %7135 = vmatprep.subr.bf16.mxu0 0
        %7136 = vmatpush1.bf16.msra.mxu0 0
        %7137 = vmatprep.subr.bf16.mxu0 0
        %7138 = vmatpush1.bf16.msra.mxu0 0
        %7139 = vmatprep.subr.bf16.mxu0 0
        %7140 = vmatpush1.bf16.msra.mxu0 0
        %7141 = vmatprep.subr.bf16.mxu0 0
        %7142 = vmatpush1.bf16.msra.mxu0 0
        %7143 = vmatprep.subr.bf16.mxu0 0
        %7144 = vmatpush1.bf16.msra.mxu0 0
        %7145 = vmatprep.mubr.bf16.mxu0 0
        %7146 = vmatmul.mubr.bf16.gmra.mrb[0].mxu0 %v6600
        %v7147 = vpop.f32.mrb[0].mxu0
        %v7148 = vadd.f32 0.0, %v7147
        %v7149 = vpop.f32.mrb[0].mxu0
        %v7150 = vadd.f32 0.0, %v7149
        %v7151 = vpop.f32.mrb[0].mxu0
        %v7152 = vadd.f32 0.0, %v7151
        %v7153 = vpop.f32.mrb[0].mxu0
        %v7154 = vadd.f32 0.0, %v7153
        %7155 = vdwg.mxu0
        %7156 = vmatprep.subr.bf16.mxu0 %v7052
        %7157 = vmatpush1.bf16.msra.mxu0 %v7051
        %7158 = vmatprep.subr.bf16.mxu0 %v7056
        %7159 = vmatpush1.bf16.msra.mxu0 %v7055
        %7160 = vmatprep.subr.bf16.mxu0 %v7060
        %7161 = vmatpush1.bf16.msra.mxu0 %v7059
        %7162 = vmatprep.subr.bf16.mxu0 %v7064
        %7163 = vmatpush1.bf16.msra.mxu0 %v7063
        %7164 = vmatprep.subr.bf16.mxu0 %v7068
        %7165 = vmatpush1.bf16.msra.mxu0 %v7067
        %7166 = vmatprep.subr.bf16.mxu0 %v7072
        %7167 = vmatpush1.bf16.msra.mxu0 %v7071
        %7168 = vmatprep.subr.bf16.mxu0 %v7076
        %7169 = vmatpush1.bf16.msra.mxu0 %v7075
        %7170 = vmatprep.subr.bf16.mxu0 %v7080
        %7171 = vmatpush1.bf16.msra.mxu0 %v7079
        %7172 = vmatprep.subr.bf16.mxu0 0
        %7173 = vmatpush1.bf16.msra.mxu0 0
        %7174 = vmatprep.subr.bf16.mxu0 0
        %7175 = vmatpush1.bf16.msra.mxu0 0
        %7176 = vmatprep.subr.bf16.mxu0 0
        %7177 = vmatpush1.bf16.msra.mxu0 0
        %7178 = vmatprep.subr.bf16.mxu0 0
        %7179 = vmatpush1.bf16.msra.mxu0 0
        %7180 = vmatprep.subr.bf16.mxu0 0
        %7181 = vmatpush1.bf16.msra.mxu0 0
        %7182 = vmatprep.subr.bf16.mxu0 0
        %7183 = vmatpush1.bf16.msra.mxu0 0
        %7184 = vmatprep.subr.bf16.mxu0 0
        %7185 = vmatpush1.bf16.msra.mxu0 0
        %7186 = vmatprep.subr.bf16.mxu0 0
        %7187 = vmatpush1.bf16.msra.mxu0 0
        %7188 = vmatprep.mubr.bf16.mxu0 0
        %7189 = vmatmul.mubr.bf16.gmra.mrb[0].mxu0 %v6600
        %v7190 = vpop.f32.mrb[0].mxu0
        %v7191 = vadd.f32 0.0, %v7190
        %v7192 = vpop.f32.mrb[0].mxu0
        %v7193 = vadd.f32 0.0, %v7192
        %v7194 = vpop.f32.mrb[0].mxu0
        %v7195 = vadd.f32 0.0, %v7194
        %v7196 = vpop.f32.mrb[0].mxu0
        %v7197 = vadd.f32 0.0, %v7196
        %7198 = vdwg.mxu0
        %v7199 = vpack.c.bf16 %v7152, %v7148
        %v7200 = vpack.c.bf16 %v7154, %v7150
        %v7201 = vpack.c.bf16 %v7195, %v7191
        %v7202 = vpack.c.bf16 %v7197, %v7193
        %7204 = vset.pattern.permute.xlu0 0
        %7205 = vperm.xlu0 %7204, %v6588
        %v7206 = vpop.permute.xlu0 %7205
        %7209 = vset.pattern.permute.xlu0 0
        %7210 = vperm.xlu0 %7209, %v6589
        %v7211 = vpop.permute.xlu0 %7210
        %7214 = vset.pattern.permute.xlu0 0
        %7215 = vperm.xlu0 %7214, %v6590
        %v7216 = vpop.permute.xlu0 %7215
        %7219 = vset.pattern.permute.xlu0 0
        %7220 = vperm.xlu0 %7219, %v6591
        %v7221 = vpop.permute.xlu0 %7220
        %v7227 = vunpack.c.l.b16 %v6584
        %v7228 = vunpack.c.l.b16 %v6585
        %v7229 = vunpack.c.l.b16 %v6586
        %v7230 = vunpack.c.l.b16 %v6587
        %v7231 = vpack.c.b16 %v7228, %v7227
        %v7232 = vpack.c.b16 %v7230, %v7229
        %v7234 = vsel %vm6881, %v7231, 0
        %v7237 = vsel %vm6881, %v7232, 0
        %7239 = vmatprep.subr.bf16.mxu0 0
        %7240 = vmatpush1.bf16.msra.mxu0 %v7199
        %7241 = vmatprep.subr.bf16.mxu0 0
        %7242 = vmatpush1.bf16.msra.mxu0 %v7200
        %7243 = vmatprep.subr.bf16.mxu0 0
        %7244 = vmatpush1.bf16.msra.mxu0 %v7201
        %7245 = vmatprep.subr.bf16.mxu0 0
        %7246 = vmatpush1.bf16.msra.mxu0 %v7202
        %7247 = vmatprep.subr.bf16.mxu0 0
        %7248 = vmatpush1.bf16.msra.mxu0 0
        %7249 = vmatprep.subr.bf16.mxu0 0
        %7250 = vmatpush1.bf16.msra.mxu0 0
        %7251 = vmatprep.subr.bf16.mxu0 0
        %7252 = vmatpush1.bf16.msra.mxu0 0
        %7253 = vmatprep.subr.bf16.mxu0 0
        %7254 = vmatpush1.bf16.msra.mxu0 0
        %7255 = vmatprep.subr.bf16.mxu0 0
        %7256 = vmatpush1.bf16.msra.mxu0 0
        %7257 = vmatprep.subr.bf16.mxu0 0
        %7258 = vmatpush1.bf16.msra.mxu0 0
        %7259 = vmatprep.subr.bf16.mxu0 0
        %7260 = vmatpush1.bf16.msra.mxu0 0
        %7261 = vmatprep.subr.bf16.mxu0 0
        %7262 = vmatpush1.bf16.msra.mxu0 0
        %7263 = vmatprep.subr.bf16.mxu0 0
        %7264 = vmatpush1.bf16.msra.mxu0 0
        %7265 = vmatprep.subr.bf16.mxu0 0
        %7266 = vmatpush1.bf16.msra.mxu0 0
        %7267 = vmatprep.subr.bf16.mxu0 0
        %7268 = vmatpush1.bf16.msra.mxu0 0
        %7269 = vmatprep.subr.bf16.mxu0 0
        %7270 = vmatpush1.bf16.msra.mxu0 0
        %7271 = vmatprep.mubr.bf16.mxu0 0
        %7272 = vmatmul.mubr.bf16.gmra.mrb[0].mxu0 %v7234
        %v7273 = vpop.f32.mrb[0].mxu0
        %v7274 = vadd.f32 %v7206, %v7273
        %v7275 = vpop.f32.mrb[0].mxu0
        %v7276 = vpop.f32.mrb[0].mxu0
        %v7277 = vadd.f32 %v7211, %v7276
        %v7278 = vpop.f32.mrb[0].mxu0
        %7279 = vmatprep.mubr.bf16.mxu0 0
        %7280 = vmatmul.mubr.bf16.gmra.mrb[0].mxu0 %v7237
        %v7281 = vpop.f32.mrb[0].mxu0
        %v7282 = vadd.f32 %v7216, %v7281
        %v7283 = vpop.f32.mrb[0].mxu0
        %v7284 = vpop.f32.mrb[0].mxu0
        %v7285 = vadd.f32 %v7221, %v7284
        %v7286 = vpop.f32.mrb[0].mxu0
        %7287 = vdwg.mxu0
        %v7288 = vmul.f32 %v7274, 0.2
        %v7289 = vmul.f32 %v7277, 0.2
        %v7290 = vmul.f32 %v7282, 0.2
        %v7291 = vmul.f32 %v7285, 0.2
        %v7292 = vmax.f32 %v7274, %v7288
        %v7293 = vmax.f32 %v7277, %v7289
        %v7294 = vmax.f32 %v7282, %v7290
        %v7295 = vmax.f32 %v7285, %v7291
        %v7296 = vmul.f32 %v7292, %v5427
        %v7297 = vmul.f32 %v7293, %v5427
        %v7298 = vmul.f32 %v7294, %v5427
        %v7299 = vmul.f32 %v7295, %v5427
        %v7300 = vadd.f32 %v7296, %v6949
        %v7301 = vadd.f32 %v7297, %v6950
        %v7302 = vadd.f32 %v7298, %v6951
        %v7303 = vadd.f32 %v7299, %v6952
        %v7304 = vld [vmem:[%s22] sm:$0xff]
        %v7305 = vld [vmem:[%s22 + $0x8] sm:$0xf]
        %v7306 = vld [vmem:[%s22 + $0xc] sm:$0xff]
        %v7307 = vld [vmem:[%s22 + $0x14] sm:$0xf]
        %v7308 = vld [vmem:[%s22 + $0x18] sm:$0xff]
        %v7309 = vld [vmem:[%s22 + $0x20] sm:$0xf]
        %v7310 = vld [vmem:[%s22 + $0x24] sm:$0xff]
        %v7311 = vld [vmem:[%s22 + $0x2c] sm:$0xf]
        %v7312 = vld [vmem:[%s23] sm:$0xff]
        %v7313 = vld [vmem:[%s23 + $0x8] sm:$0xff]
        %v7314 = vld [vmem:[%s23 + $0x10] sm:$0xff]
        %v7315 = vld [vmem:[%s23 + $0x18] sm:$0xff]
        %v7316 = vpack.c.bf16 %v7301, %v7300
        %v7317 = vpack.c.bf16 %v7303, %v7302
        %7320 = vrot.lane.b32.xlu0 %v7316, 7
        %v7321 = vpop.permute.xlu0 %7320
        %7322 = vrot.lane.b32.xlu0 %v7317, 7
        %v7323 = vpop.permute.xlu0 %7322
        %7328 = vrot.lane.b32.xlu0 %v7316, 6
        %v7329 = vpop.permute.xlu0 %7328
        %7330 = vrot.lane.b32.xlu0 %v7317, 6
        %v7331 = vpop.permute.xlu0 %7330
        %7336 = vrot.lane.b32.xlu0 %v7316, 5
        %v7337 = vpop.permute.xlu0 %7336
        %7338 = vrot.lane.b32.xlu0 %v7317, 5
        %v7339 = vpop.permute.xlu0 %7338
        %7344 = vrot.lane.b32.xlu0 %v7316, 1
        %v7345 = vpop.permute.xlu0 %7344
        %7346 = vrot.lane.b32.xlu0 %v7317, 1
        %v7347 = vpop.permute.xlu0 %7346
        %7352 = vrot.lane.b32.xlu0 %v7316, 127
        %v7353 = vpop.permute.xlu0 %7352
        %7354 = vrot.lane.b32.xlu0 %v7317, 127
        %v7355 = vpop.permute.xlu0 %7354
        %7360 = vrot.lane.b32.xlu0 %v7316, 123
        %v7361 = vpop.permute.xlu0 %7360
        %7362 = vrot.lane.b32.xlu0 %v7317, 123
        %v7363 = vpop.permute.xlu0 %7362
        %7368 = vrot.lane.b32.xlu0 %v7316, 122
        %v7369 = vpop.permute.xlu0 %7368
        %7370 = vrot.lane.b32.xlu0 %v7317, 122
        %v7371 = vpop.permute.xlu0 %7370
        %7376 = vrot.lane.b32.xlu0 %v7316, 121
        %v7377 = vpop.permute.xlu0 %7376
        %7378 = vrot.lane.b32.xlu0 %v7317, 121
        %v7379 = vpop.permute.xlu0 %7378
        %7385 = vset.pattern.permute.xlu0 0
        %7386 = vperm.xlu0 %7385, %v7312
        %v7387 = vpop.permute.xlu0 %7386
        %7390 = vset.pattern.permute.xlu0 0
        %7391 = vperm.xlu0 %7390, %v7313
        %v7392 = vpop.permute.xlu0 %7391
        %7395 = vset.pattern.permute.xlu0 0
        %7396 = vperm.xlu0 %7395, %v7314
        %v7397 = vpop.permute.xlu0 %7396
        %7400 = vset.pattern.permute.xlu0 0
        %7401 = vperm.xlu0 %7400, %v7315
        %v7402 = vpop.permute.xlu0 %7401
        %v7412 = vunpack.c.l.b16 %v7304
        %v7413 = vunpack.c.h.b16 %v7304
        %v7414 = vunpack.c.l.b16 %v7305
        %v7415 = vunpack.c.l.b16 %v7306
        %v7416 = vunpack.c.h.b16 %v7306
        %v7417 = vunpack.c.l.b16 %v7307
        %v7418 = vunpack.c.l.b16 %v7308
        %v7419 = vunpack.c.h.b16 %v7308
        %v7420 = vunpack.c.l.b16 %v7309
        %v7421 = vunpack.c.l.b16 %v7310
        %v7422 = vunpack.c.h.b16 %v7310
        %v7423 = vunpack.c.l.b16 %v7311
        %v7424 = vpack.c.b16 %v7415, %v7412
        %v7425 = vpack.c.b16 %v7416, %v7413
        %v7426 = vpack.c.b16 %v7417, %v7414
        %v7427 = vpack.c.b16 %v7421, %v7418
        %v7428 = vpack.c.b16 %v7422, %v7419
        %v7429 = vpack.c.b16 %v7423, %v7420
        %v7435 = vsel %vm6094, %v7426, 0
        %v7438 = vsel %vm6094, %v7429, 0
        %7440 = vmatprep.subr.bf16.mxu0 0
        %7441 = vmatpush1.bf16.msra.mxu0 %v7321
        %7442 = vmatprep.subr.bf16.mxu0 0
        %7443 = vmatpush1.bf16.msra.mxu0 %v7323
        %7444 = vmatprep.subr.bf16.mxu0 0
        %7445 = vmatpush1.bf16.msra.mxu0 %v7329
        %7446 = vmatprep.subr.bf16.mxu0 0
        %7447 = vmatpush1.bf16.msra.mxu0 %v7331
        %7448 = vmatprep.subr.bf16.mxu0 0
        %7449 = vmatpush1.bf16.msra.mxu0 %v7337
        %7450 = vmatprep.subr.bf16.mxu0 0
        %7451 = vmatpush1.bf16.msra.mxu0 %v7339
        %7452 = vmatprep.subr.bf16.mxu0 0
        %7453 = vmatpush1.bf16.msra.mxu0 %v7345
        %7454 = vmatprep.subr.bf16.mxu0 0
        %7455 = vmatpush1.bf16.msra.mxu0 %v7347
        %7456 = vmatprep.subr.bf16.mxu0 0
        %7457 = vmatpush1.bf16.msra.mxu0 %v7316
        %7458 = vmatprep.subr.bf16.mxu0 0
        %7459 = vmatpush1.bf16.msra.mxu0 %v7317
        %7460 = vmatprep.subr.bf16.mxu0 0
        %7461 = vmatpush1.bf16.msra.mxu0 %v7353
        %7462 = vmatprep.subr.bf16.mxu0 0
        %7463 = vmatpush1.bf16.msra.mxu0 %v7355
        %7464 = vmatprep.subr.bf16.mxu0 0
        %7465 = vmatpush1.bf16.msra.mxu0 %v7361
        %7466 = vmatprep.subr.bf16.mxu0 0
        %7467 = vmatpush1.bf16.msra.mxu0 %v7363
        %7468 = vmatprep.subr.bf16.mxu0 0
        %7469 = vmatpush1.bf16.msra.mxu0 %v7369
        %7470 = vmatprep.subr.bf16.mxu0 0
        %7471 = vmatpush1.bf16.msra.mxu0 %v7371
        %7472 = vmatprep.mubr.bf16.mxu0 %v7425
        %7473 = vmatmul.mubr.bf16.gmra.mrb[0].mxu0 %v7424
        %v7474 = vpop.f32.mrb[0].mxu0
        %v7475 = vadd.f32 %v7387, %v7474
        %v7476 = vpop.f32.mrb[0].mxu0
        %v7477 = vpop.f32.mrb[0].mxu0
        %v7478 = vadd.f32 %v7392, %v7477
        %v7479 = vpop.f32.mrb[0].mxu0
        %7480 = vmatprep.mubr.bf16.mxu0 %v7428
        %7481 = vmatmul.mubr.bf16.gmra.mrb[0].mxu0 %v7427
        %v7482 = vpop.f32.mrb[0].mxu0
        %v7483 = vadd.f32 %v7397, %v7482
        %v7484 = vpop.f32.mrb[0].mxu0
        %v7485 = vpop.f32.mrb[0].mxu0
        %v7486 = vadd.f32 %v7402, %v7485
        %v7487 = vpop.f32.mrb[0].mxu0
        %7488 = vdwg.mxu0
        %7489 = vmatprep.subr.bf16.mxu0 0
        %7490 = vmatpush1.bf16.msra.mxu0 %v7377
        %7491 = vmatprep.subr.bf16.mxu0 0
        %7492 = vmatpush1.bf16.msra.mxu0 %v7379
        %7493 = vmatprep.subr.bf16.mxu0 0
        %7494 = vmatpush1.bf16.msra.mxu0 0
        %7495 = vmatprep.subr.bf16.mxu0 0
        %7496 = vmatpush1.bf16.msra.mxu0 0
        %7497 = vmatprep.subr.bf16.mxu0 0
        %7498 = vmatpush1.bf16.msra.mxu0 0
        %7499 = vmatprep.subr.bf16.mxu0 0
        %7500 = vmatpush1.bf16.msra.mxu0 0
        %7501 = vmatprep.subr.bf16.mxu0 0
        %7502 = vmatpush1.bf16.msra.mxu0 0
        %7503 = vmatprep.subr.bf16.mxu0 0
        %7504 = vmatpush1.bf16.msra.mxu0 0
        %7505 = vmatprep.subr.bf16.mxu0 0
        %7506 = vmatpush1.bf16.msra.mxu0 0
        %7507 = vmatprep.subr.bf16.mxu0 0
        %7508 = vmatpush1.bf16.msra.mxu0 0
        %7509 = vmatprep.subr.bf16.mxu0 0
        %7510 = vmatpush1.bf16.msra.mxu0 0
        %7511 = vmatprep.subr.bf16.mxu0 0
        %7512 = vmatpush1.bf16.msra.mxu0 0
        %7513 = vmatprep.subr.bf16.mxu0 0
        %7514 = vmatpush1.bf16.msra.mxu0 0
        %7515 = vmatprep.subr.bf16.mxu0 0
        %7516 = vmatpush1.bf16.msra.mxu0 0
        %7517 = vmatprep.subr.bf16.mxu0 0
        %7518 = vmatpush1.bf16.msra.mxu0 0
        %7519 = vmatprep.subr.bf16.mxu0 0
        %7520 = vmatpush1.bf16.msra.mxu0 0
        %7521 = vmatprep.mubr.bf16.mxu0 0
        %7522 = vmatmul.mubr.bf16.gmra.mrb[0].mxu0 %v7435
        %v7523 = vpop.f32.mrb[0].mxu0
        %v7524 = vadd.f32 %v7475, %v7523
        %v7525 = vpop.f32.mrb[0].mxu0
        %v7526 = vpop.f32.mrb[0].mxu0
        %v7527 = vadd.f32 %v7478, %v7526
        %v7528 = vpop.f32.mrb[0].mxu0
        %7529 = vmatprep.mubr.bf16.mxu0 0
        %7530 = vmatmul.mubr.bf16.gmra.mrb[0].mxu0 %v7438
        %v7531 = vpop.f32.mrb[0].mxu0
        %v7532 = vadd.f32 %v7483, %v7531
        %v7533 = vpop.f32.mrb[0].mxu0
        %v7534 = vpop.f32.mrb[0].mxu0
        %v7535 = vadd.f32 %v7486, %v7534
        %v7536 = vpop.f32.mrb[0].mxu0
        %7537 = vdwg.mxu0
        %7538 = vst [vmem:[%s725] sm:$0xff] %v7524
        %7539 = vst [vmem:[%s725 + $0x8] sm:$0xff] %v7527
        %7540 = vst [vmem:[%s725 + $0x10] sm:$0xff] %v7532
        %7541 = vst [vmem:[%s725 + $0x18] sm:$0xff] %v7535
        %s7542 = sand.u32 %s552, 1
        %s7543 = sand.u32 %s552, 1
        %s7544 = smul.addr %s7543, 32
        %s7545 = scalar_lea.vmem [#allocation2], %s7544
        // Predicated region
        $region117: #{_lambda_.1} parent=115 // pred_check
          %p7546 = pneg %p562
        $region118: #{_lambda_.1} parent=115 // pred_check_branch
          %7548 = sbr.rel (%p7546) target = $region120
        $region119: #{_lambda_.1} parent=115 // pred_region
          %s7549 = smul.addr %s35, 8
          %s7550 = scalar_lea.vmem %s24, %s7549
          // Predicated region
          $region121: #{_lambda_.1} parent=119 // pred_check
            _
          $region122: #{_lambda_.1} parent=119 // pred_check_branch
            %7552 = sbr.rel (0) target = $region124
          $region123: #{_lambda_.1} parent=119 // pred_region
            // Predicated region
            $region125: #{_lambda_.1} parent=123 // pred_check
              _
            $region126: #{_lambda_.1} parent=123 // pred_check_branch
              %7554 = sbr.rel (0) target = $region128
            $region127: #{_lambda_.1} parent=123 // pred_region
              // Predicated region
              $region140: #{_lambda_.1} parent=127 // pred_check
                _
              $region141: #{_lambda_.1} parent=127 // pred_check_branch
                %7575 = sbr.rel (0) target = $region143
              $region142: #{_lambda_.1} parent=127 // pred_region
                loop: start=0, step=1, limit=1
                $region144: #{_lambda_.1} parent=142 // loop_pre_header
                  _
                $region145: #{_lambda_.1} parent=142 // loop_header
                  %s7577 = sphi 0, %s7581
                  %p7578 = scmp.ge.s32.totalorder %s7577, 1
                  %s7582 = sphi %s7545, %s7545
                  %s7583 = sphi %s7550, %s7550
                $region146: #{_lambda_.1} parent=142 // loop_header_branch
                  %7580 = sbr.rel (%p7578) target = $region150
                $region147: #{_lambda_.1} parent=142 // loop_body
                  %v7584 = vld [vmem:[%s7582] sm:$0xff]
                  %7585 = vst [vmem:[%s7583] sm:$0xff] %v7584
                  %v7586 = vld [vmem:[%s7582 + $0x8] sm:$0xff]
                  %7587 = vst [vmem:[%s7583 + $0x10] sm:$0xff] %v7586
                  %v7588 = vld [vmem:[%s7582 + $0x10] sm:$0xff]
                  %7589 = vst [vmem:[%s7583 + $0x20] sm:$0xff] %v7588
                  %v7590 = vld [vmem:[%s7582 + $0x18] sm:$0xff]
                  %7591 = vst [vmem:[%s7583 + $0x30] sm:$0xff] %v7590
                $region148: #{_lambda_.1} parent=142 // loop_footer
                  %s7581 = sadd.s32 1, %s7577
                $region149: #{_lambda_.1} parent=142 // loop_footer_branch
                  %7576 = sbr.rel target = $region145
                $region150: #{_lambda_.1} parent=142 // loop_exit
                  _
              $region143: #{_lambda_.1} parent=127 // pred_fallthru
                _
              // Predicated region
              $region151: #{_lambda_.1} parent=127 // pred_check
                _
              $region152: #{_lambda_.1} parent=127 // pred_check_branch
                %7593 = sbr.rel target = $region154
              $region153: #{_lambda_.1} parent=127 // pred_region
                _
              $region154: #{_lambda_.1} parent=127 // pred_fallthru
                _
            $region128: #{_lambda_.1} parent=123 // pred_fallthru
              _
            // Predicated region
            $region129: #{_lambda_.1} parent=123 // pred_check
              _
            $region130: #{_lambda_.1} parent=123 // pred_check_branch
              %7556 = sbr.rel target = $region132
            $region131: #{_lambda_.1} parent=123 // pred_region
              loop: start=0, step=1, limit=1
              $region133: #{_lambda_.1} parent=131 // loop_pre_header
                _
              $region134: #{_lambda_.1} parent=131 // loop_header
                %s7559 = sphi 0, %s7563
                %p7560 = scmp.ge.s32.totalorder %s7559, 1
                %s7564 = sphi %s7545, %s7545
                %s7565 = sphi %s7550, %s7550
              $region135: #{_lambda_.1} parent=131 // loop_header_branch
                %7562 = sbr.rel (%p7560) target = $region139
              $region136: #{_lambda_.1} parent=131 // loop_body
                %v7566 = vld [vmem:[%s7564] sm:$0xff]
                %7567 = vst [vmem:[%s7565] sm:$0xff] %v7566
                %v7568 = vld [vmem:[%s7564 + $0x8] sm:$0xff]
                %7569 = vst [vmem:[%s7565 + $0x10] sm:$0xff] %v7568
                %v7570 = vld [vmem:[%s7564 + $0x10] sm:$0xff]
                %7571 = vst [vmem:[%s7565 + $0x20] sm:$0xff] %v7570
                %v7572 = vld [vmem:[%s7564 + $0x18] sm:$0xff]
                %7573 = vst [vmem:[%s7565 + $0x30] sm:$0xff] %v7572
              $region137: #{_lambda_.1} parent=131 // loop_footer
                %s7563 = sadd.s32 1, %s7559
              $region138: #{_lambda_.1} parent=131 // loop_footer_branch
                %7558 = sbr.rel target = $region134
              $region139: #{_lambda_.1} parent=131 // loop_exit
                _
            $region132: #{_lambda_.1} parent=123 // pred_fallthru
              _
          $region124: #{_lambda_.1} parent=119 // pred_fallthru
            _
          %7594 = vnop
        $region120: #{_lambda_.1} parent=115 // pred_fallthru
          _
      $region116: #{_lambda_.1} parent=5 // pred_fallthru
        _
      %p7595 = scmp.le.s32.totalorder 2, %s30
      // Predicated region
      $region155: #{_lambda_.1} parent=5 // pred_check
        %p7596 = pneg %p7595
      $region156: #{_lambda_.1} parent=5 // pred_check_branch
        %7598 = sbr.rel (%p7596) target = $region158
      $region157: #{_lambda_.1} parent=5 // pred_region
        %s7599 = ssub.s32 %s30, 2
        // Predicated region
        $region159: #{_lambda_.1} parent=157 // pred_check
          %p7600 = pneg %p568
        $region160: #{_lambda_.1} parent=157 // pred_check_branch
          %7602 = sbr.rel (%p7600) target = $region162
        $region161: #{_lambda_.1} parent=157 // pred_region
          %s7603 = sand.u32 %s553, 1
          %s7604 = sand.u32 %s553, 1
          %s7605 = smul.addr %s7604, 32
          %s7606 = scalar_lea.vmem [#allocation2], %s7605
        $region162: #{_lambda_.1} parent=157 // pred_fallthru
          _
      $region158: #{_lambda_.1} parent=5 // pred_fallthru
        _
    $region6: #{_lambda_.1} parent=1 // loop_footer
      %s34 = sadd.s32 1, %s30
    $region7: #{_lambda_.1} parent=1 // loop_footer_branch
      %29 = sbr.rel target = $region3
    $region8: #{_lambda_.1} parent=1 // loop_exit
      _

</llo_original>
